<compile_context>
chip_gen: v7x
topology: tpu7x:2x2x1
jax: 0.10.0
libtpu: 0.0.40
codegen_flags: <defaults>
</compile_context>

<pallas_src>
import jax
import jax.numpy as jnp
from jax import lax
from jax.experimental import pallas as pl
from jax.experimental.pallas import tpu as pltpu

BATCH_SIZE = 128
LASER_HIDDEN_SIZE = 1024   # D
LSTM_HIDDEN_SIZE = 64      # H
TIME_TILE = 16             # Tt (sublane-aligned time chunk)


def _make_kernel(Tt, Tp, H):
    """Fused (bf16) input projection + merged bidirectional recurrence kernel."""

    def kernel(len_ref, seqf_ref, seqb_ref, wihf_ref, wihb_ref,
               whh_ref, bias_ref, wlin_ref, blin_ref,
               out_ref, h_ref, c_ref, gx_ref):
        Bb = seqf_ref.shape[0]
        D = seqf_ref.shape[2]
        k = pl.program_id(1)                      # time-chunk index (axis 0 = batch block)

        # ---- init the grid-carried state on the first chunk of each batch block ----
        @pl.when(k == 0)
        def _():
            h_ref[...] = jnp.zeros_like(h_ref)
            c_ref[...] = jnp.zeros_like(c_ref)

        # ---- hoisted input projection: two big bf16 MXU matmuls per chunk ----
        xf = seqf_ref[...].reshape(Bb * Tt, D)    # bf16, forward-order chunk rows
        xb = seqb_ref[...].reshape(Bb * Tt, D)    # bf16, reverse-order chunk rows
        pf3 = jnp.dot(xf, wihf_ref[...],
                      preferred_element_type=jnp.float32).reshape(Bb, Tt, 4 * H)
        pb3 = jnp.dot(xb, wihb_ref[...],
                      preferred_element_type=jnp.float32).reshape(Bb, Tt, 4 * H)

        # ---- hoist interleave + in-chunk time reversal + bias off the serial chain ----
        # gate layout per step: [i_f i_b | f_f f_b | o_f o_b | g_f g_b] (128-lane aligned)
        bias = bias_ref[...]                      # (1, 8H) f32
        for s in range(Tt):
            pf_s = pf3[:, s, :]                   # fwd gates of x[k*Tt + s]
            pb_s = pb3[:, Tt - 1 - s, :]          # bwd gates of x[Tp-1-(k*Tt+s)]
            gx_ref[s] = jnp.concatenate(
                [pf_s[:, 0 * H:1 * H], pb_s[:, 0 * H:1 * H],
                 pf_s[:, 1 * H:2 * H], pb_s[:, 1 * H:2 * H],
                 pf_s[:, 2 * H:3 * H], pb_s[:, 2 * H:3 * H],
                 pf_s[:, 3 * H:4 * H], pb_s[:, 3 * H:4 * H]], axis=1) + bias

        whh = whh_ref[...]                        # (2H, 8H) bf16, block-diag interleaved
        lengths = len_ref[...]                    # (Bb, 1) int32
        col = lax.broadcasted_iota(jnp.int32, (1, 2 * H), 1)

        h = h_ref[...]                            # (Bb, 2H) f32 = [h_fwd | h_bwd]
        c = c_ref[...]

        # ---- merged fwd/bwd recurrence over the Tt local steps (fully unrolled) ----
        for s in range(Tt):
            tg = k * Tt + s                       # global forward position
            tb = Tp - 1 - tg                      # global backward position

            gates = gx_ref[s] + jnp.dot(h.astype(jnp.bfloat16), whh,
                                        preferred_element_type=jnp.float32)
            # per-gate 128-lane strips (keeps the live set small; f32 elementwise)
            i_g = jax.nn.sigmoid(gates[:, 0 * H:2 * H])
            f_g = jax.nn.sigmoid(gates[:, 2 * H:4 * H])
            o_g = jax.nn.sigmoid(gates[:, 4 * H:6 * H])
            g_g = jnp.tanh(gates[:, 6 * H:8 * H])

            c_new = f_g * c + i_g * g_g
            h_new = o_g * jnp.tanh(c_new)

            # packed-sequence mask: fwd columns use tg, bwd columns use tb
            t_col = jnp.where(col < H, tg, tb)    # (1, 2H)
            valid = t_col < lengths               # (Bb, 2H)
            h = jnp.where(valid, h_new, h)
            c = jnp.where(valid, c_new, c)

        h_ref[...] = h
        c_ref[...] = c

        # ---- linear head only on the last time chunk: VPU multiply + lane reduction ----
        @pl.when(k == pl.num_programs(1) - 1)
        def _():
            out_ref[...] = (jnp.sum(h * wlin_ref[...], axis=1, keepdims=True)
                            + blin_ref[...])

    return kernel


def prepare_params(p):
    """Convert PyTorch-layout LSTM/Linear params into the kernel's packed layout."""
    H = LSTM_HIDDEN_SIZE

    def reorder_cols(w):   # (X, 4H) cols in PyTorch order (i, f, g, o) -> (i, f, o, g)
        return jnp.concatenate(
            [w[:, 0:H], w[:, H:2 * H], w[:, 3 * H:4 * H], w[:, 2 * H:3 * H]], axis=1)

    wih_f = reorder_cols(p["w_ih_f"].T.astype(jnp.float32))            # (D, 4H)
    wih_b = reorder_cols(p["w_ih_b"].T.astype(jnp.float32))            # (D, 4H)
    whh_f = reorder_cols(p["w_hh_f"].T.astype(jnp.float32))            # (H, 4H)
    whh_b = reorder_cols(p["w_hh_b"].T.astype(jnp.float32))            # (H, 4H)
    b_f = reorder_cols((p["b_ih_f"] + p["b_hh_f"]).reshape(1, 4 * H).astype(jnp.float32))
    b_b = reorder_cols((p["b_ih_b"] + p["b_hh_b"]).reshape(1, 4 * H).astype(jnp.float32))

    # block-diagonal recurrent weight / bias in interleaved column layout
    whh_c = jnp.zeros((2 * H, 8 * H), jnp.float32)
    bias_c = jnp.zeros((1, 8 * H), jnp.float32)
    for gi in range(4):
        c0 = gi * 2 * H
        whh_c = whh_c.at[0:H, c0:c0 + H].set(whh_f[:, gi * H:(gi + 1) * H])
        whh_c = whh_c.at[H:2 * H, c0 + H:c0 + 2 * H].set(whh_b[:, gi * H:(gi + 1) * H])
        bias_c = bias_c.at[:, c0:c0 + H].set(b_f[:, gi * H:(gi + 1) * H])
        bias_c = bias_c.at[:, c0 + H:c0 + 2 * H].set(b_b[:, gi * H:(gi + 1) * H])

    return dict(
        wih_f=wih_f.astype(jnp.bfloat16),        # bf16 matmul operands, f32 accumulation
        wih_b=wih_b.astype(jnp.bfloat16),
        whh_c=whh_c.astype(jnp.bfloat16),
        bias_c=bias_c,                            # bias / head stay f32
        wlin=p["w_lin"].astype(jnp.float32).reshape(1, 2 * H),
        blin=p["b_lin"].astype(jnp.float32).reshape(1, 1))


def laser_predictor_estimator(seq_btd, seq_lengths, kparams, *,
                              time_tile=TIME_TILE, num_batch_blocks=None):
    """seq_btd: (B, T, D) batch-first padded input; returns (B, 1)."""
    B, T, D = seq_btd.shape
    H = LSTM_HIDDEN_SIZE
    assert B <= BATCH_SIZE, "module semantics require batch <= BATCH_SIZE"
    assert D == LASER_HIDDEN_SIZE

    Tt = time_tile
    Tp = ((T + Tt - 1) // Tt) * Tt                 # pad T to a multiple of the time tile
    Bp = ((B + 7) // 8) * 8                        # pad batch to a sublane multiple
    if num_batch_blocks is None:
        # 2 batch blocks -> megacore-parallel on v7x; neutral (sequential) on v5e/v6e.
        num_batch_blocks = 2 if (Bp >= 16 and Bp % 16 == 0) else 1
    nb = num_batch_blocks
    Bb = Bp // nb
    assert Bp % nb == 0 and (nb == 1 or Bb % 8 == 0)

    seq = seq_btd.astype(jnp.bfloat16)             # bf16 stream: halves HBM/VMEM traffic
    if Tp != T or Bp != B:
        seq = jnp.pad(seq, ((0, Bp - B), (0, Tp - T), (0, 0)))
    len2d = jnp.pad(seq_lengths.astype(jnp.int32), (0, Bp - B)).reshape(Bp, 1)

    n_chunks = Tp // Tt
    kernel = _make_kernel(Tt, Tp, H)
    const = lambda b, k: (0, 0)

    grid_spec = pltpu.PrefetchScalarGridSpec(
        num_scalar_prefetch=0,
        grid=(nb, n_chunks),
        in_specs=[
            pl.BlockSpec((Bb, 1), lambda b, k: (b, 0)),                        # lengths
            pl.BlockSpec((Bb, Tt, D), lambda b, k: (b, k, 0)),                 # seq, fwd order
            pl.BlockSpec((Bb, Tt, D), lambda b, k: (b, n_chunks - 1 - k, 0)),  # seq, rev order
            pl.BlockSpec((D, 4 * H), const),                                   # W_ih fwd (bf16)
            pl.BlockSpec((D, 4 * H), const),                                   # W_ih bwd (bf16)
            pl.BlockSpec((2 * H, 8 * H), const),                               # W_hh (bf16)
            pl.BlockSpec((1, 8 * H), const),                                   # bias (f32)
            pl.BlockSpec((1, 2 * H), const),                                   # linear weight
            pl.BlockSpec((1, 1), const),                                       # linear bias
        ],
        out_specs=pl.BlockSpec((Bb, 1), lambda b, k: (b, 0)),
        scratch_shapes=[pltpu.VMEM((Bb, 2 * H), jnp.float32),                  # h state
                        pltpu.VMEM((Bb, 2 * H), jnp.float32),                  # c state
                        pltpu.VMEM((Tt, Bb, 8 * H), jnp.float32)],             # hoisted gates
    )

    out = pl.pallas_call(
        kernel,
        out_shape=jax.ShapeDtypeStruct((Bp, 1), jnp.float32),
        grid_spec=grid_spec,
        compiler_params=pltpu.CompilerParams(
            dimension_semantics=("parallel", "arbitrary"),
            vmem_limit_bytes=48 * 1024 * 1024),
    )(len2d, seq, seq,
      kparams["wih_f"], kparams["wih_b"], kparams["whh_c"], kparams["bias_c"],
      kparams["wlin"], kparams["blin"])
    return out[:B]


def reference_forward(seq, lengths, p):
    """Pure-JAX f32 reference mirroring the PyTorch forward (PyTorch-layout params)."""
    B, T, D = seq.shape
    H = LSTM_HIDDEN_SIZE

    def direction(w_ih, w_hh, b, reverse):
        h = c = jnp.zeros((B, H), jnp.float32)
        order = range(T - 1, -1, -1) if reverse else range(T)
        for t in order:
            g = seq[:, t] @ w_ih.T + h @ w_hh.T + b
            i = jax.nn.sigmoid(g[:, :H]); f = jax.nn.sigmoid(g[:, H:2 * H])
            gg = jnp.tanh(g[:, 2 * H:3 * H]); o = jax.nn.sigmoid(g[:, 3 * H:])
            c_new = f * c + i * gg
            h_new = o * jnp.tanh(c_new)
            m = (t < lengths)[:, None]
            h = jnp.where(m, h_new, h); c = jnp.where(m, c_new, c)
        return h

    h_f = direction(p["w_ih_f"], p["w_hh_f"], p["b_ih_f"] + p["b_hh_f"], False)
    h_b = direction(p["w_ih_b"], p["w_hh_b"], p["b_ih_b"] + p["b_hh_b"], True)
    summary = jnp.concatenate([h_f, h_b], axis=1)
    return summary @ p["w_lin"].T + p["b_lin"]


if __name__ == "__main__":
    D, H = LASER_HIDDEN_SIZE, LSTM_HIDDEN_SIZE

    key = jax.random.PRNGKey(0)
    ks = jax.random.split(key, 14)
    k_lstm = 1.0 / jnp.sqrt(jnp.float32(H))
    k_lin = 1.0 / jnp.sqrt(jnp.float32(2 * H))

    def u(k, shape, s):
        return jax.random.uniform(k, shape, jnp.float32, -s, s)

    # PyTorch-layout parameters (LSTM gate order i, f, g, o along the first axis)
    params = {
        "w_ih_f": u(ks[0], (4 * H, D), k_lstm), "w_hh_f": u(ks[1], (4 * H, H), k_lstm),
        "b_ih_f": u(ks[2], (4 * H,), k_lstm),   "b_hh_f": u(ks[3], (4 * H,), k_lstm),
        "w_ih_b": u(ks[4], (4 * H, D), k_lstm), "w_hh_b": u(ks[5], (4 * H, H), k_lstm),
        "b_ih_b": u(ks[6], (4 * H,), k_lstm),   "b_hh_b": u(ks[7], (4 * H,), k_lstm),
        "w_lin":  u(ks[8], (1, 2 * H), k_lin),  "b_lin":  u(ks[9], (1,), k_lin),
    }
    kparams = prepare_params(params)

    # bf16 inputs + f32 accumulation -> compare with a slightly relaxed tolerance.
    ATOL = RTOL = 3e-2

    # --- test 1: small batch, single time chunk, single batch block ---
    B1, T1 = 4, 8
    seq1 = jax.random.normal(ks[10], (B1, T1, D), jnp.float32)
    len1 = jnp.array([8, 5, 3, 6], jnp.int32)
    out1 = laser_predictor_estimator(seq1, len1, kparams)
    jax.block_until_ready(out1)
    ref1 = reference_forward(seq1, len1, params)
    assert out1.shape == (B1, 1), out1.shape
    assert jnp.allclose(out1, ref1, atol=ATOL, rtol=RTOL), (out1, ref1)

    # --- test 2: multi-chunk state carry + two batch blocks (megacore path on v7x) ---
    B2, T2 = 16, 20
    seq2 = jax.random.normal(ks[11], (B2, T2, D), jnp.float32)
    len2 = jax.random.randint(ks[12], (B2,), 1, T2 + 1).astype(jnp.int32)
    out2 = laser_predictor_estimator(seq2, len2, kparams)
    jax.block_until_ready(out2)
    ref2 = reference_forward(seq2, len2, params)
    assert out2.shape == (B2, 1), out2.shape
    assert jnp.allclose(out2, ref2, atol=ATOL, rtol=RTOL), (out2, ref2)

    print("KERNEL_OK")
</pallas_src>

<mosaic_0001>
module attributes {stable_mosaic.version = 11 : i64} {
  func.func @kernel(%arg0: i32, %arg1: i32, %arg2: memref<8x1xi32, #tpu.memory_space<vmem>>, %arg3: memref<8x16x1024xbf16, #tpu.memory_space<vmem>>, %arg4: memref<8x16x1024xbf16, #tpu.memory_space<vmem>>, %arg5: memref<1024x256xbf16, #tpu.memory_space<vmem>>, %arg6: memref<1024x256xbf16, #tpu.memory_space<vmem>>, %arg7: memref<128x512xbf16, #tpu.memory_space<vmem>>, %arg8: memref<1x512xf32, #tpu.memory_space<vmem>>, %arg9: memref<1x128xf32, #tpu.memory_space<vmem>>, %arg10: memref<1x1xf32, #tpu.memory_space<vmem>>, %arg11: memref<8x1xf32, #tpu.memory_space<vmem>>, %arg12: memref<8x128xf32, #tpu.memory_space<vmem>>, %arg13: memref<8x128xf32, #tpu.memory_space<vmem>>, %arg14: memref<16x8x512xf32, #tpu.memory_space<vmem>>) attributes {dimension_semantics = [#tpu.dimension_semantics<parallel>, #tpu.dimension_semantics<arbitrary>], iteration_bounds = array<i64: 1, 1>, scalar_prefetch = 0 : i64, scratch_operands = 3 : i64, tpu.core_type = #tpu.core_type<tc>, window_params = [{transform_indices = @transform_0, window_bounds = array<i64: 8, 1>}, {transform_indices = @transform_1, window_bounds = array<i64: 8, 16, 1024>}, {transform_indices = @transform_2, window_bounds = array<i64: 8, 16, 1024>}, {pipeline_mode = #tpu.pipeline_mode<synchronous>, transform_indices = @transform_3, window_bounds = array<i64: 1024, 256>}, {pipeline_mode = #tpu.pipeline_mode<synchronous>, transform_indices = @transform_4, window_bounds = array<i64: 1024, 256>}, {pipeline_mode = #tpu.pipeline_mode<synchronous>, transform_indices = @transform_5, window_bounds = array<i64: 128, 512>}, {pipeline_mode = #tpu.pipeline_mode<synchronous>, transform_indices = @transform_6, window_bounds = array<i64: 1, 512>}, {pipeline_mode = #tpu.pipeline_mode<synchronous>, transform_indices = @transform_7, window_bounds = array<i64: 1, 128>}, {pipeline_mode = #tpu.pipeline_mode<synchronous>, transform_indices = @transform_8, window_bounds = array<i64: 1, 1>}, {transform_indices = @transform_9, window_bounds = array<i64: 8, 1>}]} {
    %c0_i32 = arith.constant 0 : i32
    %0 = arith.cmpi eq, %arg1, %c0_i32 : i32
    %1 = arith.extui %0 : i1 to i32
    %c0_i32_0 = arith.constant 0 : i32
    %2 = arith.cmpi ne, %1, %c0_i32_0 : i32
    scf.if %2 {
      %cst_219 = arith.constant 0.000000e+00 : f32
      %1000 = vector.broadcast %cst_219 : f32 to vector<8x128xf32>
      %c0_220 = arith.constant 0 : index
      %c0_221 = arith.constant 0 : index
      %1001 = vector.load %arg12[%c0_220, %c0_221] : memref<8x128xf32, #tpu.memory_space<vmem>>, vector<8x128xf32>
      tpu.vector_store %arg12[%c0_220, %c0_221], %1000 {strides = array<i32>} : memref<8x128xf32, #tpu.memory_space<vmem>>, vector<8x128xf32>,
      %cst_222 = arith.constant 0.000000e+00 : f32
      %1002 = vector.broadcast %cst_222 : f32 to vector<8x128xf32>
      %c0_223 = arith.constant 0 : index
      %c0_224 = arith.constant 0 : index
      %1003 = vector.load %arg13[%c0_223, %c0_224] : memref<8x128xf32, #tpu.memory_space<vmem>>, vector<8x128xf32>
      tpu.vector_store %arg13[%c0_223, %c0_224], %1002 {strides = array<i32>} : memref<8x128xf32, #tpu.memory_space<vmem>>, vector<8x128xf32>,
    } else {
    }
    %c0 = arith.constant 0 : index
    %c0_1 = arith.constant 0 : index
    %c0_2 = arith.constant 0 : index
    %3 = vector.load %arg3[%c0, %c0_1, %c0_2] : memref<8x16x1024xbf16, #tpu.memory_space<vmem>>, vector<8x16x1024xbf16>
    %4 = vector.shape_cast %3 : vector<8x16x1024xbf16> to vector<128x1024xbf16>
    %c0_3 = arith.constant 0 : index
    %c0_4 = arith.constant 0 : index
    %c0_5 = arith.constant 0 : index
    %5 = vector.load %arg4[%c0_3, %c0_4, %c0_5] : memref<8x16x1024xbf16, #tpu.memory_space<vmem>>, vector<8x16x1024xbf16>
    %6 = vector.shape_cast %5 : vector<8x16x1024xbf16> to vector<128x1024xbf16>
    %c0_6 = arith.constant 0 : index
    %c0_7 = arith.constant 0 : index
    %7 = vector.load %arg5[%c0_6, %c0_7] : memref<1024x256xbf16, #tpu.memory_space<vmem>>, vector<1024x256xbf16>
    %cst = arith.constant dense<0.000000e+00> : vector<128x256xf32>
    %8 = tpu.matmul %4, %7, %cst {dimension_numbers = #tpu.dot_dimension_numbers<[1], [0], [0], [1], [0, 0, 1, 1], [], []>} : vector<128x1024xbf16>, vector<1024x256xbf16>, vector<128x256xf32> -> vector<128x256xf32>
    %9 = vector.shape_cast %8 : vector<128x256xf32> to vector<8x16x256xf32>
    %c0_8 = arith.constant 0 : index
    %c0_9 = arith.constant 0 : index
    %10 = vector.load %arg6[%c0_8, %c0_9] : memref<1024x256xbf16, #tpu.memory_space<vmem>>, vector<1024x256xbf16>
    %cst_10 = arith.constant dense<0.000000e+00> : vector<128x256xf32>
    %11 = tpu.matmul %6, %10, %cst_10 {dimension_numbers = #tpu.dot_dimension_numbers<[1], [0], [0], [1], [0, 0, 1, 1], [], []>} : vector<128x1024xbf16>, vector<1024x256xbf16>, vector<128x256xf32> -> vector<128x256xf32>
    %12 = vector.shape_cast %11 : vector<128x256xf32> to vector<8x16x256xf32>
    %c0_11 = arith.constant 0 : index
    %c0_12 = arith.constant 0 : index
    %13 = vector.load %arg8[%c0_11, %c0_12] : memref<1x512xf32, #tpu.memory_space<vmem>>, vector<1x512xf32>
    %14 = vector.extract_strided_slice %9 {offsets = [0, 0, 0], sizes = [8, 1, 256], strides = [1, 1, 1]} : vector<8x16x256xf32> to vector<8x1x256xf32>
    %15 = vector.shape_cast %14 : vector<8x1x256xf32> to vector<8x256xf32>
    %16 = vector.extract_strided_slice %12 {offsets = [0, 15, 0], sizes = [8, 1, 256], strides = [1, 1, 1]} : vector<8x16x256xf32> to vector<8x1x256xf32>
    %17 = vector.shape_cast %16 : vector<8x1x256xf32> to vector<8x256xf32>
    %18 = vector.extract_strided_slice %15 {offsets = [0, 0], sizes = [8, 64], strides = [1, 1]} : vector<8x256xf32> to vector<8x64xf32>
    %19 = vector.extract_strided_slice %17 {offsets = [0, 0], sizes = [8, 64], strides = [1, 1]} : vector<8x256xf32> to vector<8x64xf32>
    %20 = vector.extract_strided_slice %15 {offsets = [0, 64], sizes = [8, 64], strides = [1, 1]} : vector<8x256xf32> to vector<8x64xf32>
    %21 = vector.extract_strided_slice %17 {offsets = [0, 64], sizes = [8, 64], strides = [1, 1]} : vector<8x256xf32> to vector<8x64xf32>
    %22 = vector.extract_strided_slice %15 {offsets = [0, 128], sizes = [8, 64], strides = [1, 1]} : vector<8x256xf32> to vector<8x64xf32>
    %23 = vector.extract_strided_slice %17 {offsets = [0, 128], sizes = [8, 64], strides = [1, 1]} : vector<8x256xf32> to vector<8x64xf32>
    %24 = vector.extract_strided_slice %15 {offsets = [0, 192], sizes = [8, 64], strides = [1, 1]} : vector<8x256xf32> to vector<8x64xf32>
    %25 = vector.extract_strided_slice %17 {offsets = [0, 192], sizes = [8, 64], strides = [1, 1]} : vector<8x256xf32> to vector<8x64xf32>
    %26 = tpu.concatenate %18, %19, %20, %21, %22, %23, %24, %25 in 1 : vector<8x64xf32>, vector<8x64xf32>, vector<8x64xf32>, vector<8x64xf32>, vector<8x64xf32>, vector<8x64xf32>, vector<8x64xf32>, vector<8x64xf32> -> vector<8x512xf32>
    %27 = vector.broadcast %13 : vector<1x512xf32> to vector<8x512xf32>
    %28 = arith.addf %26, %27 : vector<8x512xf32>
    %c0_13 = arith.constant 0 : index
    %c0_14 = arith.constant 0 : index
    %c0_15 = arith.constant 0 : index
    %29 = vector.load %arg14[%c0_13, %c0_14, %c0_15] : memref<16x8x512xf32, #tpu.memory_space<vmem>>, vector<1x8x512xf32>
    %30 = vector.shape_cast %29 : vector<1x8x512xf32> to vector<8x512xf32>
    %31 = vector.shape_cast %28 : vector<8x512xf32> to vector<1x8x512xf32>
    tpu.vector_store %arg14[%c0_13, %c0_14, %c0_15], %31 {strides = array<i32>} : memref<16x8x512xf32, #tpu.memory_space<vmem>>, vector<1x8x512xf32>,
    %32 = vector.extract_strided_slice %9 {offsets = [0, 1, 0], sizes = [8, 1, 256], strides = [1, 1, 1]} : vector<8x16x256xf32> to vector<8x1x256xf32>
    %33 = vector.shape_cast %32 : vector<8x1x256xf32> to vector<8x256xf32>
    %34 = vector.extract_strided_slice %12 {offsets = [0, 14, 0], sizes = [8, 1, 256], strides = [1, 1, 1]} : vector<8x16x256xf32> to vector<8x1x256xf32>
    %35 = vector.shape_cast %34 : vector<8x1x256xf32> to vector<8x256xf32>
    %36 = vector.extract_strided_slice %33 {offsets = [0, 0], sizes = [8, 64], strides = [1, 1]} : vector<8x256xf32> to vector<8x64xf32>
    %37 = vector.extract_strided_slice %35 {offsets = [0, 0], sizes = [8, 64], strides = [1, 1]} : vector<8x256xf32> to vector<8x64xf32>
    %38 = vector.extract_strided_slice %33 {offsets = [0, 64], sizes = [8, 64], strides = [1, 1]} : vector<8x256xf32> to vector<8x64xf32>
    %39 = vector.extract_strided_slice %35 {offsets = [0, 64], sizes = [8, 64], strides = [1, 1]} : vector<8x256xf32> to vector<8x64xf32>
    %40 = vector.extract_strided_slice %33 {offsets = [0, 128], sizes = [8, 64], strides = [1, 1]} : vector<8x256xf32> to vector<8x64xf32>
    %41 = vector.extract_strided_slice %35 {offsets = [0, 128], sizes = [8, 64], strides = [1, 1]} : vector<8x256xf32> to vector<8x64xf32>
    %42 = vector.extract_strided_slice %33 {offsets = [0, 192], sizes = [8, 64], strides = [1, 1]} : vector<8x256xf32> to vector<8x64xf32>
    %43 = vector.extract_strided_slice %35 {offsets = [0, 192], sizes = [8, 64], strides = [1, 1]} : vector<8x256xf32> to vector<8x64xf32>
    %44 = tpu.concatenate %36, %37, %38, %39, %40, %41, %42, %43 in 1 : vector<8x64xf32>, vector<8x64xf32>, vector<8x64xf32>, vector<8x64xf32>, vector<8x64xf32>, vector<8x64xf32>, vector<8x64xf32>, vector<8x64xf32> -> vector<8x512xf32>
    %45 = vector.broadcast %13 : vector<1x512xf32> to vector<8x512xf32>
    %46 = arith.addf %44, %45 : vector<8x512xf32>
    %c1 = arith.constant 1 : index
    %c0_16 = arith.constant 0 : index
    %c0_17 = arith.constant 0 : index
    %47 = vector.load %arg14[%c1, %c0_16, %c0_17] : memref<16x8x512xf32, #tpu.memory_space<vmem>>, vector<1x8x512xf32>
    %48 = vector.shape_cast %47 : vector<1x8x512xf32> to vector<8x512xf32>
    %49 = vector.shape_cast %46 : vector<8x512xf32> to vector<1x8x512xf32>
    tpu.vector_store %arg14[%c1, %c0_16, %c0_17], %49 {strides = array<i32>} : memref<16x8x512xf32, #tpu.memory_space<vmem>>, vector<1x8x512xf32>,
    %50 = vector.extract_strided_slice %9 {offsets = [0, 2, 0], sizes = [8, 1, 256], strides = [1, 1, 1]} : vector<8x16x256xf32> to vector<8x1x256xf32>
    %51 = vector.shape_cast %50 : vector<8x1x256xf32> to vector<8x256xf32>
    %52 = vector.extract_strided_slice %12 {offsets = [0, 13, 0], sizes = [8, 1, 256], strides = [1, 1, 1]} : vector<8x16x256xf32> to vector<8x1x256xf32>
    %53 = vector.shape_cast %52 : vector<8x1x256xf32> to vector<8x256xf32>
    %54 = vector.extract_strided_slice %51 {offsets = [0, 0], sizes = [8, 64], strides = [1, 1]} : vector<8x256xf32> to vector<8x64xf32>
    %55 = vector.extract_strided_slice %53 {offsets = [0, 0], sizes = [8, 64], strides = [1, 1]} : vector<8x256xf32> to vector<8x64xf32>
    %56 = vector.extract_strided_slice %51 {offsets = [0, 64], sizes = [8, 64], strides = [1, 1]} : vector<8x256xf32> to vector<8x64xf32>
    %57 = vector.extract_strided_slice %53 {offsets = [0, 64], sizes = [8, 64], strides = [1, 1]} : vector<8x256xf32> to vector<8x64xf32>
    %58 = vector.extract_strided_slice %51 {offsets = [0, 128], sizes = [8, 64], strides = [1, 1]} : vector<8x256xf32> to vector<8x64xf32>
    %59 = vector.extract_strided_slice %53 {offsets = [0, 128], sizes = [8, 64], strides = [1, 1]} : vector<8x256xf32> to vector<8x64xf32>
    %60 = vector.extract_strided_slice %51 {offsets = [0, 192], sizes = [8, 64], strides = [1, 1]} : vector<8x256xf32> to vector<8x64xf32>
    %61 = vector.extract_strided_slice %53 {offsets = [0, 192], sizes = [8, 64], strides = [1, 1]} : vector<8x256xf32> to vector<8x64xf32>
    %62 = tpu.concatenate %54, %55, %56, %57, %58, %59, %60, %61 in 1 : vector<8x64xf32>, vector<8x64xf32>, vector<8x64xf32>, vector<8x64xf32>, vector<8x64xf32>, vector<8x64xf32>, vector<8x64xf32>, vector<8x64xf32> -> vector<8x512xf32>
    %63 = vector.broadcast %13 : vector<1x512xf32> to vector<8x512xf32>
    %64 = arith.addf %62, %63 : vector<8x512xf32>
    %c2 = arith.constant 2 : index
    %c0_18 = arith.constant 0 : index
    %c0_19 = arith.constant 0 : index
    %65 = vector.load %arg14[%c2, %c0_18, %c0_19] : memref<16x8x512xf32, #tpu.memory_space<vmem>>, vector<1x8x512xf32>
    %66 = vector.shape_cast %65 : vector<1x8x512xf32> to vector<8x512xf32>
    %67 = vector.shape_cast %64 : vector<8x512xf32> to vector<1x8x512xf32>
    tpu.vector_store %arg14[%c2, %c0_18, %c0_19], %67 {strides = array<i32>} : memref<16x8x512xf32, #tpu.memory_space<vmem>>, vector<1x8x512xf32>,
    %68 = vector.extract_strided_slice %9 {offsets = [0, 3, 0], sizes = [8, 1, 256], strides = [1, 1, 1]} : vector<8x16x256xf32> to vector<8x1x256xf32>
    %69 = vector.shape_cast %68 : vector<8x1x256xf32> to vector<8x256xf32>
    %70 = vector.extract_strided_slice %12 {offsets = [0, 12, 0], sizes = [8, 1, 256], strides = [1, 1, 1]} : vector<8x16x256xf32> to vector<8x1x256xf32>
    %71 = vector.shape_cast %70 : vector<8x1x256xf32> to vector<8x256xf32>
    %72 = vector.extract_strided_slice %69 {offsets = [0, 0], sizes = [8, 64], strides = [1, 1]} : vector<8x256xf32> to vector<8x64xf32>
    %73 = vector.extract_strided_slice %71 {offsets = [0, 0], sizes = [8, 64], strides = [1, 1]} : vector<8x256xf32> to vector<8x64xf32>
    %74 = vector.extract_strided_slice %69 {offsets = [0, 64], sizes = [8, 64], strides = [1, 1]} : vector<8x256xf32> to vector<8x64xf32>
    %75 = vector.extract_strided_slice %71 {offsets = [0, 64], sizes = [8, 64], strides = [1, 1]} : vector<8x256xf32> to vector<8x64xf32>
    %76 = vector.extract_strided_slice %69 {offsets = [0, 128], sizes = [8, 64], strides = [1, 1]} : vector<8x256xf32> to vector<8x64xf32>
    %77 = vector.extract_strided_slice %71 {offsets = [0, 128], sizes = [8, 64], strides = [1, 1]} : vector<8x256xf32> to vector<8x64xf32>
    %78 = vector.extract_strided_slice %69 {offsets = [0, 192], sizes = [8, 64], strides = [1, 1]} : vector<8x256xf32> to vector<8x64xf32>
    %79 = vector.extract_strided_slice %71 {offsets = [0, 192], sizes = [8, 64], strides = [1, 1]} : vector<8x256xf32> to vector<8x64xf32>
    %80 = tpu.concatenate %72, %73, %74, %75, %76, %77, %78, %79 in 1 : vector<8x64xf32>, vector<8x64xf32>, vector<8x64xf32>, vector<8x64xf32>, vector<8x64xf32>, vector<8x64xf32>, vector<8x64xf32>, vector<8x64xf32> -> vector<8x512xf32>
    %81 = vector.broadcast %13 : vector<1x512xf32> to vector<8x512xf32>
    %82 = arith.addf %80, %81 : vector<8x512xf32>
    %c3 = arith.constant 3 : index
    %c0_20 = arith.constant 0 : index
    %c0_21 = arith.constant 0 : index
    %83 = vector.load %arg14[%c3, %c0_20, %c0_21] : memref<16x8x512xf32, #tpu.memory_space<vmem>>, vector<1x8x512xf32>
    %84 = vector.shape_cast %83 : vector<1x8x512xf32> to vector<8x512xf32>
    %85 = vector.shape_cast %82 : vector<8x512xf32> to vector<1x8x512xf32>
    tpu.vector_store %arg14[%c3, %c0_20, %c0_21], %85 {strides = array<i32>} : memref<16x8x512xf32, #tpu.memory_space<vmem>>, vector<1x8x512xf32>,
    %86 = vector.extract_strided_slice %9 {offsets = [0, 4, 0], sizes = [8, 1, 256], strides = [1, 1, 1]} : vector<8x16x256xf32> to vector<8x1x256xf32>
    %87 = vector.shape_cast %86 : vector<8x1x256xf32> to vector<8x256xf32>
    %88 = vector.extract_strided_slice %12 {offsets = [0, 11, 0], sizes = [8, 1, 256], strides = [1, 1, 1]} : vector<8x16x256xf32> to vector<8x1x256xf32>
    %89 = vector.shape_cast %88 : vector<8x1x256xf32> to vector<8x256xf32>
    %90 = vector.extract_strided_slice %87 {offsets = [0, 0], sizes = [8, 64], strides = [1, 1]} : vector<8x256xf32> to vector<8x64xf32>
    %91 = vector.extract_strided_slice %89 {offsets = [0, 0], sizes = [8, 64], strides = [1, 1]} : vector<8x256xf32> to vector<8x64xf32>
    %92 = vector.extract_strided_slice %87 {offsets = [0, 64], sizes = [8, 64], strides = [1, 1]} : vector<8x256xf32> to vector<8x64xf32>
    %93 = vector.extract_strided_slice %89 {offsets = [0, 64], sizes = [8, 64], strides = [1, 1]} : vector<8x256xf32> to vector<8x64xf32>
    %94 = vector.extract_strided_slice %87 {offsets = [0, 128], sizes = [8, 64], strides = [1, 1]} : vector<8x256xf32> to vector<8x64xf32>
    %95 = vector.extract_strided_slice %89 {offsets = [0, 128], sizes = [8, 64], strides = [1, 1]} : vector<8x256xf32> to vector<8x64xf32>
    %96 = vector.extract_strided_slice %87 {offsets = [0, 192], sizes = [8, 64], strides = [1, 1]} : vector<8x256xf32> to vector<8x64xf32>
    %97 = vector.extract_strided_slice %89 {offsets = [0, 192], sizes = [8, 64], strides = [1, 1]} : vector<8x256xf32> to vector<8x64xf32>
    %98 = tpu.concatenate %90, %91, %92, %93, %94, %95, %96, %97 in 1 : vector<8x64xf32>, vector<8x64xf32>, vector<8x64xf32>, vector<8x64xf32>, vector<8x64xf32>, vector<8x64xf32>, vector<8x64xf32>, vector<8x64xf32> -> vector<8x512xf32>
    %99 = vector.broadcast %13 : vector<1x512xf32> to vector<8x512xf32>
    %100 = arith.addf %98, %99 : vector<8x512xf32>
    %c4 = arith.constant 4 : index
    %c0_22 = arith.constant 0 : index
    %c0_23 = arith.constant 0 : index
    %101 = vector.load %arg14[%c4, %c0_22, %c0_23] : memref<16x8x512xf32, #tpu.memory_space<vmem>>, vector<1x8x512xf32>
    %102 = vector.shape_cast %101 : vector<1x8x512xf32> to vector<8x512xf32>
    %103 = vector.shape_cast %100 : vector<8x512xf32> to vector<1x8x512xf32>
    tpu.vector_store %arg14[%c4, %c0_22, %c0_23], %103 {strides = array<i32>} : memref<16x8x512xf32, #tpu.memory_space<vmem>>, vector<1x8x512xf32>,
    %104 = vector.extract_strided_slice %9 {offsets = [0, 5, 0], sizes = [8, 1, 256], strides = [1, 1, 1]} : vector<8x16x256xf32> to vector<8x1x256xf32>
    %105 = vector.shape_cast %104 : vector<8x1x256xf32> to vector<8x256xf32>
    %106 = vector.extract_strided_slice %12 {offsets = [0, 10, 0], sizes = [8, 1, 256], strides = [1, 1, 1]} : vector<8x16x256xf32> to vector<8x1x256xf32>
    %107 = vector.shape_cast %106 : vector<8x1x256xf32> to vector<8x256xf32>
    %108 = vector.extract_strided_slice %105 {offsets = [0, 0], sizes = [8, 64], strides = [1, 1]} : vector<8x256xf32> to vector<8x64xf32>
    %109 = vector.extract_strided_slice %107 {offsets = [0, 0], sizes = [8, 64], strides = [1, 1]} : vector<8x256xf32> to vector<8x64xf32>
    %110 = vector.extract_strided_slice %105 {offsets = [0, 64], sizes = [8, 64], strides = [1, 1]} : vector<8x256xf32> to vector<8x64xf32>
    %111 = vector.extract_strided_slice %107 {offsets = [0, 64], sizes = [8, 64], strides = [1, 1]} : vector<8x256xf32> to vector<8x64xf32>
    %112 = vector.extract_strided_slice %105 {offsets = [0, 128], sizes = [8, 64], strides = [1, 1]} : vector<8x256xf32> to vector<8x64xf32>
    %113 = vector.extract_strided_slice %107 {offsets = [0, 128], sizes = [8, 64], strides = [1, 1]} : vector<8x256xf32> to vector<8x64xf32>
    %114 = vector.extract_strided_slice %105 {offsets = [0, 192], sizes = [8, 64], strides = [1, 1]} : vector<8x256xf32> to vector<8x64xf32>
    %115 = vector.extract_strided_slice %107 {offsets = [0, 192], sizes = [8, 64], strides = [1, 1]} : vector<8x256xf32> to vector<8x64xf32>
    %116 = tpu.concatenate %108, %109, %110, %111, %112, %113, %114, %115 in 1 : vector<8x64xf32>, vector<8x64xf32>, vector<8x64xf32>, vector<8x64xf32>, vector<8x64xf32>, vector<8x64xf32>, vector<8x64xf32>, vector<8x64xf32> -> vector<8x512xf32>
    %117 = vector.broadcast %13 : vector<1x512xf32> to vector<8x512xf32>
    %118 = arith.addf %116, %117 : vector<8x512xf32>
    %c5 = arith.constant 5 : index
    %c0_24 = arith.constant 0 : index
    %c0_25 = arith.constant 0 : index
    %119 = vector.load %arg14[%c5, %c0_24, %c0_25] : memref<16x8x512xf32, #tpu.memory_space<vmem>>, vector<1x8x512xf32>
    %120 = vector.shape_cast %119 : vector<1x8x512xf32> to vector<8x512xf32>
    %121 = vector.shape_cast %118 : vector<8x512xf32> to vector<1x8x512xf32>
    tpu.vector_store %arg14[%c5, %c0_24, %c0_25], %121 {strides = array<i32>} : memref<16x8x512xf32, #tpu.memory_space<vmem>>, vector<1x8x512xf32>,
    %122 = vector.extract_strided_slice %9 {offsets = [0, 6, 0], sizes = [8, 1, 256], strides = [1, 1, 1]} : vector<8x16x256xf32> to vector<8x1x256xf32>
    %123 = vector.shape_cast %122 : vector<8x1x256xf32> to vector<8x256xf32>
    %124 = vector.extract_strided_slice %12 {offsets = [0, 9, 0], sizes = [8, 1, 256], strides = [1, 1, 1]} : vector<8x16x256xf32> to vector<8x1x256xf32>
    %125 = vector.shape_cast %124 : vector<8x1x256xf32> to vector<8x256xf32>
    %126 = vector.extract_strided_slice %123 {offsets = [0, 0], sizes = [8, 64], strides = [1, 1]} : vector<8x256xf32> to vector<8x64xf32>
    %127 = vector.extract_strided_slice %125 {offsets = [0, 0], sizes = [8, 64], strides = [1, 1]} : vector<8x256xf32> to vector<8x64xf32>
    %128 = vector.extract_strided_slice %123 {offsets = [0, 64], sizes = [8, 64], strides = [1, 1]} : vector<8x256xf32> to vector<8x64xf32>
    %129 = vector.extract_strided_slice %125 {offsets = [0, 64], sizes = [8, 64], strides = [1, 1]} : vector<8x256xf32> to vector<8x64xf32>
    %130 = vector.extract_strided_slice %123 {offsets = [0, 128], sizes = [8, 64], strides = [1, 1]} : vector<8x256xf32> to vector<8x64xf32>
    %131 = vector.extract_strided_slice %125 {offsets = [0, 128], sizes = [8, 64], strides = [1, 1]} : vector<8x256xf32> to vector<8x64xf32>
    %132 = vector.extract_strided_slice %123 {offsets = [0, 192], sizes = [8, 64], strides = [1, 1]} : vector<8x256xf32> to vector<8x64xf32>
    %133 = vector.extract_strided_slice %125 {offsets = [0, 192], sizes = [8, 64], strides = [1, 1]} : vector<8x256xf32> to vector<8x64xf32>
    %134 = tpu.concatenate %126, %127, %128, %129, %130, %131, %132, %133 in 1 : vector<8x64xf32>, vector<8x64xf32>, vector<8x64xf32>, vector<8x64xf32>, vector<8x64xf32>, vector<8x64xf32>, vector<8x64xf32>, vector<8x64xf32> -> vector<8x512xf32>
    %135 = vector.broadcast %13 : vector<1x512xf32> to vector<8x512xf32>
    %136 = arith.addf %134, %135 : vector<8x512xf32>
    %c6 = arith.constant 6 : index
    %c0_26 = arith.constant 0 : index
    %c0_27 = arith.constant 0 : index
    %137 = vector.load %arg14[%c6, %c0_26, %c0_27] : memref<16x8x512xf32, #tpu.memory_space<vmem>>, vector<1x8x512xf32>
    %138 = vector.shape_cast %137 : vector<1x8x512xf32> to vector<8x512xf32>
    %139 = vector.shape_cast %136 : vector<8x512xf32> to vector<1x8x512xf32>
    tpu.vector_store %arg14[%c6, %c0_26, %c0_27], %139 {strides = array<i32>} : memref<16x8x512xf32, #tpu.memory_space<vmem>>, vector<1x8x512xf32>,
    %140 = vector.extract_strided_slice %9 {offsets = [0, 7, 0], sizes = [8, 1, 256], strides = [1, 1, 1]} : vector<8x16x256xf32> to vector<8x1x256xf32>
    %141 = vector.shape_cast %140 : vector<8x1x256xf32> to vector<8x256xf32>
    %142 = vector.extract_strided_slice %12 {offsets = [0, 8, 0], sizes = [8, 1, 256], strides = [1, 1, 1]} : vector<8x16x256xf32> to vector<8x1x256xf32>
    %143 = vector.shape_cast %142 : vector<8x1x256xf32> to vector<8x256xf32>
    %144 = vector.extract_strided_slice %141 {offsets = [0, 0], sizes = [8, 64], strides = [1, 1]} : vector<8x256xf32> to vector<8x64xf32>
    %145 = vector.extract_strided_slice %143 {offsets = [0, 0], sizes = [8, 64], strides = [1, 1]} : vector<8x256xf32> to vector<8x64xf32>
    %146 = vector.extract_strided_slice %141 {offsets = [0, 64], sizes = [8, 64], strides = [1, 1]} : vector<8x256xf32> to vector<8x64xf32>
    %147 = vector.extract_strided_slice %143 {offsets = [0, 64], sizes = [8, 64], strides = [1, 1]} : vector<8x256xf32> to vector<8x64xf32>
    %148 = vector.extract_strided_slice %141 {offsets = [0, 128], sizes = [8, 64], strides = [1, 1]} : vector<8x256xf32> to vector<8x64xf32>
    %149 = vector.extract_strided_slice %143 {offsets = [0, 128], sizes = [8, 64], strides = [1, 1]} : vector<8x256xf32> to vector<8x64xf32>
    %150 = vector.extract_strided_slice %141 {offsets = [0, 192], sizes = [8, 64], strides = [1, 1]} : vector<8x256xf32> to vector<8x64xf32>
    %151 = vector.extract_strided_slice %143 {offsets = [0, 192], sizes = [8, 64], strides = [1, 1]} : vector<8x256xf32> to vector<8x64xf32>
    %152 = tpu.concatenate %144, %145, %146, %147, %148, %149, %150, %151 in 1 : vector<8x64xf32>, vector<8x64xf32>, vector<8x64xf32>, vector<8x64xf32>, vector<8x64xf32>, vector<8x64xf32>, vector<8x64xf32>, vector<8x64xf32> -> vector<8x512xf32>
    %153 = vector.broadcast %13 : vector<1x512xf32> to vector<8x512xf32>
    %154 = arith.addf %152, %153 : vector<8x512xf32>
    %c7 = arith.constant 7 : index
    %c0_28 = arith.constant 0 : index
    %c0_29 = arith.constant 0 : index
    %155 = vector.load %arg14[%c7, %c0_28, %c0_29] : memref<16x8x512xf32, #tpu.memory_space<vmem>>, vector<1x8x512xf32>
    %156 = vector.shape_cast %155 : vector<1x8x512xf32> to vector<8x512xf32>
    %157 = vector.shape_cast %154 : vector<8x512xf32> to vector<1x8x512xf32>
    tpu.vector_store %arg14[%c7, %c0_28, %c0_29], %157 {strides = array<i32>} : memref<16x8x512xf32, #tpu.memory_space<vmem>>, vector<1x8x512xf32>,
    %158 = vector.extract_strided_slice %9 {offsets = [0, 8, 0], sizes = [8, 1, 256], strides = [1, 1, 1]} : vector<8x16x256xf32> to vector<8x1x256xf32>
    %159 = vector.shape_cast %158 : vector<8x1x256xf32> to vector<8x256xf32>
    %160 = vector.extract_strided_slice %12 {offsets = [0, 7, 0], sizes = [8, 1, 256], strides = [1, 1, 1]} : vector<8x16x256xf32> to vector<8x1x256xf32>
    %161 = vector.shape_cast %160 : vector<8x1x256xf32> to vector<8x256xf32>
    %162 = vector.extract_strided_slice %159 {offsets = [0, 0], sizes = [8, 64], strides = [1, 1]} : vector<8x256xf32> to vector<8x64xf32>
    %163 = vector.extract_strided_slice %161 {offsets = [0, 0], sizes = [8, 64], strides = [1, 1]} : vector<8x256xf32> to vector<8x64xf32>
    %164 = vector.extract_strided_slice %159 {offsets = [0, 64], sizes = [8, 64], strides = [1, 1]} : vector<8x256xf32> to vector<8x64xf32>
    %165 = vector.extract_strided_slice %161 {offsets = [0, 64], sizes = [8, 64], strides = [1, 1]} : vector<8x256xf32> to vector<8x64xf32>
    %166 = vector.extract_strided_slice %159 {offsets = [0, 128], sizes = [8, 64], strides = [1, 1]} : vector<8x256xf32> to vector<8x64xf32>
    %167 = vector.extract_strided_slice %161 {offsets = [0, 128], sizes = [8, 64], strides = [1, 1]} : vector<8x256xf32> to vector<8x64xf32>
    %168 = vector.extract_strided_slice %159 {offsets = [0, 192], sizes = [8, 64], strides = [1, 1]} : vector<8x256xf32> to vector<8x64xf32>
    %169 = vector.extract_strided_slice %161 {offsets = [0, 192], sizes = [8, 64], strides = [1, 1]} : vector<8x256xf32> to vector<8x64xf32>
    %170 = tpu.concatenate %162, %163, %164, %165, %166, %167, %168, %169 in 1 : vector<8x64xf32>, vector<8x64xf32>, vector<8x64xf32>, vector<8x64xf32>, vector<8x64xf32>, vector<8x64xf32>, vector<8x64xf32>, vector<8x64xf32> -> vector<8x512xf32>
    %171 = vector.broadcast %13 : vector<1x512xf32> to vector<8x512xf32>
    %172 = arith.addf %170, %171 : vector<8x512xf32>
    %c8 = arith.constant 8 : index
    %c0_30 = arith.constant 0 : index
    %c0_31 = arith.constant 0 : index
    %173 = vector.load %arg14[%c8, %c0_30, %c0_31] : memref<16x8x512xf32, #tpu.memory_space<vmem>>, vector<1x8x512xf32>
    %174 = vector.shape_cast %173 : vector<1x8x512xf32> to vector<8x512xf32>
    %175 = vector.shape_cast %172 : vector<8x512xf32> to vector<1x8x512xf32>
    tpu.vector_store %arg14[%c8, %c0_30, %c0_31], %175 {strides = array<i32>} : memref<16x8x512xf32, #tpu.memory_space<vmem>>, vector<1x8x512xf32>,
    %176 = vector.extract_strided_slice %9 {offsets = [0, 9, 0], sizes = [8, 1, 256], strides = [1, 1, 1]} : vector<8x16x256xf32> to vector<8x1x256xf32>
    %177 = vector.shape_cast %176 : vector<8x1x256xf32> to vector<8x256xf32>
    %178 = vector.extract_strided_slice %12 {offsets = [0, 6, 0], sizes = [8, 1, 256], strides = [1, 1, 1]} : vector<8x16x256xf32> to vector<8x1x256xf32>
    %179 = vector.shape_cast %178 : vector<8x1x256xf32> to vector<8x256xf32>
    %180 = vector.extract_strided_slice %177 {offsets = [0, 0], sizes = [8, 64], strides = [1, 1]} : vector<8x256xf32> to vector<8x64xf32>
    %181 = vector.extract_strided_slice %179 {offsets = [0, 0], sizes = [8, 64], strides = [1, 1]} : vector<8x256xf32> to vector<8x64xf32>
    %182 = vector.extract_strided_slice %177 {offsets = [0, 64], sizes = [8, 64], strides = [1, 1]} : vector<8x256xf32> to vector<8x64xf32>
    %183 = vector.extract_strided_slice %179 {offsets = [0, 64], sizes = [8, 64], strides = [1, 1]} : vector<8x256xf32> to vector<8x64xf32>
    %184 = vector.extract_strided_slice %177 {offsets = [0, 128], sizes = [8, 64], strides = [1, 1]} : vector<8x256xf32> to vector<8x64xf32>
    %185 = vector.extract_strided_slice %179 {offsets = [0, 128], sizes = [8, 64], strides = [1, 1]} : vector<8x256xf32> to vector<8x64xf32>
    %186 = vector.extract_strided_slice %177 {offsets = [0, 192], sizes = [8, 64], strides = [1, 1]} : vector<8x256xf32> to vector<8x64xf32>
    %187 = vector.extract_strided_slice %179 {offsets = [0, 192], sizes = [8, 64], strides = [1, 1]} : vector<8x256xf32> to vector<8x64xf32>
    %188 = tpu.concatenate %180, %181, %182, %183, %184, %185, %186, %187 in 1 : vector<8x64xf32>, vector<8x64xf32>, vector<8x64xf32>, vector<8x64xf32>, vector<8x64xf32>, vector<8x64xf32>, vector<8x64xf32>, vector<8x64xf32> -> vector<8x512xf32>
    %189 = vector.broadcast %13 : vector<1x512xf32> to vector<8x512xf32>
    %190 = arith.addf %188, %189 : vector<8x512xf32>
    %c9 = arith.constant 9 : index
    %c0_32 = arith.constant 0 : index
    %c0_33 = arith.constant 0 : index
    %191 = vector.load %arg14[%c9, %c0_32, %c0_33] : memref<16x8x512xf32, #tpu.memory_space<vmem>>, vector<1x8x512xf32>
    %192 = vector.shape_cast %191 : vector<1x8x512xf32> to vector<8x512xf32>
    %193 = vector.shape_cast %190 : vector<8x512xf32> to vector<1x8x512xf32>
    tpu.vector_store %arg14[%c9, %c0_32, %c0_33], %193 {strides = array<i32>} : memref<16x8x512xf32, #tpu.memory_space<vmem>>, vector<1x8x512xf32>,
    %194 = vector.extract_strided_slice %9 {offsets = [0, 10, 0], sizes = [8, 1, 256], strides = [1, 1, 1]} : vector<8x16x256xf32> to vector<8x1x256xf32>
    %195 = vector.shape_cast %194 : vector<8x1x256xf32> to vector<8x256xf32>
    %196 = vector.extract_strided_slice %12 {offsets = [0, 5, 0], sizes = [8, 1, 256], strides = [1, 1, 1]} : vector<8x16x256xf32> to vector<8x1x256xf32>
    %197 = vector.shape_cast %196 : vector<8x1x256xf32> to vector<8x256xf32>
    %198 = vector.extract_strided_slice %195 {offsets = [0, 0], sizes = [8, 64], strides = [1, 1]} : vector<8x256xf32> to vector<8x64xf32>
    %199 = vector.extract_strided_slice %197 {offsets = [0, 0], sizes = [8, 64], strides = [1, 1]} : vector<8x256xf32> to vector<8x64xf32>
    %200 = vector.extract_strided_slice %195 {offsets = [0, 64], sizes = [8, 64], strides = [1, 1]} : vector<8x256xf32> to vector<8x64xf32>
    %201 = vector.extract_strided_slice %197 {offsets = [0, 64], sizes = [8, 64], strides = [1, 1]} : vector<8x256xf32> to vector<8x64xf32>
    %202 = vector.extract_strided_slice %195 {offsets = [0, 128], sizes = [8, 64], strides = [1, 1]} : vector<8x256xf32> to vector<8x64xf32>
    %203 = vector.extract_strided_slice %197 {offsets = [0, 128], sizes = [8, 64], strides = [1, 1]} : vector<8x256xf32> to vector<8x64xf32>
    %204 = vector.extract_strided_slice %195 {offsets = [0, 192], sizes = [8, 64], strides = [1, 1]} : vector<8x256xf32> to vector<8x64xf32>
    %205 = vector.extract_strided_slice %197 {offsets = [0, 192], sizes = [8, 64], strides = [1, 1]} : vector<8x256xf32> to vector<8x64xf32>
    %206 = tpu.concatenate %198, %199, %200, %201, %202, %203, %204, %205 in 1 : vector<8x64xf32>, vector<8x64xf32>, vector<8x64xf32>, vector<8x64xf32>, vector<8x64xf32>, vector<8x64xf32>, vector<8x64xf32>, vector<8x64xf32> -> vector<8x512xf32>
    %207 = vector.broadcast %13 : vector<1x512xf32> to vector<8x512xf32>
    %208 = arith.addf %206, %207 : vector<8x512xf32>
    %c10 = arith.constant 10 : index
    %c0_34 = arith.constant 0 : index
    %c0_35 = arith.constant 0 : index
    %209 = vector.load %arg14[%c10, %c0_34, %c0_35] : memref<16x8x512xf32, #tpu.memory_space<vmem>>, vector<1x8x512xf32>
    %210 = vector.shape_cast %209 : vector<1x8x512xf32> to vector<8x512xf32>
    %211 = vector.shape_cast %208 : vector<8x512xf32> to vector<1x8x512xf32>
    tpu.vector_store %arg14[%c10, %c0_34, %c0_35], %211 {strides = array<i32>} : memref<16x8x512xf32, #tpu.memory_space<vmem>>, vector<1x8x512xf32>,
    %212 = vector.extract_strided_slice %9 {offsets = [0, 11, 0], sizes = [8, 1, 256], strides = [1, 1, 1]} : vector<8x16x256xf32> to vector<8x1x256xf32>
    %213 = vector.shape_cast %212 : vector<8x1x256xf32> to vector<8x256xf32>
    %214 = vector.extract_strided_slice %12 {offsets = [0, 4, 0], sizes = [8, 1, 256], strides = [1, 1, 1]} : vector<8x16x256xf32> to vector<8x1x256xf32>
    %215 = vector.shape_cast %214 : vector<8x1x256xf32> to vector<8x256xf32>
    %216 = vector.extract_strided_slice %213 {offsets = [0, 0], sizes = [8, 64], strides = [1, 1]} : vector<8x256xf32> to vector<8x64xf32>
    %217 = vector.extract_strided_slice %215 {offsets = [0, 0], sizes = [8, 64], strides = [1, 1]} : vector<8x256xf32> to vector<8x64xf32>
    %218 = vector.extract_strided_slice %213 {offsets = [0, 64], sizes = [8, 64], strides = [1, 1]} : vector<8x256xf32> to vector<8x64xf32>
    %219 = vector.extract_strided_slice %215 {offsets = [0, 64], sizes = [8, 64], strides = [1, 1]} : vector<8x256xf32> to vector<8x64xf32>
    %220 = vector.extract_strided_slice %213 {offsets = [0, 128], sizes = [8, 64], strides = [1, 1]} : vector<8x256xf32> to vector<8x64xf32>
    %221 = vector.extract_strided_slice %215 {offsets = [0, 128], sizes = [8, 64], strides = [1, 1]} : vector<8x256xf32> to vector<8x64xf32>
    %222 = vector.extract_strided_slice %213 {offsets = [0, 192], sizes = [8, 64], strides = [1, 1]} : vector<8x256xf32> to vector<8x64xf32>
    %223 = vector.extract_strided_slice %215 {offsets = [0, 192], sizes = [8, 64], strides = [1, 1]} : vector<8x256xf32> to vector<8x64xf32>
    %224 = tpu.concatenate %216, %217, %218, %219, %220, %221, %222, %223 in 1 : vector<8x64xf32>, vector<8x64xf32>, vector<8x64xf32>, vector<8x64xf32>, vector<8x64xf32>, vector<8x64xf32>, vector<8x64xf32>, vector<8x64xf32> -> vector<8x512xf32>
    %225 = vector.broadcast %13 : vector<1x512xf32> to vector<8x512xf32>
    %226 = arith.addf %224, %225 : vector<8x512xf32>
    %c11 = arith.constant 11 : index
    %c0_36 = arith.constant 0 : index
    %c0_37 = arith.constant 0 : index
    %227 = vector.load %arg14[%c11, %c0_36, %c0_37] : memref<16x8x512xf32, #tpu.memory_space<vmem>>, vector<1x8x512xf32>
    %228 = vector.shape_cast %227 : vector<1x8x512xf32> to vector<8x512xf32>
    %229 = vector.shape_cast %226 : vector<8x512xf32> to vector<1x8x512xf32>
    tpu.vector_store %arg14[%c11, %c0_36, %c0_37], %229 {strides = array<i32>} : memref<16x8x512xf32, #tpu.memory_space<vmem>>, vector<1x8x512xf32>,
    %230 = vector.extract_strided_slice %9 {offsets = [0, 12, 0], sizes = [8, 1, 256], strides = [1, 1, 1]} : vector<8x16x256xf32> to vector<8x1x256xf32>
    %231 = vector.shape_cast %230 : vector<8x1x256xf32> to vector<8x256xf32>
    %232 = vector.extract_strided_slice %12 {offsets = [0, 3, 0], sizes = [8, 1, 256], strides = [1, 1, 1]} : vector<8x16x256xf32> to vector<8x1x256xf32>
    %233 = vector.shape_cast %232 : vector<8x1x256xf32> to vector<8x256xf32>
    %234 = vector.extract_strided_slice %231 {offsets = [0, 0], sizes = [8, 64], strides = [1, 1]} : vector<8x256xf32> to vector<8x64xf32>
    %235 = vector.extract_strided_slice %233 {offsets = [0, 0], sizes = [8, 64], strides = [1, 1]} : vector<8x256xf32> to vector<8x64xf32>
    %236 = vector.extract_strided_slice %231 {offsets = [0, 64], sizes = [8, 64], strides = [1, 1]} : vector<8x256xf32> to vector<8x64xf32>
    %237 = vector.extract_strided_slice %233 {offsets = [0, 64], sizes = [8, 64], strides = [1, 1]} : vector<8x256xf32> to vector<8x64xf32>
    %238 = vector.extract_strided_slice %231 {offsets = [0, 128], sizes = [8, 64], strides = [1, 1]} : vector<8x256xf32> to vector<8x64xf32>
    %239 = vector.extract_strided_slice %233 {offsets = [0, 128], sizes = [8, 64], strides = [1, 1]} : vector<8x256xf32> to vector<8x64xf32>
    %240 = vector.extract_strided_slice %231 {offsets = [0, 192], sizes = [8, 64], strides = [1, 1]} : vector<8x256xf32> to vector<8x64xf32>
    %241 = vector.extract_strided_slice %233 {offsets = [0, 192], sizes = [8, 64], strides = [1, 1]} : vector<8x256xf32> to vector<8x64xf32>
    %242 = tpu.concatenate %234, %235, %236, %237, %238, %239, %240, %241 in 1 : vector<8x64xf32>, vector<8x64xf32>, vector<8x64xf32>, vector<8x64xf32>, vector<8x64xf32>, vector<8x64xf32>, vector<8x64xf32>, vector<8x64xf32> -> vector<8x512xf32>
    %243 = vector.broadcast %13 : vector<1x512xf32> to vector<8x512xf32>
    %244 = arith.addf %242, %243 : vector<8x512xf32>
    %c12 = arith.constant 12 : index
    %c0_38 = arith.constant 0 : index
    %c0_39 = arith.constant 0 : index
    %245 = vector.load %arg14[%c12, %c0_38, %c0_39] : memref<16x8x512xf32, #tpu.memory_space<vmem>>, vector<1x8x512xf32>
    %246 = vector.shape_cast %245 : vector<1x8x512xf32> to vector<8x512xf32>
    %247 = vector.shape_cast %244 : vector<8x512xf32> to vector<1x8x512xf32>
    tpu.vector_store %arg14[%c12, %c0_38, %c0_39], %247 {strides = array<i32>} : memref<16x8x512xf32, #tpu.memory_space<vmem>>, vector<1x8x512xf32>,
    %248 = vector.extract_strided_slice %9 {offsets = [0, 13, 0], sizes = [8, 1, 256], strides = [1, 1, 1]} : vector<8x16x256xf32> to vector<8x1x256xf32>
    %249 = vector.shape_cast %248 : vector<8x1x256xf32> to vector<8x256xf32>
    %250 = vector.extract_strided_slice %12 {offsets = [0, 2, 0], sizes = [8, 1, 256], strides = [1, 1, 1]} : vector<8x16x256xf32> to vector<8x1x256xf32>
    %251 = vector.shape_cast %250 : vector<8x1x256xf32> to vector<8x256xf32>
    %252 = vector.extract_strided_slice %249 {offsets = [0, 0], sizes = [8, 64], strides = [1, 1]} : vector<8x256xf32> to vector<8x64xf32>
    %253 = vector.extract_strided_slice %251 {offsets = [0, 0], sizes = [8, 64], strides = [1, 1]} : vector<8x256xf32> to vector<8x64xf32>
    %254 = vector.extract_strided_slice %249 {offsets = [0, 64], sizes = [8, 64], strides = [1, 1]} : vector<8x256xf32> to vector<8x64xf32>
    %255 = vector.extract_strided_slice %251 {offsets = [0, 64], sizes = [8, 64], strides = [1, 1]} : vector<8x256xf32> to vector<8x64xf32>
    %256 = vector.extract_strided_slice %249 {offsets = [0, 128], sizes = [8, 64], strides = [1, 1]} : vector<8x256xf32> to vector<8x64xf32>
    %257 = vector.extract_strided_slice %251 {offsets = [0, 128], sizes = [8, 64], strides = [1, 1]} : vector<8x256xf32> to vector<8x64xf32>
    %258 = vector.extract_strided_slice %249 {offsets = [0, 192], sizes = [8, 64], strides = [1, 1]} : vector<8x256xf32> to vector<8x64xf32>
    %259 = vector.extract_strided_slice %251 {offsets = [0, 192], sizes = [8, 64], strides = [1, 1]} : vector<8x256xf32> to vector<8x64xf32>
    %260 = tpu.concatenate %252, %253, %254, %255, %256, %257, %258, %259 in 1 : vector<8x64xf32>, vector<8x64xf32>, vector<8x64xf32>, vector<8x64xf32>, vector<8x64xf32>, vector<8x64xf32>, vector<8x64xf32>, vector<8x64xf32> -> vector<8x512xf32>
    %261 = vector.broadcast %13 : vector<1x512xf32> to vector<8x512xf32>
    %262 = arith.addf %260, %261 : vector<8x512xf32>
    %c13 = arith.constant 13 : index
    %c0_40 = arith.constant 0 : index
    %c0_41 = arith.constant 0 : index
    %263 = vector.load %arg14[%c13, %c0_40, %c0_41] : memref<16x8x512xf32, #tpu.memory_space<vmem>>, vector<1x8x512xf32>
    %264 = vector.shape_cast %263 : vector<1x8x512xf32> to vector<8x512xf32>
    %265 = vector.shape_cast %262 : vector<8x512xf32> to vector<1x8x512xf32>
    tpu.vector_store %arg14[%c13, %c0_40, %c0_41], %265 {strides = array<i32>} : memref<16x8x512xf32, #tpu.memory_space<vmem>>, vector<1x8x512xf32>,
    %266 = vector.extract_strided_slice %9 {offsets = [0, 14, 0], sizes = [8, 1, 256], strides = [1, 1, 1]} : vector<8x16x256xf32> to vector<8x1x256xf32>
    %267 = vector.shape_cast %266 : vector<8x1x256xf32> to vector<8x256xf32>
    %268 = vector.extract_strided_slice %12 {offsets = [0, 1, 0], sizes = [8, 1, 256], strides = [1, 1, 1]} : vector<8x16x256xf32> to vector<8x1x256xf32>
    %269 = vector.shape_cast %268 : vector<8x1x256xf32> to vector<8x256xf32>
    %270 = vector.extract_strided_slice %267 {offsets = [0, 0], sizes = [8, 64], strides = [1, 1]} : vector<8x256xf32> to vector<8x64xf32>
    %271 = vector.extract_strided_slice %269 {offsets = [0, 0], sizes = [8, 64], strides = [1, 1]} : vector<8x256xf32> to vector<8x64xf32>
    %272 = vector.extract_strided_slice %267 {offsets = [0, 64], sizes = [8, 64], strides = [1, 1]} : vector<8x256xf32> to vector<8x64xf32>
    %273 = vector.extract_strided_slice %269 {offsets = [0, 64], sizes = [8, 64], strides = [1, 1]} : vector<8x256xf32> to vector<8x64xf32>
    %274 = vector.extract_strided_slice %267 {offsets = [0, 128], sizes = [8, 64], strides = [1, 1]} : vector<8x256xf32> to vector<8x64xf32>
    %275 = vector.extract_strided_slice %269 {offsets = [0, 128], sizes = [8, 64], strides = [1, 1]} : vector<8x256xf32> to vector<8x64xf32>
    %276 = vector.extract_strided_slice %267 {offsets = [0, 192], sizes = [8, 64], strides = [1, 1]} : vector<8x256xf32> to vector<8x64xf32>
    %277 = vector.extract_strided_slice %269 {offsets = [0, 192], sizes = [8, 64], strides = [1, 1]} : vector<8x256xf32> to vector<8x64xf32>
    %278 = tpu.concatenate %270, %271, %272, %273, %274, %275, %276, %277 in 1 : vector<8x64xf32>, vector<8x64xf32>, vector<8x64xf32>, vector<8x64xf32>, vector<8x64xf32>, vector<8x64xf32>, vector<8x64xf32>, vector<8x64xf32> -> vector<8x512xf32>
    %279 = vector.broadcast %13 : vector<1x512xf32> to vector<8x512xf32>
    %280 = arith.addf %278, %279 : vector<8x512xf32>
    %c14 = arith.constant 14 : index
    %c0_42 = arith.constant 0 : index
    %c0_43 = arith.constant 0 : index
    %281 = vector.load %arg14[%c14, %c0_42, %c0_43] : memref<16x8x512xf32, #tpu.memory_space<vmem>>, vector<1x8x512xf32>
    %282 = vector.shape_cast %281 : vector<1x8x512xf32> to vector<8x512xf32>
    %283 = vector.shape_cast %280 : vector<8x512xf32> to vector<1x8x512xf32>
    tpu.vector_store %arg14[%c14, %c0_42, %c0_43], %283 {strides = array<i32>} : memref<16x8x512xf32, #tpu.memory_space<vmem>>, vector<1x8x512xf32>,
    %284 = vector.extract_strided_slice %9 {offsets = [0, 15, 0], sizes = [8, 1, 256], strides = [1, 1, 1]} : vector<8x16x256xf32> to vector<8x1x256xf32>
    %285 = vector.shape_cast %284 : vector<8x1x256xf32> to vector<8x256xf32>
    %286 = vector.extract_strided_slice %12 {offsets = [0, 0, 0], sizes = [8, 1, 256], strides = [1, 1, 1]} : vector<8x16x256xf32> to vector<8x1x256xf32>
    %287 = vector.shape_cast %286 : vector<8x1x256xf32> to vector<8x256xf32>
    %288 = vector.extract_strided_slice %285 {offsets = [0, 0], sizes = [8, 64], strides = [1, 1]} : vector<8x256xf32> to vector<8x64xf32>
    %289 = vector.extract_strided_slice %287 {offsets = [0, 0], sizes = [8, 64], strides = [1, 1]} : vector<8x256xf32> to vector<8x64xf32>
    %290 = vector.extract_strided_slice %285 {offsets = [0, 64], sizes = [8, 64], strides = [1, 1]} : vector<8x256xf32> to vector<8x64xf32>
    %291 = vector.extract_strided_slice %287 {offsets = [0, 64], sizes = [8, 64], strides = [1, 1]} : vector<8x256xf32> to vector<8x64xf32>
    %292 = vector.extract_strided_slice %285 {offsets = [0, 128], sizes = [8, 64], strides = [1, 1]} : vector<8x256xf32> to vector<8x64xf32>
    %293 = vector.extract_strided_slice %287 {offsets = [0, 128], sizes = [8, 64], strides = [1, 1]} : vector<8x256xf32> to vector<8x64xf32>
    %294 = vector.extract_strided_slice %285 {offsets = [0, 192], sizes = [8, 64], strides = [1, 1]} : vector<8x256xf32> to vector<8x64xf32>
    %295 = vector.extract_strided_slice %287 {offsets = [0, 192], sizes = [8, 64], strides = [1, 1]} : vector<8x256xf32> to vector<8x64xf32>
    %296 = tpu.concatenate %288, %289, %290, %291, %292, %293, %294, %295 in 1 : vector<8x64xf32>, vector<8x64xf32>, vector<8x64xf32>, vector<8x64xf32>, vector<8x64xf32>, vector<8x64xf32>, vector<8x64xf32>, vector<8x64xf32> -> vector<8x512xf32>
    %297 = vector.broadcast %13 : vector<1x512xf32> to vector<8x512xf32>
    %298 = arith.addf %296, %297 : vector<8x512xf32>
    %c15 = arith.constant 15 : index
    %c0_44 = arith.constant 0 : index
    %c0_45 = arith.constant 0 : index
    %299 = vector.load %arg14[%c15, %c0_44, %c0_45] : memref<16x8x512xf32, #tpu.memory_space<vmem>>, vector<1x8x512xf32>
    %300 = vector.shape_cast %299 : vector<1x8x512xf32> to vector<8x512xf32>
    %301 = vector.shape_cast %298 : vector<8x512xf32> to vector<1x8x512xf32>
    tpu.vector_store %arg14[%c15, %c0_44, %c0_45], %301 {strides = array<i32>} : memref<16x8x512xf32, #tpu.memory_space<vmem>>, vector<1x8x512xf32>,
    %c0_46 = arith.constant 0 : index
    %c0_47 = arith.constant 0 : index
    %302 = vector.load %arg7[%c0_46, %c0_47] : memref<128x512xbf16, #tpu.memory_space<vmem>>, vector<128x512xbf16>
    %c0_48 = arith.constant 0 : index
    %c0_49 = arith.constant 0 : index
    %303 = vector.load %arg2[%c0_48, %c0_49] : memref<8x1xi32, #tpu.memory_space<vmem>>, vector<8x1xi32>
    %304 = tpu.iota {dimensions = array<i32: 1>} : vector<1x128xi32>
    %c0_50 = arith.constant 0 : index
    %c0_51 = arith.constant 0 : index
    %305 = vector.load %arg12[%c0_50, %c0_51] : memref<8x128xf32, #tpu.memory_space<vmem>>, vector<8x128xf32>
    %c0_52 = arith.constant 0 : index
    %c0_53 = arith.constant 0 : index
    %306 = vector.load %arg13[%c0_52, %c0_53] : memref<8x128xf32, #tpu.memory_space<vmem>>, vector<8x128xf32>
    %c16_i32 = arith.constant 16 : i32
    %307 = arith.muli %arg1, %c16_i32 : i32
    %c0_i32_54 = arith.constant 0 : i32
    %308 = arith.addi %307, %c0_i32_54 : i32
    %c15_i32 = arith.constant 15 : i32
    %309 = arith.subi %c15_i32, %308 : i32
    %c0_55 = arith.constant 0 : index
    %c0_56 = arith.constant 0 : index
    %c0_57 = arith.constant 0 : index
    %310 = vector.load %arg14[%c0_55, %c0_56, %c0_57] : memref<16x8x512xf32, #tpu.memory_space<vmem>>, vector<1x8x512xf32>
    %311 = vector.shape_cast %310 : vector<1x8x512xf32> to vector<8x512xf32>
    %312 = arith.truncf %305 : vector<8x128xf32> to vector<8x128xbf16>
    %cst_58 = arith.constant dense<0.000000e+00> : vector<8x512xf32>
    %313 = tpu.matmul %312, %302, %cst_58 {dimension_numbers = #tpu.dot_dimension_numbers<[1], [0], [0], [1], [0, 0, 1, 1], [], []>} : vector<8x128xbf16>, vector<128x512xbf16>, vector<8x512xf32> -> vector<8x512xf32>
    %314 = arith.addf %311, %313 : vector<8x512xf32>
    %315 = vector.extract_strided_slice %314 {offsets = [0, 0], sizes = [8, 128], strides = [1, 1]} : vector<8x512xf32> to vector<8x128xf32>
    %316 = arith.negf %315 : vector<8x128xf32>
    %317 = math.exp %316 : vector<8x128xf32>
    %cst_59 = arith.constant 1.000000e+00 : f32
    %318 = vector.broadcast %cst_59 : f32 to vector<8x128xf32>
    %319 = arith.addf %318, %317 : vector<8x128xf32>
    %320 = arith.divf %318, %319 : vector<8x128xf32>
    %321 = vector.extract_strided_slice %314 {offsets = [0, 128], sizes = [8, 128], strides = [1, 1]} : vector<8x512xf32> to vector<8x128xf32>
    %322 = arith.negf %321 : vector<8x128xf32>
    %323 = math.exp %322 : vector<8x128xf32>
    %cst_60 = arith.constant 1.000000e+00 : f32
    %324 = vector.broadcast %cst_60 : f32 to vector<8x128xf32>
    %325 = arith.addf %324, %323 : vector<8x128xf32>
    %326 = arith.divf %324, %325 : vector<8x128xf32>
    %327 = vector.extract_strided_slice %314 {offsets = [0, 256], sizes = [8, 128], strides = [1, 1]} : vector<8x512xf32> to vector<8x128xf32>
    %328 = arith.negf %327 : vector<8x128xf32>
    %329 = math.exp %328 : vector<8x128xf32>
    %cst_61 = arith.constant 1.000000e+00 : f32
    %330 = vector.broadcast %cst_61 : f32 to vector<8x128xf32>
    %331 = arith.addf %330, %329 : vector<8x128xf32>
    %332 = arith.divf %330, %331 : vector<8x128xf32>
    %333 = vector.extract_strided_slice %314 {offsets = [0, 384], sizes = [8, 128], strides = [1, 1]} : vector<8x512xf32> to vector<8x128xf32>
    %334 = math.tanh %333 : vector<8x128xf32>
    %335 = arith.mulf %326, %306 : vector<8x128xf32>
    %336 = arith.mulf %320, %334 : vector<8x128xf32>
    %337 = arith.addf %335, %336 : vector<8x128xf32>
    %338 = math.tanh %337 : vector<8x128xf32>
    %339 = arith.mulf %332, %338 : vector<8x128xf32>
    %c64_i32 = arith.constant 64 : i32
    %340 = vector.broadcast %c64_i32 : i32 to vector<1x128xi32>
    %341 = arith.cmpi slt, %304, %340 : vector<1x128xi32>
    %342 = vector.broadcast %308 : i32 to vector<1x128xi32>
    %343 = vector.broadcast %309 : i32 to vector<1x128xi32>
    %344 = arith.select %341, %342, %343 : vector<1x128xi1>, vector<1x128xi32>
    %345 = vector.broadcast %344 : vector<1x128xi32> to vector<8x128xi32>
    %346 = vector.broadcast %303 : vector<8x1xi32> to vector<8x128xi32>
    %347 = arith.cmpi slt, %345, %346 : vector<8x128xi32>
    %348 = arith.select %347, %339, %305 : vector<8x128xi1>, vector<8x128xf32>
    %349 = arith.select %347, %337, %306 : vector<8x128xi1>, vector<8x128xf32>
    %c16_i32_62 = arith.constant 16 : i32
    %350 = arith.muli %arg1, %c16_i32_62 : i32
    %c1_i32 = arith.constant 1 : i32
    %351 = arith.addi %350, %c1_i32 : i32
    %c15_i32_63 = arith.constant 15 : i32
    %352 = arith.subi %c15_i32_63, %351 : i32
    %c1_64 = arith.constant 1 : index
    %c0_65 = arith.constant 0 : index
    %c0_66 = arith.constant 0 : index
    %353 = vector.load %arg14[%c1_64, %c0_65, %c0_66] : memref<16x8x512xf32, #tpu.memory_space<vmem>>, vector<1x8x512xf32>
    %354 = vector.shape_cast %353 : vector<1x8x512xf32> to vector<8x512xf32>
    %355 = arith.truncf %348 : vector<8x128xf32> to vector<8x128xbf16>
    %cst_67 = arith.constant dense<0.000000e+00> : vector<8x512xf32>
    %356 = tpu.matmul %355, %302, %cst_67 {dimension_numbers = #tpu.dot_dimension_numbers<[1], [0], [0], [1], [0, 0, 1, 1], [], []>} : vector<8x128xbf16>, vector<128x512xbf16>, vector<8x512xf32> -> vector<8x512xf32>
    %357 = arith.addf %354, %356 : vector<8x512xf32>
    %358 = vector.extract_strided_slice %357 {offsets = [0, 0], sizes = [8, 128], strides = [1, 1]} : vector<8x512xf32> to vector<8x128xf32>
    %359 = arith.negf %358 : vector<8x128xf32>
    %360 = math.exp %359 : vector<8x128xf32>
    %cst_68 = arith.constant 1.000000e+00 : f32
    %361 = vector.broadcast %cst_68 : f32 to vector<8x128xf32>
    %362 = arith.addf %361, %360 : vector<8x128xf32>
    %363 = arith.divf %361, %362 : vector<8x128xf32>
    %364 = vector.extract_strided_slice %357 {offsets = [0, 128], sizes = [8, 128], strides = [1, 1]} : vector<8x512xf32> to vector<8x128xf32>
    %365 = arith.negf %364 : vector<8x128xf32>
    %366 = math.exp %365 : vector<8x128xf32>
    %cst_69 = arith.constant 1.000000e+00 : f32
    %367 = vector.broadcast %cst_69 : f32 to vector<8x128xf32>
    %368 = arith.addf %367, %366 : vector<8x128xf32>
    %369 = arith.divf %367, %368 : vector<8x128xf32>
    %370 = vector.extract_strided_slice %357 {offsets = [0, 256], sizes = [8, 128], strides = [1, 1]} : vector<8x512xf32> to vector<8x128xf32>
    %371 = arith.negf %370 : vector<8x128xf32>
    %372 = math.exp %371 : vector<8x128xf32>
    %cst_70 = arith.constant 1.000000e+00 : f32
    %373 = vector.broadcast %cst_70 : f32 to vector<8x128xf32>
    %374 = arith.addf %373, %372 : vector<8x128xf32>
    %375 = arith.divf %373, %374 : vector<8x128xf32>
    %376 = vector.extract_strided_slice %357 {offsets = [0, 384], sizes = [8, 128], strides = [1, 1]} : vector<8x512xf32> to vector<8x128xf32>
    %377 = math.tanh %376 : vector<8x128xf32>
    %378 = arith.mulf %369, %349 : vector<8x128xf32>
    %379 = arith.mulf %363, %377 : vector<8x128xf32>
    %380 = arith.addf %378, %379 : vector<8x128xf32>
    %381 = math.tanh %380 : vector<8x128xf32>
    %382 = arith.mulf %375, %381 : vector<8x128xf32>
    %c64_i32_71 = arith.constant 64 : i32
    %383 = vector.broadcast %c64_i32_71 : i32 to vector<1x128xi32>
    %384 = arith.cmpi slt, %304, %383 : vector<1x128xi32>
    %385 = vector.broadcast %351 : i32 to vector<1x128xi32>
    %386 = vector.broadcast %352 : i32 to vector<1x128xi32>
    %387 = arith.select %384, %385, %386 : vector<1x128xi1>, vector<1x128xi32>
    %388 = vector.broadcast %387 : vector<1x128xi32> to vector<8x128xi32>
    %389 = vector.broadcast %303 : vector<8x1xi32> to vector<8x128xi32>
    %390 = arith.cmpi slt, %388, %389 : vector<8x128xi32>
    %391 = arith.select %390, %382, %348 : vector<8x128xi1>, vector<8x128xf32>
    %392 = arith.select %390, %380, %349 : vector<8x128xi1>, vector<8x128xf32>
    %c16_i32_72 = arith.constant 16 : i32
    %393 = arith.muli %arg1, %c16_i32_72 : i32
    %c2_i32 = arith.constant 2 : i32
    %394 = arith.addi %393, %c2_i32 : i32
    %c15_i32_73 = arith.constant 15 : i32
    %395 = arith.subi %c15_i32_73, %394 : i32
    %c2_74 = arith.constant 2 : index
    %c0_75 = arith.constant 0 : index
    %c0_76 = arith.constant 0 : index
    %396 = vector.load %arg14[%c2_74, %c0_75, %c0_76] : memref<16x8x512xf32, #tpu.memory_space<vmem>>, vector<1x8x512xf32>
    %397 = vector.shape_cast %396 : vector<1x8x512xf32> to vector<8x512xf32>
    %398 = arith.truncf %391 : vector<8x128xf32> to vector<8x128xbf16>
    %cst_77 = arith.constant dense<0.000000e+00> : vector<8x512xf32>
    %399 = tpu.matmul %398, %302, %cst_77 {dimension_numbers = #tpu.dot_dimension_numbers<[1], [0], [0], [1], [0, 0, 1, 1], [], []>} : vector<8x128xbf16>, vector<128x512xbf16>, vector<8x512xf32> -> vector<8x512xf32>
    %400 = arith.addf %397, %399 : vector<8x512xf32>
    %401 = vector.extract_strided_slice %400 {offsets = [0, 0], sizes = [8, 128], strides = [1, 1]} : vector<8x512xf32> to vector<8x128xf32>
    %402 = arith.negf %401 : vector<8x128xf32>
    %403 = math.exp %402 : vector<8x128xf32>
    %cst_78 = arith.constant 1.000000e+00 : f32
    %404 = vector.broadcast %cst_78 : f32 to vector<8x128xf32>
    %405 = arith.addf %404, %403 : vector<8x128xf32>
    %406 = arith.divf %404, %405 : vector<8x128xf32>
    %407 = vector.extract_strided_slice %400 {offsets = [0, 128], sizes = [8, 128], strides = [1, 1]} : vector<8x512xf32> to vector<8x128xf32>
    %408 = arith.negf %407 : vector<8x128xf32>
    %409 = math.exp %408 : vector<8x128xf32>
    %cst_79 = arith.constant 1.000000e+00 : f32
    %410 = vector.broadcast %cst_79 : f32 to vector<8x128xf32>
    %411 = arith.addf %410, %409 : vector<8x128xf32>
    %412 = arith.divf %410, %411 : vector<8x128xf32>
    %413 = vector.extract_strided_slice %400 {offsets = [0, 256], sizes = [8, 128], strides = [1, 1]} : vector<8x512xf32> to vector<8x128xf32>
    %414 = arith.negf %413 : vector<8x128xf32>
    %415 = math.exp %414 : vector<8x128xf32>
    %cst_80 = arith.constant 1.000000e+00 : f32
    %416 = vector.broadcast %cst_80 : f32 to vector<8x128xf32>
    %417 = arith.addf %416, %415 : vector<8x128xf32>
    %418 = arith.divf %416, %417 : vector<8x128xf32>
    %419 = vector.extract_strided_slice %400 {offsets = [0, 384], sizes = [8, 128], strides = [1, 1]} : vector<8x512xf32> to vector<8x128xf32>
    %420 = math.tanh %419 : vector<8x128xf32>
    %421 = arith.mulf %412, %392 : vector<8x128xf32>
    %422 = arith.mulf %406, %420 : vector<8x128xf32>
    %423 = arith.addf %421, %422 : vector<8x128xf32>
    %424 = math.tanh %423 : vector<8x128xf32>
    %425 = arith.mulf %418, %424 : vector<8x128xf32>
    %c64_i32_81 = arith.constant 64 : i32
    %426 = vector.broadcast %c64_i32_81 : i32 to vector<1x128xi32>
    %427 = arith.cmpi slt, %304, %426 : vector<1x128xi32>
    %428 = vector.broadcast %394 : i32 to vector<1x128xi32>
    %429 = vector.broadcast %395 : i32 to vector<1x128xi32>
    %430 = arith.select %427, %428, %429 : vector<1x128xi1>, vector<1x128xi32>
    %431 = vector.broadcast %430 : vector<1x128xi32> to vector<8x128xi32>
    %432 = vector.broadcast %303 : vector<8x1xi32> to vector<8x128xi32>
    %433 = arith.cmpi slt, %431, %432 : vector<8x128xi32>
    %434 = arith.select %433, %425, %391 : vector<8x128xi1>, vector<8x128xf32>
    %435 = arith.select %433, %423, %392 : vector<8x128xi1>, vector<8x128xf32>
    %c16_i32_82 = arith.constant 16 : i32
    %436 = arith.muli %arg1, %c16_i32_82 : i32
    %c3_i32 = arith.constant 3 : i32
    %437 = arith.addi %436, %c3_i32 : i32
    %c15_i32_83 = arith.constant 15 : i32
    %438 = arith.subi %c15_i32_83, %437 : i32
    %c3_84 = arith.constant 3 : index
    %c0_85 = arith.constant 0 : index
    %c0_86 = arith.constant 0 : index
    %439 = vector.load %arg14[%c3_84, %c0_85, %c0_86] : memref<16x8x512xf32, #tpu.memory_space<vmem>>, vector<1x8x512xf32>
    %440 = vector.shape_cast %439 : vector<1x8x512xf32> to vector<8x512xf32>
    %441 = arith.truncf %434 : vector<8x128xf32> to vector<8x128xbf16>
    %cst_87 = arith.constant dense<0.000000e+00> : vector<8x512xf32>
    %442 = tpu.matmul %441, %302, %cst_87 {dimension_numbers = #tpu.dot_dimension_numbers<[1], [0], [0], [1], [0, 0, 1, 1], [], []>} : vector<8x128xbf16>, vector<128x512xbf16>, vector<8x512xf32> -> vector<8x512xf32>
    %443 = arith.addf %440, %442 : vector<8x512xf32>
    %444 = vector.extract_strided_slice %443 {offsets = [0, 0], sizes = [8, 128], strides = [1, 1]} : vector<8x512xf32> to vector<8x128xf32>
    %445 = arith.negf %444 : vector<8x128xf32>
    %446 = math.exp %445 : vector<8x128xf32>
    %cst_88 = arith.constant 1.000000e+00 : f32
    %447 = vector.broadcast %cst_88 : f32 to vector<8x128xf32>
    %448 = arith.addf %447, %446 : vector<8x128xf32>
    %449 = arith.divf %447, %448 : vector<8x128xf32>
    %450 = vector.extract_strided_slice %443 {offsets = [0, 128], sizes = [8, 128], strides = [1, 1]} : vector<8x512xf32> to vector<8x128xf32>
    %451 = arith.negf %450 : vector<8x128xf32>
    %452 = math.exp %451 : vector<8x128xf32>
    %cst_89 = arith.constant 1.000000e+00 : f32
    %453 = vector.broadcast %cst_89 : f32 to vector<8x128xf32>
    %454 = arith.addf %453, %452 : vector<8x128xf32>
    %455 = arith.divf %453, %454 : vector<8x128xf32>
    %456 = vector.extract_strided_slice %443 {offsets = [0, 256], sizes = [8, 128], strides = [1, 1]} : vector<8x512xf32> to vector<8x128xf32>
    %457 = arith.negf %456 : vector<8x128xf32>
    %458 = math.exp %457 : vector<8x128xf32>
    %cst_90 = arith.constant 1.000000e+00 : f32
    %459 = vector.broadcast %cst_90 : f32 to vector<8x128xf32>
    %460 = arith.addf %459, %458 : vector<8x128xf32>
    %461 = arith.divf %459, %460 : vector<8x128xf32>
    %462 = vector.extract_strided_slice %443 {offsets = [0, 384], sizes = [8, 128], strides = [1, 1]} : vector<8x512xf32> to vector<8x128xf32>
    %463 = math.tanh %462 : vector<8x128xf32>
    %464 = arith.mulf %455, %435 : vector<8x128xf32>
    %465 = arith.mulf %449, %463 : vector<8x128xf32>
    %466 = arith.addf %464, %465 : vector<8x128xf32>
    %467 = math.tanh %466 : vector<8x128xf32>
    %468 = arith.mulf %461, %467 : vector<8x128xf32>
    %c64_i32_91 = arith.constant 64 : i32
    %469 = vector.broadcast %c64_i32_91 : i32 to vector<1x128xi32>
    %470 = arith.cmpi slt, %304, %469 : vector<1x128xi32>
    %471 = vector.broadcast %437 : i32 to vector<1x128xi32>
    %472 = vector.broadcast %438 : i32 to vector<1x128xi32>
    %473 = arith.select %470, %471, %472 : vector<1x128xi1>, vector<1x128xi32>
    %474 = vector.broadcast %473 : vector<1x128xi32> to vector<8x128xi32>
    %475 = vector.broadcast %303 : vector<8x1xi32> to vector<8x128xi32>
    %476 = arith.cmpi slt, %474, %475 : vector<8x128xi32>
    %477 = arith.select %476, %468, %434 : vector<8x128xi1>, vector<8x128xf32>
    %478 = arith.select %476, %466, %435 : vector<8x128xi1>, vector<8x128xf32>
    %c16_i32_92 = arith.constant 16 : i32
    %479 = arith.muli %arg1, %c16_i32_92 : i32
    %c4_i32 = arith.constant 4 : i32
    %480 = arith.addi %479, %c4_i32 : i32
    %c15_i32_93 = arith.constant 15 : i32
    %481 = arith.subi %c15_i32_93, %480 : i32
    %c4_94 = arith.constant 4 : index
    %c0_95 = arith.constant 0 : index
    %c0_96 = arith.constant 0 : index
    %482 = vector.load %arg14[%c4_94, %c0_95, %c0_96] : memref<16x8x512xf32, #tpu.memory_space<vmem>>, vector<1x8x512xf32>
    %483 = vector.shape_cast %482 : vector<1x8x512xf32> to vector<8x512xf32>
    %484 = arith.truncf %477 : vector<8x128xf32> to vector<8x128xbf16>
    %cst_97 = arith.constant dense<0.000000e+00> : vector<8x512xf32>
    %485 = tpu.matmul %484, %302, %cst_97 {dimension_numbers = #tpu.dot_dimension_numbers<[1], [0], [0], [1], [0, 0, 1, 1], [], []>} : vector<8x128xbf16>, vector<128x512xbf16>, vector<8x512xf32> -> vector<8x512xf32>
    %486 = arith.addf %483, %485 : vector<8x512xf32>
    %487 = vector.extract_strided_slice %486 {offsets = [0, 0], sizes = [8, 128], strides = [1, 1]} : vector<8x512xf32> to vector<8x128xf32>
    %488 = arith.negf %487 : vector<8x128xf32>
    %489 = math.exp %488 : vector<8x128xf32>
    %cst_98 = arith.constant 1.000000e+00 : f32
    %490 = vector.broadcast %cst_98 : f32 to vector<8x128xf32>
    %491 = arith.addf %490, %489 : vector<8x128xf32>
    %492 = arith.divf %490, %491 : vector<8x128xf32>
    %493 = vector.extract_strided_slice %486 {offsets = [0, 128], sizes = [8, 128], strides = [1, 1]} : vector<8x512xf32> to vector<8x128xf32>
    %494 = arith.negf %493 : vector<8x128xf32>
    %495 = math.exp %494 : vector<8x128xf32>
    %cst_99 = arith.constant 1.000000e+00 : f32
    %496 = vector.broadcast %cst_99 : f32 to vector<8x128xf32>
    %497 = arith.addf %496, %495 : vector<8x128xf32>
    %498 = arith.divf %496, %497 : vector<8x128xf32>
    %499 = vector.extract_strided_slice %486 {offsets = [0, 256], sizes = [8, 128], strides = [1, 1]} : vector<8x512xf32> to vector<8x128xf32>
    %500 = arith.negf %499 : vector<8x128xf32>
    %501 = math.exp %500 : vector<8x128xf32>
    %cst_100 = arith.constant 1.000000e+00 : f32
    %502 = vector.broadcast %cst_100 : f32 to vector<8x128xf32>
    %503 = arith.addf %502, %501 : vector<8x128xf32>
    %504 = arith.divf %502, %503 : vector<8x128xf32>
    %505 = vector.extract_strided_slice %486 {offsets = [0, 384], sizes = [8, 128], strides = [1, 1]} : vector<8x512xf32> to vector<8x128xf32>
    %506 = math.tanh %505 : vector<8x128xf32>
    %507 = arith.mulf %498, %478 : vector<8x128xf32>
    %508 = arith.mulf %492, %506 : vector<8x128xf32>
    %509 = arith.addf %507, %508 : vector<8x128xf32>
    %510 = math.tanh %509 : vector<8x128xf32>
    %511 = arith.mulf %504, %510 : vector<8x128xf32>
    %c64_i32_101 = arith.constant 64 : i32
    %512 = vector.broadcast %c64_i32_101 : i32 to vector<1x128xi32>
    %513 = arith.cmpi slt, %304, %512 : vector<1x128xi32>
    %514 = vector.broadcast %480 : i32 to vector<1x128xi32>
    %515 = vector.broadcast %481 : i32 to vector<1x128xi32>
    %516 = arith.select %513, %514, %515 : vector<1x128xi1>, vector<1x128xi32>
    %517 = vector.broadcast %516 : vector<1x128xi32> to vector<8x128xi32>
    %518 = vector.broadcast %303 : vector<8x1xi32> to vector<8x128xi32>
    %519 = arith.cmpi slt, %517, %518 : vector<8x128xi32>
    %520 = arith.select %519, %511, %477 : vector<8x128xi1>, vector<8x128xf32>
    %521 = arith.select %519, %509, %478 : vector<8x128xi1>, vector<8x128xf32>
    %c16_i32_102 = arith.constant 16 : i32
    %522 = arith.muli %arg1, %c16_i32_102 : i32
    %c5_i32 = arith.constant 5 : i32
    %523 = arith.addi %522, %c5_i32 : i32
    %c15_i32_103 = arith.constant 15 : i32
    %524 = arith.subi %c15_i32_103, %523 : i32
    %c5_104 = arith.constant 5 : index
    %c0_105 = arith.constant 0 : index
    %c0_106 = arith.constant 0 : index
    %525 = vector.load %arg14[%c5_104, %c0_105, %c0_106] : memref<16x8x512xf32, #tpu.memory_space<vmem>>, vector<1x8x512xf32>
    %526 = vector.shape_cast %525 : vector<1x8x512xf32> to vector<8x512xf32>
    %527 = arith.truncf %520 : vector<8x128xf32> to vector<8x128xbf16>
    %cst_107 = arith.constant dense<0.000000e+00> : vector<8x512xf32>
    %528 = tpu.matmul %527, %302, %cst_107 {dimension_numbers = #tpu.dot_dimension_numbers<[1], [0], [0], [1], [0, 0, 1, 1], [], []>} : vector<8x128xbf16>, vector<128x512xbf16>, vector<8x512xf32> -> vector<8x512xf32>
    %529 = arith.addf %526, %528 : vector<8x512xf32>
    %530 = vector.extract_strided_slice %529 {offsets = [0, 0], sizes = [8, 128], strides = [1, 1]} : vector<8x512xf32> to vector<8x128xf32>
    %531 = arith.negf %530 : vector<8x128xf32>
    %532 = math.exp %531 : vector<8x128xf32>
    %cst_108 = arith.constant 1.000000e+00 : f32
    %533 = vector.broadcast %cst_108 : f32 to vector<8x128xf32>
    %534 = arith.addf %533, %532 : vector<8x128xf32>
    %535 = arith.divf %533, %534 : vector<8x128xf32>
    %536 = vector.extract_strided_slice %529 {offsets = [0, 128], sizes = [8, 128], strides = [1, 1]} : vector<8x512xf32> to vector<8x128xf32>
    %537 = arith.negf %536 : vector<8x128xf32>
    %538 = math.exp %537 : vector<8x128xf32>
    %cst_109 = arith.constant 1.000000e+00 : f32
    %539 = vector.broadcast %cst_109 : f32 to vector<8x128xf32>
    %540 = arith.addf %539, %538 : vector<8x128xf32>
    %541 = arith.divf %539, %540 : vector<8x128xf32>
    %542 = vector.extract_strided_slice %529 {offsets = [0, 256], sizes = [8, 128], strides = [1, 1]} : vector<8x512xf32> to vector<8x128xf32>
    %543 = arith.negf %542 : vector<8x128xf32>
    %544 = math.exp %543 : vector<8x128xf32>
    %cst_110 = arith.constant 1.000000e+00 : f32
    %545 = vector.broadcast %cst_110 : f32 to vector<8x128xf32>
    %546 = arith.addf %545, %544 : vector<8x128xf32>
    %547 = arith.divf %545, %546 : vector<8x128xf32>
    %548 = vector.extract_strided_slice %529 {offsets = [0, 384], sizes = [8, 128], strides = [1, 1]} : vector<8x512xf32> to vector<8x128xf32>
    %549 = math.tanh %548 : vector<8x128xf32>
    %550 = arith.mulf %541, %521 : vector<8x128xf32>
    %551 = arith.mulf %535, %549 : vector<8x128xf32>
    %552 = arith.addf %550, %551 : vector<8x128xf32>
    %553 = math.tanh %552 : vector<8x128xf32>
    %554 = arith.mulf %547, %553 : vector<8x128xf32>
    %c64_i32_111 = arith.constant 64 : i32
    %555 = vector.broadcast %c64_i32_111 : i32 to vector<1x128xi32>
    %556 = arith.cmpi slt, %304, %555 : vector<1x128xi32>
    %557 = vector.broadcast %523 : i32 to vector<1x128xi32>
    %558 = vector.broadcast %524 : i32 to vector<1x128xi32>
    %559 = arith.select %556, %557, %558 : vector<1x128xi1>, vector<1x128xi32>
    %560 = vector.broadcast %559 : vector<1x128xi32> to vector<8x128xi32>
    %561 = vector.broadcast %303 : vector<8x1xi32> to vector<8x128xi32>
    %562 = arith.cmpi slt, %560, %561 : vector<8x128xi32>
    %563 = arith.select %562, %554, %520 : vector<8x128xi1>, vector<8x128xf32>
    %564 = arith.select %562, %552, %521 : vector<8x128xi1>, vector<8x128xf32>
    %c16_i32_112 = arith.constant 16 : i32
    %565 = arith.muli %arg1, %c16_i32_112 : i32
    %c6_i32 = arith.constant 6 : i32
    %566 = arith.addi %565, %c6_i32 : i32
    %c15_i32_113 = arith.constant 15 : i32
    %567 = arith.subi %c15_i32_113, %566 : i32
    %c6_114 = arith.constant 6 : index
    %c0_115 = arith.constant 0 : index
    %c0_116 = arith.constant 0 : index
    %568 = vector.load %arg14[%c6_114, %c0_115, %c0_116] : memref<16x8x512xf32, #tpu.memory_space<vmem>>, vector<1x8x512xf32>
    %569 = vector.shape_cast %568 : vector<1x8x512xf32> to vector<8x512xf32>
    %570 = arith.truncf %563 : vector<8x128xf32> to vector<8x128xbf16>
    %cst_117 = arith.constant dense<0.000000e+00> : vector<8x512xf32>
    %571 = tpu.matmul %570, %302, %cst_117 {dimension_numbers = #tpu.dot_dimension_numbers<[1], [0], [0], [1], [0, 0, 1, 1], [], []>} : vector<8x128xbf16>, vector<128x512xbf16>, vector<8x512xf32> -> vector<8x512xf32>
    %572 = arith.addf %569, %571 : vector<8x512xf32>
    %573 = vector.extract_strided_slice %572 {offsets = [0, 0], sizes = [8, 128], strides = [1, 1]} : vector<8x512xf32> to vector<8x128xf32>
    %574 = arith.negf %573 : vector<8x128xf32>
    %575 = math.exp %574 : vector<8x128xf32>
    %cst_118 = arith.constant 1.000000e+00 : f32
    %576 = vector.broadcast %cst_118 : f32 to vector<8x128xf32>
    %577 = arith.addf %576, %575 : vector<8x128xf32>
    %578 = arith.divf %576, %577 : vector<8x128xf32>
    %579 = vector.extract_strided_slice %572 {offsets = [0, 128], sizes = [8, 128], strides = [1, 1]} : vector<8x512xf32> to vector<8x128xf32>
    %580 = arith.negf %579 : vector<8x128xf32>
    %581 = math.exp %580 : vector<8x128xf32>
    %cst_119 = arith.constant 1.000000e+00 : f32
    %582 = vector.broadcast %cst_119 : f32 to vector<8x128xf32>
    %583 = arith.addf %582, %581 : vector<8x128xf32>
    %584 = arith.divf %582, %583 : vector<8x128xf32>
    %585 = vector.extract_strided_slice %572 {offsets = [0, 256], sizes = [8, 128], strides = [1, 1]} : vector<8x512xf32> to vector<8x128xf32>
    %586 = arith.negf %585 : vector<8x128xf32>
    %587 = math.exp %586 : vector<8x128xf32>
    %cst_120 = arith.constant 1.000000e+00 : f32
    %588 = vector.broadcast %cst_120 : f32 to vector<8x128xf32>
    %589 = arith.addf %588, %587 : vector<8x128xf32>
    %590 = arith.divf %588, %589 : vector<8x128xf32>
    %591 = vector.extract_strided_slice %572 {offsets = [0, 384], sizes = [8, 128], strides = [1, 1]} : vector<8x512xf32> to vector<8x128xf32>
    %592 = math.tanh %591 : vector<8x128xf32>
    %593 = arith.mulf %584, %564 : vector<8x128xf32>
    %594 = arith.mulf %578, %592 : vector<8x128xf32>
    %595 = arith.addf %593, %594 : vector<8x128xf32>
    %596 = math.tanh %595 : vector<8x128xf32>
    %597 = arith.mulf %590, %596 : vector<8x128xf32>
    %c64_i32_121 = arith.constant 64 : i32
    %598 = vector.broadcast %c64_i32_121 : i32 to vector<1x128xi32>
    %599 = arith.cmpi slt, %304, %598 : vector<1x128xi32>
    %600 = vector.broadcast %566 : i32 to vector<1x128xi32>
    %601 = vector.broadcast %567 : i32 to vector<1x128xi32>
    %602 = arith.select %599, %600, %601 : vector<1x128xi1>, vector<1x128xi32>
    %603 = vector.broadcast %602 : vector<1x128xi32> to vector<8x128xi32>
    %604 = vector.broadcast %303 : vector<8x1xi32> to vector<8x128xi32>
    %605 = arith.cmpi slt, %603, %604 : vector<8x128xi32>
    %606 = arith.select %605, %597, %563 : vector<8x128xi1>, vector<8x128xf32>
    %607 = arith.select %605, %595, %564 : vector<8x128xi1>, vector<8x128xf32>
    %c16_i32_122 = arith.constant 16 : i32
    %608 = arith.muli %arg1, %c16_i32_122 : i32
    %c7_i32 = arith.constant 7 : i32
    %609 = arith.addi %608, %c7_i32 : i32
    %c15_i32_123 = arith.constant 15 : i32
    %610 = arith.subi %c15_i32_123, %609 : i32
    %c7_124 = arith.constant 7 : index
    %c0_125 = arith.constant 0 : index
    %c0_126 = arith.constant 0 : index
    %611 = vector.load %arg14[%c7_124, %c0_125, %c0_126] : memref<16x8x512xf32, #tpu.memory_space<vmem>>, vector<1x8x512xf32>
    %612 = vector.shape_cast %611 : vector<1x8x512xf32> to vector<8x512xf32>
    %613 = arith.truncf %606 : vector<8x128xf32> to vector<8x128xbf16>
    %cst_127 = arith.constant dense<0.000000e+00> : vector<8x512xf32>
    %614 = tpu.matmul %613, %302, %cst_127 {dimension_numbers = #tpu.dot_dimension_numbers<[1], [0], [0], [1], [0, 0, 1, 1], [], []>} : vector<8x128xbf16>, vector<128x512xbf16>, vector<8x512xf32> -> vector<8x512xf32>
    %615 = arith.addf %612, %614 : vector<8x512xf32>
    %616 = vector.extract_strided_slice %615 {offsets = [0, 0], sizes = [8, 128], strides = [1, 1]} : vector<8x512xf32> to vector<8x128xf32>
    %617 = arith.negf %616 : vector<8x128xf32>
    %618 = math.exp %617 : vector<8x128xf32>
    %cst_128 = arith.constant 1.000000e+00 : f32
    %619 = vector.broadcast %cst_128 : f32 to vector<8x128xf32>
    %620 = arith.addf %619, %618 : vector<8x128xf32>
    %621 = arith.divf %619, %620 : vector<8x128xf32>
    %622 = vector.extract_strided_slice %615 {offsets = [0, 128], sizes = [8, 128], strides = [1, 1]} : vector<8x512xf32> to vector<8x128xf32>
    %623 = arith.negf %622 : vector<8x128xf32>
    %624 = math.exp %623 : vector<8x128xf32>
    %cst_129 = arith.constant 1.000000e+00 : f32
    %625 = vector.broadcast %cst_129 : f32 to vector<8x128xf32>
    %626 = arith.addf %625, %624 : vector<8x128xf32>
    %627 = arith.divf %625, %626 : vector<8x128xf32>
    %628 = vector.extract_strided_slice %615 {offsets = [0, 256], sizes = [8, 128], strides = [1, 1]} : vector<8x512xf32> to vector<8x128xf32>
    %629 = arith.negf %628 : vector<8x128xf32>
    %630 = math.exp %629 : vector<8x128xf32>
    %cst_130 = arith.constant 1.000000e+00 : f32
    %631 = vector.broadcast %cst_130 : f32 to vector<8x128xf32>
    %632 = arith.addf %631, %630 : vector<8x128xf32>
    %633 = arith.divf %631, %632 : vector<8x128xf32>
    %634 = vector.extract_strided_slice %615 {offsets = [0, 384], sizes = [8, 128], strides = [1, 1]} : vector<8x512xf32> to vector<8x128xf32>
    %635 = math.tanh %634 : vector<8x128xf32>
    %636 = arith.mulf %627, %607 : vector<8x128xf32>
    %637 = arith.mulf %621, %635 : vector<8x128xf32>
    %638 = arith.addf %636, %637 : vector<8x128xf32>
    %639 = math.tanh %638 : vector<8x128xf32>
    %640 = arith.mulf %633, %639 : vector<8x128xf32>
    %c64_i32_131 = arith.constant 64 : i32
    %641 = vector.broadcast %c64_i32_131 : i32 to vector<1x128xi32>
    %642 = arith.cmpi slt, %304, %641 : vector<1x128xi32>
    %643 = vector.broadcast %609 : i32 to vector<1x128xi32>
    %644 = vector.broadcast %610 : i32 to vector<1x128xi32>
    %645 = arith.select %642, %643, %644 : vector<1x128xi1>, vector<1x128xi32>
    %646 = vector.broadcast %645 : vector<1x128xi32> to vector<8x128xi32>
    %647 = vector.broadcast %303 : vector<8x1xi32> to vector<8x128xi32>
    %648 = arith.cmpi slt, %646, %647 : vector<8x128xi32>
    %649 = arith.select %648, %640, %606 : vector<8x128xi1>, vector<8x128xf32>
    %650 = arith.select %648, %638, %607 : vector<8x128xi1>, vector<8x128xf32>
    %c16_i32_132 = arith.constant 16 : i32
    %651 = arith.muli %arg1, %c16_i32_132 : i32
    %c8_i32 = arith.constant 8 : i32
    %652 = arith.addi %651, %c8_i32 : i32
    %c15_i32_133 = arith.constant 15 : i32
    %653 = arith.subi %c15_i32_133, %652 : i32
    %c8_134 = arith.constant 8 : index
    %c0_135 = arith.constant 0 : index
    %c0_136 = arith.constant 0 : index
    %654 = vector.load %arg14[%c8_134, %c0_135, %c0_136] : memref<16x8x512xf32, #tpu.memory_space<vmem>>, vector<1x8x512xf32>
    %655 = vector.shape_cast %654 : vector<1x8x512xf32> to vector<8x512xf32>
    %656 = arith.truncf %649 : vector<8x128xf32> to vector<8x128xbf16>
    %cst_137 = arith.constant dense<0.000000e+00> : vector<8x512xf32>
    %657 = tpu.matmul %656, %302, %cst_137 {dimension_numbers = #tpu.dot_dimension_numbers<[1], [0], [0], [1], [0, 0, 1, 1], [], []>} : vector<8x128xbf16>, vector<128x512xbf16>, vector<8x512xf32> -> vector<8x512xf32>
    %658 = arith.addf %655, %657 : vector<8x512xf32>
    %659 = vector.extract_strided_slice %658 {offsets = [0, 0], sizes = [8, 128], strides = [1, 1]} : vector<8x512xf32> to vector<8x128xf32>
    %660 = arith.negf %659 : vector<8x128xf32>
    %661 = math.exp %660 : vector<8x128xf32>
    %cst_138 = arith.constant 1.000000e+00 : f32
    %662 = vector.broadcast %cst_138 : f32 to vector<8x128xf32>
    %663 = arith.addf %662, %661 : vector<8x128xf32>
    %664 = arith.divf %662, %663 : vector<8x128xf32>
    %665 = vector.extract_strided_slice %658 {offsets = [0, 128], sizes = [8, 128], strides = [1, 1]} : vector<8x512xf32> to vector<8x128xf32>
    %666 = arith.negf %665 : vector<8x128xf32>
    %667 = math.exp %666 : vector<8x128xf32>
    %cst_139 = arith.constant 1.000000e+00 : f32
    %668 = vector.broadcast %cst_139 : f32 to vector<8x128xf32>
    %669 = arith.addf %668, %667 : vector<8x128xf32>
    %670 = arith.divf %668, %669 : vector<8x128xf32>
    %671 = vector.extract_strided_slice %658 {offsets = [0, 256], sizes = [8, 128], strides = [1, 1]} : vector<8x512xf32> to vector<8x128xf32>
    %672 = arith.negf %671 : vector<8x128xf32>
    %673 = math.exp %672 : vector<8x128xf32>
    %cst_140 = arith.constant 1.000000e+00 : f32
    %674 = vector.broadcast %cst_140 : f32 to vector<8x128xf32>
    %675 = arith.addf %674, %673 : vector<8x128xf32>
    %676 = arith.divf %674, %675 : vector<8x128xf32>
    %677 = vector.extract_strided_slice %658 {offsets = [0, 384], sizes = [8, 128], strides = [1, 1]} : vector<8x512xf32> to vector<8x128xf32>
    %678 = math.tanh %677 : vector<8x128xf32>
    %679 = arith.mulf %670, %650 : vector<8x128xf32>
    %680 = arith.mulf %664, %678 : vector<8x128xf32>
    %681 = arith.addf %679, %680 : vector<8x128xf32>
    %682 = math.tanh %681 : vector<8x128xf32>
    %683 = arith.mulf %676, %682 : vector<8x128xf32>
    %c64_i32_141 = arith.constant 64 : i32
    %684 = vector.broadcast %c64_i32_141 : i32 to vector<1x128xi32>
    %685 = arith.cmpi slt, %304, %684 : vector<1x128xi32>
    %686 = vector.broadcast %652 : i32 to vector<1x128xi32>
    %687 = vector.broadcast %653 : i32 to vector<1x128xi32>
    %688 = arith.select %685, %686, %687 : vector<1x128xi1>, vector<1x128xi32>
    %689 = vector.broadcast %688 : vector<1x128xi32> to vector<8x128xi32>
    %690 = vector.broadcast %303 : vector<8x1xi32> to vector<8x128xi32>
    %691 = arith.cmpi slt, %689, %690 : vector<8x128xi32>
    %692 = arith.select %691, %683, %649 : vector<8x128xi1>, vector<8x128xf32>
    %693 = arith.select %691, %681, %650 : vector<8x128xi1>, vector<8x128xf32>
    %c16_i32_142 = arith.constant 16 : i32
    %694 = arith.muli %arg1, %c16_i32_142 : i32
    %c9_i32 = arith.constant 9 : i32
    %695 = arith.addi %694, %c9_i32 : i32
    %c15_i32_143 = arith.constant 15 : i32
    %696 = arith.subi %c15_i32_143, %695 : i32
    %c9_144 = arith.constant 9 : index
    %c0_145 = arith.constant 0 : index
    %c0_146 = arith.constant 0 : index
    %697 = vector.load %arg14[%c9_144, %c0_145, %c0_146] : memref<16x8x512xf32, #tpu.memory_space<vmem>>, vector<1x8x512xf32>
    %698 = vector.shape_cast %697 : vector<1x8x512xf32> to vector<8x512xf32>
    %699 = arith.truncf %692 : vector<8x128xf32> to vector<8x128xbf16>
    %cst_147 = arith.constant dense<0.000000e+00> : vector<8x512xf32>
    %700 = tpu.matmul %699, %302, %cst_147 {dimension_numbers = #tpu.dot_dimension_numbers<[1], [0], [0], [1], [0, 0, 1, 1], [], []>} : vector<8x128xbf16>, vector<128x512xbf16>, vector<8x512xf32> -> vector<8x512xf32>
    %701 = arith.addf %698, %700 : vector<8x512xf32>
    %702 = vector.extract_strided_slice %701 {offsets = [0, 0], sizes = [8, 128], strides = [1, 1]} : vector<8x512xf32> to vector<8x128xf32>
    %703 = arith.negf %702 : vector<8x128xf32>
    %704 = math.exp %703 : vector<8x128xf32>
    %cst_148 = arith.constant 1.000000e+00 : f32
    %705 = vector.broadcast %cst_148 : f32 to vector<8x128xf32>
    %706 = arith.addf %705, %704 : vector<8x128xf32>
    %707 = arith.divf %705, %706 : vector<8x128xf32>
    %708 = vector.extract_strided_slice %701 {offsets = [0, 128], sizes = [8, 128], strides = [1, 1]} : vector<8x512xf32> to vector<8x128xf32>
    %709 = arith.negf %708 : vector<8x128xf32>
    %710 = math.exp %709 : vector<8x128xf32>
    %cst_149 = arith.constant 1.000000e+00 : f32
    %711 = vector.broadcast %cst_149 : f32 to vector<8x128xf32>
    %712 = arith.addf %711, %710 : vector<8x128xf32>
    %713 = arith.divf %711, %712 : vector<8x128xf32>
    %714 = vector.extract_strided_slice %701 {offsets = [0, 256], sizes = [8, 128], strides = [1, 1]} : vector<8x512xf32> to vector<8x128xf32>
    %715 = arith.negf %714 : vector<8x128xf32>
    %716 = math.exp %715 : vector<8x128xf32>
    %cst_150 = arith.constant 1.000000e+00 : f32
    %717 = vector.broadcast %cst_150 : f32 to vector<8x128xf32>
    %718 = arith.addf %717, %716 : vector<8x128xf32>
    %719 = arith.divf %717, %718 : vector<8x128xf32>
    %720 = vector.extract_strided_slice %701 {offsets = [0, 384], sizes = [8, 128], strides = [1, 1]} : vector<8x512xf32> to vector<8x128xf32>
    %721 = math.tanh %720 : vector<8x128xf32>
    %722 = arith.mulf %713, %693 : vector<8x128xf32>
    %723 = arith.mulf %707, %721 : vector<8x128xf32>
    %724 = arith.addf %722, %723 : vector<8x128xf32>
    %725 = math.tanh %724 : vector<8x128xf32>
    %726 = arith.mulf %719, %725 : vector<8x128xf32>
    %c64_i32_151 = arith.constant 64 : i32
    %727 = vector.broadcast %c64_i32_151 : i32 to vector<1x128xi32>
    %728 = arith.cmpi slt, %304, %727 : vector<1x128xi32>
    %729 = vector.broadcast %695 : i32 to vector<1x128xi32>
    %730 = vector.broadcast %696 : i32 to vector<1x128xi32>
    %731 = arith.select %728, %729, %730 : vector<1x128xi1>, vector<1x128xi32>
    %732 = vector.broadcast %731 : vector<1x128xi32> to vector<8x128xi32>
    %733 = vector.broadcast %303 : vector<8x1xi32> to vector<8x128xi32>
    %734 = arith.cmpi slt, %732, %733 : vector<8x128xi32>
    %735 = arith.select %734, %726, %692 : vector<8x128xi1>, vector<8x128xf32>
    %736 = arith.select %734, %724, %693 : vector<8x128xi1>, vector<8x128xf32>
    %c16_i32_152 = arith.constant 16 : i32
    %737 = arith.muli %arg1, %c16_i32_152 : i32
    %c10_i32 = arith.constant 10 : i32
    %738 = arith.addi %737, %c10_i32 : i32
    %c15_i32_153 = arith.constant 15 : i32
    %739 = arith.subi %c15_i32_153, %738 : i32
    %c10_154 = arith.constant 10 : index
    %c0_155 = arith.constant 0 : index
    %c0_156 = arith.constant 0 : index
    %740 = vector.load %arg14[%c10_154, %c0_155, %c0_156] : memref<16x8x512xf32, #tpu.memory_space<vmem>>, vector<1x8x512xf32>
    %741 = vector.shape_cast %740 : vector<1x8x512xf32> to vector<8x512xf32>
    %742 = arith.truncf %735 : vector<8x128xf32> to vector<8x128xbf16>
    %cst_157 = arith.constant dense<0.000000e+00> : vector<8x512xf32>
    %743 = tpu.matmul %742, %302, %cst_157 {dimension_numbers = #tpu.dot_dimension_numbers<[1], [0], [0], [1], [0, 0, 1, 1], [], []>} : vector<8x128xbf16>, vector<128x512xbf16>, vector<8x512xf32> -> vector<8x512xf32>
    %744 = arith.addf %741, %743 : vector<8x512xf32>
    %745 = vector.extract_strided_slice %744 {offsets = [0, 0], sizes = [8, 128], strides = [1, 1]} : vector<8x512xf32> to vector<8x128xf32>
    %746 = arith.negf %745 : vector<8x128xf32>
    %747 = math.exp %746 : vector<8x128xf32>
    %cst_158 = arith.constant 1.000000e+00 : f32
    %748 = vector.broadcast %cst_158 : f32 to vector<8x128xf32>
    %749 = arith.addf %748, %747 : vector<8x128xf32>
    %750 = arith.divf %748, %749 : vector<8x128xf32>
    %751 = vector.extract_strided_slice %744 {offsets = [0, 128], sizes = [8, 128], strides = [1, 1]} : vector<8x512xf32> to vector<8x128xf32>
    %752 = arith.negf %751 : vector<8x128xf32>
    %753 = math.exp %752 : vector<8x128xf32>
    %cst_159 = arith.constant 1.000000e+00 : f32
    %754 = vector.broadcast %cst_159 : f32 to vector<8x128xf32>
    %755 = arith.addf %754, %753 : vector<8x128xf32>
    %756 = arith.divf %754, %755 : vector<8x128xf32>
    %757 = vector.extract_strided_slice %744 {offsets = [0, 256], sizes = [8, 128], strides = [1, 1]} : vector<8x512xf32> to vector<8x128xf32>
    %758 = arith.negf %757 : vector<8x128xf32>
    %759 = math.exp %758 : vector<8x128xf32>
    %cst_160 = arith.constant 1.000000e+00 : f32
    %760 = vector.broadcast %cst_160 : f32 to vector<8x128xf32>
    %761 = arith.addf %760, %759 : vector<8x128xf32>
    %762 = arith.divf %760, %761 : vector<8x128xf32>
    %763 = vector.extract_strided_slice %744 {offsets = [0, 384], sizes = [8, 128], strides = [1, 1]} : vector<8x512xf32> to vector<8x128xf32>
    %764 = math.tanh %763 : vector<8x128xf32>
    %765 = arith.mulf %756, %736 : vector<8x128xf32>
    %766 = arith.mulf %750, %764 : vector<8x128xf32>
    %767 = arith.addf %765, %766 : vector<8x128xf32>
    %768 = math.tanh %767 : vector<8x128xf32>
    %769 = arith.mulf %762, %768 : vector<8x128xf32>
    %c64_i32_161 = arith.constant 64 : i32
    %770 = vector.broadcast %c64_i32_161 : i32 to vector<1x128xi32>
    %771 = arith.cmpi slt, %304, %770 : vector<1x128xi32>
    %772 = vector.broadcast %738 : i32 to vector<1x128xi32>
    %773 = vector.broadcast %739 : i32 to vector<1x128xi32>
    %774 = arith.select %771, %772, %773 : vector<1x128xi1>, vector<1x128xi32>
    %775 = vector.broadcast %774 : vector<1x128xi32> to vector<8x128xi32>
    %776 = vector.broadcast %303 : vector<8x1xi32> to vector<8x128xi32>
    %777 = arith.cmpi slt, %775, %776 : vector<8x128xi32>
    %778 = arith.select %777, %769, %735 : vector<8x128xi1>, vector<8x128xf32>
    %779 = arith.select %777, %767, %736 : vector<8x128xi1>, vector<8x128xf32>
    %c16_i32_162 = arith.constant 16 : i32
    %780 = arith.muli %arg1, %c16_i32_162 : i32
    %c11_i32 = arith.constant 11 : i32
    %781 = arith.addi %780, %c11_i32 : i32
    %c15_i32_163 = arith.constant 15 : i32
    %782 = arith.subi %c15_i32_163, %781 : i32
    %c11_164 = arith.constant 11 : index
    %c0_165 = arith.constant 0 : index
    %c0_166 = arith.constant 0 : index
    %783 = vector.load %arg14[%c11_164, %c0_165, %c0_166] : memref<16x8x512xf32, #tpu.memory_space<vmem>>, vector<1x8x512xf32>
    %784 = vector.shape_cast %783 : vector<1x8x512xf32> to vector<8x512xf32>
    %785 = arith.truncf %778 : vector<8x128xf32> to vector<8x128xbf16>
    %cst_167 = arith.constant dense<0.000000e+00> : vector<8x512xf32>
    %786 = tpu.matmul %785, %302, %cst_167 {dimension_numbers = #tpu.dot_dimension_numbers<[1], [0], [0], [1], [0, 0, 1, 1], [], []>} : vector<8x128xbf16>, vector<128x512xbf16>, vector<8x512xf32> -> vector<8x512xf32>
    %787 = arith.addf %784, %786 : vector<8x512xf32>
    %788 = vector.extract_strided_slice %787 {offsets = [0, 0], sizes = [8, 128], strides = [1, 1]} : vector<8x512xf32> to vector<8x128xf32>
    %789 = arith.negf %788 : vector<8x128xf32>
    %790 = math.exp %789 : vector<8x128xf32>
    %cst_168 = arith.constant 1.000000e+00 : f32
    %791 = vector.broadcast %cst_168 : f32 to vector<8x128xf32>
    %792 = arith.addf %791, %790 : vector<8x128xf32>
    %793 = arith.divf %791, %792 : vector<8x128xf32>
    %794 = vector.extract_strided_slice %787 {offsets = [0, 128], sizes = [8, 128], strides = [1, 1]} : vector<8x512xf32> to vector<8x128xf32>
    %795 = arith.negf %794 : vector<8x128xf32>
    %796 = math.exp %795 : vector<8x128xf32>
    %cst_169 = arith.constant 1.000000e+00 : f32
    %797 = vector.broadcast %cst_169 : f32 to vector<8x128xf32>
    %798 = arith.addf %797, %796 : vector<8x128xf32>
    %799 = arith.divf %797, %798 : vector<8x128xf32>
    %800 = vector.extract_strided_slice %787 {offsets = [0, 256], sizes = [8, 128], strides = [1, 1]} : vector<8x512xf32> to vector<8x128xf32>
    %801 = arith.negf %800 : vector<8x128xf32>
    %802 = math.exp %801 : vector<8x128xf32>
    %cst_170 = arith.constant 1.000000e+00 : f32
    %803 = vector.broadcast %cst_170 : f32 to vector<8x128xf32>
    %804 = arith.addf %803, %802 : vector<8x128xf32>
    %805 = arith.divf %803, %804 : vector<8x128xf32>
    %806 = vector.extract_strided_slice %787 {offsets = [0, 384], sizes = [8, 128], strides = [1, 1]} : vector<8x512xf32> to vector<8x128xf32>
    %807 = math.tanh %806 : vector<8x128xf32>
    %808 = arith.mulf %799, %779 : vector<8x128xf32>
    %809 = arith.mulf %793, %807 : vector<8x128xf32>
    %810 = arith.addf %808, %809 : vector<8x128xf32>
    %811 = math.tanh %810 : vector<8x128xf32>
    %812 = arith.mulf %805, %811 : vector<8x128xf32>
    %c64_i32_171 = arith.constant 64 : i32
    %813 = vector.broadcast %c64_i32_171 : i32 to vector<1x128xi32>
    %814 = arith.cmpi slt, %304, %813 : vector<1x128xi32>
    %815 = vector.broadcast %781 : i32 to vector<1x128xi32>
    %816 = vector.broadcast %782 : i32 to vector<1x128xi32>
    %817 = arith.select %814, %815, %816 : vector<1x128xi1>, vector<1x128xi32>
    %818 = vector.broadcast %817 : vector<1x128xi32> to vector<8x128xi32>
    %819 = vector.broadcast %303 : vector<8x1xi32> to vector<8x128xi32>
    %820 = arith.cmpi slt, %818, %819 : vector<8x128xi32>
    %821 = arith.select %820, %812, %778 : vector<8x128xi1>, vector<8x128xf32>
    %822 = arith.select %820, %810, %779 : vector<8x128xi1>, vector<8x128xf32>
    %c16_i32_172 = arith.constant 16 : i32
    %823 = arith.muli %arg1, %c16_i32_172 : i32
    %c12_i32 = arith.constant 12 : i32
    %824 = arith.addi %823, %c12_i32 : i32
    %c15_i32_173 = arith.constant 15 : i32
    %825 = arith.subi %c15_i32_173, %824 : i32
    %c12_174 = arith.constant 12 : index
    %c0_175 = arith.constant 0 : index
    %c0_176 = arith.constant 0 : index
    %826 = vector.load %arg14[%c12_174, %c0_175, %c0_176] : memref<16x8x512xf32, #tpu.memory_space<vmem>>, vector<1x8x512xf32>
    %827 = vector.shape_cast %826 : vector<1x8x512xf32> to vector<8x512xf32>
    %828 = arith.truncf %821 : vector<8x128xf32> to vector<8x128xbf16>
    %cst_177 = arith.constant dense<0.000000e+00> : vector<8x512xf32>
    %829 = tpu.matmul %828, %302, %cst_177 {dimension_numbers = #tpu.dot_dimension_numbers<[1], [0], [0], [1], [0, 0, 1, 1], [], []>} : vector<8x128xbf16>, vector<128x512xbf16>, vector<8x512xf32> -> vector<8x512xf32>
    %830 = arith.addf %827, %829 : vector<8x512xf32>
    %831 = vector.extract_strided_slice %830 {offsets = [0, 0], sizes = [8, 128], strides = [1, 1]} : vector<8x512xf32> to vector<8x128xf32>
    %832 = arith.negf %831 : vector<8x128xf32>
    %833 = math.exp %832 : vector<8x128xf32>
    %cst_178 = arith.constant 1.000000e+00 : f32
    %834 = vector.broadcast %cst_178 : f32 to vector<8x128xf32>
    %835 = arith.addf %834, %833 : vector<8x128xf32>
    %836 = arith.divf %834, %835 : vector<8x128xf32>
    %837 = vector.extract_strided_slice %830 {offsets = [0, 128], sizes = [8, 128], strides = [1, 1]} : vector<8x512xf32> to vector<8x128xf32>
    %838 = arith.negf %837 : vector<8x128xf32>
    %839 = math.exp %838 : vector<8x128xf32>
    %cst_179 = arith.constant 1.000000e+00 : f32
    %840 = vector.broadcast %cst_179 : f32 to vector<8x128xf32>
    %841 = arith.addf %840, %839 : vector<8x128xf32>
    %842 = arith.divf %840, %841 : vector<8x128xf32>
    %843 = vector.extract_strided_slice %830 {offsets = [0, 256], sizes = [8, 128], strides = [1, 1]} : vector<8x512xf32> to vector<8x128xf32>
    %844 = arith.negf %843 : vector<8x128xf32>
    %845 = math.exp %844 : vector<8x128xf32>
    %cst_180 = arith.constant 1.000000e+00 : f32
    %846 = vector.broadcast %cst_180 : f32 to vector<8x128xf32>
    %847 = arith.addf %846, %845 : vector<8x128xf32>
    %848 = arith.divf %846, %847 : vector<8x128xf32>
    %849 = vector.extract_strided_slice %830 {offsets = [0, 384], sizes = [8, 128], strides = [1, 1]} : vector<8x512xf32> to vector<8x128xf32>
    %850 = math.tanh %849 : vector<8x128xf32>
    %851 = arith.mulf %842, %822 : vector<8x128xf32>
    %852 = arith.mulf %836, %850 : vector<8x128xf32>
    %853 = arith.addf %851, %852 : vector<8x128xf32>
    %854 = math.tanh %853 : vector<8x128xf32>
    %855 = arith.mulf %848, %854 : vector<8x128xf32>
    %c64_i32_181 = arith.constant 64 : i32
    %856 = vector.broadcast %c64_i32_181 : i32 to vector<1x128xi32>
    %857 = arith.cmpi slt, %304, %856 : vector<1x128xi32>
    %858 = vector.broadcast %824 : i32 to vector<1x128xi32>
    %859 = vector.broadcast %825 : i32 to vector<1x128xi32>
    %860 = arith.select %857, %858, %859 : vector<1x128xi1>, vector<1x128xi32>
    %861 = vector.broadcast %860 : vector<1x128xi32> to vector<8x128xi32>
    %862 = vector.broadcast %303 : vector<8x1xi32> to vector<8x128xi32>
    %863 = arith.cmpi slt, %861, %862 : vector<8x128xi32>
    %864 = arith.select %863, %855, %821 : vector<8x128xi1>, vector<8x128xf32>
    %865 = arith.select %863, %853, %822 : vector<8x128xi1>, vector<8x128xf32>
    %c16_i32_182 = arith.constant 16 : i32
    %866 = arith.muli %arg1, %c16_i32_182 : i32
    %c13_i32 = arith.constant 13 : i32
    %867 = arith.addi %866, %c13_i32 : i32
    %c15_i32_183 = arith.constant 15 : i32
    %868 = arith.subi %c15_i32_183, %867 : i32
    %c13_184 = arith.constant 13 : index
    %c0_185 = arith.constant 0 : index
    %c0_186 = arith.constant 0 : index
    %869 = vector.load %arg14[%c13_184, %c0_185, %c0_186] : memref<16x8x512xf32, #tpu.memory_space<vmem>>, vector<1x8x512xf32>
    %870 = vector.shape_cast %869 : vector<1x8x512xf32> to vector<8x512xf32>
    %871 = arith.truncf %864 : vector<8x128xf32> to vector<8x128xbf16>
    %cst_187 = arith.constant dense<0.000000e+00> : vector<8x512xf32>
    %872 = tpu.matmul %871, %302, %cst_187 {dimension_numbers = #tpu.dot_dimension_numbers<[1], [0], [0], [1], [0, 0, 1, 1], [], []>} : vector<8x128xbf16>, vector<128x512xbf16>, vector<8x512xf32> -> vector<8x512xf32>
    %873 = arith.addf %870, %872 : vector<8x512xf32>
    %874 = vector.extract_strided_slice %873 {offsets = [0, 0], sizes = [8, 128], strides = [1, 1]} : vector<8x512xf32> to vector<8x128xf32>
    %875 = arith.negf %874 : vector<8x128xf32>
    %876 = math.exp %875 : vector<8x128xf32>
    %cst_188 = arith.constant 1.000000e+00 : f32
    %877 = vector.broadcast %cst_188 : f32 to vector<8x128xf32>
    %878 = arith.addf %877, %876 : vector<8x128xf32>
    %879 = arith.divf %877, %878 : vector<8x128xf32>
    %880 = vector.extract_strided_slice %873 {offsets = [0, 128], sizes = [8, 128], strides = [1, 1]} : vector<8x512xf32> to vector<8x128xf32>
    %881 = arith.negf %880 : vector<8x128xf32>
    %882 = math.exp %881 : vector<8x128xf32>
    %cst_189 = arith.constant 1.000000e+00 : f32
    %883 = vector.broadcast %cst_189 : f32 to vector<8x128xf32>
    %884 = arith.addf %883, %882 : vector<8x128xf32>
    %885 = arith.divf %883, %884 : vector<8x128xf32>
    %886 = vector.extract_strided_slice %873 {offsets = [0, 256], sizes = [8, 128], strides = [1, 1]} : vector<8x512xf32> to vector<8x128xf32>
    %887 = arith.negf %886 : vector<8x128xf32>
    %888 = math.exp %887 : vector<8x128xf32>
    %cst_190 = arith.constant 1.000000e+00 : f32
    %889 = vector.broadcast %cst_190 : f32 to vector<8x128xf32>
    %890 = arith.addf %889, %888 : vector<8x128xf32>
    %891 = arith.divf %889, %890 : vector<8x128xf32>
    %892 = vector.extract_strided_slice %873 {offsets = [0, 384], sizes = [8, 128], strides = [1, 1]} : vector<8x512xf32> to vector<8x128xf32>
    %893 = math.tanh %892 : vector<8x128xf32>
    %894 = arith.mulf %885, %865 : vector<8x128xf32>
    %895 = arith.mulf %879, %893 : vector<8x128xf32>
    %896 = arith.addf %894, %895 : vector<8x128xf32>
    %897 = math.tanh %896 : vector<8x128xf32>
    %898 = arith.mulf %891, %897 : vector<8x128xf32>
    %c64_i32_191 = arith.constant 64 : i32
    %899 = vector.broadcast %c64_i32_191 : i32 to vector<1x128xi32>
    %900 = arith.cmpi slt, %304, %899 : vector<1x128xi32>
    %901 = vector.broadcast %867 : i32 to vector<1x128xi32>
    %902 = vector.broadcast %868 : i32 to vector<1x128xi32>
    %903 = arith.select %900, %901, %902 : vector<1x128xi1>, vector<1x128xi32>
    %904 = vector.broadcast %903 : vector<1x128xi32> to vector<8x128xi32>
    %905 = vector.broadcast %303 : vector<8x1xi32> to vector<8x128xi32>
    %906 = arith.cmpi slt, %904, %905 : vector<8x128xi32>
    %907 = arith.select %906, %898, %864 : vector<8x128xi1>, vector<8x128xf32>
    %908 = arith.select %906, %896, %865 : vector<8x128xi1>, vector<8x128xf32>
    %c16_i32_192 = arith.constant 16 : i32
    %909 = arith.muli %arg1, %c16_i32_192 : i32
    %c14_i32 = arith.constant 14 : i32
    %910 = arith.addi %909, %c14_i32 : i32
    %c15_i32_193 = arith.constant 15 : i32
    %911 = arith.subi %c15_i32_193, %910 : i32
    %c14_194 = arith.constant 14 : index
    %c0_195 = arith.constant 0 : index
    %c0_196 = arith.constant 0 : index
    %912 = vector.load %arg14[%c14_194, %c0_195, %c0_196] : memref<16x8x512xf32, #tpu.memory_space<vmem>>, vector<1x8x512xf32>
    %913 = vector.shape_cast %912 : vector<1x8x512xf32> to vector<8x512xf32>
    %914 = arith.truncf %907 : vector<8x128xf32> to vector<8x128xbf16>
    %cst_197 = arith.constant dense<0.000000e+00> : vector<8x512xf32>
    %915 = tpu.matmul %914, %302, %cst_197 {dimension_numbers = #tpu.dot_dimension_numbers<[1], [0], [0], [1], [0, 0, 1, 1], [], []>} : vector<8x128xbf16>, vector<128x512xbf16>, vector<8x512xf32> -> vector<8x512xf32>
    %916 = arith.addf %913, %915 : vector<8x512xf32>
    %917 = vector.extract_strided_slice %916 {offsets = [0, 0], sizes = [8, 128], strides = [1, 1]} : vector<8x512xf32> to vector<8x128xf32>
    %918 = arith.negf %917 : vector<8x128xf32>
    %919 = math.exp %918 : vector<8x128xf32>
    %cst_198 = arith.constant 1.000000e+00 : f32
    %920 = vector.broadcast %cst_198 : f32 to vector<8x128xf32>
    %921 = arith.addf %920, %919 : vector<8x128xf32>
    %922 = arith.divf %920, %921 : vector<8x128xf32>
    %923 = vector.extract_strided_slice %916 {offsets = [0, 128], sizes = [8, 128], strides = [1, 1]} : vector<8x512xf32> to vector<8x128xf32>
    %924 = arith.negf %923 : vector<8x128xf32>
    %925 = math.exp %924 : vector<8x128xf32>
    %cst_199 = arith.constant 1.000000e+00 : f32
    %926 = vector.broadcast %cst_199 : f32 to vector<8x128xf32>
    %927 = arith.addf %926, %925 : vector<8x128xf32>
    %928 = arith.divf %926, %927 : vector<8x128xf32>
    %929 = vector.extract_strided_slice %916 {offsets = [0, 256], sizes = [8, 128], strides = [1, 1]} : vector<8x512xf32> to vector<8x128xf32>
    %930 = arith.negf %929 : vector<8x128xf32>
    %931 = math.exp %930 : vector<8x128xf32>
    %cst_200 = arith.constant 1.000000e+00 : f32
    %932 = vector.broadcast %cst_200 : f32 to vector<8x128xf32>
    %933 = arith.addf %932, %931 : vector<8x128xf32>
    %934 = arith.divf %932, %933 : vector<8x128xf32>
    %935 = vector.extract_strided_slice %916 {offsets = [0, 384], sizes = [8, 128], strides = [1, 1]} : vector<8x512xf32> to vector<8x128xf32>
    %936 = math.tanh %935 : vector<8x128xf32>
    %937 = arith.mulf %928, %908 : vector<8x128xf32>
    %938 = arith.mulf %922, %936 : vector<8x128xf32>
    %939 = arith.addf %937, %938 : vector<8x128xf32>
    %940 = math.tanh %939 : vector<8x128xf32>
    %941 = arith.mulf %934, %940 : vector<8x128xf32>
    %c64_i32_201 = arith.constant 64 : i32
    %942 = vector.broadcast %c64_i32_201 : i32 to vector<1x128xi32>
    %943 = arith.cmpi slt, %304, %942 : vector<1x128xi32>
    %944 = vector.broadcast %910 : i32 to vector<1x128xi32>
    %945 = vector.broadcast %911 : i32 to vector<1x128xi32>
    %946 = arith.select %943, %944, %945 : vector<1x128xi1>, vector<1x128xi32>
    %947 = vector.broadcast %946 : vector<1x128xi32> to vector<8x128xi32>
    %948 = vector.broadcast %303 : vector<8x1xi32> to vector<8x128xi32>
    %949 = arith.cmpi slt, %947, %948 : vector<8x128xi32>
    %950 = arith.select %949, %941, %907 : vector<8x128xi1>, vector<8x128xf32>
    %951 = arith.select %949, %939, %908 : vector<8x128xi1>, vector<8x128xf32>
    %c16_i32_202 = arith.constant 16 : i32
    %952 = arith.muli %arg1, %c16_i32_202 : i32
    %c15_i32_203 = arith.constant 15 : i32
    %953 = arith.addi %952, %c15_i32_203 : i32
    %c15_i32_204 = arith.constant 15 : i32
    %954 = arith.subi %c15_i32_204, %953 : i32
    %c15_205 = arith.constant 15 : index
    %c0_206 = arith.constant 0 : index
    %c0_207 = arith.constant 0 : index
    %955 = vector.load %arg14[%c15_205, %c0_206, %c0_207] : memref<16x8x512xf32, #tpu.memory_space<vmem>>, vector<1x8x512xf32>
    %956 = vector.shape_cast %955 : vector<1x8x512xf32> to vector<8x512xf32>
    %957 = arith.truncf %950 : vector<8x128xf32> to vector<8x128xbf16>
    %cst_208 = arith.constant dense<0.000000e+00> : vector<8x512xf32>
    %958 = tpu.matmul %957, %302, %cst_208 {dimension_numbers = #tpu.dot_dimension_numbers<[1], [0], [0], [1], [0, 0, 1, 1], [], []>} : vector<8x128xbf16>, vector<128x512xbf16>, vector<8x512xf32> -> vector<8x512xf32>
    %959 = arith.addf %956, %958 : vector<8x512xf32>
    %960 = vector.extract_strided_slice %959 {offsets = [0, 0], sizes = [8, 128], strides = [1, 1]} : vector<8x512xf32> to vector<8x128xf32>
    %961 = arith.negf %960 : vector<8x128xf32>
    %962 = math.exp %961 : vector<8x128xf32>
    %cst_209 = arith.constant 1.000000e+00 : f32
    %963 = vector.broadcast %cst_209 : f32 to vector<8x128xf32>
    %964 = arith.addf %963, %962 : vector<8x128xf32>
    %965 = arith.divf %963, %964 : vector<8x128xf32>
    %966 = vector.extract_strided_slice %959 {offsets = [0, 128], sizes = [8, 128], strides = [1, 1]} : vector<8x512xf32> to vector<8x128xf32>
    %967 = arith.negf %966 : vector<8x128xf32>
    %968 = math.exp %967 : vector<8x128xf32>
    %cst_210 = arith.constant 1.000000e+00 : f32
    %969 = vector.broadcast %cst_210 : f32 to vector<8x128xf32>
    %970 = arith.addf %969, %968 : vector<8x128xf32>
    %971 = arith.divf %969, %970 : vector<8x128xf32>
    %972 = vector.extract_strided_slice %959 {offsets = [0, 256], sizes = [8, 128], strides = [1, 1]} : vector<8x512xf32> to vector<8x128xf32>
    %973 = arith.negf %972 : vector<8x128xf32>
    %974 = math.exp %973 : vector<8x128xf32>
    %cst_211 = arith.constant 1.000000e+00 : f32
    %975 = vector.broadcast %cst_211 : f32 to vector<8x128xf32>
    %976 = arith.addf %975, %974 : vector<8x128xf32>
    %977 = arith.divf %975, %976 : vector<8x128xf32>
    %978 = vector.extract_strided_slice %959 {offsets = [0, 384], sizes = [8, 128], strides = [1, 1]} : vector<8x512xf32> to vector<8x128xf32>
    %979 = math.tanh %978 : vector<8x128xf32>
    %980 = arith.mulf %971, %951 : vector<8x128xf32>
    %981 = arith.mulf %965, %979 : vector<8x128xf32>
    %982 = arith.addf %980, %981 : vector<8x128xf32>
    %983 = math.tanh %982 : vector<8x128xf32>
    %984 = arith.mulf %977, %983 : vector<8x128xf32>
    %c64_i32_212 = arith.constant 64 : i32
    %985 = vector.broadcast %c64_i32_212 : i32 to vector<1x128xi32>
    %986 = arith.cmpi slt, %304, %985 : vector<1x128xi32>
    %987 = vector.broadcast %953 : i32 to vector<1x128xi32>
    %988 = vector.broadcast %954 : i32 to vector<1x128xi32>
    %989 = arith.select %986, %987, %988 : vector<1x128xi1>, vector<1x128xi32>
    %990 = vector.broadcast %989 : vector<1x128xi32> to vector<8x128xi32>
    %991 = vector.broadcast %303 : vector<8x1xi32> to vector<8x128xi32>
    %992 = arith.cmpi slt, %990, %991 : vector<8x128xi32>
    %993 = arith.select %992, %984, %950 : vector<8x128xi1>, vector<8x128xf32>
    %994 = arith.select %992, %982, %951 : vector<8x128xi1>, vector<8x128xf32>
    %c0_213 = arith.constant 0 : index
    %c0_214 = arith.constant 0 : index
    %995 = vector.load %arg12[%c0_213, %c0_214] : memref<8x128xf32, #tpu.memory_space<vmem>>, vector<8x128xf32>
    tpu.vector_store %arg12[%c0_213, %c0_214], %993 {strides = array<i32>} : memref<8x128xf32, #tpu.memory_space<vmem>>, vector<8x128xf32>,
    %c0_215 = arith.constant 0 : index
    %c0_216 = arith.constant 0 : index
    %996 = vector.load %arg13[%c0_215, %c0_216] : memref<8x128xf32, #tpu.memory_space<vmem>>, vector<8x128xf32>
    tpu.vector_store %arg13[%c0_215, %c0_216], %994 {strides = array<i32>} : memref<8x128xf32, #tpu.memory_space<vmem>>, vector<8x128xf32>,
    %c0_i32_217 = arith.constant 0 : i32
    %997 = arith.cmpi eq, %arg1, %c0_i32_217 : i32
    %998 = arith.extui %997 : i1 to i32
    %c0_i32_218 = arith.constant 0 : i32
    %999 = arith.cmpi ne, %998, %c0_i32_218 : i32
    scf.if %999 {
      %c0_219 = arith.constant 0 : index
      %c0_220 = arith.constant 0 : index
      %1000 = vector.load %arg9[%c0_219, %c0_220] : memref<1x128xf32, #tpu.memory_space<vmem>>, vector<1x128xf32>
      %1001 = vector.broadcast %1000 : vector<1x128xf32> to vector<8x128xf32>
      %1002 = arith.mulf %993, %1001 : vector<8x128xf32>
      %cst_221 = arith.constant dense<0.000000e+00> : vector<8xf32>
      %1003 = vector.multi_reduction <add>, %1002, %cst_221 [1] : vector<8x128xf32> to vector<8xf32>
      %1004 = vector.shape_cast %1003 : vector<8xf32> to vector<8x1xf32>
      %c0_222 = arith.constant 0 : index
      %c0_223 = arith.constant 0 : index
      %1005 = vector.load %arg10[%c0_222, %c0_223] : memref<1x1xf32, #tpu.memory_space<vmem>>, vector<1x1xf32>
      %1006 = vector.broadcast %1005 : vector<1x1xf32> to vector<8x1xf32>
      %1007 = arith.addf %1004, %1006 : vector<8x1xf32>
      %c0_224 = arith.constant 0 : index
      %c0_225 = arith.constant 0 : index
      %1008 = vector.load %arg11[%c0_224, %c0_225] : memref<8x1xf32, #tpu.memory_space<vmem>>, vector<8x1xf32>
      tpu.vector_store %arg11[%c0_224, %c0_225], %1007 {strides = array<i32>} : memref<8x1xf32, #tpu.memory_space<vmem>>, vector<8x1xf32>,
    } else {
    }
    return
  }
  func.func @transform_0(%arg0: i32, %arg1: i32) -> (i32, i32) {
    %c0_i32 = arith.constant 0 : i32
    %c0_i32_0 = arith.constant 0 : i32
    return %arg0, %c0_i32 : i32, i32
  }
  func.func @transform_1(%arg0: i32, %arg1: i32) -> (i32, i32, i32) {
    %c0_i32 = arith.constant 0 : i32
    %c0_i32_0 = arith.constant 0 : i32
    return %arg0, %arg1, %c0_i32 : i32, i32, i32
  }
  func.func @transform_2(%arg0: i32, %arg1: i32) -> (i32, i32, i32) {
    %c0_i32 = arith.constant 0 : i32
    %0 = arith.subi %c0_i32, %arg1 : i32
    %c0_i32_0 = arith.constant 0 : i32
    %c0_i32_1 = arith.constant 0 : i32
    return %arg0, %0, %c0_i32_0 : i32, i32, i32
  }
  func.func @transform_3(%arg0: i32, %arg1: i32) -> (i32, i32) {
    %c0_i32 = arith.constant 0 : i32
    %c0_i32_0 = arith.constant 0 : i32
    %c0_i32_1 = arith.constant 0 : i32
    return %c0_i32, %c0_i32_0 : i32, i32
  }
  func.func @transform_4(%arg0: i32, %arg1: i32) -> (i32, i32) {
    %c0_i32 = arith.constant 0 : i32
    %c0_i32_0 = arith.constant 0 : i32
    %c0_i32_1 = arith.constant 0 : i32
    return %c0_i32, %c0_i32_0 : i32, i32
  }
  func.func @transform_5(%arg0: i32, %arg1: i32) -> (i32, i32) {
    %c0_i32 = arith.constant 0 : i32
    %c0_i32_0 = arith.constant 0 : i32
    %c0_i32_1 = arith.constant 0 : i32
    return %c0_i32, %c0_i32_0 : i32, i32
  }
  func.func @transform_6(%arg0: i32, %arg1: i32) -> (i32, i32) {
    %c0_i32 = arith.constant 0 : i32
    %c0_i32_0 = arith.constant 0 : i32
    %c0_i32_1 = arith.constant 0 : i32
    return %c0_i32, %c0_i32_0 : i32, i32
  }
  func.func @transform_7(%arg0: i32, %arg1: i32) -> (i32, i32) {
    %c0_i32 = arith.constant 0 : i32
    %c0_i32_0 = arith.constant 0 : i32
    %c0_i32_1 = arith.constant 0 : i32
    return %c0_i32, %c0_i32_0 : i32, i32
  }
  func.func @transform_8(%arg0: i32, %arg1: i32) -> (i32, i32) {
    %c0_i32 = arith.constant 0 : i32
    %c0_i32_0 = arith.constant 0 : i32
    %c0_i32_1 = arith.constant 0 : i32
    return %c0_i32, %c0_i32_0 : i32, i32
  }
  func.func @transform_9(%arg0: i32, %arg1: i32) -> (i32, i32) {
    %c0_i32 = arith.constant 0 : i32
    %c0_i32_0 = arith.constant 0 : i32
    return %arg0, %c0_i32 : i32, i32
  }
}

</mosaic_0001>

<llo_original>
// kernel: tpu_custom_call.1
$region0: #{tpu_custom_call.1}
  #allocation0 [shape = 'u32[]', space=smem, size = 0x4, offset = 0x4, fixed_abs, tag = 'smem constant byte address 0x4 - core index']
  #allocation1 [shape = 'u32[144,128]{1,0:T(1,128)}', space=vmem, size = 0x12000, scoped, tag = 'internal scratch']
  #allocation2 [shape = 'f32[8,128]{1,0:T(8,128)}', space=vmem, size = 0x1000, scoped, tag = 'scratch operand']
  #allocation3 [shape = 'f32[8,128]{1,0:T(8,128)}', space=vmem, size = 0x1000, scoped, tag = 'scratch operand']
  #allocation4 [shape = 'f32[16,8,512]{2,1,0:T(8,128)}', space=vmem, size = 0x40000, scoped, tag = 'scratch operand']
  #allocation5 [shape = 'f32[1,1]{1,0:T(1,128)S(1)}', space=vmem, size = 0x200, scoped, tag = 'scoped memory for tpu_custom_call.1']
  %s0 = inlined_call_operand.vmem [shape: s32[8,1], index: 0, kind: input, shape index: {}]
  %s1 = inlined_call_operand.hbm [shape: bf16[8,16,1024], index: 1, kind: input, shape index: {}]
  %s2 = inlined_call_operand.hbm [shape: bf16[8,16,1024], index: 2, kind: input, shape index: {}]
  %s3 = inlined_call_operand.hbm [shape: bf16[1024,256], index: 3, kind: input, shape index: {}]
  %s4 = inlined_call_operand.hbm [shape: bf16[1024,256], index: 4, kind: input, shape index: {}]
  %s5 = inlined_call_operand.hbm [shape: bf16[128,512], index: 5, kind: input, shape index: {}]
  %s6 = inlined_call_operand.vmem [shape: f32[1,512], index: 6, kind: input, shape index: {}]
  %s7 = inlined_call_operand.vmem [shape: f32[1,128], index: 7, kind: input, shape index: {}]
  %s8 = inlined_call_operand.<no memory space> [shape: f32[1,1], index: 8, kind: input, shape index: {}]
  %s9 = inlined_call_operand.vmem [shape: f32[8,1], index: 9, kind: output, shape index: {}]
  %s10 = sld [smem:[#allocation0]]
  $region74: #{tpu_custom_call.1} parent=0
    _
  %s12 = ssub.s32 1, %s10
  %s13 = scalar_select 0, %s12, %s10
  %v14 = vstv %s8
  %15 = vst [vmem:[#allocation5] sm:$0x1] %v14
  $region1: #{tpu_custom_call.1} parent=0
    #allocation6 [shape = 'u8[262144]{0}', space=vmem, size = 0x40000, scoped, tag = 'input window, operand 1, single buffered']
    #allocation7 [shape = 's32[1]{0}', space=sflag, size = 0x4, scoped, tag = 'scoped memory for tpu_custom_call.1']
    #allocation8 [shape = 'u8[262144]{0}', space=vmem, size = 0x40000, scoped, tag = 'input window, operand 2, single buffered']
    #allocation9 [shape = 's32[1]{0}', space=sflag, size = 0x4, scoped, tag = 'scoped memory for tpu_custom_call.1']
    #allocation10 [shape = 'u8[524288]{0}', space=vmem, size = 0x80000, scoped, tag = 'input window, operand 3, single buffered']
    #allocation11 [shape = 'u8[524288]{0}', space=vmem, size = 0x80000, scoped, tag = 'input window, operand 4, single buffered']
    #allocation12 [shape = 's32[1]{0}', space=sflag, size = 0x4, scoped, tag = 'scoped memory for tpu_custom_call.1']
    #allocation13 [shape = 'u8[131072]{0}', space=vmem, size = 0x20000, scoped, tag = 'input window, operand 5, single buffered']
    %16 = vsyncpa [#allocation7], 0
    %17 = vsyncpa [#allocation9], 0
    %18 = vsyncpa [#allocation12], 0
    // Predicated region
    $region2: #{tpu_custom_call.1} parent=1 // pred_check
      _
    $region3: #{tpu_custom_call.1} parent=1 // pred_check_branch
      %20 = sbr.rel (0) target = $region5
    $region4: #{tpu_custom_call.1} parent=1 // pred_region
      _
    $region5: #{tpu_custom_call.1} parent=1 // pred_fallthru
      _
    // Predicated region
    $region6: #{tpu_custom_call.1} parent=1 // pred_check
      _
    $region7: #{tpu_custom_call.1} parent=1 // pred_check_branch
      %22 = sbr.rel (0) target = $region9
    $region8: #{tpu_custom_call.1} parent=1 // pred_region
      %s24 = ssub.s32 8192, 8192
      %25 = vsyncadd [#allocation7], %s24
      %s26 = sshll.u32 [#allocation6], 4
      %s27 = int_to_ptr.vmem [resolvable:$true] %s26
      %32 = dma.hbm_to_vmem [thread:$0]  %s1, 8192, %s27, [#allocation7], 512, 512, 32
    $region9: #{tpu_custom_call.1} parent=1 // pred_fallthru
      _
    // Predicated region
    $region10: #{tpu_custom_call.1} parent=1 // pred_check
      _
    $region11: #{tpu_custom_call.1} parent=1 // pred_check_branch
      %34 = sbr.rel (0) target = $region13
    $region12: #{tpu_custom_call.1} parent=1 // pred_region
      %s35 = ssub.s32 0, 0
      %s36 = smul.u32 2, %s35
      %s38 = ssub.s32 8192, 8192
      %39 = vsyncadd [#allocation9], %s38
      %s40 = smul.addr %s36, 8
      %s41 = smul.addr %s40, 64
      %s42 = scalar_lea.hbm %s2, %s41
      %s43 = sshll.u32 [#allocation8], 4
      %s44 = int_to_ptr.vmem [resolvable:$true] %s43
      %49 = dma.hbm_to_vmem [thread:$0]  %s42, 8192, %s44, [#allocation9], 512, 512, 32
    $region13: #{tpu_custom_call.1} parent=1 // pred_fallthru
      _
    // Predicated region
    $region14: #{tpu_custom_call.1} parent=1 // pred_check
      _
    $region15: #{tpu_custom_call.1} parent=1 // pred_check_branch
      %51 = sbr.rel (0) target = $region17
    $region16: #{tpu_custom_call.1} parent=1 // pred_region
      %s53 = ssub.s32 16384, 16384
      %54 = vsyncadd [#allocation9], %s53
      %s55 = sshll.u32 [#allocation10], 4
      %s56 = int_to_ptr.vmem [resolvable:$true] %s55
      %61 = dma.hbm_to_vmem [thread:$0]  %s3, 16384, %s56, [#allocation9], 128, 128, 8
    $region17: #{tpu_custom_call.1} parent=1 // pred_fallthru
      _
    // Predicated region
    $region18: #{tpu_custom_call.1} parent=1 // pred_check
      _
    $region19: #{tpu_custom_call.1} parent=1 // pred_check_branch
      %63 = sbr.rel (0) target = $region21
    $region20: #{tpu_custom_call.1} parent=1 // pred_region
      %s65 = ssub.s32 16384, 16384
      %66 = vsyncadd [#allocation12], %s65
      %s67 = sshll.u32 [#allocation11], 4
      %s68 = int_to_ptr.vmem [resolvable:$true] %s67
      %73 = dma.hbm_to_vmem [thread:$0]  %s4, 16384, %s68, [#allocation12], 128, 128, 8
    $region21: #{tpu_custom_call.1} parent=1 // pred_fallthru
      _
    // Predicated region
    $region22: #{tpu_custom_call.1} parent=1 // pred_check
      _
    $region23: #{tpu_custom_call.1} parent=1 // pred_check_branch
      %75 = sbr.rel (0) target = $region25
    $region24: #{tpu_custom_call.1} parent=1 // pred_region
      %s77 = ssub.s32 4096, 4096
      %78 = vsyncadd [#allocation12], %s77
      %s79 = sshll.u32 [#allocation13], 4
      %s80 = int_to_ptr.vmem [resolvable:$true] %s79
      %85 = dma.hbm_to_vmem [thread:$0]  %s5, 4096, %s80, [#allocation12], 256, 256, 16
    $region25: #{tpu_custom_call.1} parent=1 // pred_fallthru
      _
    // Predicated region
    $region26: #{tpu_custom_call.1} parent=1 // pred_check
      _
    $region27: #{tpu_custom_call.1} parent=1 // pred_check_branch
      %87 = sbr.rel (0) target = $region29
    $region28: #{tpu_custom_call.1} parent=1 // pred_region
      _
    $region29: #{tpu_custom_call.1} parent=1 // pred_fallthru
      _
    // Predicated region
    $region30: #{tpu_custom_call.1} parent=1 // pred_check
      _
    $region31: #{tpu_custom_call.1} parent=1 // pred_check_branch
      %89 = sbr.rel (0) target = $region33
    $region32: #{tpu_custom_call.1} parent=1 // pred_region
      _
    $region33: #{tpu_custom_call.1} parent=1 // pred_fallthru
      _
    // Predicated region
    $region34: #{tpu_custom_call.1} parent=1 // pred_check
      _
    $region35: #{tpu_custom_call.1} parent=1 // pred_check_branch
      %91 = sbr.rel (0) target = $region37
    $region36: #{tpu_custom_call.1} parent=1 // pred_region
      _
    $region37: #{tpu_custom_call.1} parent=1 // pred_fallthru
      _
    // Predicated region
    $region38: #{tpu_custom_call.1} parent=1 // pred_check
      _
    $region39: #{tpu_custom_call.1} parent=1 // pred_check_branch
      %93 = sbr.rel (0) target = $region41
    $region40: #{tpu_custom_call.1} parent=1 // pred_region
      %94 = dma.done [#allocation7], 8192
    $region41: #{tpu_custom_call.1} parent=1 // pred_fallthru
      _
    // Predicated region
    $region42: #{tpu_custom_call.1} parent=1 // pred_check
      _
    $region43: #{tpu_custom_call.1} parent=1 // pred_check_branch
      %96 = sbr.rel (0) target = $region45
    $region44: #{tpu_custom_call.1} parent=1 // pred_region
      %97 = dma.done [#allocation9], 8192
    $region45: #{tpu_custom_call.1} parent=1 // pred_fallthru
      _
    // Predicated region
    $region46: #{tpu_custom_call.1} parent=1 // pred_check
      _
    $region47: #{tpu_custom_call.1} parent=1 // pred_check_branch
      %99 = sbr.rel (0) target = $region49
    $region48: #{tpu_custom_call.1} parent=1 // pred_region
      %100 = dma.done [#allocation9], 16384
    $region49: #{tpu_custom_call.1} parent=1 // pred_fallthru
      _
    // Predicated region
    $region50: #{tpu_custom_call.1} parent=1 // pred_check
      _
    $region51: #{tpu_custom_call.1} parent=1 // pred_check_branch
      %102 = sbr.rel (0) target = $region53
    $region52: #{tpu_custom_call.1} parent=1 // pred_region
      %103 = dma.done [#allocation12], 16384
    $region53: #{tpu_custom_call.1} parent=1 // pred_fallthru
      _
    // Predicated region
    $region54: #{tpu_custom_call.1} parent=1 // pred_check
      _
    $region55: #{tpu_custom_call.1} parent=1 // pred_check_branch
      %105 = sbr.rel (0) target = $region57
    $region56: #{tpu_custom_call.1} parent=1 // pred_region
      %106 = dma.done [#allocation12], 4096
    $region57: #{tpu_custom_call.1} parent=1 // pred_fallthru
      _
    %s107 = ssub.s32 0, 0
    %s108 = smul.u32 2, %s107
    %p110 = scmp.eq.s32.totalorder 0, 0
    // Predicated region
    $region58: #{tpu_custom_call.1} parent=1 // pred_check
      %p111 = pneg %p110
    $region59: #{tpu_custom_call.1} parent=1 // pred_check_branch
      %113 = sbr.rel (%p111) target = $region61
    $region60: #{tpu_custom_call.1} parent=1 // pred_region
      %114 = vst [vmem:[#allocation2] sm:$0xff] 0.0
      %115 = vst [vmem:[#allocation3] sm:$0xff] 0.0
    $region61: #{tpu_custom_call.1} parent=1 // pred_fallthru
      _
    %v116 = vld [vmem:[#allocation6] sm:$0xff]
    %v117 = vld [vmem:[#allocation6 + $0x8] sm:$0xff]
    %v118 = vld [vmem:[#allocation6 + $0x10] sm:$0xff]
    %v119 = vld [vmem:[#allocation6 + $0x18] sm:$0xff]
    %v120 = vld [vmem:[#allocation6 + $0x20] sm:$0xff]
    %v121 = vld [vmem:[#allocation6 + $0x28] sm:$0xff]
    %v122 = vld [vmem:[#allocation6 + $0x30] sm:$0xff]
    %v123 = vld [vmem:[#allocation6 + $0x38] sm:$0xff]
    %v124 = vld [vmem:[#allocation6 + $0x40] sm:$0xff]
    %v125 = vld [vmem:[#allocation6 + $0x48] sm:$0xff]
    %v126 = vld [vmem:[#allocation6 + $0x50] sm:$0xff]
    %v127 = vld [vmem:[#allocation6 + $0x58] sm:$0xff]
    %v128 = vld [vmem:[#allocation6 + $0x60] sm:$0xff]
    %v129 = vld [vmem:[#allocation6 + $0x68] sm:$0xff]
    %v130 = vld [vmem:[#allocation6 + $0x70] sm:$0xff]
    %v131 = vld [vmem:[#allocation6 + $0x78] sm:$0xff]
    %v132 = vld [vmem:[#allocation6 + $0x80] sm:$0xff]
    %v133 = vld [vmem:[#allocation6 + $0x88] sm:$0xff]
    %v134 = vld [vmem:[#allocation6 + $0x90] sm:$0xff]
    %v135 = vld [vmem:[#allocation6 + $0x98] sm:$0xff]
    %v136 = vld [vmem:[#allocation6 + $0xa0] sm:$0xff]
    %v137 = vld [vmem:[#allocation6 + $0xa8] sm:$0xff]
    %v138 = vld [vmem:[#allocation6 + $0xb0] sm:$0xff]
    %v139 = vld [vmem:[#allocation6 + $0xb8] sm:$0xff]
    %v140 = vld [vmem:[#allocation6 + $0xc0] sm:$0xff]
    %v141 = vld [vmem:[#allocation6 + $0xc8] sm:$0xff]
    %v142 = vld [vmem:[#allocation6 + $0xd0] sm:$0xff]
    %v143 = vld [vmem:[#allocation6 + $0xd8] sm:$0xff]
    %v144 = vld [vmem:[#allocation6 + $0xe0] sm:$0xff]
    %v145 = vld [vmem:[#allocation6 + $0xe8] sm:$0xff]
    %v146 = vld [vmem:[#allocation6 + $0xf0] sm:$0xff]
    %v147 = vld [vmem:[#allocation6 + $0xf8] sm:$0xff]
    %v148 = vld [vmem:[#allocation6 + $0x100] sm:$0xff]
    %v149 = vld [vmem:[#allocation6 + $0x108] sm:$0xff]
    %v150 = vld [vmem:[#allocation6 + $0x110] sm:$0xff]
    %v151 = vld [vmem:[#allocation6 + $0x118] sm:$0xff]
    %v152 = vld [vmem:[#allocation6 + $0x120] sm:$0xff]
    %v153 = vld [vmem:[#allocation6 + $0x128] sm:$0xff]
    %v154 = vld [vmem:[#allocation6 + $0x130] sm:$0xff]
    %v155 = vld [vmem:[#allocation6 + $0x138] sm:$0xff]
    %v156 = vld [vmem:[#allocation6 + $0x140] sm:$0xff]
    %v157 = vld [vmem:[#allocation6 + $0x148] sm:$0xff]
    %v158 = vld [vmem:[#allocation6 + $0x150] sm:$0xff]
    %v159 = vld [vmem:[#allocation6 + $0x158] sm:$0xff]
    %v160 = vld [vmem:[#allocation6 + $0x160] sm:$0xff]
    %v161 = vld [vmem:[#allocation6 + $0x168] sm:$0xff]
    %v162 = vld [vmem:[#allocation6 + $0x170] sm:$0xff]
    %v163 = vld [vmem:[#allocation6 + $0x178] sm:$0xff]
    %v164 = vld [vmem:[#allocation6 + $0x180] sm:$0xff]
    %v165 = vld [vmem:[#allocation6 + $0x188] sm:$0xff]
    %v166 = vld [vmem:[#allocation6 + $0x190] sm:$0xff]
    %v167 = vld [vmem:[#allocation6 + $0x198] sm:$0xff]
    %v168 = vld [vmem:[#allocation6 + $0x1a0] sm:$0xff]
    %v169 = vld [vmem:[#allocation6 + $0x1a8] sm:$0xff]
    %v170 = vld [vmem:[#allocation6 + $0x1b0] sm:$0xff]
    %v171 = vld [vmem:[#allocation6 + $0x1b8] sm:$0xff]
    %v172 = vld [vmem:[#allocation6 + $0x1c0] sm:$0xff]
    %v173 = vld [vmem:[#allocation6 + $0x1c8] sm:$0xff]
    %v174 = vld [vmem:[#allocation6 + $0x1d0] sm:$0xff]
    %v175 = vld [vmem:[#allocation6 + $0x1d8] sm:$0xff]
    %v176 = vld [vmem:[#allocation6 + $0x1e0] sm:$0xff]
    %v177 = vld [vmem:[#allocation6 + $0x1e8] sm:$0xff]
    %v178 = vld [vmem:[#allocation6 + $0x1f0] sm:$0xff]
    %v179 = vld [vmem:[#allocation6 + $0x1f8] sm:$0xff]
    %v180 = vld [vmem:[#allocation8] sm:$0xff]
    %v181 = vld [vmem:[#allocation8 + $0x8] sm:$0xff]
    %v182 = vld [vmem:[#allocation8 + $0x10] sm:$0xff]
    %v183 = vld [vmem:[#allocation8 + $0x18] sm:$0xff]
    %v184 = vld [vmem:[#allocation8 + $0x20] sm:$0xff]
    %v185 = vld [vmem:[#allocation8 + $0x28] sm:$0xff]
    %v186 = vld [vmem:[#allocation8 + $0x30] sm:$0xff]
    %v187 = vld [vmem:[#allocation8 + $0x38] sm:$0xff]
    %v188 = vld [vmem:[#allocation8 + $0x40] sm:$0xff]
    %v189 = vld [vmem:[#allocation8 + $0x48] sm:$0xff]
    %v190 = vld [vmem:[#allocation8 + $0x50] sm:$0xff]
    %v191 = vld [vmem:[#allocation8 + $0x58] sm:$0xff]
    %v192 = vld [vmem:[#allocation8 + $0x60] sm:$0xff]
    %v193 = vld [vmem:[#allocation8 + $0x68] sm:$0xff]
    %v194 = vld [vmem:[#allocation8 + $0x70] sm:$0xff]
    %v195 = vld [vmem:[#allocation8 + $0x78] sm:$0xff]
    %v196 = vld [vmem:[#allocation8 + $0x80] sm:$0xff]
    %v197 = vld [vmem:[#allocation8 + $0x88] sm:$0xff]
    %v198 = vld [vmem:[#allocation8 + $0x90] sm:$0xff]
    %v199 = vld [vmem:[#allocation8 + $0x98] sm:$0xff]
    %v200 = vld [vmem:[#allocation8 + $0xa0] sm:$0xff]
    %v201 = vld [vmem:[#allocation8 + $0xa8] sm:$0xff]
    %v202 = vld [vmem:[#allocation8 + $0xb0] sm:$0xff]
    %v203 = vld [vmem:[#allocation8 + $0xb8] sm:$0xff]
    %v204 = vld [vmem:[#allocation8 + $0xc0] sm:$0xff]
    %v205 = vld [vmem:[#allocation8 + $0xc8] sm:$0xff]
    %v206 = vld [vmem:[#allocation8 + $0xd0] sm:$0xff]
    %v207 = vld [vmem:[#allocation8 + $0xd8] sm:$0xff]
    %v208 = vld [vmem:[#allocation8 + $0xe0] sm:$0xff]
    %v209 = vld [vmem:[#allocation8 + $0xe8] sm:$0xff]
    %v210 = vld [vmem:[#allocation8 + $0xf0] sm:$0xff]
    %v211 = vld [vmem:[#allocation8 + $0xf8] sm:$0xff]
    %v212 = vld [vmem:[#allocation8 + $0x100] sm:$0xff]
    %v213 = vld [vmem:[#allocation8 + $0x108] sm:$0xff]
    %v214 = vld [vmem:[#allocation8 + $0x110] sm:$0xff]
    %v215 = vld [vmem:[#allocation8 + $0x118] sm:$0xff]
    %v216 = vld [vmem:[#allocation8 + $0x120] sm:$0xff]
    %v217 = vld [vmem:[#allocation8 + $0x128] sm:$0xff]
    %v218 = vld [vmem:[#allocation8 + $0x130] sm:$0xff]
    %v219 = vld [vmem:[#allocation8 + $0x138] sm:$0xff]
    %v220 = vld [vmem:[#allocation8 + $0x140] sm:$0xff]
    %v221 = vld [vmem:[#allocation8 + $0x148] sm:$0xff]
    %v222 = vld [vmem:[#allocation8 + $0x150] sm:$0xff]
    %v223 = vld [vmem:[#allocation8 + $0x158] sm:$0xff]
    %v224 = vld [vmem:[#allocation8 + $0x160] sm:$0xff]
    %v225 = vld [vmem:[#allocation8 + $0x168] sm:$0xff]
    %v226 = vld [vmem:[#allocation8 + $0x170] sm:$0xff]
    %v227 = vld [vmem:[#allocation8 + $0x178] sm:$0xff]
    %v228 = vld [vmem:[#allocation8 + $0x180] sm:$0xff]
    %v229 = vld [vmem:[#allocation8 + $0x188] sm:$0xff]
    %v230 = vld [vmem:[#allocation8 + $0x190] sm:$0xff]
    %v231 = vld [vmem:[#allocation8 + $0x198] sm:$0xff]
    %v232 = vld [vmem:[#allocation8 + $0x1a0] sm:$0xff]
    %v233 = vld [vmem:[#allocation8 + $0x1a8] sm:$0xff]
    %v234 = vld [vmem:[#allocation8 + $0x1b0] sm:$0xff]
    %v235 = vld [vmem:[#allocation8 + $0x1b8] sm:$0xff]
    %v236 = vld [vmem:[#allocation8 + $0x1c0] sm:$0xff]
    %v237 = vld [vmem:[#allocation8 + $0x1c8] sm:$0xff]
    %v238 = vld [vmem:[#allocation8 + $0x1d0] sm:$0xff]
    %v239 = vld [vmem:[#allocation8 + $0x1d8] sm:$0xff]
    %v240 = vld [vmem:[#allocation8 + $0x1e0] sm:$0xff]
    %v241 = vld [vmem:[#allocation8 + $0x1e8] sm:$0xff]
    %v242 = vld [vmem:[#allocation8 + $0x1f0] sm:$0xff]
    %v243 = vld [vmem:[#allocation8 + $0x1f8] sm:$0xff]
    %v244 = vld [vmem:[#allocation10] sm:$0xff]
    %v245 = vld [vmem:[#allocation10 + $0x8] sm:$0xff]
    %v246 = vld [vmem:[#allocation10 + $0x10] sm:$0xff]
    %v247 = vld [vmem:[#allocation10 + $0x18] sm:$0xff]
    %v248 = vld [vmem:[#allocation10 + $0x20] sm:$0xff]
    %v249 = vld [vmem:[#allocation10 + $0x28] sm:$0xff]
    %v250 = vld [vmem:[#allocation10 + $0x30] sm:$0xff]
    %v251 = vld [vmem:[#allocation10 + $0x38] sm:$0xff]
    %v252 = vld [vmem:[#allocation10 + $0x40] sm:$0xff]
    %v253 = vld [vmem:[#allocation10 + $0x48] sm:$0xff]
    %v254 = vld [vmem:[#allocation10 + $0x50] sm:$0xff]
    %v255 = vld [vmem:[#allocation10 + $0x58] sm:$0xff]
    %v256 = vld [vmem:[#allocation10 + $0x60] sm:$0xff]
    %v257 = vld [vmem:[#allocation10 + $0x68] sm:$0xff]
    %v258 = vld [vmem:[#allocation10 + $0x70] sm:$0xff]
    %v259 = vld [vmem:[#allocation10 + $0x78] sm:$0xff]
    %v260 = vld [vmem:[#allocation10 + $0x80] sm:$0xff]
    %v261 = vld [vmem:[#allocation10 + $0x88] sm:$0xff]
    %v262 = vld [vmem:[#allocation10 + $0x90] sm:$0xff]
    %v263 = vld [vmem:[#allocation10 + $0x98] sm:$0xff]
    %v264 = vld [vmem:[#allocation10 + $0xa0] sm:$0xff]
    %v265 = vld [vmem:[#allocation10 + $0xa8] sm:$0xff]
    %v266 = vld [vmem:[#allocation10 + $0xb0] sm:$0xff]
    %v267 = vld [vmem:[#allocation10 + $0xb8] sm:$0xff]
    %v268 = vld [vmem:[#allocation10 + $0xc0] sm:$0xff]
    %v269 = vld [vmem:[#allocation10 + $0xc8] sm:$0xff]
    %v270 = vld [vmem:[#allocation10 + $0xd0] sm:$0xff]
    %v271 = vld [vmem:[#allocation10 + $0xd8] sm:$0xff]
    %v272 = vld [vmem:[#allocation10 + $0xe0] sm:$0xff]
    %v273 = vld [vmem:[#allocation10 + $0xe8] sm:$0xff]
    %v274 = vld [vmem:[#allocation10 + $0xf0] sm:$0xff]
    %v275 = vld [vmem:[#allocation10 + $0xf8] sm:$0xff]
    %v276 = vld [vmem:[#allocation10 + $0x100] sm:$0xff]
    %v277 = vld [vmem:[#allocation10 + $0x108] sm:$0xff]
    %v278 = vld [vmem:[#allocation10 + $0x110] sm:$0xff]
    %v279 = vld [vmem:[#allocation10 + $0x118] sm:$0xff]
    %v280 = vld [vmem:[#allocation10 + $0x120] sm:$0xff]
    %v281 = vld [vmem:[#allocation10 + $0x128] sm:$0xff]
    %v282 = vld [vmem:[#allocation10 + $0x130] sm:$0xff]
    %v283 = vld [vmem:[#allocation10 + $0x138] sm:$0xff]
    %v284 = vld [vmem:[#allocation10 + $0x140] sm:$0xff]
    %v285 = vld [vmem:[#allocation10 + $0x148] sm:$0xff]
    %v286 = vld [vmem:[#allocation10 + $0x150] sm:$0xff]
    %v287 = vld [vmem:[#allocation10 + $0x158] sm:$0xff]
    %v288 = vld [vmem:[#allocation10 + $0x160] sm:$0xff]
    %v289 = vld [vmem:[#allocation10 + $0x168] sm:$0xff]
    %v290 = vld [vmem:[#allocation10 + $0x170] sm:$0xff]
    %v291 = vld [vmem:[#allocation10 + $0x178] sm:$0xff]
    %v292 = vld [vmem:[#allocation10 + $0x180] sm:$0xff]
    %v293 = vld [vmem:[#allocation10 + $0x188] sm:$0xff]
    %v294 = vld [vmem:[#allocation10 + $0x190] sm:$0xff]
    %v295 = vld [vmem:[#allocation10 + $0x198] sm:$0xff]
    %v296 = vld [vmem:[#allocation10 + $0x1a0] sm:$0xff]
    %v297 = vld [vmem:[#allocation10 + $0x1a8] sm:$0xff]
    %v298 = vld [vmem:[#allocation10 + $0x1b0] sm:$0xff]
    %v299 = vld [vmem:[#allocation10 + $0x1b8] sm:$0xff]
    %v300 = vld [vmem:[#allocation10 + $0x1c0] sm:$0xff]
    %v301 = vld [vmem:[#allocation10 + $0x1c8] sm:$0xff]
    %v302 = vld [vmem:[#allocation10 + $0x1d0] sm:$0xff]
    %v303 = vld [vmem:[#allocation10 + $0x1d8] sm:$0xff]
    %v304 = vld [vmem:[#allocation10 + $0x1e0] sm:$0xff]
    %v305 = vld [vmem:[#allocation10 + $0x1e8] sm:$0xff]
    %v306 = vld [vmem:[#allocation10 + $0x1f0] sm:$0xff]
    %v307 = vld [vmem:[#allocation10 + $0x1f8] sm:$0xff]
    %v308 = vld [vmem:[#allocation10 + $0x200] sm:$0xff]
    %v309 = vld [vmem:[#allocation10 + $0x208] sm:$0xff]
    %v310 = vld [vmem:[#allocation10 + $0x210] sm:$0xff]
    %v311 = vld [vmem:[#allocation10 + $0x218] sm:$0xff]
    %v312 = vld [vmem:[#allocation10 + $0x220] sm:$0xff]
    %v313 = vld [vmem:[#allocation10 + $0x228] sm:$0xff]
    %v314 = vld [vmem:[#allocation10 + $0x230] sm:$0xff]
    %v315 = vld [vmem:[#allocation10 + $0x238] sm:$0xff]
    %v316 = vld [vmem:[#allocation10 + $0x240] sm:$0xff]
    %v317 = vld [vmem:[#allocation10 + $0x248] sm:$0xff]
    %v318 = vld [vmem:[#allocation10 + $0x250] sm:$0xff]
    %v319 = vld [vmem:[#allocation10 + $0x258] sm:$0xff]
    %v320 = vld [vmem:[#allocation10 + $0x260] sm:$0xff]
    %v321 = vld [vmem:[#allocation10 + $0x268] sm:$0xff]
    %v322 = vld [vmem:[#allocation10 + $0x270] sm:$0xff]
    %v323 = vld [vmem:[#allocation10 + $0x278] sm:$0xff]
    %v324 = vld [vmem:[#allocation10 + $0x280] sm:$0xff]
    %v325 = vld [vmem:[#allocation10 + $0x288] sm:$0xff]
    %v326 = vld [vmem:[#allocation10 + $0x290] sm:$0xff]
    %v327 = vld [vmem:[#allocation10 + $0x298] sm:$0xff]
    %v328 = vld [vmem:[#allocation10 + $0x2a0] sm:$0xff]
    %v329 = vld [vmem:[#allocation10 + $0x2a8] sm:$0xff]
    %v330 = vld [vmem:[#allocation10 + $0x2b0] sm:$0xff]
    %v331 = vld [vmem:[#allocation10 + $0x2b8] sm:$0xff]
    %v332 = vld [vmem:[#allocation10 + $0x2c0] sm:$0xff]
    %v333 = vld [vmem:[#allocation10 + $0x2c8] sm:$0xff]
    %v334 = vld [vmem:[#allocation10 + $0x2d0] sm:$0xff]
    %v335 = vld [vmem:[#allocation10 + $0x2d8] sm:$0xff]
    %v336 = vld [vmem:[#allocation10 + $0x2e0] sm:$0xff]
    %v337 = vld [vmem:[#allocation10 + $0x2e8] sm:$0xff]
    %v338 = vld [vmem:[#allocation10 + $0x2f0] sm:$0xff]
    %v339 = vld [vmem:[#allocation10 + $0x2f8] sm:$0xff]
    %v340 = vld [vmem:[#allocation10 + $0x300] sm:$0xff]
    %v341 = vld [vmem:[#allocation10 + $0x308] sm:$0xff]
    %v342 = vld [vmem:[#allocation10 + $0x310] sm:$0xff]
    %v343 = vld [vmem:[#allocation10 + $0x318] sm:$0xff]
    %v344 = vld [vmem:[#allocation10 + $0x320] sm:$0xff]
    %v345 = vld [vmem:[#allocation10 + $0x328] sm:$0xff]
    %v346 = vld [vmem:[#allocation10 + $0x330] sm:$0xff]
    %v347 = vld [vmem:[#allocation10 + $0x338] sm:$0xff]
    %v348 = vld [vmem:[#allocation10 + $0x340] sm:$0xff]
    %v349 = vld [vmem:[#allocation10 + $0x348] sm:$0xff]
    %v350 = vld [vmem:[#allocation10 + $0x350] sm:$0xff]
    %v351 = vld [vmem:[#allocation10 + $0x358] sm:$0xff]
    %v352 = vld [vmem:[#allocation10 + $0x360] sm:$0xff]
    %v353 = vld [vmem:[#allocation10 + $0x368] sm:$0xff]
    %v354 = vld [vmem:[#allocation10 + $0x370] sm:$0xff]
    %v355 = vld [vmem:[#allocation10 + $0x378] sm:$0xff]
    %v356 = vld [vmem:[#allocation10 + $0x380] sm:$0xff]
    %v357 = vld [vmem:[#allocation10 + $0x388] sm:$0xff]
    %v358 = vld [vmem:[#allocation10 + $0x390] sm:$0xff]
    %v359 = vld [vmem:[#allocation10 + $0x398] sm:$0xff]
    %v360 = vld [vmem:[#allocation10 + $0x3a0] sm:$0xff]
    %v361 = vld [vmem:[#allocation10 + $0x3a8] sm:$0xff]
    %v362 = vld [vmem:[#allocation10 + $0x3b0] sm:$0xff]
    %v363 = vld [vmem:[#allocation10 + $0x3b8] sm:$0xff]
    %v364 = vld [vmem:[#allocation10 + $0x3c0] sm:$0xff]
    %v365 = vld [vmem:[#allocation10 + $0x3c8] sm:$0xff]
    %v366 = vld [vmem:[#allocation10 + $0x3d0] sm:$0xff]
    %v367 = vld [vmem:[#allocation10 + $0x3d8] sm:$0xff]
    %v368 = vld [vmem:[#allocation10 + $0x3e0] sm:$0xff]
    %v369 = vld [vmem:[#allocation10 + $0x3e8] sm:$0xff]
    %v370 = vld [vmem:[#allocation10 + $0x3f0] sm:$0xff]
    %v371 = vld [vmem:[#allocation10 + $0x3f8] sm:$0xff]
    %v436 = vunpack.c.l.b16 %v116
    %v437 = vunpack.c.h.b16 %v116
    %v438 = vunpack.c.l.b16 %v117
    %v439 = vunpack.c.h.b16 %v117
    %v440 = vunpack.c.l.b16 %v118
    %v441 = vunpack.c.h.b16 %v118
    %v442 = vunpack.c.l.b16 %v119
    %v443 = vunpack.c.h.b16 %v119
    %v444 = vunpack.c.l.b16 %v120
    %v445 = vunpack.c.h.b16 %v120
    %v446 = vunpack.c.l.b16 %v121
    %v447 = vunpack.c.h.b16 %v121
    %v448 = vunpack.c.l.b16 %v122
    %v449 = vunpack.c.h.b16 %v122
    %v450 = vunpack.c.l.b16 %v123
    %v451 = vunpack.c.h.b16 %v123
    %v452 = vunpack.c.l.b16 %v124
    %v453 = vunpack.c.h.b16 %v124
    %v454 = vunpack.c.l.b16 %v125
    %v455 = vunpack.c.h.b16 %v125
    %v456 = vunpack.c.l.b16 %v126
    %v457 = vunpack.c.h.b16 %v126
    %v458 = vunpack.c.l.b16 %v127
    %v459 = vunpack.c.h.b16 %v127
    %v460 = vunpack.c.l.b16 %v128
    %v461 = vunpack.c.h.b16 %v128
    %v462 = vunpack.c.l.b16 %v129
    %v463 = vunpack.c.h.b16 %v129
    %v464 = vunpack.c.l.b16 %v130
    %v465 = vunpack.c.h.b16 %v130
    %v466 = vunpack.c.l.b16 %v131
    %v467 = vunpack.c.h.b16 %v131
    %v468 = vunpack.c.l.b16 %v132
    %v469 = vunpack.c.h.b16 %v132
    %v470 = vunpack.c.l.b16 %v133
    %v471 = vunpack.c.h.b16 %v133
    %v472 = vunpack.c.l.b16 %v134
    %v473 = vunpack.c.h.b16 %v134
    %v474 = vunpack.c.l.b16 %v135
    %v475 = vunpack.c.h.b16 %v135
    %v476 = vunpack.c.l.b16 %v136
    %v477 = vunpack.c.h.b16 %v136
    %v478 = vunpack.c.l.b16 %v137
    %v479 = vunpack.c.h.b16 %v137
    %v480 = vunpack.c.l.b16 %v138
    %v481 = vunpack.c.h.b16 %v138
    %v482 = vunpack.c.l.b16 %v139
    %v483 = vunpack.c.h.b16 %v139
    %v484 = vunpack.c.l.b16 %v140
    %v485 = vunpack.c.h.b16 %v140
    %v486 = vunpack.c.l.b16 %v141
    %v487 = vunpack.c.h.b16 %v141
    %v488 = vunpack.c.l.b16 %v142
    %v489 = vunpack.c.h.b16 %v142
    %v490 = vunpack.c.l.b16 %v143
    %v491 = vunpack.c.h.b16 %v143
    %v492 = vunpack.c.l.b16 %v144
    %v493 = vunpack.c.h.b16 %v144
    %v494 = vunpack.c.l.b16 %v145
    %v495 = vunpack.c.h.b16 %v145
    %v496 = vunpack.c.l.b16 %v146
    %v497 = vunpack.c.h.b16 %v146
    %v498 = vunpack.c.l.b16 %v147
    %v499 = vunpack.c.h.b16 %v147
    %v500 = vunpack.c.l.b16 %v148
    %v501 = vunpack.c.h.b16 %v148
    %v502 = vunpack.c.l.b16 %v149
    %v503 = vunpack.c.h.b16 %v149
    %v504 = vunpack.c.l.b16 %v150
    %v505 = vunpack.c.h.b16 %v150
    %v506 = vunpack.c.l.b16 %v151
    %v507 = vunpack.c.h.b16 %v151
    %v508 = vunpack.c.l.b16 %v152
    %v509 = vunpack.c.h.b16 %v152
    %v510 = vunpack.c.l.b16 %v153
    %v511 = vunpack.c.h.b16 %v153
    %v512 = vunpack.c.l.b16 %v154
    %v513 = vunpack.c.h.b16 %v154
    %v514 = vunpack.c.l.b16 %v155
    %v515 = vunpack.c.h.b16 %v155
    %v516 = vunpack.c.l.b16 %v156
    %v517 = vunpack.c.h.b16 %v156
    %v518 = vunpack.c.l.b16 %v157
    %v519 = vunpack.c.h.b16 %v157
    %v520 = vunpack.c.l.b16 %v158
    %v521 = vunpack.c.h.b16 %v158
    %v522 = vunpack.c.l.b16 %v159
    %v523 = vunpack.c.h.b16 %v159
    %v524 = vunpack.c.l.b16 %v160
    %v525 = vunpack.c.h.b16 %v160
    %v526 = vunpack.c.l.b16 %v161
    %v527 = vunpack.c.h.b16 %v161
    %v528 = vunpack.c.l.b16 %v162
    %v529 = vunpack.c.h.b16 %v162
    %v530 = vunpack.c.l.b16 %v163
    %v531 = vunpack.c.h.b16 %v163
    %v532 = vunpack.c.l.b16 %v164
    %v533 = vunpack.c.h.b16 %v164
    %v534 = vunpack.c.l.b16 %v165
    %v535 = vunpack.c.h.b16 %v165
    %v536 = vunpack.c.l.b16 %v166
    %v537 = vunpack.c.h.b16 %v166
    %v538 = vunpack.c.l.b16 %v167
    %v539 = vunpack.c.h.b16 %v167
    %v540 = vunpack.c.l.b16 %v168
    %v541 = vunpack.c.h.b16 %v168
    %v542 = vunpack.c.l.b16 %v169
    %v543 = vunpack.c.h.b16 %v169
    %v544 = vunpack.c.l.b16 %v170
    %v545 = vunpack.c.h.b16 %v170
    %v546 = vunpack.c.l.b16 %v171
    %v547 = vunpack.c.h.b16 %v171
    %v548 = vunpack.c.l.b16 %v172
    %v549 = vunpack.c.h.b16 %v172
    %v550 = vunpack.c.l.b16 %v173
    %v551 = vunpack.c.h.b16 %v173
    %v552 = vunpack.c.l.b16 %v174
    %v553 = vunpack.c.h.b16 %v174
    %v554 = vunpack.c.l.b16 %v175
    %v555 = vunpack.c.h.b16 %v175
    %v556 = vunpack.c.l.b16 %v176
    %v557 = vunpack.c.h.b16 %v176
    %v558 = vunpack.c.l.b16 %v177
    %v559 = vunpack.c.h.b16 %v177
    %v560 = vunpack.c.l.b16 %v178
    %v561 = vunpack.c.h.b16 %v178
    %v562 = vunpack.c.l.b16 %v179
    %v563 = vunpack.c.h.b16 %v179
    %v564 = vpack.c.b16 %v444, %v436
    %v565 = vpack.c.b16 %v445, %v437
    %v566 = vpack.c.b16 %v446, %v438
    %v567 = vpack.c.b16 %v447, %v439
    %v568 = vpack.c.b16 %v448, %v440
    %v569 = vpack.c.b16 %v449, %v441
    %v570 = vpack.c.b16 %v450, %v442
    %v571 = vpack.c.b16 %v451, %v443
    %v572 = vpack.c.b16 %v460, %v452
    %v573 = vpack.c.b16 %v461, %v453
    %v574 = vpack.c.b16 %v462, %v454
    %v575 = vpack.c.b16 %v463, %v455
    %v576 = vpack.c.b16 %v464, %v456
    %v577 = vpack.c.b16 %v465, %v457
    %v578 = vpack.c.b16 %v466, %v458
    %v579 = vpack.c.b16 %v467, %v459
    %v580 = vpack.c.b16 %v476, %v468
    %v581 = vpack.c.b16 %v477, %v469
    %v582 = vpack.c.b16 %v478, %v470
    %v583 = vpack.c.b16 %v479, %v471
    %v584 = vpack.c.b16 %v480, %v472
    %v585 = vpack.c.b16 %v481, %v473
    %v586 = vpack.c.b16 %v482, %v474
    %v587 = vpack.c.b16 %v483, %v475
    %v588 = vpack.c.b16 %v492, %v484
    %v589 = vpack.c.b16 %v493, %v485
    %v590 = vpack.c.b16 %v494, %v486
    %v591 = vpack.c.b16 %v495, %v487
    %v592 = vpack.c.b16 %v496, %v488
    %v593 = vpack.c.b16 %v497, %v489
    %v594 = vpack.c.b16 %v498, %v490
    %v595 = vpack.c.b16 %v499, %v491
    %v596 = vpack.c.b16 %v508, %v500
    %v597 = vpack.c.b16 %v509, %v501
    %v598 = vpack.c.b16 %v510, %v502
    %v599 = vpack.c.b16 %v511, %v503
    %v600 = vpack.c.b16 %v512, %v504
    %v601 = vpack.c.b16 %v513, %v505
    %v602 = vpack.c.b16 %v514, %v506
    %v603 = vpack.c.b16 %v515, %v507
    %v604 = vpack.c.b16 %v524, %v516
    %v605 = vpack.c.b16 %v525, %v517
    %v606 = vpack.c.b16 %v526, %v518
    %v607 = vpack.c.b16 %v527, %v519
    %v608 = vpack.c.b16 %v528, %v520
    %v609 = vpack.c.b16 %v529, %v521
    %v610 = vpack.c.b16 %v530, %v522
    %v611 = vpack.c.b16 %v531, %v523
    %v612 = vpack.c.b16 %v540, %v532
    %v613 = vpack.c.b16 %v541, %v533
    %v614 = vpack.c.b16 %v542, %v534
    %v615 = vpack.c.b16 %v543, %v535
    %v616 = vpack.c.b16 %v544, %v536
    %v617 = vpack.c.b16 %v545, %v537
    %v618 = vpack.c.b16 %v546, %v538
    %v619 = vpack.c.b16 %v547, %v539
    %v620 = vpack.c.b16 %v556, %v548
    %v621 = vpack.c.b16 %v557, %v549
    %v622 = vpack.c.b16 %v558, %v550
    %v623 = vpack.c.b16 %v559, %v551
    %v624 = vpack.c.b16 %v560, %v552
    %v625 = vpack.c.b16 %v561, %v553
    %v626 = vpack.c.b16 %v562, %v554
    %v627 = vpack.c.b16 %v563, %v555
    %v820 = vunpack.c.l.b16 %v244
    %v821 = vunpack.c.h.b16 %v244
    %v822 = vunpack.c.l.b16 %v245
    %v823 = vunpack.c.h.b16 %v245
    %v824 = vunpack.c.l.b16 %v246
    %v825 = vunpack.c.h.b16 %v246
    %v826 = vunpack.c.l.b16 %v247
    %v827 = vunpack.c.h.b16 %v247
    %v828 = vunpack.c.l.b16 %v248
    %v829 = vunpack.c.h.b16 %v248
    %v830 = vunpack.c.l.b16 %v249
    %v831 = vunpack.c.h.b16 %v249
    %v832 = vunpack.c.l.b16 %v250
    %v833 = vunpack.c.h.b16 %v250
    %v834 = vunpack.c.l.b16 %v251
    %v835 = vunpack.c.h.b16 %v251
    %v836 = vunpack.c.l.b16 %v252
    %v837 = vunpack.c.h.b16 %v252
    %v838 = vunpack.c.l.b16 %v253
    %v839 = vunpack.c.h.b16 %v253
    %v840 = vunpack.c.l.b16 %v254
    %v841 = vunpack.c.h.b16 %v254
    %v842 = vunpack.c.l.b16 %v255
    %v843 = vunpack.c.h.b16 %v255
    %v844 = vunpack.c.l.b16 %v256
    %v845 = vunpack.c.h.b16 %v256
    %v846 = vunpack.c.l.b16 %v257
    %v847 = vunpack.c.h.b16 %v257
    %v848 = vunpack.c.l.b16 %v258
    %v849 = vunpack.c.h.b16 %v258
    %v850 = vunpack.c.l.b16 %v259
    %v851 = vunpack.c.h.b16 %v259
    %v852 = vunpack.c.l.b16 %v260
    %v853 = vunpack.c.h.b16 %v260
    %v854 = vunpack.c.l.b16 %v261
    %v855 = vunpack.c.h.b16 %v261
    %v856 = vunpack.c.l.b16 %v262
    %v857 = vunpack.c.h.b16 %v262
    %v858 = vunpack.c.l.b16 %v263
    %v859 = vunpack.c.h.b16 %v263
    %v860 = vunpack.c.l.b16 %v264
    %v861 = vunpack.c.h.b16 %v264
    %v862 = vunpack.c.l.b16 %v265
    %v863 = vunpack.c.h.b16 %v265
    %v864 = vunpack.c.l.b16 %v266
    %v865 = vunpack.c.h.b16 %v266
    %v866 = vunpack.c.l.b16 %v267
    %v867 = vunpack.c.h.b16 %v267
    %v868 = vunpack.c.l.b16 %v268
    %v869 = vunpack.c.h.b16 %v268
    %v870 = vunpack.c.l.b16 %v269
    %v871 = vunpack.c.h.b16 %v269
    %v872 = vunpack.c.l.b16 %v270
    %v873 = vunpack.c.h.b16 %v270
    %v874 = vunpack.c.l.b16 %v271
    %v875 = vunpack.c.h.b16 %v271
    %v876 = vunpack.c.l.b16 %v272
    %v877 = vunpack.c.h.b16 %v272
    %v878 = vunpack.c.l.b16 %v273
    %v879 = vunpack.c.h.b16 %v273
    %v880 = vunpack.c.l.b16 %v274
    %v881 = vunpack.c.h.b16 %v274
    %v882 = vunpack.c.l.b16 %v275
    %v883 = vunpack.c.h.b16 %v275
    %v884 = vunpack.c.l.b16 %v276
    %v885 = vunpack.c.h.b16 %v276
    %v886 = vunpack.c.l.b16 %v277
    %v887 = vunpack.c.h.b16 %v277
    %v888 = vunpack.c.l.b16 %v278
    %v889 = vunpack.c.h.b16 %v278
    %v890 = vunpack.c.l.b16 %v279
    %v891 = vunpack.c.h.b16 %v279
    %v892 = vunpack.c.l.b16 %v280
    %v893 = vunpack.c.h.b16 %v280
    %v894 = vunpack.c.l.b16 %v281
    %v895 = vunpack.c.h.b16 %v281
    %v896 = vunpack.c.l.b16 %v282
    %v897 = vunpack.c.h.b16 %v282
    %v898 = vunpack.c.l.b16 %v283
    %v899 = vunpack.c.h.b16 %v283
    %v900 = vunpack.c.l.b16 %v284
    %v901 = vunpack.c.h.b16 %v284
    %v902 = vunpack.c.l.b16 %v285
    %v903 = vunpack.c.h.b16 %v285
    %v904 = vunpack.c.l.b16 %v286
    %v905 = vunpack.c.h.b16 %v286
    %v906 = vunpack.c.l.b16 %v287
    %v907 = vunpack.c.h.b16 %v287
    %v908 = vunpack.c.l.b16 %v288
    %v909 = vunpack.c.h.b16 %v288
    %v910 = vunpack.c.l.b16 %v289
    %v911 = vunpack.c.h.b16 %v289
    %v912 = vunpack.c.l.b16 %v290
    %v913 = vunpack.c.h.b16 %v290
    %v914 = vunpack.c.l.b16 %v291
    %v915 = vunpack.c.h.b16 %v291
    %v916 = vunpack.c.l.b16 %v292
    %v917 = vunpack.c.h.b16 %v292
    %v918 = vunpack.c.l.b16 %v293
    %v919 = vunpack.c.h.b16 %v293
    %v920 = vunpack.c.l.b16 %v294
    %v921 = vunpack.c.h.b16 %v294
    %v922 = vunpack.c.l.b16 %v295
    %v923 = vunpack.c.h.b16 %v295
    %v924 = vunpack.c.l.b16 %v296
    %v925 = vunpack.c.h.b16 %v296
    %v926 = vunpack.c.l.b16 %v297
    %v927 = vunpack.c.h.b16 %v297
    %v928 = vunpack.c.l.b16 %v298
    %v929 = vunpack.c.h.b16 %v298
    %v930 = vunpack.c.l.b16 %v299
    %v931 = vunpack.c.h.b16 %v299
    %v932 = vunpack.c.l.b16 %v300
    %v933 = vunpack.c.h.b16 %v300
    %v934 = vunpack.c.l.b16 %v301
    %v935 = vunpack.c.h.b16 %v301
    %v936 = vunpack.c.l.b16 %v302
    %v937 = vunpack.c.h.b16 %v302
    %v938 = vunpack.c.l.b16 %v303
    %v939 = vunpack.c.h.b16 %v303
    %v940 = vunpack.c.l.b16 %v304
    %v941 = vunpack.c.h.b16 %v304
    %v942 = vunpack.c.l.b16 %v305
    %v943 = vunpack.c.h.b16 %v305
    %v944 = vunpack.c.l.b16 %v306
    %v945 = vunpack.c.h.b16 %v306
    %v946 = vunpack.c.l.b16 %v307
    %v947 = vunpack.c.h.b16 %v307
    %v948 = vunpack.c.l.b16 %v308
    %v949 = vunpack.c.h.b16 %v308
    %v950 = vunpack.c.l.b16 %v309
    %v951 = vunpack.c.h.b16 %v309
    %v952 = vunpack.c.l.b16 %v310
    %v953 = vunpack.c.h.b16 %v310
    %v954 = vunpack.c.l.b16 %v311
    %v955 = vunpack.c.h.b16 %v311
    %v956 = vunpack.c.l.b16 %v312
    %v957 = vunpack.c.h.b16 %v312
    %v958 = vunpack.c.l.b16 %v313
    %v959 = vunpack.c.h.b16 %v313
    %v960 = vunpack.c.l.b16 %v314
    %v961 = vunpack.c.h.b16 %v314
    %v962 = vunpack.c.l.b16 %v315
    %v963 = vunpack.c.h.b16 %v315
    %v964 = vunpack.c.l.b16 %v316
    %v965 = vunpack.c.h.b16 %v316
    %v966 = vunpack.c.l.b16 %v317
    %v967 = vunpack.c.h.b16 %v317
    %v968 = vunpack.c.l.b16 %v318
    %v969 = vunpack.c.h.b16 %v318
    %v970 = vunpack.c.l.b16 %v319
    %v971 = vunpack.c.h.b16 %v319
    %v972 = vunpack.c.l.b16 %v320
    %v973 = vunpack.c.h.b16 %v320
    %v974 = vunpack.c.l.b16 %v321
    %v975 = vunpack.c.h.b16 %v321
    %v976 = vunpack.c.l.b16 %v322
    %v977 = vunpack.c.h.b16 %v322
    %v978 = vunpack.c.l.b16 %v323
    %v979 = vunpack.c.h.b16 %v323
    %v980 = vunpack.c.l.b16 %v324
    %v981 = vunpack.c.h.b16 %v324
    %v982 = vunpack.c.l.b16 %v325
    %v983 = vunpack.c.h.b16 %v325
    %v984 = vunpack.c.l.b16 %v326
    %v985 = vunpack.c.h.b16 %v326
    %v986 = vunpack.c.l.b16 %v327
    %v987 = vunpack.c.h.b16 %v327
    %v988 = vunpack.c.l.b16 %v328
    %v989 = vunpack.c.h.b16 %v328
    %v990 = vunpack.c.l.b16 %v329
    %v991 = vunpack.c.h.b16 %v329
    %v992 = vunpack.c.l.b16 %v330
    %v993 = vunpack.c.h.b16 %v330
    %v994 = vunpack.c.l.b16 %v331
    %v995 = vunpack.c.h.b16 %v331
    %v996 = vunpack.c.l.b16 %v332
    %v997 = vunpack.c.h.b16 %v332
    %v998 = vunpack.c.l.b16 %v333
    %v999 = vunpack.c.h.b16 %v333
    %v1000 = vunpack.c.l.b16 %v334
    %v1001 = vunpack.c.h.b16 %v334
    %v1002 = vunpack.c.l.b16 %v335
    %v1003 = vunpack.c.h.b16 %v335
    %v1004 = vunpack.c.l.b16 %v336
    %v1005 = vunpack.c.h.b16 %v336
    %v1006 = vunpack.c.l.b16 %v337
    %v1007 = vunpack.c.h.b16 %v337
    %v1008 = vunpack.c.l.b16 %v338
    %v1009 = vunpack.c.h.b16 %v338
    %v1010 = vunpack.c.l.b16 %v339
    %v1011 = vunpack.c.h.b16 %v339
    %v1012 = vunpack.c.l.b16 %v340
    %v1013 = vunpack.c.h.b16 %v340
    %v1014 = vunpack.c.l.b16 %v341
    %v1015 = vunpack.c.h.b16 %v341
    %v1016 = vunpack.c.l.b16 %v342
    %v1017 = vunpack.c.h.b16 %v342
    %v1018 = vunpack.c.l.b16 %v343
    %v1019 = vunpack.c.h.b16 %v343
    %v1020 = vunpack.c.l.b16 %v344
    %v1021 = vunpack.c.h.b16 %v344
    %v1022 = vunpack.c.l.b16 %v345
    %v1023 = vunpack.c.h.b16 %v345
    %v1024 = vunpack.c.l.b16 %v346
    %v1025 = vunpack.c.h.b16 %v346
    %v1026 = vunpack.c.l.b16 %v347
    %v1027 = vunpack.c.h.b16 %v347
    %v1028 = vunpack.c.l.b16 %v348
    %v1029 = vunpack.c.h.b16 %v348
    %v1030 = vunpack.c.l.b16 %v349
    %v1031 = vunpack.c.h.b16 %v349
    %v1032 = vunpack.c.l.b16 %v350
    %v1033 = vunpack.c.h.b16 %v350
    %v1034 = vunpack.c.l.b16 %v351
    %v1035 = vunpack.c.h.b16 %v351
    %v1036 = vunpack.c.l.b16 %v352
    %v1037 = vunpack.c.h.b16 %v352
    %v1038 = vunpack.c.l.b16 %v353
    %v1039 = vunpack.c.h.b16 %v353
    %v1040 = vunpack.c.l.b16 %v354
    %v1041 = vunpack.c.h.b16 %v354
    %v1042 = vunpack.c.l.b16 %v355
    %v1043 = vunpack.c.h.b16 %v355
    %v1044 = vunpack.c.l.b16 %v356
    %v1045 = vunpack.c.h.b16 %v356
    %v1046 = vunpack.c.l.b16 %v357
    %v1047 = vunpack.c.h.b16 %v357
    %v1048 = vunpack.c.l.b16 %v358
    %v1049 = vunpack.c.h.b16 %v358
    %v1050 = vunpack.c.l.b16 %v359
    %v1051 = vunpack.c.h.b16 %v359
    %v1052 = vunpack.c.l.b16 %v360
    %v1053 = vunpack.c.h.b16 %v360
    %v1054 = vunpack.c.l.b16 %v361
    %v1055 = vunpack.c.h.b16 %v361
    %v1056 = vunpack.c.l.b16 %v362
    %v1057 = vunpack.c.h.b16 %v362
    %v1058 = vunpack.c.l.b16 %v363
    %v1059 = vunpack.c.h.b16 %v363
    %v1060 = vunpack.c.l.b16 %v364
    %v1061 = vunpack.c.h.b16 %v364
    %v1062 = vunpack.c.l.b16 %v365
    %v1063 = vunpack.c.h.b16 %v365
    %v1064 = vunpack.c.l.b16 %v366
    %v1065 = vunpack.c.h.b16 %v366
    %v1066 = vunpack.c.l.b16 %v367
    %v1067 = vunpack.c.h.b16 %v367
    %v1068 = vunpack.c.l.b16 %v368
    %v1069 = vunpack.c.h.b16 %v368
    %v1070 = vunpack.c.l.b16 %v369
    %v1071 = vunpack.c.h.b16 %v369
    %v1072 = vunpack.c.l.b16 %v370
    %v1073 = vunpack.c.h.b16 %v370
    %v1074 = vunpack.c.l.b16 %v371
    %v1075 = vunpack.c.h.b16 %v371
    %v1076 = vpack.c.b16 %v822, %v820
    %v1077 = vpack.c.b16 %v823, %v821
    %v1078 = vpack.c.b16 %v826, %v824
    %v1079 = vpack.c.b16 %v827, %v825
    %v1080 = vpack.c.b16 %v830, %v828
    %v1081 = vpack.c.b16 %v831, %v829
    %v1082 = vpack.c.b16 %v834, %v832
    %v1083 = vpack.c.b16 %v835, %v833
    %v1084 = vpack.c.b16 %v838, %v836
    %v1085 = vpack.c.b16 %v839, %v837
    %v1086 = vpack.c.b16 %v842, %v840
    %v1087 = vpack.c.b16 %v843, %v841
    %v1088 = vpack.c.b16 %v846, %v844
    %v1089 = vpack.c.b16 %v847, %v845
    %v1090 = vpack.c.b16 %v850, %v848
    %v1091 = vpack.c.b16 %v851, %v849
    %v1092 = vpack.c.b16 %v854, %v852
    %v1093 = vpack.c.b16 %v855, %v853
    %v1094 = vpack.c.b16 %v858, %v856
    %v1095 = vpack.c.b16 %v859, %v857
    %v1096 = vpack.c.b16 %v862, %v860
    %v1097 = vpack.c.b16 %v863, %v861
    %v1098 = vpack.c.b16 %v866, %v864
    %v1099 = vpack.c.b16 %v867, %v865
    %v1100 = vpack.c.b16 %v870, %v868
    %v1101 = vpack.c.b16 %v871, %v869
    %v1102 = vpack.c.b16 %v874, %v872
    %v1103 = vpack.c.b16 %v875, %v873
    %v1104 = vpack.c.b16 %v878, %v876
    %v1105 = vpack.c.b16 %v879, %v877
    %v1106 = vpack.c.b16 %v882, %v880
    %v1107 = vpack.c.b16 %v883, %v881
    %v1108 = vpack.c.b16 %v886, %v884
    %v1109 = vpack.c.b16 %v887, %v885
    %v1110 = vpack.c.b16 %v890, %v888
    %v1111 = vpack.c.b16 %v891, %v889
    %v1112 = vpack.c.b16 %v894, %v892
    %v1113 = vpack.c.b16 %v895, %v893
    %v1114 = vpack.c.b16 %v898, %v896
    %v1115 = vpack.c.b16 %v899, %v897
    %v1116 = vpack.c.b16 %v902, %v900
    %v1117 = vpack.c.b16 %v903, %v901
    %v1118 = vpack.c.b16 %v906, %v904
    %v1119 = vpack.c.b16 %v907, %v905
    %v1120 = vpack.c.b16 %v910, %v908
    %v1121 = vpack.c.b16 %v911, %v909
    %v1122 = vpack.c.b16 %v914, %v912
    %v1123 = vpack.c.b16 %v915, %v913
    %v1124 = vpack.c.b16 %v918, %v916
    %v1125 = vpack.c.b16 %v919, %v917
    %v1126 = vpack.c.b16 %v922, %v920
    %v1127 = vpack.c.b16 %v923, %v921
    %v1128 = vpack.c.b16 %v926, %v924
    %v1129 = vpack.c.b16 %v927, %v925
    %v1130 = vpack.c.b16 %v930, %v928
    %v1131 = vpack.c.b16 %v931, %v929
    %v1132 = vpack.c.b16 %v934, %v932
    %v1133 = vpack.c.b16 %v935, %v933
    %v1134 = vpack.c.b16 %v938, %v936
    %v1135 = vpack.c.b16 %v939, %v937
    %v1136 = vpack.c.b16 %v942, %v940
    %v1137 = vpack.c.b16 %v943, %v941
    %v1138 = vpack.c.b16 %v946, %v944
    %v1139 = vpack.c.b16 %v947, %v945
    %v1140 = vpack.c.b16 %v950, %v948
    %v1141 = vpack.c.b16 %v951, %v949
    %v1142 = vpack.c.b16 %v954, %v952
    %v1143 = vpack.c.b16 %v955, %v953
    %v1144 = vpack.c.b16 %v958, %v956
    %v1145 = vpack.c.b16 %v959, %v957
    %v1146 = vpack.c.b16 %v962, %v960
    %v1147 = vpack.c.b16 %v963, %v961
    %v1148 = vpack.c.b16 %v966, %v964
    %v1149 = vpack.c.b16 %v967, %v965
    %v1150 = vpack.c.b16 %v970, %v968
    %v1151 = vpack.c.b16 %v971, %v969
    %v1152 = vpack.c.b16 %v974, %v972
    %v1153 = vpack.c.b16 %v975, %v973
    %v1154 = vpack.c.b16 %v978, %v976
    %v1155 = vpack.c.b16 %v979, %v977
    %v1156 = vpack.c.b16 %v982, %v980
    %v1157 = vpack.c.b16 %v983, %v981
    %v1158 = vpack.c.b16 %v986, %v984
    %v1159 = vpack.c.b16 %v987, %v985
    %v1160 = vpack.c.b16 %v990, %v988
    %v1161 = vpack.c.b16 %v991, %v989
    %v1162 = vpack.c.b16 %v994, %v992
    %v1163 = vpack.c.b16 %v995, %v993
    %v1164 = vpack.c.b16 %v998, %v996
    %v1165 = vpack.c.b16 %v999, %v997
    %v1166 = vpack.c.b16 %v1002, %v1000
    %v1167 = vpack.c.b16 %v1003, %v1001
    %v1168 = vpack.c.b16 %v1006, %v1004
    %v1169 = vpack.c.b16 %v1007, %v1005
    %v1170 = vpack.c.b16 %v1010, %v1008
    %v1171 = vpack.c.b16 %v1011, %v1009
    %v1172 = vpack.c.b16 %v1014, %v1012
    %v1173 = vpack.c.b16 %v1015, %v1013
    %v1174 = vpack.c.b16 %v1018, %v1016
    %v1175 = vpack.c.b16 %v1019, %v1017
    %v1176 = vpack.c.b16 %v1022, %v1020
    %v1177 = vpack.c.b16 %v1023, %v1021
    %v1178 = vpack.c.b16 %v1026, %v1024
    %v1179 = vpack.c.b16 %v1027, %v1025
    %v1180 = vpack.c.b16 %v1030, %v1028
    %v1181 = vpack.c.b16 %v1031, %v1029
    %v1182 = vpack.c.b16 %v1034, %v1032
    %v1183 = vpack.c.b16 %v1035, %v1033
    %v1184 = vpack.c.b16 %v1038, %v1036
    %v1185 = vpack.c.b16 %v1039, %v1037
    %v1186 = vpack.c.b16 %v1042, %v1040
    %v1187 = vpack.c.b16 %v1043, %v1041
    %v1188 = vpack.c.b16 %v1046, %v1044
    %v1189 = vpack.c.b16 %v1047, %v1045
    %v1190 = vpack.c.b16 %v1050, %v1048
    %v1191 = vpack.c.b16 %v1051, %v1049
    %v1192 = vpack.c.b16 %v1054, %v1052
    %v1193 = vpack.c.b16 %v1055, %v1053
    %v1194 = vpack.c.b16 %v1058, %v1056
    %v1195 = vpack.c.b16 %v1059, %v1057
    %v1196 = vpack.c.b16 %v1062, %v1060
    %v1197 = vpack.c.b16 %v1063, %v1061
    %v1198 = vpack.c.b16 %v1066, %v1064
    %v1199 = vpack.c.b16 %v1067, %v1065
    %v1200 = vpack.c.b16 %v1070, %v1068
    %v1201 = vpack.c.b16 %v1071, %v1069
    %v1202 = vpack.c.b16 %v1074, %v1072
    %v1203 = vpack.c.b16 %v1075, %v1073
    %1332 = vmatprep.subr.bf16.mxu0 %v1077
    %1333 = vmatpush1.bf16.msra.mxu0 %v1076
    %1334 = vmatprep.subr.bf16.mxu0 %v1079
    %1335 = vmatpush1.bf16.msra.mxu0 %v1078
    %1336 = vmatprep.subr.bf16.mxu0 %v1081
    %1337 = vmatpush1.bf16.msra.mxu0 %v1080
    %1338 = vmatprep.subr.bf16.mxu0 %v1083
    %1339 = vmatpush1.bf16.msra.mxu0 %v1082
    %1340 = vmatprep.subr.bf16.mxu0 %v1085
    %1341 = vmatpush1.bf16.msra.mxu0 %v1084
    %1342 = vmatprep.subr.bf16.mxu0 %v1087
    %1343 = vmatpush1.bf16.msra.mxu0 %v1086
    %1344 = vmatprep.subr.bf16.mxu0 %v1089
    %1345 = vmatpush1.bf16.msra.mxu0 %v1088
    %1346 = vmatprep.subr.bf16.mxu0 %v1091
    %1347 = vmatpush1.bf16.msra.mxu0 %v1090
    %1348 = vmatprep.subr.bf16.mxu0 %v1093
    %1349 = vmatpush1.bf16.msra.mxu0 %v1092
    %1350 = vmatprep.subr.bf16.mxu0 %v1095
    %1351 = vmatpush1.bf16.msra.mxu0 %v1094
    %1352 = vmatprep.subr.bf16.mxu0 %v1097
    %1353 = vmatpush1.bf16.msra.mxu0 %v1096
    %1354 = vmatprep.subr.bf16.mxu0 %v1099
    %1355 = vmatpush1.bf16.msra.mxu0 %v1098
    %1356 = vmatprep.subr.bf16.mxu0 %v1101
    %1357 = vmatpush1.bf16.msra.mxu0 %v1100
    %1358 = vmatprep.subr.bf16.mxu0 %v1103
    %1359 = vmatpush1.bf16.msra.mxu0 %v1102
    %1360 = vmatprep.subr.bf16.mxu0 %v1105
    %1361 = vmatpush1.bf16.msra.mxu0 %v1104
    %1362 = vmatprep.subr.bf16.mxu0 %v1107
    %1363 = vmatpush1.bf16.msra.mxu0 %v1106
    %1364 = vmatprep.mubr.bf16.mxu0 %v565
    %1365 = vmatmul.mubr.bf16.gmra.mrb[0].mxu0 %v564
    %v1366 = vpop.f32.mrb[0].mxu0
    %v1367 = vadd.f32 0.0, %v1366
    %v1368 = vpop.f32.mrb[0].mxu0
    %v1369 = vadd.f32 0.0, %v1368
    %v1370 = vpop.f32.mrb[0].mxu0
    %v1371 = vadd.f32 0.0, %v1370
    %v1372 = vpop.f32.mrb[0].mxu0
    %v1373 = vadd.f32 0.0, %v1372
    %1374 = vmatprep.mubr.bf16.mxu0 %v573
    %1375 = vmatmul.mubr.bf16.gmra.mrb[0].mxu0 %v572
    %v1376 = vpop.f32.mrb[0].mxu0
    %v1377 = vadd.f32 0.0, %v1376
    %v1378 = vpop.f32.mrb[0].mxu0
    %v1379 = vadd.f32 0.0, %v1378
    %v1380 = vpop.f32.mrb[0].mxu0
    %v1381 = vadd.f32 0.0, %v1380
    %v1382 = vpop.f32.mrb[0].mxu0
    %v1383 = vadd.f32 0.0, %v1382
    %1384 = vmatprep.mubr.bf16.mxu0 %v581
    %1385 = vmatmul.mubr.bf16.gmra.mrb[0].mxu0 %v580
    %v1386 = vpop.f32.mrb[0].mxu0
    %v1387 = vadd.f32 0.0, %v1386
    %v1388 = vpop.f32.mrb[0].mxu0
    %v1389 = vadd.f32 0.0, %v1388
    %v1390 = vpop.f32.mrb[0].mxu0
    %v1391 = vadd.f32 0.0, %v1390
    %v1392 = vpop.f32.mrb[0].mxu0
    %v1393 = vadd.f32 0.0, %v1392
    %1394 = vmatprep.mubr.bf16.mxu0 %v589
    %1395 = vmatmul.mubr.bf16.gmra.mrb[0].mxu0 %v588
    %v1396 = vpop.f32.mrb[0].mxu0
    %v1397 = vadd.f32 0.0, %v1396
    %v1398 = vpop.f32.mrb[0].mxu0
    %v1399 = vadd.f32 0.0, %v1398
    %v1400 = vpop.f32.mrb[0].mxu0
    %v1401 = vadd.f32 0.0, %v1400
    %v1402 = vpop.f32.mrb[0].mxu0
    %v1403 = vadd.f32 0.0, %v1402
    %1404 = vmatprep.mubr.bf16.mxu0 %v597
    %1405 = vmatmul.mubr.bf16.gmra.mrb[0].mxu0 %v596
    %v1406 = vpop.f32.mrb[0].mxu0
    %v1407 = vadd.f32 0.0, %v1406
    %v1408 = vpop.f32.mrb[0].mxu0
    %v1409 = vadd.f32 0.0, %v1408
    %v1410 = vpop.f32.mrb[0].mxu0
    %v1411 = vadd.f32 0.0, %v1410
    %v1412 = vpop.f32.mrb[0].mxu0
    %v1413 = vadd.f32 0.0, %v1412
    %1414 = vmatprep.mubr.bf16.mxu0 %v605
    %1415 = vmatmul.mubr.bf16.gmra.mrb[0].mxu0 %v604
    %v1416 = vpop.f32.mrb[0].mxu0
    %v1417 = vadd.f32 0.0, %v1416
    %v1418 = vpop.f32.mrb[0].mxu0
    %v1419 = vadd.f32 0.0, %v1418
    %v1420 = vpop.f32.mrb[0].mxu0
    %v1421 = vadd.f32 0.0, %v1420
    %v1422 = vpop.f32.mrb[0].mxu0
    %v1423 = vadd.f32 0.0, %v1422
    %1424 = vmatprep.mubr.bf16.mxu0 %v613
    %1425 = vmatmul.mubr.bf16.gmra.mrb[0].mxu0 %v612
    %v1426 = vpop.f32.mrb[0].mxu0
    %v1427 = vadd.f32 0.0, %v1426
    %v1428 = vpop.f32.mrb[0].mxu0
    %v1429 = vadd.f32 0.0, %v1428
    %v1430 = vpop.f32.mrb[0].mxu0
    %v1431 = vadd.f32 0.0, %v1430
    %v1432 = vpop.f32.mrb[0].mxu0
    %v1433 = vadd.f32 0.0, %v1432
    %1434 = vmatprep.mubr.bf16.mxu0 %v621
    %1435 = vmatmul.mubr.bf16.gmra.mrb[0].mxu0 %v620
    %v1436 = vpop.f32.mrb[0].mxu0
    %v1437 = vadd.f32 0.0, %v1436
    %v1438 = vpop.f32.mrb[0].mxu0
    %v1439 = vadd.f32 0.0, %v1438
    %v1440 = vpop.f32.mrb[0].mxu0
    %v1441 = vadd.f32 0.0, %v1440
    %v1442 = vpop.f32.mrb[0].mxu0
    %v1443 = vadd.f32 0.0, %v1442
    %1444 = vdwg.mxu0
    %1445 = vmatprep.subr.bf16.mxu0 %v1109
    %1446 = vmatpush1.bf16.msra.mxu0 %v1108
    %1447 = vmatprep.subr.bf16.mxu0 %v1111
    %1448 = vmatpush1.bf16.msra.mxu0 %v1110
    %1449 = vmatprep.subr.bf16.mxu0 %v1113
    %1450 = vmatpush1.bf16.msra.mxu0 %v1112
    %1451 = vmatprep.subr.bf16.mxu0 %v1115
    %1452 = vmatpush1.bf16.msra.mxu0 %v1114
    %1453 = vmatprep.subr.bf16.mxu0 %v1117
    %1454 = vmatpush1.bf16.msra.mxu0 %v1116
    %1455 = vmatprep.subr.bf16.mxu0 %v1119
    %1456 = vmatpush1.bf16.msra.mxu0 %v1118
    %1457 = vmatprep.subr.bf16.mxu0 %v1121
    %1458 = vmatpush1.bf16.msra.mxu0 %v1120
    %1459 = vmatprep.subr.bf16.mxu0 %v1123
    %1460 = vmatpush1.bf16.msra.mxu0 %v1122
    %1461 = vmatprep.subr.bf16.mxu0 %v1125
    %1462 = vmatpush1.bf16.msra.mxu0 %v1124
    %1463 = vmatprep.subr.bf16.mxu0 %v1127
    %1464 = vmatpush1.bf16.msra.mxu0 %v1126
    %1465 = vmatprep.subr.bf16.mxu0 %v1129
    %1466 = vmatpush1.bf16.msra.mxu0 %v1128
    %1467 = vmatprep.subr.bf16.mxu0 %v1131
    %1468 = vmatpush1.bf16.msra.mxu0 %v1130
    %1469 = vmatprep.subr.bf16.mxu0 %v1133
    %1470 = vmatpush1.bf16.msra.mxu0 %v1132
    %1471 = vmatprep.subr.bf16.mxu0 %v1135
    %1472 = vmatpush1.bf16.msra.mxu0 %v1134
    %1473 = vmatprep.subr.bf16.mxu0 %v1137
    %1474 = vmatpush1.bf16.msra.mxu0 %v1136
    %1475 = vmatprep.subr.bf16.mxu0 %v1139
    %1476 = vmatpush1.bf16.msra.mxu0 %v1138
    %1477 = vmatprep.mubr.bf16.mxu0 %v567
    %1478 = vmatmul.mubr.bf16.gmra.mrb[0].mxu0 %v566
    %v1479 = vpop.f32.mrb[0].mxu0
    %v1480 = vadd.f32 %v1367, %v1479
    %v1481 = vpop.f32.mrb[0].mxu0
    %v1482 = vadd.f32 %v1369, %v1481
    %v1483 = vpop.f32.mrb[0].mxu0
    %v1484 = vadd.f32 %v1371, %v1483
    %v1485 = vpop.f32.mrb[0].mxu0
    %v1486 = vadd.f32 %v1373, %v1485
    %1487 = vmatprep.mubr.bf16.mxu0 %v575
    %1488 = vmatmul.mubr.bf16.gmra.mrb[0].mxu0 %v574
    %v1489 = vpop.f32.mrb[0].mxu0
    %v1490 = vadd.f32 %v1377, %v1489
    %v1491 = vpop.f32.mrb[0].mxu0
    %v1492 = vadd.f32 %v1379, %v1491
    %v1493 = vpop.f32.mrb[0].mxu0
    %v1494 = vadd.f32 %v1381, %v1493
    %v1495 = vpop.f32.mrb[0].mxu0
    %v1496 = vadd.f32 %v1383, %v1495
    %1497 = vmatprep.mubr.bf16.mxu0 %v583
    %1498 = vmatmul.mubr.bf16.gmra.mrb[0].mxu0 %v582
    %v1499 = vpop.f32.mrb[0].mxu0
    %v1500 = vadd.f32 %v1387, %v1499
    %v1501 = vpop.f32.mrb[0].mxu0
    %v1502 = vadd.f32 %v1389, %v1501
    %v1503 = vpop.f32.mrb[0].mxu0
    %v1504 = vadd.f32 %v1391, %v1503
    %v1505 = vpop.f32.mrb[0].mxu0
    %v1506 = vadd.f32 %v1393, %v1505
    %1507 = vmatprep.mubr.bf16.mxu0 %v591
    %1508 = vmatmul.mubr.bf16.gmra.mrb[0].mxu0 %v590
    %v1509 = vpop.f32.mrb[0].mxu0
    %v1510 = vadd.f32 %v1397, %v1509
    %v1511 = vpop.f32.mrb[0].mxu0
    %v1512 = vadd.f32 %v1399, %v1511
    %v1513 = vpop.f32.mrb[0].mxu0
    %v1514 = vadd.f32 %v1401, %v1513
    %v1515 = vpop.f32.mrb[0].mxu0
    %v1516 = vadd.f32 %v1403, %v1515
    %1517 = vmatprep.mubr.bf16.mxu0 %v599
    %1518 = vmatmul.mubr.bf16.gmra.mrb[0].mxu0 %v598
    %v1519 = vpop.f32.mrb[0].mxu0
    %v1520 = vadd.f32 %v1407, %v1519
    %v1521 = vpop.f32.mrb[0].mxu0
    %v1522 = vadd.f32 %v1409, %v1521
    %v1523 = vpop.f32.mrb[0].mxu0
    %v1524 = vadd.f32 %v1411, %v1523
    %v1525 = vpop.f32.mrb[0].mxu0
    %v1526 = vadd.f32 %v1413, %v1525
    %1527 = vmatprep.mubr.bf16.mxu0 %v607
    %1528 = vmatmul.mubr.bf16.gmra.mrb[0].mxu0 %v606
    %v1529 = vpop.f32.mrb[0].mxu0
    %v1530 = vadd.f32 %v1417, %v1529
    %v1531 = vpop.f32.mrb[0].mxu0
    %v1532 = vadd.f32 %v1419, %v1531
    %v1533 = vpop.f32.mrb[0].mxu0
    %v1534 = vadd.f32 %v1421, %v1533
    %v1535 = vpop.f32.mrb[0].mxu0
    %v1536 = vadd.f32 %v1423, %v1535
    %1537 = vmatprep.mubr.bf16.mxu0 %v615
    %1538 = vmatmul.mubr.bf16.gmra.mrb[0].mxu0 %v614
    %v1539 = vpop.f32.mrb[0].mxu0
    %v1540 = vadd.f32 %v1427, %v1539
    %v1541 = vpop.f32.mrb[0].mxu0
    %v1542 = vadd.f32 %v1429, %v1541
    %v1543 = vpop.f32.mrb[0].mxu0
    %v1544 = vadd.f32 %v1431, %v1543
    %v1545 = vpop.f32.mrb[0].mxu0
    %v1546 = vadd.f32 %v1433, %v1545
    %1547 = vmatprep.mubr.bf16.mxu0 %v623
    %1548 = vmatmul.mubr.bf16.gmra.mrb[0].mxu0 %v622
    %v1549 = vpop.f32.mrb[0].mxu0
    %v1550 = vadd.f32 %v1437, %v1549
    %v1551 = vpop.f32.mrb[0].mxu0
    %v1552 = vadd.f32 %v1439, %v1551
    %v1553 = vpop.f32.mrb[0].mxu0
    %v1554 = vadd.f32 %v1441, %v1553
    %v1555 = vpop.f32.mrb[0].mxu0
    %v1556 = vadd.f32 %v1443, %v1555
    %1557 = vdwg.mxu0
    %1558 = vmatprep.subr.bf16.mxu0 %v1141
    %1559 = vmatpush1.bf16.msra.mxu0 %v1140
    %1560 = vmatprep.subr.bf16.mxu0 %v1143
    %1561 = vmatpush1.bf16.msra.mxu0 %v1142
    %1562 = vmatprep.subr.bf16.mxu0 %v1145
    %1563 = vmatpush1.bf16.msra.mxu0 %v1144
    %1564 = vmatprep.subr.bf16.mxu0 %v1147
    %1565 = vmatpush1.bf16.msra.mxu0 %v1146
    %1566 = vmatprep.subr.bf16.mxu0 %v1149
    %1567 = vmatpush1.bf16.msra.mxu0 %v1148
    %1568 = vmatprep.subr.bf16.mxu0 %v1151
    %1569 = vmatpush1.bf16.msra.mxu0 %v1150
    %1570 = vmatprep.subr.bf16.mxu0 %v1153
    %1571 = vmatpush1.bf16.msra.mxu0 %v1152
    %1572 = vmatprep.subr.bf16.mxu0 %v1155
    %1573 = vmatpush1.bf16.msra.mxu0 %v1154
    %1574 = vmatprep.subr.bf16.mxu0 %v1157
    %1575 = vmatpush1.bf16.msra.mxu0 %v1156
    %1576 = vmatprep.subr.bf16.mxu0 %v1159
    %1577 = vmatpush1.bf16.msra.mxu0 %v1158
    %1578 = vmatprep.subr.bf16.mxu0 %v1161
    %1579 = vmatpush1.bf16.msra.mxu0 %v1160
    %1580 = vmatprep.subr.bf16.mxu0 %v1163
    %1581 = vmatpush1.bf16.msra.mxu0 %v1162
    %1582 = vmatprep.subr.bf16.mxu0 %v1165
    %1583 = vmatpush1.bf16.msra.mxu0 %v1164
    %1584 = vmatprep.subr.bf16.mxu0 %v1167
    %1585 = vmatpush1.bf16.msra.mxu0 %v1166
    %1586 = vmatprep.subr.bf16.mxu0 %v1169
    %1587 = vmatpush1.bf16.msra.mxu0 %v1168
    %1588 = vmatprep.subr.bf16.mxu0 %v1171
    %1589 = vmatpush1.bf16.msra.mxu0 %v1170
    %1590 = vmatprep.mubr.bf16.mxu0 %v569
    %1591 = vmatmul.mubr.bf16.gmra.mrb[0].mxu0 %v568
    %v1592 = vpop.f32.mrb[0].mxu0
    %v1593 = vadd.f32 %v1480, %v1592
    %v1594 = vpop.f32.mrb[0].mxu0
    %v1595 = vadd.f32 %v1482, %v1594
    %v1596 = vpop.f32.mrb[0].mxu0
    %v1597 = vadd.f32 %v1484, %v1596
    %v1598 = vpop.f32.mrb[0].mxu0
    %v1599 = vadd.f32 %v1486, %v1598
    %1600 = vmatprep.mubr.bf16.mxu0 %v577
    %1601 = vmatmul.mubr.bf16.gmra.mrb[0].mxu0 %v576
    %v1602 = vpop.f32.mrb[0].mxu0
    %v1603 = vadd.f32 %v1490, %v1602
    %v1604 = vpop.f32.mrb[0].mxu0
    %v1605 = vadd.f32 %v1492, %v1604
    %v1606 = vpop.f32.mrb[0].mxu0
    %v1607 = vadd.f32 %v1494, %v1606
    %v1608 = vpop.f32.mrb[0].mxu0
    %v1609 = vadd.f32 %v1496, %v1608
    %1610 = vmatprep.mubr.bf16.mxu0 %v585
    %1611 = vmatmul.mubr.bf16.gmra.mrb[0].mxu0 %v584
    %v1612 = vpop.f32.mrb[0].mxu0
    %v1613 = vadd.f32 %v1500, %v1612
    %v1614 = vpop.f32.mrb[0].mxu0
    %v1615 = vadd.f32 %v1502, %v1614
    %v1616 = vpop.f32.mrb[0].mxu0
    %v1617 = vadd.f32 %v1504, %v1616
    %v1618 = vpop.f32.mrb[0].mxu0
    %v1619 = vadd.f32 %v1506, %v1618
    %1620 = vmatprep.mubr.bf16.mxu0 %v593
    %1621 = vmatmul.mubr.bf16.gmra.mrb[0].mxu0 %v592
    %v1622 = vpop.f32.mrb[0].mxu0
    %v1623 = vadd.f32 %v1510, %v1622
    %v1624 = vpop.f32.mrb[0].mxu0
    %v1625 = vadd.f32 %v1512, %v1624
    %v1626 = vpop.f32.mrb[0].mxu0
    %v1627 = vadd.f32 %v1514, %v1626
    %v1628 = vpop.f32.mrb[0].mxu0
    %v1629 = vadd.f32 %v1516, %v1628
    %1630 = vmatprep.mubr.bf16.mxu0 %v601
    %1631 = vmatmul.mubr.bf16.gmra.mrb[0].mxu0 %v600
    %v1632 = vpop.f32.mrb[0].mxu0
    %v1633 = vadd.f32 %v1520, %v1632
    %v1634 = vpop.f32.mrb[0].mxu0
    %v1635 = vadd.f32 %v1522, %v1634
    %v1636 = vpop.f32.mrb[0].mxu0
    %v1637 = vadd.f32 %v1524, %v1636
    %v1638 = vpop.f32.mrb[0].mxu0
    %v1639 = vadd.f32 %v1526, %v1638
    %1640 = vmatprep.mubr.bf16.mxu0 %v609
    %1641 = vmatmul.mubr.bf16.gmra.mrb[0].mxu0 %v608
    %v1642 = vpop.f32.mrb[0].mxu0
    %v1643 = vadd.f32 %v1530, %v1642
    %v1644 = vpop.f32.mrb[0].mxu0
    %v1645 = vadd.f32 %v1532, %v1644
    %v1646 = vpop.f32.mrb[0].mxu0
    %v1647 = vadd.f32 %v1534, %v1646
    %v1648 = vpop.f32.mrb[0].mxu0
    %v1649 = vadd.f32 %v1536, %v1648
    %1650 = vmatprep.mubr.bf16.mxu0 %v617
    %1651 = vmatmul.mubr.bf16.gmra.mrb[0].mxu0 %v616
    %v1652 = vpop.f32.mrb[0].mxu0
    %v1653 = vadd.f32 %v1540, %v1652
    %v1654 = vpop.f32.mrb[0].mxu0
    %v1655 = vadd.f32 %v1542, %v1654
    %v1656 = vpop.f32.mrb[0].mxu0
    %v1657 = vadd.f32 %v1544, %v1656
    %v1658 = vpop.f32.mrb[0].mxu0
    %v1659 = vadd.f32 %v1546, %v1658
    %1660 = vmatprep.mubr.bf16.mxu0 %v625
    %1661 = vmatmul.mubr.bf16.gmra.mrb[0].mxu0 %v624
    %v1662 = vpop.f32.mrb[0].mxu0
    %v1663 = vadd.f32 %v1550, %v1662
    %v1664 = vpop.f32.mrb[0].mxu0
    %v1665 = vadd.f32 %v1552, %v1664
    %v1666 = vpop.f32.mrb[0].mxu0
    %v1667 = vadd.f32 %v1554, %v1666
    %v1668 = vpop.f32.mrb[0].mxu0
    %v1669 = vadd.f32 %v1556, %v1668
    %1670 = vdwg.mxu0
    %1671 = vmatprep.subr.bf16.mxu0 %v1173
    %1672 = vmatpush1.bf16.msra.mxu0 %v1172
    %1673 = vmatprep.subr.bf16.mxu0 %v1175
    %1674 = vmatpush1.bf16.msra.mxu0 %v1174
    %1675 = vmatprep.subr.bf16.mxu0 %v1177
    %1676 = vmatpush1.bf16.msra.mxu0 %v1176
    %1677 = vmatprep.subr.bf16.mxu0 %v1179
    %1678 = vmatpush1.bf16.msra.mxu0 %v1178
    %1679 = vmatprep.subr.bf16.mxu0 %v1181
    %1680 = vmatpush1.bf16.msra.mxu0 %v1180
    %1681 = vmatprep.subr.bf16.mxu0 %v1183
    %1682 = vmatpush1.bf16.msra.mxu0 %v1182
    %1683 = vmatprep.subr.bf16.mxu0 %v1185
    %1684 = vmatpush1.bf16.msra.mxu0 %v1184
    %1685 = vmatprep.subr.bf16.mxu0 %v1187
    %1686 = vmatpush1.bf16.msra.mxu0 %v1186
    %1687 = vmatprep.subr.bf16.mxu0 %v1189
    %1688 = vmatpush1.bf16.msra.mxu0 %v1188
    %1689 = vmatprep.subr.bf16.mxu0 %v1191
    %1690 = vmatpush1.bf16.msra.mxu0 %v1190
    %1691 = vmatprep.subr.bf16.mxu0 %v1193
    %1692 = vmatpush1.bf16.msra.mxu0 %v1192
    %1693 = vmatprep.subr.bf16.mxu0 %v1195
    %1694 = vmatpush1.bf16.msra.mxu0 %v1194
    %1695 = vmatprep.subr.bf16.mxu0 %v1197
    %1696 = vmatpush1.bf16.msra.mxu0 %v1196
    %1697 = vmatprep.subr.bf16.mxu0 %v1199
    %1698 = vmatpush1.bf16.msra.mxu0 %v1198
    %1699 = vmatprep.subr.bf16.mxu0 %v1201
    %1700 = vmatpush1.bf16.msra.mxu0 %v1200
    %1701 = vmatprep.subr.bf16.mxu0 %v1203
    %1702 = vmatpush1.bf16.msra.mxu0 %v1202
    %1703 = vmatprep.mubr.bf16.mxu0 %v571
    %1704 = vmatmul.mubr.bf16.gmra.mrb[0].mxu0 %v570
    %v1705 = vpop.f32.mrb[0].mxu0
    %v1706 = vadd.f32 %v1593, %v1705
    %v1707 = vpop.f32.mrb[0].mxu0
    %v1708 = vadd.f32 %v1595, %v1707
    %v1709 = vpop.f32.mrb[0].mxu0
    %v1710 = vadd.f32 %v1597, %v1709
    %v1711 = vpop.f32.mrb[0].mxu0
    %v1712 = vadd.f32 %v1599, %v1711
    %1713 = vmatprep.mubr.bf16.mxu0 %v579
    %1714 = vmatmul.mubr.bf16.gmra.mrb[0].mxu0 %v578
    %v1715 = vpop.f32.mrb[0].mxu0
    %v1716 = vadd.f32 %v1603, %v1715
    %v1717 = vpop.f32.mrb[0].mxu0
    %v1718 = vadd.f32 %v1605, %v1717
    %v1719 = vpop.f32.mrb[0].mxu0
    %v1720 = vadd.f32 %v1607, %v1719
    %v1721 = vpop.f32.mrb[0].mxu0
    %v1722 = vadd.f32 %v1609, %v1721
    %1723 = vmatprep.mubr.bf16.mxu0 %v587
    %1724 = vmatmul.mubr.bf16.gmra.mrb[0].mxu0 %v586
    %v1725 = vpop.f32.mrb[0].mxu0
    %v1726 = vadd.f32 %v1613, %v1725
    %v1727 = vpop.f32.mrb[0].mxu0
    %v1728 = vadd.f32 %v1615, %v1727
    %v1729 = vpop.f32.mrb[0].mxu0
    %v1730 = vadd.f32 %v1617, %v1729
    %v1731 = vpop.f32.mrb[0].mxu0
    %v1732 = vadd.f32 %v1619, %v1731
    %1733 = vmatprep.mubr.bf16.mxu0 %v595
    %1734 = vmatmul.mubr.bf16.gmra.mrb[0].mxu0 %v594
    %v1735 = vpop.f32.mrb[0].mxu0
    %v1736 = vadd.f32 %v1623, %v1735
    %v1737 = vpop.f32.mrb[0].mxu0
    %v1738 = vadd.f32 %v1625, %v1737
    %v1739 = vpop.f32.mrb[0].mxu0
    %v1740 = vadd.f32 %v1627, %v1739
    %v1741 = vpop.f32.mrb[0].mxu0
    %v1742 = vadd.f32 %v1629, %v1741
    %1743 = vmatprep.mubr.bf16.mxu0 %v603
    %1744 = vmatmul.mubr.bf16.gmra.mrb[0].mxu0 %v602
    %v1745 = vpop.f32.mrb[0].mxu0
    %v1746 = vadd.f32 %v1633, %v1745
    %v1747 = vpop.f32.mrb[0].mxu0
    %v1748 = vadd.f32 %v1635, %v1747
    %v1749 = vpop.f32.mrb[0].mxu0
    %v1750 = vadd.f32 %v1637, %v1749
    %v1751 = vpop.f32.mrb[0].mxu0
    %v1752 = vadd.f32 %v1639, %v1751
    %1753 = vmatprep.mubr.bf16.mxu0 %v611
    %1754 = vmatmul.mubr.bf16.gmra.mrb[0].mxu0 %v610
    %v1755 = vpop.f32.mrb[0].mxu0
    %v1756 = vadd.f32 %v1643, %v1755
    %v1757 = vpop.f32.mrb[0].mxu0
    %v1758 = vadd.f32 %v1645, %v1757
    %v1759 = vpop.f32.mrb[0].mxu0
    %v1760 = vadd.f32 %v1647, %v1759
    %v1761 = vpop.f32.mrb[0].mxu0
    %v1762 = vadd.f32 %v1649, %v1761
    %1763 = vmatprep.mubr.bf16.mxu0 %v619
    %1764 = vmatmul.mubr.bf16.gmra.mrb[0].mxu0 %v618
    %v1765 = vpop.f32.mrb[0].mxu0
    %v1766 = vadd.f32 %v1653, %v1765
    %v1767 = vpop.f32.mrb[0].mxu0
    %v1768 = vadd.f32 %v1655, %v1767
    %v1769 = vpop.f32.mrb[0].mxu0
    %v1770 = vadd.f32 %v1657, %v1769
    %v1771 = vpop.f32.mrb[0].mxu0
    %v1772 = vadd.f32 %v1659, %v1771
    %1773 = vmatprep.mubr.bf16.mxu0 %v627
    %1774 = vmatmul.mubr.bf16.gmra.mrb[0].mxu0 %v626
    %v1775 = vpop.f32.mrb[0].mxu0
    %v1776 = vadd.f32 %v1663, %v1775
    %v1777 = vpop.f32.mrb[0].mxu0
    %v1778 = vadd.f32 %v1665, %v1777
    %v1779 = vpop.f32.mrb[0].mxu0
    %v1780 = vadd.f32 %v1667, %v1779
    %v1781 = vpop.f32.mrb[0].mxu0
    %v1782 = vadd.f32 %v1669, %v1781
    %1783 = vdwg.mxu0
    %v1784 = vld [vmem:[#allocation11] sm:$0xff]
    %v1785 = vld [vmem:[#allocation11 + $0x8] sm:$0xff]
    %v1786 = vld [vmem:[#allocation11 + $0x10] sm:$0xff]
    %v1787 = vld [vmem:[#allocation11 + $0x18] sm:$0xff]
    %v1788 = vld [vmem:[#allocation11 + $0x20] sm:$0xff]
    %v1789 = vld [vmem:[#allocation11 + $0x28] sm:$0xff]
    %v1790 = vld [vmem:[#allocation11 + $0x30] sm:$0xff]
    %v1791 = vld [vmem:[#allocation11 + $0x38] sm:$0xff]
    %v1792 = vld [vmem:[#allocation11 + $0x40] sm:$0xff]
    %v1793 = vld [vmem:[#allocation11 + $0x48] sm:$0xff]
    %v1794 = vld [vmem:[#allocation11 + $0x50] sm:$0xff]
    %v1795 = vld [vmem:[#allocation11 + $0x58] sm:$0xff]
    %v1796 = vld [vmem:[#allocation11 + $0x60] sm:$0xff]
    %v1797 = vld [vmem:[#allocation11 + $0x68] sm:$0xff]
    %v1798 = vld [vmem:[#allocation11 + $0x70] sm:$0xff]
    %v1799 = vld [vmem:[#allocation11 + $0x78] sm:$0xff]
    %v1800 = vld [vmem:[#allocation11 + $0x80] sm:$0xff]
    %v1801 = vld [vmem:[#allocation11 + $0x88] sm:$0xff]
    %v1802 = vld [vmem:[#allocation11 + $0x90] sm:$0xff]
    %v1803 = vld [vmem:[#allocation11 + $0x98] sm:$0xff]
    %v1804 = vld [vmem:[#allocation11 + $0xa0] sm:$0xff]
    %v1805 = vld [vmem:[#allocation11 + $0xa8] sm:$0xff]
    %v1806 = vld [vmem:[#allocation11 + $0xb0] sm:$0xff]
    %v1807 = vld [vmem:[#allocation11 + $0xb8] sm:$0xff]
    %v1808 = vld [vmem:[#allocation11 + $0xc0] sm:$0xff]
    %v1809 = vld [vmem:[#allocation11 + $0xc8] sm:$0xff]
    %v1810 = vld [vmem:[#allocation11 + $0xd0] sm:$0xff]
    %v1811 = vld [vmem:[#allocation11 + $0xd8] sm:$0xff]
    %v1812 = vld [vmem:[#allocation11 + $0xe0] sm:$0xff]
    %v1813 = vld [vmem:[#allocation11 + $0xe8] sm:$0xff]
    %v1814 = vld [vmem:[#allocation11 + $0xf0] sm:$0xff]
    %v1815 = vld [vmem:[#allocation11 + $0xf8] sm:$0xff]
    %v1816 = vld [vmem:[#allocation11 + $0x100] sm:$0xff]
    %v1817 = vld [vmem:[#allocation11 + $0x108] sm:$0xff]
    %v1818 = vld [vmem:[#allocation11 + $0x110] sm:$0xff]
    %v1819 = vld [vmem:[#allocation11 + $0x118] sm:$0xff]
    %v1820 = vld [vmem:[#allocation11 + $0x120] sm:$0xff]
    %v1821 = vld [vmem:[#allocation11 + $0x128] sm:$0xff]
    %v1822 = vld [vmem:[#allocation11 + $0x130] sm:$0xff]
    %v1823 = vld [vmem:[#allocation11 + $0x138] sm:$0xff]
    %v1824 = vld [vmem:[#allocation11 + $0x140] sm:$0xff]
    %v1825 = vld [vmem:[#allocation11 + $0x148] sm:$0xff]
    %v1826 = vld [vmem:[#allocation11 + $0x150] sm:$0xff]
    %v1827 = vld [vmem:[#allocation11 + $0x158] sm:$0xff]
    %v1828 = vld [vmem:[#allocation11 + $0x160] sm:$0xff]
    %v1829 = vld [vmem:[#allocation11 + $0x168] sm:$0xff]
    %v1830 = vld [vmem:[#allocation11 + $0x170] sm:$0xff]
    %v1831 = vld [vmem:[#allocation11 + $0x178] sm:$0xff]
    %v1832 = vld [vmem:[#allocation11 + $0x180] sm:$0xff]
    %v1833 = vld [vmem:[#allocation11 + $0x188] sm:$0xff]
    %v1834 = vld [vmem:[#allocation11 + $0x190] sm:$0xff]
    %v1835 = vld [vmem:[#allocation11 + $0x198] sm:$0xff]
    %v1836 = vld [vmem:[#allocation11 + $0x1a0] sm:$0xff]
    %v1837 = vld [vmem:[#allocation11 + $0x1a8] sm:$0xff]
    %v1838 = vld [vmem:[#allocation11 + $0x1b0] sm:$0xff]
    %v1839 = vld [vmem:[#allocation11 + $0x1b8] sm:$0xff]
    %v1840 = vld [vmem:[#allocation11 + $0x1c0] sm:$0xff]
    %v1841 = vld [vmem:[#allocation11 + $0x1c8] sm:$0xff]
    %v1842 = vld [vmem:[#allocation11 + $0x1d0] sm:$0xff]
    %v1843 = vld [vmem:[#allocation11 + $0x1d8] sm:$0xff]
    %v1844 = vld [vmem:[#allocation11 + $0x1e0] sm:$0xff]
    %v1845 = vld [vmem:[#allocation11 + $0x1e8] sm:$0xff]
    %v1846 = vld [vmem:[#allocation11 + $0x1f0] sm:$0xff]
    %v1847 = vld [vmem:[#allocation11 + $0x1f8] sm:$0xff]
    %v1848 = vld [vmem:[#allocation11 + $0x200] sm:$0xff]
    %v1849 = vld [vmem:[#allocation11 + $0x208] sm:$0xff]
    %v1850 = vld [vmem:[#allocation11 + $0x210] sm:$0xff]
    %v1851 = vld [vmem:[#allocation11 + $0x218] sm:$0xff]
    %v1852 = vld [vmem:[#allocation11 + $0x220] sm:$0xff]
    %v1853 = vld [vmem:[#allocation11 + $0x228] sm:$0xff]
    %v1854 = vld [vmem:[#allocation11 + $0x230] sm:$0xff]
    %v1855 = vld [vmem:[#allocation11 + $0x238] sm:$0xff]
    %v1856 = vld [vmem:[#allocation11 + $0x240] sm:$0xff]
    %v1857 = vld [vmem:[#allocation11 + $0x248] sm:$0xff]
    %v1858 = vld [vmem:[#allocation11 + $0x250] sm:$0xff]
    %v1859 = vld [vmem:[#allocation11 + $0x258] sm:$0xff]
    %v1860 = vld [vmem:[#allocation11 + $0x260] sm:$0xff]
    %v1861 = vld [vmem:[#allocation11 + $0x268] sm:$0xff]
    %v1862 = vld [vmem:[#allocation11 + $0x270] sm:$0xff]
    %v1863 = vld [vmem:[#allocation11 + $0x278] sm:$0xff]
    %v1864 = vld [vmem:[#allocation11 + $0x280] sm:$0xff]
    %v1865 = vld [vmem:[#allocation11 + $0x288] sm:$0xff]
    %v1866 = vld [vmem:[#allocation11 + $0x290] sm:$0xff]
    %v1867 = vld [vmem:[#allocation11 + $0x298] sm:$0xff]
    %v1868 = vld [vmem:[#allocation11 + $0x2a0] sm:$0xff]
    %v1869 = vld [vmem:[#allocation11 + $0x2a8] sm:$0xff]
    %v1870 = vld [vmem:[#allocation11 + $0x2b0] sm:$0xff]
    %v1871 = vld [vmem:[#allocation11 + $0x2b8] sm:$0xff]
    %v1872 = vld [vmem:[#allocation11 + $0x2c0] sm:$0xff]
    %v1873 = vld [vmem:[#allocation11 + $0x2c8] sm:$0xff]
    %v1874 = vld [vmem:[#allocation11 + $0x2d0] sm:$0xff]
    %v1875 = vld [vmem:[#allocation11 + $0x2d8] sm:$0xff]
    %v1876 = vld [vmem:[#allocation11 + $0x2e0] sm:$0xff]
    %v1877 = vld [vmem:[#allocation11 + $0x2e8] sm:$0xff]
    %v1878 = vld [vmem:[#allocation11 + $0x2f0] sm:$0xff]
    %v1879 = vld [vmem:[#allocation11 + $0x2f8] sm:$0xff]
    %v1880 = vld [vmem:[#allocation11 + $0x300] sm:$0xff]
    %v1881 = vld [vmem:[#allocation11 + $0x308] sm:$0xff]
    %v1882 = vld [vmem:[#allocation11 + $0x310] sm:$0xff]
    %v1883 = vld [vmem:[#allocation11 + $0x318] sm:$0xff]
    %v1884 = vld [vmem:[#allocation11 + $0x320] sm:$0xff]
    %v1885 = vld [vmem:[#allocation11 + $0x328] sm:$0xff]
    %v1886 = vld [vmem:[#allocation11 + $0x330] sm:$0xff]
    %v1887 = vld [vmem:[#allocation11 + $0x338] sm:$0xff]
    %v1888 = vld [vmem:[#allocation11 + $0x340] sm:$0xff]
    %v1889 = vld [vmem:[#allocation11 + $0x348] sm:$0xff]
    %v1890 = vld [vmem:[#allocation11 + $0x350] sm:$0xff]
    %v1891 = vld [vmem:[#allocation11 + $0x358] sm:$0xff]
    %v1892 = vld [vmem:[#allocation11 + $0x360] sm:$0xff]
    %v1893 = vld [vmem:[#allocation11 + $0x368] sm:$0xff]
    %v1894 = vld [vmem:[#allocation11 + $0x370] sm:$0xff]
    %v1895 = vld [vmem:[#allocation11 + $0x378] sm:$0xff]
    %v1896 = vld [vmem:[#allocation11 + $0x380] sm:$0xff]
    %v1897 = vld [vmem:[#allocation11 + $0x388] sm:$0xff]
    %v1898 = vld [vmem:[#allocation11 + $0x390] sm:$0xff]
    %v1899 = vld [vmem:[#allocation11 + $0x398] sm:$0xff]
    %v1900 = vld [vmem:[#allocation11 + $0x3a0] sm:$0xff]
    %v1901 = vld [vmem:[#allocation11 + $0x3a8] sm:$0xff]
    %v1902 = vld [vmem:[#allocation11 + $0x3b0] sm:$0xff]
    %v1903 = vld [vmem:[#allocation11 + $0x3b8] sm:$0xff]
    %v1904 = vld [vmem:[#allocation11 + $0x3c0] sm:$0xff]
    %v1905 = vld [vmem:[#allocation11 + $0x3c8] sm:$0xff]
    %v1906 = vld [vmem:[#allocation11 + $0x3d0] sm:$0xff]
    %v1907 = vld [vmem:[#allocation11 + $0x3d8] sm:$0xff]
    %v1908 = vld [vmem:[#allocation11 + $0x3e0] sm:$0xff]
    %v1909 = vld [vmem:[#allocation11 + $0x3e8] sm:$0xff]
    %v1910 = vld [vmem:[#allocation11 + $0x3f0] sm:$0xff]
    %v1911 = vld [vmem:[#allocation11 + $0x3f8] sm:$0xff]
    %v1976 = vunpack.c.l.b16 %v180
    %v1977 = vunpack.c.h.b16 %v180
    %v1978 = vunpack.c.l.b16 %v181
    %v1979 = vunpack.c.h.b16 %v181
    %v1980 = vunpack.c.l.b16 %v182
    %v1981 = vunpack.c.h.b16 %v182
    %v1982 = vunpack.c.l.b16 %v183
    %v1983 = vunpack.c.h.b16 %v183
    %v1984 = vunpack.c.l.b16 %v184
    %v1985 = vunpack.c.h.b16 %v184
    %v1986 = vunpack.c.l.b16 %v185
    %v1987 = vunpack.c.h.b16 %v185
    %v1988 = vunpack.c.l.b16 %v186
    %v1989 = vunpack.c.h.b16 %v186
    %v1990 = vunpack.c.l.b16 %v187
    %v1991 = vunpack.c.h.b16 %v187
    %v1992 = vunpack.c.l.b16 %v188
    %v1993 = vunpack.c.h.b16 %v188
    %v1994 = vunpack.c.l.b16 %v189
    %v1995 = vunpack.c.h.b16 %v189
    %v1996 = vunpack.c.l.b16 %v190
    %v1997 = vunpack.c.h.b16 %v190
    %v1998 = vunpack.c.l.b16 %v191
    %v1999 = vunpack.c.h.b16 %v191
    %v2000 = vunpack.c.l.b16 %v192
    %v2001 = vunpack.c.h.b16 %v192
    %v2002 = vunpack.c.l.b16 %v193
    %v2003 = vunpack.c.h.b16 %v193
    %v2004 = vunpack.c.l.b16 %v194
    %v2005 = vunpack.c.h.b16 %v194
    %v2006 = vunpack.c.l.b16 %v195
    %v2007 = vunpack.c.h.b16 %v195
    %v2008 = vunpack.c.l.b16 %v196
    %v2009 = vunpack.c.h.b16 %v196
    %v2010 = vunpack.c.l.b16 %v197
    %v2011 = vunpack.c.h.b16 %v197
    %v2012 = vunpack.c.l.b16 %v198
    %v2013 = vunpack.c.h.b16 %v198
    %v2014 = vunpack.c.l.b16 %v199
    %v2015 = vunpack.c.h.b16 %v199
    %v2016 = vunpack.c.l.b16 %v200
    %v2017 = vunpack.c.h.b16 %v200
    %v2018 = vunpack.c.l.b16 %v201
    %v2019 = vunpack.c.h.b16 %v201
    %v2020 = vunpack.c.l.b16 %v202
    %v2021 = vunpack.c.h.b16 %v202
    %v2022 = vunpack.c.l.b16 %v203
    %v2023 = vunpack.c.h.b16 %v203
    %v2024 = vunpack.c.l.b16 %v204
    %v2025 = vunpack.c.h.b16 %v204
    %v2026 = vunpack.c.l.b16 %v205
    %v2027 = vunpack.c.h.b16 %v205
    %v2028 = vunpack.c.l.b16 %v206
    %v2029 = vunpack.c.h.b16 %v206
    %v2030 = vunpack.c.l.b16 %v207
    %v2031 = vunpack.c.h.b16 %v207
    %v2032 = vunpack.c.l.b16 %v208
    %v2033 = vunpack.c.h.b16 %v208
    %v2034 = vunpack.c.l.b16 %v209
    %v2035 = vunpack.c.h.b16 %v209
    %v2036 = vunpack.c.l.b16 %v210
    %v2037 = vunpack.c.h.b16 %v210
    %v2038 = vunpack.c.l.b16 %v211
    %v2039 = vunpack.c.h.b16 %v211
    %v2040 = vunpack.c.l.b16 %v212
    %v2041 = vunpack.c.h.b16 %v212
    %v2042 = vunpack.c.l.b16 %v213
    %v2043 = vunpack.c.h.b16 %v213
    %v2044 = vunpack.c.l.b16 %v214
    %v2045 = vunpack.c.h.b16 %v214
    %v2046 = vunpack.c.l.b16 %v215
    %v2047 = vunpack.c.h.b16 %v215
    %v2048 = vunpack.c.l.b16 %v216
    %v2049 = vunpack.c.h.b16 %v216
    %v2050 = vunpack.c.l.b16 %v217
    %v2051 = vunpack.c.h.b16 %v217
    %v2052 = vunpack.c.l.b16 %v218
    %v2053 = vunpack.c.h.b16 %v218
    %v2054 = vunpack.c.l.b16 %v219
    %v2055 = vunpack.c.h.b16 %v219
    %v2056 = vunpack.c.l.b16 %v220
    %v2057 = vunpack.c.h.b16 %v220
    %v2058 = vunpack.c.l.b16 %v221
    %v2059 = vunpack.c.h.b16 %v221
    %v2060 = vunpack.c.l.b16 %v222
    %v2061 = vunpack.c.h.b16 %v222
    %v2062 = vunpack.c.l.b16 %v223
    %v2063 = vunpack.c.h.b16 %v223
    %v2064 = vunpack.c.l.b16 %v224
    %v2065 = vunpack.c.h.b16 %v224
    %v2066 = vunpack.c.l.b16 %v225
    %v2067 = vunpack.c.h.b16 %v225
    %v2068 = vunpack.c.l.b16 %v226
    %v2069 = vunpack.c.h.b16 %v226
    %v2070 = vunpack.c.l.b16 %v227
    %v2071 = vunpack.c.h.b16 %v227
    %v2072 = vunpack.c.l.b16 %v228
    %v2073 = vunpack.c.h.b16 %v228
    %v2074 = vunpack.c.l.b16 %v229
    %v2075 = vunpack.c.h.b16 %v229
    %v2076 = vunpack.c.l.b16 %v230
    %v2077 = vunpack.c.h.b16 %v230
    %v2078 = vunpack.c.l.b16 %v231
    %v2079 = vunpack.c.h.b16 %v231
    %v2080 = vunpack.c.l.b16 %v232
    %v2081 = vunpack.c.h.b16 %v232
    %v2082 = vunpack.c.l.b16 %v233
    %v2083 = vunpack.c.h.b16 %v233
    %v2084 = vunpack.c.l.b16 %v234
    %v2085 = vunpack.c.h.b16 %v234
    %v2086 = vunpack.c.l.b16 %v235
    %v2087 = vunpack.c.h.b16 %v235
    %v2088 = vunpack.c.l.b16 %v236
    %v2089 = vunpack.c.h.b16 %v236
    %v2090 = vunpack.c.l.b16 %v237
    %v2091 = vunpack.c.h.b16 %v237
    %v2092 = vunpack.c.l.b16 %v238
    %v2093 = vunpack.c.h.b16 %v238
    %v2094 = vunpack.c.l.b16 %v239
    %v2095 = vunpack.c.h.b16 %v239
    %v2096 = vunpack.c.l.b16 %v240
    %v2097 = vunpack.c.h.b16 %v240
    %v2098 = vunpack.c.l.b16 %v241
    %v2099 = vunpack.c.h.b16 %v241
    %v2100 = vunpack.c.l.b16 %v242
    %v2101 = vunpack.c.h.b16 %v242
    %v2102 = vunpack.c.l.b16 %v243
    %v2103 = vunpack.c.h.b16 %v243
    %v2104 = vpack.c.b16 %v1984, %v1976
    %v2105 = vpack.c.b16 %v1985, %v1977
    %v2106 = vpack.c.b16 %v1986, %v1978
    %v2107 = vpack.c.b16 %v1987, %v1979
    %v2108 = vpack.c.b16 %v1988, %v1980
    %v2109 = vpack.c.b16 %v1989, %v1981
    %v2110 = vpack.c.b16 %v1990, %v1982
    %v2111 = vpack.c.b16 %v1991, %v1983
    %v2112 = vpack.c.b16 %v2000, %v1992
    %v2113 = vpack.c.b16 %v2001, %v1993
    %v2114 = vpack.c.b16 %v2002, %v1994
    %v2115 = vpack.c.b16 %v2003, %v1995
    %v2116 = vpack.c.b16 %v2004, %v1996
    %v2117 = vpack.c.b16 %v2005, %v1997
    %v2118 = vpack.c.b16 %v2006, %v1998
    %v2119 = vpack.c.b16 %v2007, %v1999
    %v2120 = vpack.c.b16 %v2016, %v2008
    %v2121 = vpack.c.b16 %v2017, %v2009
    %v2122 = vpack.c.b16 %v2018, %v2010
    %v2123 = vpack.c.b16 %v2019, %v2011
    %v2124 = vpack.c.b16 %v2020, %v2012
    %v2125 = vpack.c.b16 %v2021, %v2013
    %v2126 = vpack.c.b16 %v2022, %v2014
    %v2127 = vpack.c.b16 %v2023, %v2015
    %v2128 = vpack.c.b16 %v2032, %v2024
    %v2129 = vpack.c.b16 %v2033, %v2025
    %v2130 = vpack.c.b16 %v2034, %v2026
    %v2131 = vpack.c.b16 %v2035, %v2027
    %v2132 = vpack.c.b16 %v2036, %v2028
    %v2133 = vpack.c.b16 %v2037, %v2029
    %v2134 = vpack.c.b16 %v2038, %v2030
    %v2135 = vpack.c.b16 %v2039, %v2031
    %v2136 = vpack.c.b16 %v2048, %v2040
    %v2137 = vpack.c.b16 %v2049, %v2041
    %v2138 = vpack.c.b16 %v2050, %v2042
    %v2139 = vpack.c.b16 %v2051, %v2043
    %v2140 = vpack.c.b16 %v2052, %v2044
    %v2141 = vpack.c.b16 %v2053, %v2045
    %v2142 = vpack.c.b16 %v2054, %v2046
    %v2143 = vpack.c.b16 %v2055, %v2047
    %v2144 = vpack.c.b16 %v2064, %v2056
    %v2145 = vpack.c.b16 %v2065, %v2057
    %v2146 = vpack.c.b16 %v2066, %v2058
    %v2147 = vpack.c.b16 %v2067, %v2059
    %v2148 = vpack.c.b16 %v2068, %v2060
    %v2149 = vpack.c.b16 %v2069, %v2061
    %v2150 = vpack.c.b16 %v2070, %v2062
    %v2151 = vpack.c.b16 %v2071, %v2063
    %v2152 = vpack.c.b16 %v2080, %v2072
    %v2153 = vpack.c.b16 %v2081, %v2073
    %v2154 = vpack.c.b16 %v2082, %v2074
    %v2155 = vpack.c.b16 %v2083, %v2075
    %v2156 = vpack.c.b16 %v2084, %v2076
    %v2157 = vpack.c.b16 %v2085, %v2077
    %v2158 = vpack.c.b16 %v2086, %v2078
    %v2159 = vpack.c.b16 %v2087, %v2079
    %v2160 = vpack.c.b16 %v2096, %v2088
    %v2161 = vpack.c.b16 %v2097, %v2089
    %v2162 = vpack.c.b16 %v2098, %v2090
    %v2163 = vpack.c.b16 %v2099, %v2091
    %v2164 = vpack.c.b16 %v2100, %v2092
    %v2165 = vpack.c.b16 %v2101, %v2093
    %v2166 = vpack.c.b16 %v2102, %v2094
    %v2167 = vpack.c.b16 %v2103, %v2095
    %v2360 = vunpack.c.l.b16 %v1784
    %v2361 = vunpack.c.h.b16 %v1784
    %v2362 = vunpack.c.l.b16 %v1785
    %v2363 = vunpack.c.h.b16 %v1785
    %v2364 = vunpack.c.l.b16 %v1786
    %v2365 = vunpack.c.h.b16 %v1786
    %v2366 = vunpack.c.l.b16 %v1787
    %v2367 = vunpack.c.h.b16 %v1787
    %v2368 = vunpack.c.l.b16 %v1788
    %v2369 = vunpack.c.h.b16 %v1788
    %v2370 = vunpack.c.l.b16 %v1789
    %v2371 = vunpack.c.h.b16 %v1789
    %v2372 = vunpack.c.l.b16 %v1790
    %v2373 = vunpack.c.h.b16 %v1790
    %v2374 = vunpack.c.l.b16 %v1791
    %v2375 = vunpack.c.h.b16 %v1791
    %v2376 = vunpack.c.l.b16 %v1792
    %v2377 = vunpack.c.h.b16 %v1792
    %v2378 = vunpack.c.l.b16 %v1793
    %v2379 = vunpack.c.h.b16 %v1793
    %v2380 = vunpack.c.l.b16 %v1794
    %v2381 = vunpack.c.h.b16 %v1794
    %v2382 = vunpack.c.l.b16 %v1795
    %v2383 = vunpack.c.h.b16 %v1795
    %v2384 = vunpack.c.l.b16 %v1796
    %v2385 = vunpack.c.h.b16 %v1796
    %v2386 = vunpack.c.l.b16 %v1797
    %v2387 = vunpack.c.h.b16 %v1797
    %v2388 = vunpack.c.l.b16 %v1798
    %v2389 = vunpack.c.h.b16 %v1798
    %v2390 = vunpack.c.l.b16 %v1799
    %v2391 = vunpack.c.h.b16 %v1799
    %v2392 = vunpack.c.l.b16 %v1800
    %v2393 = vunpack.c.h.b16 %v1800
    %v2394 = vunpack.c.l.b16 %v1801
    %v2395 = vunpack.c.h.b16 %v1801
    %v2396 = vunpack.c.l.b16 %v1802
    %v2397 = vunpack.c.h.b16 %v1802
    %v2398 = vunpack.c.l.b16 %v1803
    %v2399 = vunpack.c.h.b16 %v1803
    %v2400 = vunpack.c.l.b16 %v1804
    %v2401 = vunpack.c.h.b16 %v1804
    %v2402 = vunpack.c.l.b16 %v1805
    %v2403 = vunpack.c.h.b16 %v1805
    %v2404 = vunpack.c.l.b16 %v1806
    %v2405 = vunpack.c.h.b16 %v1806
    %v2406 = vunpack.c.l.b16 %v1807
    %v2407 = vunpack.c.h.b16 %v1807
    %v2408 = vunpack.c.l.b16 %v1808
    %v2409 = vunpack.c.h.b16 %v1808
    %v2410 = vunpack.c.l.b16 %v1809
    %v2411 = vunpack.c.h.b16 %v1809
    %v2412 = vunpack.c.l.b16 %v1810
    %v2413 = vunpack.c.h.b16 %v1810
    %v2414 = vunpack.c.l.b16 %v1811
    %v2415 = vunpack.c.h.b16 %v1811
    %v2416 = vunpack.c.l.b16 %v1812
    %v2417 = vunpack.c.h.b16 %v1812
    %v2418 = vunpack.c.l.b16 %v1813
    %v2419 = vunpack.c.h.b16 %v1813
    %v2420 = vunpack.c.l.b16 %v1814
    %v2421 = vunpack.c.h.b16 %v1814
    %v2422 = vunpack.c.l.b16 %v1815
    %v2423 = vunpack.c.h.b16 %v1815
    %v2424 = vunpack.c.l.b16 %v1816
    %v2425 = vunpack.c.h.b16 %v1816
    %v2426 = vunpack.c.l.b16 %v1817
    %v2427 = vunpack.c.h.b16 %v1817
    %v2428 = vunpack.c.l.b16 %v1818
    %v2429 = vunpack.c.h.b16 %v1818
    %v2430 = vunpack.c.l.b16 %v1819
    %v2431 = vunpack.c.h.b16 %v1819
    %v2432 = vunpack.c.l.b16 %v1820
    %v2433 = vunpack.c.h.b16 %v1820
    %v2434 = vunpack.c.l.b16 %v1821
    %v2435 = vunpack.c.h.b16 %v1821
    %v2436 = vunpack.c.l.b16 %v1822
    %v2437 = vunpack.c.h.b16 %v1822
    %v2438 = vunpack.c.l.b16 %v1823
    %v2439 = vunpack.c.h.b16 %v1823
    %v2440 = vunpack.c.l.b16 %v1824
    %v2441 = vunpack.c.h.b16 %v1824
    %v2442 = vunpack.c.l.b16 %v1825
    %v2443 = vunpack.c.h.b16 %v1825
    %v2444 = vunpack.c.l.b16 %v1826
    %v2445 = vunpack.c.h.b16 %v1826
    %v2446 = vunpack.c.l.b16 %v1827
    %v2447 = vunpack.c.h.b16 %v1827
    %v2448 = vunpack.c.l.b16 %v1828
    %v2449 = vunpack.c.h.b16 %v1828
    %v2450 = vunpack.c.l.b16 %v1829
    %v2451 = vunpack.c.h.b16 %v1829
    %v2452 = vunpack.c.l.b16 %v1830
    %v2453 = vunpack.c.h.b16 %v1830
    %v2454 = vunpack.c.l.b16 %v1831
    %v2455 = vunpack.c.h.b16 %v1831
    %v2456 = vunpack.c.l.b16 %v1832
    %v2457 = vunpack.c.h.b16 %v1832
    %v2458 = vunpack.c.l.b16 %v1833
    %v2459 = vunpack.c.h.b16 %v1833
    %v2460 = vunpack.c.l.b16 %v1834
    %v2461 = vunpack.c.h.b16 %v1834
    %v2462 = vunpack.c.l.b16 %v1835
    %v2463 = vunpack.c.h.b16 %v1835
    %v2464 = vunpack.c.l.b16 %v1836
    %v2465 = vunpack.c.h.b16 %v1836
    %v2466 = vunpack.c.l.b16 %v1837
    %v2467 = vunpack.c.h.b16 %v1837
    %v2468 = vunpack.c.l.b16 %v1838
    %v2469 = vunpack.c.h.b16 %v1838
    %v2470 = vunpack.c.l.b16 %v1839
    %v2471 = vunpack.c.h.b16 %v1839
    %v2472 = vunpack.c.l.b16 %v1840
    %v2473 = vunpack.c.h.b16 %v1840
    %v2474 = vunpack.c.l.b16 %v1841
    %v2475 = vunpack.c.h.b16 %v1841
    %v2476 = vunpack.c.l.b16 %v1842
    %v2477 = vunpack.c.h.b16 %v1842
    %v2478 = vunpack.c.l.b16 %v1843
    %v2479 = vunpack.c.h.b16 %v1843
    %v2480 = vunpack.c.l.b16 %v1844
    %v2481 = vunpack.c.h.b16 %v1844
    %v2482 = vunpack.c.l.b16 %v1845
    %v2483 = vunpack.c.h.b16 %v1845
    %v2484 = vunpack.c.l.b16 %v1846
    %v2485 = vunpack.c.h.b16 %v1846
    %v2486 = vunpack.c.l.b16 %v1847
    %v2487 = vunpack.c.h.b16 %v1847
    %v2488 = vunpack.c.l.b16 %v1848
    %v2489 = vunpack.c.h.b16 %v1848
    %v2490 = vunpack.c.l.b16 %v1849
    %v2491 = vunpack.c.h.b16 %v1849
    %v2492 = vunpack.c.l.b16 %v1850
    %v2493 = vunpack.c.h.b16 %v1850
    %v2494 = vunpack.c.l.b16 %v1851
    %v2495 = vunpack.c.h.b16 %v1851
    %v2496 = vunpack.c.l.b16 %v1852
    %v2497 = vunpack.c.h.b16 %v1852
    %v2498 = vunpack.c.l.b16 %v1853
    %v2499 = vunpack.c.h.b16 %v1853
    %v2500 = vunpack.c.l.b16 %v1854
    %v2501 = vunpack.c.h.b16 %v1854
    %v2502 = vunpack.c.l.b16 %v1855
    %v2503 = vunpack.c.h.b16 %v1855
    %v2504 = vunpack.c.l.b16 %v1856
    %v2505 = vunpack.c.h.b16 %v1856
    %v2506 = vunpack.c.l.b16 %v1857
    %v2507 = vunpack.c.h.b16 %v1857
    %v2508 = vunpack.c.l.b16 %v1858
    %v2509 = vunpack.c.h.b16 %v1858
    %v2510 = vunpack.c.l.b16 %v1859
    %v2511 = vunpack.c.h.b16 %v1859
    %v2512 = vunpack.c.l.b16 %v1860
    %v2513 = vunpack.c.h.b16 %v1860
    %v2514 = vunpack.c.l.b16 %v1861
    %v2515 = vunpack.c.h.b16 %v1861
    %v2516 = vunpack.c.l.b16 %v1862
    %v2517 = vunpack.c.h.b16 %v1862
    %v2518 = vunpack.c.l.b16 %v1863
    %v2519 = vunpack.c.h.b16 %v1863
    %v2520 = vunpack.c.l.b16 %v1864
    %v2521 = vunpack.c.h.b16 %v1864
    %v2522 = vunpack.c.l.b16 %v1865
    %v2523 = vunpack.c.h.b16 %v1865
    %v2524 = vunpack.c.l.b16 %v1866
    %v2525 = vunpack.c.h.b16 %v1866
    %v2526 = vunpack.c.l.b16 %v1867
    %v2527 = vunpack.c.h.b16 %v1867
    %v2528 = vunpack.c.l.b16 %v1868
    %v2529 = vunpack.c.h.b16 %v1868
    %v2530 = vunpack.c.l.b16 %v1869
    %v2531 = vunpack.c.h.b16 %v1869
    %v2532 = vunpack.c.l.b16 %v1870
    %v2533 = vunpack.c.h.b16 %v1870
    %v2534 = vunpack.c.l.b16 %v1871
    %v2535 = vunpack.c.h.b16 %v1871
    %v2536 = vunpack.c.l.b16 %v1872
    %v2537 = vunpack.c.h.b16 %v1872
    %v2538 = vunpack.c.l.b16 %v1873
    %v2539 = vunpack.c.h.b16 %v1873
    %v2540 = vunpack.c.l.b16 %v1874
    %v2541 = vunpack.c.h.b16 %v1874
    %v2542 = vunpack.c.l.b16 %v1875
    %v2543 = vunpack.c.h.b16 %v1875
    %v2544 = vunpack.c.l.b16 %v1876
    %v2545 = vunpack.c.h.b16 %v1876
    %v2546 = vunpack.c.l.b16 %v1877
    %v2547 = vunpack.c.h.b16 %v1877
    %v2548 = vunpack.c.l.b16 %v1878
    %v2549 = vunpack.c.h.b16 %v1878
    %v2550 = vunpack.c.l.b16 %v1879
    %v2551 = vunpack.c.h.b16 %v1879
    %v2552 = vunpack.c.l.b16 %v1880
    %v2553 = vunpack.c.h.b16 %v1880
    %v2554 = vunpack.c.l.b16 %v1881
    %v2555 = vunpack.c.h.b16 %v1881
    %v2556 = vunpack.c.l.b16 %v1882
    %v2557 = vunpack.c.h.b16 %v1882
    %v2558 = vunpack.c.l.b16 %v1883
    %v2559 = vunpack.c.h.b16 %v1883
    %v2560 = vunpack.c.l.b16 %v1884
    %v2561 = vunpack.c.h.b16 %v1884
    %v2562 = vunpack.c.l.b16 %v1885
    %v2563 = vunpack.c.h.b16 %v1885
    %v2564 = vunpack.c.l.b16 %v1886
    %v2565 = vunpack.c.h.b16 %v1886
    %v2566 = vunpack.c.l.b16 %v1887
    %v2567 = vunpack.c.h.b16 %v1887
    %v2568 = vunpack.c.l.b16 %v1888
    %v2569 = vunpack.c.h.b16 %v1888
    %v2570 = vunpack.c.l.b16 %v1889
    %v2571 = vunpack.c.h.b16 %v1889
    %v2572 = vunpack.c.l.b16 %v1890
    %v2573 = vunpack.c.h.b16 %v1890
    %v2574 = vunpack.c.l.b16 %v1891
    %v2575 = vunpack.c.h.b16 %v1891
    %v2576 = vunpack.c.l.b16 %v1892
    %v2577 = vunpack.c.h.b16 %v1892
    %v2578 = vunpack.c.l.b16 %v1893
    %v2579 = vunpack.c.h.b16 %v1893
    %v2580 = vunpack.c.l.b16 %v1894
    %v2581 = vunpack.c.h.b16 %v1894
    %v2582 = vunpack.c.l.b16 %v1895
    %v2583 = vunpack.c.h.b16 %v1895
    %v2584 = vunpack.c.l.b16 %v1896
    %v2585 = vunpack.c.h.b16 %v1896
    %v2586 = vunpack.c.l.b16 %v1897
    %v2587 = vunpack.c.h.b16 %v1897
    %v2588 = vunpack.c.l.b16 %v1898
    %v2589 = vunpack.c.h.b16 %v1898
    %v2590 = vunpack.c.l.b16 %v1899
    %v2591 = vunpack.c.h.b16 %v1899
    %v2592 = vunpack.c.l.b16 %v1900
    %v2593 = vunpack.c.h.b16 %v1900
    %v2594 = vunpack.c.l.b16 %v1901
    %v2595 = vunpack.c.h.b16 %v1901
    %v2596 = vunpack.c.l.b16 %v1902
    %v2597 = vunpack.c.h.b16 %v1902
    %v2598 = vunpack.c.l.b16 %v1903
    %v2599 = vunpack.c.h.b16 %v1903
    %v2600 = vunpack.c.l.b16 %v1904
    %v2601 = vunpack.c.h.b16 %v1904
    %v2602 = vunpack.c.l.b16 %v1905
    %v2603 = vunpack.c.h.b16 %v1905
    %v2604 = vunpack.c.l.b16 %v1906
    %v2605 = vunpack.c.h.b16 %v1906
    %v2606 = vunpack.c.l.b16 %v1907
    %v2607 = vunpack.c.h.b16 %v1907
    %v2608 = vunpack.c.l.b16 %v1908
    %v2609 = vunpack.c.h.b16 %v1908
    %v2610 = vunpack.c.l.b16 %v1909
    %v2611 = vunpack.c.h.b16 %v1909
    %v2612 = vunpack.c.l.b16 %v1910
    %v2613 = vunpack.c.h.b16 %v1910
    %v2614 = vunpack.c.l.b16 %v1911
    %v2615 = vunpack.c.h.b16 %v1911
    %v2616 = vpack.c.b16 %v2362, %v2360
    %v2617 = vpack.c.b16 %v2363, %v2361
    %v2618 = vpack.c.b16 %v2366, %v2364
    %v2619 = vpack.c.b16 %v2367, %v2365
    %v2620 = vpack.c.b16 %v2370, %v2368
    %v2621 = vpack.c.b16 %v2371, %v2369
    %v2622 = vpack.c.b16 %v2374, %v2372
    %v2623 = vpack.c.b16 %v2375, %v2373
    %v2624 = vpack.c.b16 %v2378, %v2376
    %v2625 = vpack.c.b16 %v2379, %v2377
    %v2626 = vpack.c.b16 %v2382, %v2380
    %v2627 = vpack.c.b16 %v2383, %v2381
    %v2628 = vpack.c.b16 %v2386, %v2384
    %v2629 = vpack.c.b16 %v2387, %v2385
    %v2630 = vpack.c.b16 %v2390, %v2388
    %v2631 = vpack.c.b16 %v2391, %v2389
    %v2632 = vpack.c.b16 %v2394, %v2392
    %v2633 = vpack.c.b16 %v2395, %v2393
    %v2634 = vpack.c.b16 %v2398, %v2396
    %v2635 = vpack.c.b16 %v2399, %v2397
    %v2636 = vpack.c.b16 %v2402, %v2400
    %v2637 = vpack.c.b16 %v2403, %v2401
    %v2638 = vpack.c.b16 %v2406, %v2404
    %v2639 = vpack.c.b16 %v2407, %v2405
    %v2640 = vpack.c.b16 %v2410, %v2408
    %v2641 = vpack.c.b16 %v2411, %v2409
    %v2642 = vpack.c.b16 %v2414, %v2412
    %v2643 = vpack.c.b16 %v2415, %v2413
    %v2644 = vpack.c.b16 %v2418, %v2416
    %v2645 = vpack.c.b16 %v2419, %v2417
    %v2646 = vpack.c.b16 %v2422, %v2420
    %v2647 = vpack.c.b16 %v2423, %v2421
    %v2648 = vpack.c.b16 %v2426, %v2424
    %v2649 = vpack.c.b16 %v2427, %v2425
    %v2650 = vpack.c.b16 %v2430, %v2428
    %v2651 = vpack.c.b16 %v2431, %v2429
    %v2652 = vpack.c.b16 %v2434, %v2432
    %v2653 = vpack.c.b16 %v2435, %v2433
    %v2654 = vpack.c.b16 %v2438, %v2436
    %v2655 = vpack.c.b16 %v2439, %v2437
    %v2656 = vpack.c.b16 %v2442, %v2440
    %v2657 = vpack.c.b16 %v2443, %v2441
    %v2658 = vpack.c.b16 %v2446, %v2444
    %v2659 = vpack.c.b16 %v2447, %v2445
    %v2660 = vpack.c.b16 %v2450, %v2448
    %v2661 = vpack.c.b16 %v2451, %v2449
    %v2662 = vpack.c.b16 %v2454, %v2452
    %v2663 = vpack.c.b16 %v2455, %v2453
    %v2664 = vpack.c.b16 %v2458, %v2456
    %v2665 = vpack.c.b16 %v2459, %v2457
    %v2666 = vpack.c.b16 %v2462, %v2460
    %v2667 = vpack.c.b16 %v2463, %v2461
    %v2668 = vpack.c.b16 %v2466, %v2464
    %v2669 = vpack.c.b16 %v2467, %v2465
    %v2670 = vpack.c.b16 %v2470, %v2468
    %v2671 = vpack.c.b16 %v2471, %v2469
    %v2672 = vpack.c.b16 %v2474, %v2472
    %v2673 = vpack.c.b16 %v2475, %v2473
    %v2674 = vpack.c.b16 %v2478, %v2476
    %v2675 = vpack.c.b16 %v2479, %v2477
    %v2676 = vpack.c.b16 %v2482, %v2480
    %v2677 = vpack.c.b16 %v2483, %v2481
    %v2678 = vpack.c.b16 %v2486, %v2484
    %v2679 = vpack.c.b16 %v2487, %v2485
    %v2680 = vpack.c.b16 %v2490, %v2488
    %v2681 = vpack.c.b16 %v2491, %v2489
    %v2682 = vpack.c.b16 %v2494, %v2492
    %v2683 = vpack.c.b16 %v2495, %v2493
    %v2684 = vpack.c.b16 %v2498, %v2496
    %v2685 = vpack.c.b16 %v2499, %v2497
    %v2686 = vpack.c.b16 %v2502, %v2500
    %v2687 = vpack.c.b16 %v2503, %v2501
    %v2688 = vpack.c.b16 %v2506, %v2504
    %v2689 = vpack.c.b16 %v2507, %v2505
    %v2690 = vpack.c.b16 %v2510, %v2508
    %v2691 = vpack.c.b16 %v2511, %v2509
    %v2692 = vpack.c.b16 %v2514, %v2512
    %v2693 = vpack.c.b16 %v2515, %v2513
    %v2694 = vpack.c.b16 %v2518, %v2516
    %v2695 = vpack.c.b16 %v2519, %v2517
    %v2696 = vpack.c.b16 %v2522, %v2520
    %v2697 = vpack.c.b16 %v2523, %v2521
    %v2698 = vpack.c.b16 %v2526, %v2524
    %v2699 = vpack.c.b16 %v2527, %v2525
    %v2700 = vpack.c.b16 %v2530, %v2528
    %v2701 = vpack.c.b16 %v2531, %v2529
    %v2702 = vpack.c.b16 %v2534, %v2532
    %v2703 = vpack.c.b16 %v2535, %v2533
    %v2704 = vpack.c.b16 %v2538, %v2536
    %v2705 = vpack.c.b16 %v2539, %v2537
    %v2706 = vpack.c.b16 %v2542, %v2540
    %v2707 = vpack.c.b16 %v2543, %v2541
    %v2708 = vpack.c.b16 %v2546, %v2544
    %v2709 = vpack.c.b16 %v2547, %v2545
    %v2710 = vpack.c.b16 %v2550, %v2548
    %v2711 = vpack.c.b16 %v2551, %v2549
    %v2712 = vpack.c.b16 %v2554, %v2552
    %v2713 = vpack.c.b16 %v2555, %v2553
    %v2714 = vpack.c.b16 %v2558, %v2556
    %v2715 = vpack.c.b16 %v2559, %v2557
    %v2716 = vpack.c.b16 %v2562, %v2560
    %v2717 = vpack.c.b16 %v2563, %v2561
    %v2718 = vpack.c.b16 %v2566, %v2564
    %v2719 = vpack.c.b16 %v2567, %v2565
    %v2720 = vpack.c.b16 %v2570, %v2568
    %v2721 = vpack.c.b16 %v2571, %v2569
    %v2722 = vpack.c.b16 %v2574, %v2572
    %v2723 = vpack.c.b16 %v2575, %v2573
    %v2724 = vpack.c.b16 %v2578, %v2576
    %v2725 = vpack.c.b16 %v2579, %v2577
    %v2726 = vpack.c.b16 %v2582, %v2580
    %v2727 = vpack.c.b16 %v2583, %v2581
    %v2728 = vpack.c.b16 %v2586, %v2584
    %v2729 = vpack.c.b16 %v2587, %v2585
    %v2730 = vpack.c.b16 %v2590, %v2588
    %v2731 = vpack.c.b16 %v2591, %v2589
    %v2732 = vpack.c.b16 %v2594, %v2592
    %v2733 = vpack.c.b16 %v2595, %v2593
    %v2734 = vpack.c.b16 %v2598, %v2596
    %v2735 = vpack.c.b16 %v2599, %v2597
    %v2736 = vpack.c.b16 %v2602, %v2600
    %v2737 = vpack.c.b16 %v2603, %v2601
    %v2738 = vpack.c.b16 %v2606, %v2604
    %v2739 = vpack.c.b16 %v2607, %v2605
    %v2740 = vpack.c.b16 %v2610, %v2608
    %v2741 = vpack.c.b16 %v2611, %v2609
    %v2742 = vpack.c.b16 %v2614, %v2612
    %v2743 = vpack.c.b16 %v2615, %v2613
    %2872 = vmatprep.subr.bf16.mxu0 %v2617
    %2873 = vmatpush1.bf16.msra.mxu0 %v2616
    %2874 = vmatprep.subr.bf16.mxu0 %v2619
    %2875 = vmatpush1.bf16.msra.mxu0 %v2618
    %2876 = vmatprep.subr.bf16.mxu0 %v2621
    %2877 = vmatpush1.bf16.msra.mxu0 %v2620
    %2878 = vmatprep.subr.bf16.mxu0 %v2623
    %2879 = vmatpush1.bf16.msra.mxu0 %v2622
    %2880 = vmatprep.subr.bf16.mxu0 %v2625
    %2881 = vmatpush1.bf16.msra.mxu0 %v2624
    %2882 = vmatprep.subr.bf16.mxu0 %v2627
    %2883 = vmatpush1.bf16.msra.mxu0 %v2626
    %2884 = vmatprep.subr.bf16.mxu0 %v2629
    %2885 = vmatpush1.bf16.msra.mxu0 %v2628
    %2886 = vmatprep.subr.bf16.mxu0 %v2631
    %2887 = vmatpush1.bf16.msra.mxu0 %v2630
    %2888 = vmatprep.subr.bf16.mxu0 %v2633
    %2889 = vmatpush1.bf16.msra.mxu0 %v2632
    %2890 = vmatprep.subr.bf16.mxu0 %v2635
    %2891 = vmatpush1.bf16.msra.mxu0 %v2634
    %2892 = vmatprep.subr.bf16.mxu0 %v2637
    %2893 = vmatpush1.bf16.msra.mxu0 %v2636
    %2894 = vmatprep.subr.bf16.mxu0 %v2639
    %2895 = vmatpush1.bf16.msra.mxu0 %v2638
    %2896 = vmatprep.subr.bf16.mxu0 %v2641
    %2897 = vmatpush1.bf16.msra.mxu0 %v2640
    %2898 = vmatprep.subr.bf16.mxu0 %v2643
    %2899 = vmatpush1.bf16.msra.mxu0 %v2642
    %2900 = vmatprep.subr.bf16.mxu0 %v2645
    %2901 = vmatpush1.bf16.msra.mxu0 %v2644
    %2902 = vmatprep.subr.bf16.mxu0 %v2647
    %2903 = vmatpush1.bf16.msra.mxu0 %v2646
    %2904 = vmatprep.mubr.bf16.mxu0 %v2105
    %2905 = vmatmul.mubr.bf16.gmra.mrb[0].mxu0 %v2104
    %v2906 = vpop.f32.mrb[0].mxu0
    %v2907 = vadd.f32 0.0, %v2906
    %v2908 = vpop.f32.mrb[0].mxu0
    %v2909 = vadd.f32 0.0, %v2908
    %v2910 = vpop.f32.mrb[0].mxu0
    %v2911 = vadd.f32 0.0, %v2910
    %v2912 = vpop.f32.mrb[0].mxu0
    %v2913 = vadd.f32 0.0, %v2912
    %2914 = vmatprep.mubr.bf16.mxu0 %v2113
    %2915 = vmatmul.mubr.bf16.gmra.mrb[0].mxu0 %v2112
    %v2916 = vpop.f32.mrb[0].mxu0
    %v2917 = vadd.f32 0.0, %v2916
    %v2918 = vpop.f32.mrb[0].mxu0
    %v2919 = vadd.f32 0.0, %v2918
    %v2920 = vpop.f32.mrb[0].mxu0
    %v2921 = vadd.f32 0.0, %v2920
    %v2922 = vpop.f32.mrb[0].mxu0
    %v2923 = vadd.f32 0.0, %v2922
    %2924 = vmatprep.mubr.bf16.mxu0 %v2121
    %2925 = vmatmul.mubr.bf16.gmra.mrb[0].mxu0 %v2120
    %v2926 = vpop.f32.mrb[0].mxu0
    %v2927 = vadd.f32 0.0, %v2926
    %v2928 = vpop.f32.mrb[0].mxu0
    %v2929 = vadd.f32 0.0, %v2928
    %v2930 = vpop.f32.mrb[0].mxu0
    %v2931 = vadd.f32 0.0, %v2930
    %v2932 = vpop.f32.mrb[0].mxu0
    %v2933 = vadd.f32 0.0, %v2932
    %2934 = vmatprep.mubr.bf16.mxu0 %v2129
    %2935 = vmatmul.mubr.bf16.gmra.mrb[0].mxu0 %v2128
    %v2936 = vpop.f32.mrb[0].mxu0
    %v2937 = vadd.f32 0.0, %v2936
    %v2938 = vpop.f32.mrb[0].mxu0
    %v2939 = vadd.f32 0.0, %v2938
    %v2940 = vpop.f32.mrb[0].mxu0
    %v2941 = vadd.f32 0.0, %v2940
    %v2942 = vpop.f32.mrb[0].mxu0
    %v2943 = vadd.f32 0.0, %v2942
    %2944 = vmatprep.mubr.bf16.mxu0 %v2137
    %2945 = vmatmul.mubr.bf16.gmra.mrb[0].mxu0 %v2136
    %v2946 = vpop.f32.mrb[0].mxu0
    %v2947 = vadd.f32 0.0, %v2946
    %v2948 = vpop.f32.mrb[0].mxu0
    %v2949 = vadd.f32 0.0, %v2948
    %v2950 = vpop.f32.mrb[0].mxu0
    %v2951 = vadd.f32 0.0, %v2950
    %v2952 = vpop.f32.mrb[0].mxu0
    %v2953 = vadd.f32 0.0, %v2952
    %2954 = vmatprep.mubr.bf16.mxu0 %v2145
    %2955 = vmatmul.mubr.bf16.gmra.mrb[0].mxu0 %v2144
    %v2956 = vpop.f32.mrb[0].mxu0
    %v2957 = vadd.f32 0.0, %v2956
    %v2958 = vpop.f32.mrb[0].mxu0
    %v2959 = vadd.f32 0.0, %v2958
    %v2960 = vpop.f32.mrb[0].mxu0
    %v2961 = vadd.f32 0.0, %v2960
    %v2962 = vpop.f32.mrb[0].mxu0
    %v2963 = vadd.f32 0.0, %v2962
    %2964 = vmatprep.mubr.bf16.mxu0 %v2153
    %2965 = vmatmul.mubr.bf16.gmra.mrb[0].mxu0 %v2152
    %v2966 = vpop.f32.mrb[0].mxu0
    %v2967 = vadd.f32 0.0, %v2966
    %v2968 = vpop.f32.mrb[0].mxu0
    %v2969 = vadd.f32 0.0, %v2968
    %v2970 = vpop.f32.mrb[0].mxu0
    %v2971 = vadd.f32 0.0, %v2970
    %v2972 = vpop.f32.mrb[0].mxu0
    %v2973 = vadd.f32 0.0, %v2972
    %2974 = vmatprep.mubr.bf16.mxu0 %v2161
    %2975 = vmatmul.mubr.bf16.gmra.mrb[0].mxu0 %v2160
    %v2976 = vpop.f32.mrb[0].mxu0
    %v2977 = vadd.f32 0.0, %v2976
    %v2978 = vpop.f32.mrb[0].mxu0
    %v2979 = vadd.f32 0.0, %v2978
    %v2980 = vpop.f32.mrb[0].mxu0
    %v2981 = vadd.f32 0.0, %v2980
    %v2982 = vpop.f32.mrb[0].mxu0
    %v2983 = vadd.f32 0.0, %v2982
    %2984 = vdwg.mxu0
    %2985 = vmatprep.subr.bf16.mxu0 %v2649
    %2986 = vmatpush1.bf16.msra.mxu0 %v2648
    %2987 = vmatprep.subr.bf16.mxu0 %v2651
    %2988 = vmatpush1.bf16.msra.mxu0 %v2650
    %2989 = vmatprep.subr.bf16.mxu0 %v2653
    %2990 = vmatpush1.bf16.msra.mxu0 %v2652
    %2991 = vmatprep.subr.bf16.mxu0 %v2655
    %2992 = vmatpush1.bf16.msra.mxu0 %v2654
    %2993 = vmatprep.subr.bf16.mxu0 %v2657
    %2994 = vmatpush1.bf16.msra.mxu0 %v2656
    %2995 = vmatprep.subr.bf16.mxu0 %v2659
    %2996 = vmatpush1.bf16.msra.mxu0 %v2658
    %2997 = vmatprep.subr.bf16.mxu0 %v2661
    %2998 = vmatpush1.bf16.msra.mxu0 %v2660
    %2999 = vmatprep.subr.bf16.mxu0 %v2663
    %3000 = vmatpush1.bf16.msra.mxu0 %v2662
    %3001 = vmatprep.subr.bf16.mxu0 %v2665
    %3002 = vmatpush1.bf16.msra.mxu0 %v2664
    %3003 = vmatprep.subr.bf16.mxu0 %v2667
    %3004 = vmatpush1.bf16.msra.mxu0 %v2666
    %3005 = vmatprep.subr.bf16.mxu0 %v2669
    %3006 = vmatpush1.bf16.msra.mxu0 %v2668
    %3007 = vmatprep.subr.bf16.mxu0 %v2671
    %3008 = vmatpush1.bf16.msra.mxu0 %v2670
    %3009 = vmatprep.subr.bf16.mxu0 %v2673
    %3010 = vmatpush1.bf16.msra.mxu0 %v2672
    %3011 = vmatprep.subr.bf16.mxu0 %v2675
    %3012 = vmatpush1.bf16.msra.mxu0 %v2674
    %3013 = vmatprep.subr.bf16.mxu0 %v2677
    %3014 = vmatpush1.bf16.msra.mxu0 %v2676
    %3015 = vmatprep.subr.bf16.mxu0 %v2679
    %3016 = vmatpush1.bf16.msra.mxu0 %v2678
    %3017 = vmatprep.mubr.bf16.mxu0 %v2107
    %3018 = vmatmul.mubr.bf16.gmra.mrb[0].mxu0 %v2106
    %v3019 = vpop.f32.mrb[0].mxu0
    %v3020 = vadd.f32 %v2907, %v3019
    %v3021 = vpop.f32.mrb[0].mxu0
    %v3022 = vadd.f32 %v2909, %v3021
    %v3023 = vpop.f32.mrb[0].mxu0
    %v3024 = vadd.f32 %v2911, %v3023
    %v3025 = vpop.f32.mrb[0].mxu0
    %v3026 = vadd.f32 %v2913, %v3025
    %3027 = vmatprep.mubr.bf16.mxu0 %v2115
    %3028 = vmatmul.mubr.bf16.gmra.mrb[0].mxu0 %v2114
    %v3029 = vpop.f32.mrb[0].mxu0
    %v3030 = vadd.f32 %v2917, %v3029
    %v3031 = vpop.f32.mrb[0].mxu0
    %v3032 = vadd.f32 %v2919, %v3031
    %v3033 = vpop.f32.mrb[0].mxu0
    %v3034 = vadd.f32 %v2921, %v3033
    %v3035 = vpop.f32.mrb[0].mxu0
    %v3036 = vadd.f32 %v2923, %v3035
    %3037 = vmatprep.mubr.bf16.mxu0 %v2123
    %3038 = vmatmul.mubr.bf16.gmra.mrb[0].mxu0 %v2122
    %v3039 = vpop.f32.mrb[0].mxu0
    %v3040 = vadd.f32 %v2927, %v3039
    %v3041 = vpop.f32.mrb[0].mxu0
    %v3042 = vadd.f32 %v2929, %v3041
    %v3043 = vpop.f32.mrb[0].mxu0
    %v3044 = vadd.f32 %v2931, %v3043
    %v3045 = vpop.f32.mrb[0].mxu0
    %v3046 = vadd.f32 %v2933, %v3045
    %3047 = vmatprep.mubr.bf16.mxu0 %v2131
    %3048 = vmatmul.mubr.bf16.gmra.mrb[0].mxu0 %v2130
    %v3049 = vpop.f32.mrb[0].mxu0
    %v3050 = vadd.f32 %v2937, %v3049
    %v3051 = vpop.f32.mrb[0].mxu0
    %v3052 = vadd.f32 %v2939, %v3051
    %v3053 = vpop.f32.mrb[0].mxu0
    %v3054 = vadd.f32 %v2941, %v3053
    %v3055 = vpop.f32.mrb[0].mxu0
    %v3056 = vadd.f32 %v2943, %v3055
    %3057 = vmatprep.mubr.bf16.mxu0 %v2139
    %3058 = vmatmul.mubr.bf16.gmra.mrb[0].mxu0 %v2138
    %v3059 = vpop.f32.mrb[0].mxu0
    %v3060 = vadd.f32 %v2947, %v3059
    %v3061 = vpop.f32.mrb[0].mxu0
    %v3062 = vadd.f32 %v2949, %v3061
    %v3063 = vpop.f32.mrb[0].mxu0
    %v3064 = vadd.f32 %v2951, %v3063
    %v3065 = vpop.f32.mrb[0].mxu0
    %v3066 = vadd.f32 %v2953, %v3065
    %3067 = vmatprep.mubr.bf16.mxu0 %v2147
    %3068 = vmatmul.mubr.bf16.gmra.mrb[0].mxu0 %v2146
    %v3069 = vpop.f32.mrb[0].mxu0
    %v3070 = vadd.f32 %v2957, %v3069
    %v3071 = vpop.f32.mrb[0].mxu0
    %v3072 = vadd.f32 %v2959, %v3071
    %v3073 = vpop.f32.mrb[0].mxu0
    %v3074 = vadd.f32 %v2961, %v3073
    %v3075 = vpop.f32.mrb[0].mxu0
    %v3076 = vadd.f32 %v2963, %v3075
    %3077 = vmatprep.mubr.bf16.mxu0 %v2155
    %3078 = vmatmul.mubr.bf16.gmra.mrb[0].mxu0 %v2154
    %v3079 = vpop.f32.mrb[0].mxu0
    %v3080 = vadd.f32 %v2967, %v3079
    %v3081 = vpop.f32.mrb[0].mxu0
    %v3082 = vadd.f32 %v2969, %v3081
    %v3083 = vpop.f32.mrb[0].mxu0
    %v3084 = vadd.f32 %v2971, %v3083
    %v3085 = vpop.f32.mrb[0].mxu0
    %v3086 = vadd.f32 %v2973, %v3085
    %3087 = vmatprep.mubr.bf16.mxu0 %v2163
    %3088 = vmatmul.mubr.bf16.gmra.mrb[0].mxu0 %v2162
    %v3089 = vpop.f32.mrb[0].mxu0
    %v3090 = vadd.f32 %v2977, %v3089
    %v3091 = vpop.f32.mrb[0].mxu0
    %v3092 = vadd.f32 %v2979, %v3091
    %v3093 = vpop.f32.mrb[0].mxu0
    %v3094 = vadd.f32 %v2981, %v3093
    %v3095 = vpop.f32.mrb[0].mxu0
    %v3096 = vadd.f32 %v2983, %v3095
    %3097 = vdwg.mxu0
    %3098 = vmatprep.subr.bf16.mxu0 %v2681
    %3099 = vmatpush1.bf16.msra.mxu0 %v2680
    %3100 = vmatprep.subr.bf16.mxu0 %v2683
    %3101 = vmatpush1.bf16.msra.mxu0 %v2682
    %3102 = vmatprep.subr.bf16.mxu0 %v2685
    %3103 = vmatpush1.bf16.msra.mxu0 %v2684
    %3104 = vmatprep.subr.bf16.mxu0 %v2687
    %3105 = vmatpush1.bf16.msra.mxu0 %v2686
    %3106 = vmatprep.subr.bf16.mxu0 %v2689
    %3107 = vmatpush1.bf16.msra.mxu0 %v2688
    %3108 = vmatprep.subr.bf16.mxu0 %v2691
    %3109 = vmatpush1.bf16.msra.mxu0 %v2690
    %3110 = vmatprep.subr.bf16.mxu0 %v2693
    %3111 = vmatpush1.bf16.msra.mxu0 %v2692
    %3112 = vmatprep.subr.bf16.mxu0 %v2695
    %3113 = vmatpush1.bf16.msra.mxu0 %v2694
    %3114 = vmatprep.subr.bf16.mxu0 %v2697
    %3115 = vmatpush1.bf16.msra.mxu0 %v2696
    %3116 = vmatprep.subr.bf16.mxu0 %v2699
    %3117 = vmatpush1.bf16.msra.mxu0 %v2698
    %3118 = vmatprep.subr.bf16.mxu0 %v2701
    %3119 = vmatpush1.bf16.msra.mxu0 %v2700
    %3120 = vmatprep.subr.bf16.mxu0 %v2703
    %3121 = vmatpush1.bf16.msra.mxu0 %v2702
    %3122 = vmatprep.subr.bf16.mxu0 %v2705
    %3123 = vmatpush1.bf16.msra.mxu0 %v2704
    %3124 = vmatprep.subr.bf16.mxu0 %v2707
    %3125 = vmatpush1.bf16.msra.mxu0 %v2706
    %3126 = vmatprep.subr.bf16.mxu0 %v2709
    %3127 = vmatpush1.bf16.msra.mxu0 %v2708
    %3128 = vmatprep.subr.bf16.mxu0 %v2711
    %3129 = vmatpush1.bf16.msra.mxu0 %v2710
    %3130 = vmatprep.mubr.bf16.mxu0 %v2109
    %3131 = vmatmul.mubr.bf16.gmra.mrb[0].mxu0 %v2108
    %v3132 = vpop.f32.mrb[0].mxu0
    %v3133 = vadd.f32 %v3020, %v3132
    %v3134 = vpop.f32.mrb[0].mxu0
    %v3135 = vadd.f32 %v3022, %v3134
    %v3136 = vpop.f32.mrb[0].mxu0
    %v3137 = vadd.f32 %v3024, %v3136
    %v3138 = vpop.f32.mrb[0].mxu0
    %v3139 = vadd.f32 %v3026, %v3138
    %3140 = vmatprep.mubr.bf16.mxu0 %v2117
    %3141 = vmatmul.mubr.bf16.gmra.mrb[0].mxu0 %v2116
    %v3142 = vpop.f32.mrb[0].mxu0
    %v3143 = vadd.f32 %v3030, %v3142
    %v3144 = vpop.f32.mrb[0].mxu0
    %v3145 = vadd.f32 %v3032, %v3144
    %v3146 = vpop.f32.mrb[0].mxu0
    %v3147 = vadd.f32 %v3034, %v3146
    %v3148 = vpop.f32.mrb[0].mxu0
    %v3149 = vadd.f32 %v3036, %v3148
    %3150 = vmatprep.mubr.bf16.mxu0 %v2125
    %3151 = vmatmul.mubr.bf16.gmra.mrb[0].mxu0 %v2124
    %v3152 = vpop.f32.mrb[0].mxu0
    %v3153 = vadd.f32 %v3040, %v3152
    %v3154 = vpop.f32.mrb[0].mxu0
    %v3155 = vadd.f32 %v3042, %v3154
    %v3156 = vpop.f32.mrb[0].mxu0
    %v3157 = vadd.f32 %v3044, %v3156
    %v3158 = vpop.f32.mrb[0].mxu0
    %v3159 = vadd.f32 %v3046, %v3158
    %3160 = vmatprep.mubr.bf16.mxu0 %v2133
    %3161 = vmatmul.mubr.bf16.gmra.mrb[0].mxu0 %v2132
    %v3162 = vpop.f32.mrb[0].mxu0
    %v3163 = vadd.f32 %v3050, %v3162
    %v3164 = vpop.f32.mrb[0].mxu0
    %v3165 = vadd.f32 %v3052, %v3164
    %v3166 = vpop.f32.mrb[0].mxu0
    %v3167 = vadd.f32 %v3054, %v3166
    %v3168 = vpop.f32.mrb[0].mxu0
    %v3169 = vadd.f32 %v3056, %v3168
    %3170 = vmatprep.mubr.bf16.mxu0 %v2141
    %3171 = vmatmul.mubr.bf16.gmra.mrb[0].mxu0 %v2140
    %v3172 = vpop.f32.mrb[0].mxu0
    %v3173 = vadd.f32 %v3060, %v3172
    %v3174 = vpop.f32.mrb[0].mxu0
    %v3175 = vadd.f32 %v3062, %v3174
    %v3176 = vpop.f32.mrb[0].mxu0
    %v3177 = vadd.f32 %v3064, %v3176
    %v3178 = vpop.f32.mrb[0].mxu0
    %v3179 = vadd.f32 %v3066, %v3178
    %3180 = vmatprep.mubr.bf16.mxu0 %v2149
    %3181 = vmatmul.mubr.bf16.gmra.mrb[0].mxu0 %v2148
    %v3182 = vpop.f32.mrb[0].mxu0
    %v3183 = vadd.f32 %v3070, %v3182
    %v3184 = vpop.f32.mrb[0].mxu0
    %v3185 = vadd.f32 %v3072, %v3184
    %v3186 = vpop.f32.mrb[0].mxu0
    %v3187 = vadd.f32 %v3074, %v3186
    %v3188 = vpop.f32.mrb[0].mxu0
    %v3189 = vadd.f32 %v3076, %v3188
    %3190 = vmatprep.mubr.bf16.mxu0 %v2157
    %3191 = vmatmul.mubr.bf16.gmra.mrb[0].mxu0 %v2156
    %v3192 = vpop.f32.mrb[0].mxu0
    %v3193 = vadd.f32 %v3080, %v3192
    %v3194 = vpop.f32.mrb[0].mxu0
    %v3195 = vadd.f32 %v3082, %v3194
    %v3196 = vpop.f32.mrb[0].mxu0
    %v3197 = vadd.f32 %v3084, %v3196
    %v3198 = vpop.f32.mrb[0].mxu0
    %v3199 = vadd.f32 %v3086, %v3198
    %3200 = vmatprep.mubr.bf16.mxu0 %v2165
    %3201 = vmatmul.mubr.bf16.gmra.mrb[0].mxu0 %v2164
    %v3202 = vpop.f32.mrb[0].mxu0
    %v3203 = vadd.f32 %v3090, %v3202
    %v3204 = vpop.f32.mrb[0].mxu0
    %v3205 = vadd.f32 %v3092, %v3204
    %v3206 = vpop.f32.mrb[0].mxu0
    %v3207 = vadd.f32 %v3094, %v3206
    %v3208 = vpop.f32.mrb[0].mxu0
    %v3209 = vadd.f32 %v3096, %v3208
    %3210 = vdwg.mxu0
    %3211 = vmatprep.subr.bf16.mxu0 %v2713
    %3212 = vmatpush1.bf16.msra.mxu0 %v2712
    %3213 = vmatprep.subr.bf16.mxu0 %v2715
    %3214 = vmatpush1.bf16.msra.mxu0 %v2714
    %3215 = vmatprep.subr.bf16.mxu0 %v2717
    %3216 = vmatpush1.bf16.msra.mxu0 %v2716
    %3217 = vmatprep.subr.bf16.mxu0 %v2719
    %3218 = vmatpush1.bf16.msra.mxu0 %v2718
    %3219 = vmatprep.subr.bf16.mxu0 %v2721
    %3220 = vmatpush1.bf16.msra.mxu0 %v2720
    %3221 = vmatprep.subr.bf16.mxu0 %v2723
    %3222 = vmatpush1.bf16.msra.mxu0 %v2722
    %3223 = vmatprep.subr.bf16.mxu0 %v2725
    %3224 = vmatpush1.bf16.msra.mxu0 %v2724
    %3225 = vmatprep.subr.bf16.mxu0 %v2727
    %3226 = vmatpush1.bf16.msra.mxu0 %v2726
    %3227 = vmatprep.subr.bf16.mxu0 %v2729
    %3228 = vmatpush1.bf16.msra.mxu0 %v2728
    %3229 = vmatprep.subr.bf16.mxu0 %v2731
    %3230 = vmatpush1.bf16.msra.mxu0 %v2730
    %3231 = vmatprep.subr.bf16.mxu0 %v2733
    %3232 = vmatpush1.bf16.msra.mxu0 %v2732
    %3233 = vmatprep.subr.bf16.mxu0 %v2735
    %3234 = vmatpush1.bf16.msra.mxu0 %v2734
    %3235 = vmatprep.subr.bf16.mxu0 %v2737
    %3236 = vmatpush1.bf16.msra.mxu0 %v2736
    %3237 = vmatprep.subr.bf16.mxu0 %v2739
    %3238 = vmatpush1.bf16.msra.mxu0 %v2738
    %3239 = vmatprep.subr.bf16.mxu0 %v2741
    %3240 = vmatpush1.bf16.msra.mxu0 %v2740
    %3241 = vmatprep.subr.bf16.mxu0 %v2743
    %3242 = vmatpush1.bf16.msra.mxu0 %v2742
    %3243 = vmatprep.mubr.bf16.mxu0 %v2111
    %3244 = vmatmul.mubr.bf16.gmra.mrb[0].mxu0 %v2110
    %v3245 = vpop.f32.mrb[0].mxu0
    %v3246 = vadd.f32 %v3133, %v3245
    %v3247 = vpop.f32.mrb[0].mxu0
    %v3248 = vadd.f32 %v3135, %v3247
    %v3249 = vpop.f32.mrb[0].mxu0
    %v3250 = vadd.f32 %v3137, %v3249
    %v3251 = vpop.f32.mrb[0].mxu0
    %v3252 = vadd.f32 %v3139, %v3251
    %3253 = vmatprep.mubr.bf16.mxu0 %v2119
    %3254 = vmatmul.mubr.bf16.gmra.mrb[0].mxu0 %v2118
    %v3255 = vpop.f32.mrb[0].mxu0
    %v3256 = vadd.f32 %v3143, %v3255
    %v3257 = vpop.f32.mrb[0].mxu0
    %v3258 = vadd.f32 %v3145, %v3257
    %v3259 = vpop.f32.mrb[0].mxu0
    %v3260 = vadd.f32 %v3147, %v3259
    %v3261 = vpop.f32.mrb[0].mxu0
    %v3262 = vadd.f32 %v3149, %v3261
    %3263 = vmatprep.mubr.bf16.mxu0 %v2127
    %3264 = vmatmul.mubr.bf16.gmra.mrb[0].mxu0 %v2126
    %v3265 = vpop.f32.mrb[0].mxu0
    %v3266 = vadd.f32 %v3153, %v3265
    %v3267 = vpop.f32.mrb[0].mxu0
    %v3268 = vadd.f32 %v3155, %v3267
    %v3269 = vpop.f32.mrb[0].mxu0
    %v3270 = vadd.f32 %v3157, %v3269
    %v3271 = vpop.f32.mrb[0].mxu0
    %v3272 = vadd.f32 %v3159, %v3271
    %3273 = vmatprep.mubr.bf16.mxu0 %v2135
    %3274 = vmatmul.mubr.bf16.gmra.mrb[0].mxu0 %v2134
    %v3275 = vpop.f32.mrb[0].mxu0
    %v3276 = vadd.f32 %v3163, %v3275
    %v3277 = vpop.f32.mrb[0].mxu0
    %v3278 = vadd.f32 %v3165, %v3277
    %v3279 = vpop.f32.mrb[0].mxu0
    %v3280 = vadd.f32 %v3167, %v3279
    %v3281 = vpop.f32.mrb[0].mxu0
    %v3282 = vadd.f32 %v3169, %v3281
    %3283 = vmatprep.mubr.bf16.mxu0 %v2143
    %3284 = vmatmul.mubr.bf16.gmra.mrb[0].mxu0 %v2142
    %v3285 = vpop.f32.mrb[0].mxu0
    %v3286 = vadd.f32 %v3173, %v3285
    %v3287 = vpop.f32.mrb[0].mxu0
    %v3288 = vadd.f32 %v3175, %v3287
    %v3289 = vpop.f32.mrb[0].mxu0
    %v3290 = vadd.f32 %v3177, %v3289
    %v3291 = vpop.f32.mrb[0].mxu0
    %v3292 = vadd.f32 %v3179, %v3291
    %3293 = vmatprep.mubr.bf16.mxu0 %v2151
    %3294 = vmatmul.mubr.bf16.gmra.mrb[0].mxu0 %v2150
    %v3295 = vpop.f32.mrb[0].mxu0
    %v3296 = vadd.f32 %v3183, %v3295
    %v3297 = vpop.f32.mrb[0].mxu0
    %v3298 = vadd.f32 %v3185, %v3297
    %v3299 = vpop.f32.mrb[0].mxu0
    %v3300 = vadd.f32 %v3187, %v3299
    %v3301 = vpop.f32.mrb[0].mxu0
    %v3302 = vadd.f32 %v3189, %v3301
    %3303 = vmatprep.mubr.bf16.mxu0 %v2159
    %3304 = vmatmul.mubr.bf16.gmra.mrb[0].mxu0 %v2158
    %v3305 = vpop.f32.mrb[0].mxu0
    %v3306 = vadd.f32 %v3193, %v3305
    %v3307 = vpop.f32.mrb[0].mxu0
    %v3308 = vadd.f32 %v3195, %v3307
    %v3309 = vpop.f32.mrb[0].mxu0
    %v3310 = vadd.f32 %v3197, %v3309
    %v3311 = vpop.f32.mrb[0].mxu0
    %v3312 = vadd.f32 %v3199, %v3311
    %3313 = vmatprep.mubr.bf16.mxu0 %v2167
    %3314 = vmatmul.mubr.bf16.gmra.mrb[0].mxu0 %v2166
    %v3315 = vpop.f32.mrb[0].mxu0
    %v3316 = vadd.f32 %v3203, %v3315
    %v3317 = vpop.f32.mrb[0].mxu0
    %v3318 = vadd.f32 %v3205, %v3317
    %v3319 = vpop.f32.mrb[0].mxu0
    %v3320 = vadd.f32 %v3207, %v3319
    %v3321 = vpop.f32.mrb[0].mxu0
    %v3322 = vadd.f32 %v3209, %v3321
    %3323 = vdwg.mxu0
    %v3324 = vld [vmem:[%s6] sm:$0xf]
    %v3333 = vrot.slane %v1716, 7
    %vm3334 = vcmask 1041409
    %v3335 = vsel %vm3334, %v3333, %v1706
    %v3336 = vrot.slane %v1726, 6
    %vm3337 = vcmask 1042434
    %v3338 = vsel %vm3337, %v3336, %v3335
    %v3339 = vrot.slane %v1736, 5
    %vm3340 = vcmask 1043459
    %v3341 = vsel %vm3340, %v3339, %v3338
    %v3342 = vrot.slane %v1746, 4
    %vm3343 = vcmask 1044484
    %v3344 = vsel %vm3343, %v3342, %v3341
    %v3345 = vrot.slane %v1756, 3
    %vm3346 = vcmask 1045509
    %v3347 = vsel %vm3346, %v3345, %v3344
    %v3348 = vrot.slane %v1766, 2
    %vm3349 = vcmask 1046534
    %v3350 = vsel %vm3349, %v3348, %v3347
    %v3351 = vrot.slane %v1776, 1
    %vm3352 = vcmask 1047559
    %v3353 = vsel %vm3352, %v3351, %v3350
    %v3363 = vrot.slane %v3250, 7
    %v3364 = vrot.slane %v3260, 6
    %v3365 = vsel %vm3334, %v3364, %v3363
    %v3366 = vrot.slane %v3270, 5
    %v3367 = vsel %vm3337, %v3366, %v3365
    %v3368 = vrot.slane %v3280, 4
    %v3369 = vsel %vm3340, %v3368, %v3367
    %v3370 = vrot.slane %v3290, 3
    %v3371 = vsel %vm3343, %v3370, %v3369
    %v3372 = vrot.slane %v3300, 2
    %v3373 = vsel %vm3346, %v3372, %v3371
    %v3374 = vrot.slane %v3310, 1
    %v3375 = vsel %vm3349, %v3374, %v3373
    %v3376 = vsel %vm3352, %v3320, %v3375
    %3377 = vrot.lane.b32.xlu0 %v3376, 64
    %v3378 = vpop.permute.xlu0 %3377
    %3380 = vrot.lane.b32.xlu0 %v3353, 64
    %v3381 = vpop.permute.xlu0 %3380
    %v3392 = vrot.slane %v1718, 7
    %v3393 = vsel %vm3334, %v3392, %v1708
    %v3394 = vrot.slane %v1728, 6
    %v3395 = vsel %vm3337, %v3394, %v3393
    %v3396 = vrot.slane %v1738, 5
    %v3397 = vsel %vm3340, %v3396, %v3395
    %v3398 = vrot.slane %v1748, 4
    %v3399 = vsel %vm3343, %v3398, %v3397
    %v3400 = vrot.slane %v1758, 3
    %v3401 = vsel %vm3346, %v3400, %v3399
    %v3402 = vrot.slane %v1768, 2
    %v3403 = vsel %vm3349, %v3402, %v3401
    %v3404 = vrot.slane %v1778, 1
    %v3405 = vsel %vm3352, %v3404, %v3403
    %v3415 = vrot.slane %v3252, 7
    %v3416 = vrot.slane %v3262, 6
    %v3417 = vsel %vm3334, %v3416, %v3415
    %v3418 = vrot.slane %v3272, 5
    %v3419 = vsel %vm3337, %v3418, %v3417
    %v3420 = vrot.slane %v3282, 4
    %v3421 = vsel %vm3340, %v3420, %v3419
    %v3422 = vrot.slane %v3292, 3
    %v3423 = vsel %vm3343, %v3422, %v3421
    %v3424 = vrot.slane %v3302, 2
    %v3425 = vsel %vm3346, %v3424, %v3423
    %v3426 = vrot.slane %v3312, 1
    %v3427 = vsel %vm3349, %v3426, %v3425
    %v3428 = vsel %vm3352, %v3322, %v3427
    %3429 = vrot.lane.b32.xlu0 %v3428, 64
    %v3430 = vpop.permute.xlu0 %3429
    %3432 = vrot.lane.b32.xlu0 %v3405, 64
    %v3433 = vpop.permute.xlu0 %3432
    %vm3436 = vcmask 523264
    %v3437 = vsel %vm3436, %v3353, %v3378
    %v3438 = vsel %vm3436, %v3381, %v3376
    %v3439 = vsel %vm3436, %v3405, %v3430
    %v3440 = vsel %vm3436, %v3433, %v3428
    %v3442 = vlaneseq
    %v3443 = vshrl.u32 %v3442, 7
    %v3444 = vsub.s32 0, %v3443
    %v3445 = vrot.slane %v3324, %v3444
    %v3446 = vlaneseq
    %v3447 = vshrl.u32 %v3446, 7
    %v3448 = vsub.s32 1, %v3447
    %v3449 = vrot.slane %v3324, %v3448
    %v3450 = vlaneseq
    %v3451 = vshrl.u32 %v3450, 7
    %v3452 = vsub.s32 2, %v3451
    %v3453 = vrot.slane %v3324, %v3452
    %v3454 = vlaneseq
    %v3455 = vshrl.u32 %v3454, 7
    %v3456 = vsub.s32 3, %v3455
    %v3457 = vrot.slane %v3324, %v3456
    %v3462 = vadd.f32 %v3437, %v3445
    %v3463 = vadd.f32 %v3438, %v3449
    %v3464 = vadd.f32 %v3439, %v3453
    %v3465 = vadd.f32 %v3440, %v3457
    %3466 = vst [vmem:[#allocation4] sm:$0xff] %v3462
    %3467 = vst [vmem:[#allocation4 + $0x8] sm:$0xff] %v3463
    %3468 = vst [vmem:[#allocation4 + $0x10] sm:$0xff] %v3464
    %3469 = vst [vmem:[#allocation4 + $0x18] sm:$0xff] %v3465
    %v3470 = vsel %vm3337, %v3333, %v1706
    %v3471 = vsel %vm3340, %v3336, %v3470
    %v3472 = vsel %vm3343, %v3339, %v3471
    %v3473 = vsel %vm3346, %v3342, %v3472
    %v3474 = vsel %vm3349, %v3345, %v3473
    %v3475 = vsel %vm3352, %v3348, %v3474
    %v3478 = vrot.slane %v3250, 5
    %v3479 = vrot.slane %v3260, 4
    %v3480 = vsel %vm3337, %v3479, %v3478
    %v3481 = vrot.slane %v3270, 3
    %v3482 = vsel %vm3340, %v3481, %v3480
    %v3483 = vrot.slane %v3280, 2
    %v3484 = vsel %vm3343, %v3483, %v3482
    %v3485 = vrot.slane %v3290, 1
    %v3486 = vsel %vm3346, %v3485, %v3484
    %v3487 = vsel %vm3349, %v3300, %v3486
    %v3488 = vrot.slane %v3310, 7
    %v3489 = vsel %vm3352, %v3488, %v3487
    %v3490 = vrot.slane %v3320, 6
    %3491 = vrot.lane.b32.xlu0 %v3489, 64
    %v3492 = vpop.permute.xlu0 %3491
    %3493 = vrot.lane.b32.xlu0 %v3490, 64
    %v3494 = vpop.permute.xlu0 %3493
    %3497 = vrot.lane.b32.xlu0 %v3475, 64
    %v3498 = vpop.permute.xlu0 %3497
    %3499 = vrot.lane.b32.xlu0 %v3351, 64
    %v3500 = vpop.permute.xlu0 %3499
    %v3505 = vsel %vm3337, %v3392, %v1708
    %v3506 = vsel %vm3340, %v3394, %v3505
    %v3507 = vsel %vm3343, %v3396, %v3506
    %v3508 = vsel %vm3346, %v3398, %v3507
    %v3509 = vsel %vm3349, %v3400, %v3508
    %v3510 = vsel %vm3352, %v3402, %v3509
    %v3513 = vrot.slane %v3252, 5
    %v3514 = vrot.slane %v3262, 4
    %v3515 = vsel %vm3337, %v3514, %v3513
    %v3516 = vrot.slane %v3272, 3
    %v3517 = vsel %vm3340, %v3516, %v3515
    %v3518 = vrot.slane %v3282, 2
    %v3519 = vsel %vm3343, %v3518, %v3517
    %v3520 = vrot.slane %v3292, 1
    %v3521 = vsel %vm3346, %v3520, %v3519
    %v3522 = vsel %vm3349, %v3302, %v3521
    %v3523 = vrot.slane %v3312, 7
    %v3524 = vsel %vm3352, %v3523, %v3522
    %v3525 = vrot.slane %v3322, 6
    %3526 = vrot.lane.b32.xlu0 %v3524, 64
    %v3527 = vpop.permute.xlu0 %3526
    %3528 = vrot.lane.b32.xlu0 %v3525, 64
    %v3529 = vpop.permute.xlu0 %3528
    %3532 = vrot.lane.b32.xlu0 %v3510, 64
    %v3533 = vpop.permute.xlu0 %3532
    %3534 = vrot.lane.b32.xlu0 %v3404, 64
    %v3535 = vpop.permute.xlu0 %3534
    %v3540 = vsel %vm3436, %v3475, %v3492
    %v3541 = vsel %vm3436, %v3351, %v3494
    %v3542 = vsel %vm3436, %v3498, %v3489
    %v3543 = vsel %vm3436, %v3500, %v3490
    %v3544 = vsel %vm3436, %v3510, %v3527
    %v3545 = vsel %vm3436, %v3404, %v3529
    %v3546 = vsel %vm3436, %v3533, %v3524
    %v3547 = vsel %vm3436, %v3535, %v3525
    %v3548 = vadd.f32 %v3540, %v3445
    %v3549 = vadd.f32 %v3542, %v3449
    %v3550 = vadd.f32 %v3544, %v3453
    %v3551 = vadd.f32 %v3546, %v3457
    %v3552 = vadd.f32 %v3541, %v3445
    %v3553 = vadd.f32 %v3543, %v3449
    %v3554 = vadd.f32 %v3545, %v3453
    %v3555 = vadd.f32 %v3547, %v3457
    %vm3564 = vcmask 1046528
    %v3565 = vrot.slane %v3548, 1
    %v3566 = vrot.slane %v3552, 1
    %v3567 = vsel %vm3564, %v3565, %v3566
    %v3568 = vrot.slane %v3549, 1
    %v3569 = vrot.slane %v3553, 1
    %v3570 = vsel %vm3564, %v3568, %v3569
    %v3571 = vrot.slane %v3550, 1
    %v3572 = vrot.slane %v3554, 1
    %v3573 = vsel %vm3564, %v3571, %v3572
    %v3574 = vrot.slane %v3551, 1
    %v3575 = vrot.slane %v3555, 1
    %v3576 = vsel %vm3564, %v3574, %v3575
    %s3581 = scalar_lea.vmem [#allocation4], 32
    %3582 = vst [vmem:[%s3581] sm:$0xff] %v3567
    %3583 = vst [vmem:[%s3581 + $0x8] sm:$0xff] %v3570
    %3584 = vst [vmem:[%s3581 + $0x10] sm:$0xff] %v3573
    %3585 = vst [vmem:[%s3581 + $0x18] sm:$0xff] %v3576
    %v3586 = vsel %vm3340, %v3333, %v1706
    %v3587 = vsel %vm3343, %v3336, %v3586
    %v3588 = vsel %vm3346, %v3339, %v3587
    %v3589 = vsel %vm3349, %v3342, %v3588
    %v3590 = vsel %vm3352, %v3345, %v3589
    %v3591 = vsel %vm3334, %v3351, %v3348
    %v3594 = vrot.slane %v3250, 3
    %v3595 = vrot.slane %v3260, 2
    %v3596 = vsel %vm3340, %v3595, %v3594
    %v3597 = vrot.slane %v3270, 1
    %v3598 = vsel %vm3343, %v3597, %v3596
    %v3599 = vsel %vm3346, %v3280, %v3598
    %v3600 = vrot.slane %v3290, 7
    %v3601 = vsel %vm3349, %v3600, %v3599
    %v3602 = vrot.slane %v3300, 6
    %v3603 = vsel %vm3352, %v3602, %v3601
    %v3604 = vrot.slane %v3310, 5
    %v3605 = vrot.slane %v3320, 4
    %v3606 = vsel %vm3334, %v3605, %v3604
    %3607 = vrot.lane.b32.xlu0 %v3603, 64
    %v3608 = vpop.permute.xlu0 %3607
    %3609 = vrot.lane.b32.xlu0 %v3606, 64
    %v3610 = vpop.permute.xlu0 %3609
    %3613 = vrot.lane.b32.xlu0 %v3590, 64
    %v3614 = vpop.permute.xlu0 %3613
    %3615 = vrot.lane.b32.xlu0 %v3591, 64
    %v3616 = vpop.permute.xlu0 %3615
    %v3621 = vsel %vm3340, %v3392, %v1708
    %v3622 = vsel %vm3343, %v3394, %v3621
    %v3623 = vsel %vm3346, %v3396, %v3622
    %v3624 = vsel %vm3349, %v3398, %v3623
    %v3625 = vsel %vm3352, %v3400, %v3624
    %v3626 = vsel %vm3334, %v3404, %v3402
    %v3629 = vrot.slane %v3252, 3
    %v3630 = vrot.slane %v3262, 2
    %v3631 = vsel %vm3340, %v3630, %v3629
    %v3632 = vrot.slane %v3272, 1
    %v3633 = vsel %vm3343, %v3632, %v3631
    %v3634 = vsel %vm3346, %v3282, %v3633
    %v3635 = vrot.slane %v3292, 7
    %v3636 = vsel %vm3349, %v3635, %v3634
    %v3637 = vrot.slane %v3302, 6
    %v3638 = vsel %vm3352, %v3637, %v3636
    %v3639 = vrot.slane %v3312, 5
    %v3640 = vrot.slane %v3322, 4
    %v3641 = vsel %vm3334, %v3640, %v3639
    %3642 = vrot.lane.b32.xlu0 %v3638, 64
    %v3643 = vpop.permute.xlu0 %3642
    %3644 = vrot.lane.b32.xlu0 %v3641, 64
    %v3645 = vpop.permute.xlu0 %3644
    %3648 = vrot.lane.b32.xlu0 %v3625, 64
    %v3649 = vpop.permute.xlu0 %3648
    %3650 = vrot.lane.b32.xlu0 %v3626, 64
    %v3651 = vpop.permute.xlu0 %3650
    %v3656 = vsel %vm3436, %v3590, %v3608
    %v3657 = vsel %vm3436, %v3591, %v3610
    %v3658 = vsel %vm3436, %v3614, %v3603
    %v3659 = vsel %vm3436, %v3616, %v3606
    %v3660 = vsel %vm3436, %v3625, %v3643
    %v3661 = vsel %vm3436, %v3626, %v3645
    %v3662 = vsel %vm3436, %v3649, %v3638
    %v3663 = vsel %vm3436, %v3651, %v3641
    %v3664 = vadd.f32 %v3656, %v3445
    %v3665 = vadd.f32 %v3658, %v3449
    %v3666 = vadd.f32 %v3660, %v3453
    %v3667 = vadd.f32 %v3662, %v3457
    %v3668 = vadd.f32 %v3657, %v3445
    %v3669 = vadd.f32 %v3659, %v3449
    %v3670 = vadd.f32 %v3661, %v3453
    %v3671 = vadd.f32 %v3663, %v3457
    %vm3680 = vcmask 1045504
    %v3681 = vrot.slane %v3664, 2
    %v3682 = vrot.slane %v3668, 2
    %v3683 = vsel %vm3680, %v3681, %v3682
    %v3684 = vrot.slane %v3665, 2
    %v3685 = vrot.slane %v3669, 2
    %v3686 = vsel %vm3680, %v3684, %v3685
    %v3687 = vrot.slane %v3666, 2
    %v3688 = vrot.slane %v3670, 2
    %v3689 = vsel %vm3680, %v3687, %v3688
    %v3690 = vrot.slane %v3667, 2
    %v3691 = vrot.slane %v3671, 2
    %v3692 = vsel %vm3680, %v3690, %v3691
    %s3697 = scalar_lea.vmem [#allocation4], 64
    %3698 = vst [vmem:[%s3697] sm:$0xff] %v3683
    %3699 = vst [vmem:[%s3697 + $0x8] sm:$0xff] %v3686
    %3700 = vst [vmem:[%s3697 + $0x10] sm:$0xff] %v3689
    %3701 = vst [vmem:[%s3697 + $0x18] sm:$0xff] %v3692
    %v3702 = vsel %vm3343, %v3333, %v1706
    %v3703 = vsel %vm3346, %v3336, %v3702
    %v3704 = vsel %vm3349, %v3339, %v3703
    %v3705 = vsel %vm3352, %v3342, %v3704
    %v3706 = vsel %vm3334, %v3348, %v3345
    %v3707 = vsel %vm3337, %v3351, %v3706
    %v3710 = vrot.slane %v3250, 1
    %v3711 = vsel %vm3343, %v3260, %v3710
    %v3712 = vrot.slane %v3270, 7
    %v3713 = vsel %vm3346, %v3712, %v3711
    %v3714 = vrot.slane %v3280, 6
    %v3715 = vsel %vm3349, %v3714, %v3713
    %v3716 = vrot.slane %v3290, 5
    %v3717 = vsel %vm3352, %v3716, %v3715
    %v3718 = vrot.slane %v3300, 4
    %v3719 = vrot.slane %v3310, 3
    %v3720 = vsel %vm3334, %v3719, %v3718
    %v3721 = vrot.slane %v3320, 2
    %v3722 = vsel %vm3337, %v3721, %v3720
    %3723 = vrot.lane.b32.xlu0 %v3717, 64
    %v3724 = vpop.permute.xlu0 %3723
    %3725 = vrot.lane.b32.xlu0 %v3722, 64
    %v3726 = vpop.permute.xlu0 %3725
    %3729 = vrot.lane.b32.xlu0 %v3705, 64
    %v3730 = vpop.permute.xlu0 %3729
    %3731 = vrot.lane.b32.xlu0 %v3707, 64
    %v3732 = vpop.permute.xlu0 %3731
    %v3737 = vsel %vm3343, %v3392, %v1708
    %v3738 = vsel %vm3346, %v3394, %v3737
    %v3739 = vsel %vm3349, %v3396, %v3738
    %v3740 = vsel %vm3352, %v3398, %v3739
    %v3741 = vsel %vm3334, %v3402, %v3400
    %v3742 = vsel %vm3337, %v3404, %v3741
    %v3745 = vrot.slane %v3252, 1
    %v3746 = vsel %vm3343, %v3262, %v3745
    %v3747 = vrot.slane %v3272, 7
    %v3748 = vsel %vm3346, %v3747, %v3746
    %v3749 = vrot.slane %v3282, 6
    %v3750 = vsel %vm3349, %v3749, %v3748
    %v3751 = vrot.slane %v3292, 5
    %v3752 = vsel %vm3352, %v3751, %v3750
    %v3753 = vrot.slane %v3302, 4
    %v3754 = vrot.slane %v3312, 3
    %v3755 = vsel %vm3334, %v3754, %v3753
    %v3756 = vrot.slane %v3322, 2
    %v3757 = vsel %vm3337, %v3756, %v3755
    %3758 = vrot.lane.b32.xlu0 %v3752, 64
    %v3759 = vpop.permute.xlu0 %3758
    %3760 = vrot.lane.b32.xlu0 %v3757, 64
    %v3761 = vpop.permute.xlu0 %3760
    %3764 = vrot.lane.b32.xlu0 %v3740, 64
    %v3765 = vpop.permute.xlu0 %3764
    %3766 = vrot.lane.b32.xlu0 %v3742, 64
    %v3767 = vpop.permute.xlu0 %3766
    %v3772 = vsel %vm3436, %v3705, %v3724
    %v3773 = vsel %vm3436, %v3707, %v3726
    %v3774 = vsel %vm3436, %v3730, %v3717
    %v3775 = vsel %vm3436, %v3732, %v3722
    %v3776 = vsel %vm3436, %v3740, %v3759
    %v3777 = vsel %vm3436, %v3742, %v3761
    %v3778 = vsel %vm3436, %v3765, %v3752
    %v3779 = vsel %vm3436, %v3767, %v3757
    %v3780 = vadd.f32 %v3772, %v3445
    %v3781 = vadd.f32 %v3774, %v3449
    %v3782 = vadd.f32 %v3776, %v3453
    %v3783 = vadd.f32 %v3778, %v3457
    %v3784 = vadd.f32 %v3773, %v3445
    %v3785 = vadd.f32 %v3775, %v3449
    %v3786 = vadd.f32 %v3777, %v3453
    %v3787 = vadd.f32 %v3779, %v3457
    %vm3796 = vcmask 1044480
    %v3797 = vrot.slane %v3780, 3
    %v3798 = vrot.slane %v3784, 3
    %v3799 = vsel %vm3796, %v3797, %v3798
    %v3800 = vrot.slane %v3781, 3
    %v3801 = vrot.slane %v3785, 3
    %v3802 = vsel %vm3796, %v3800, %v3801
    %v3803 = vrot.slane %v3782, 3
    %v3804 = vrot.slane %v3786, 3
    %v3805 = vsel %vm3796, %v3803, %v3804
    %v3806 = vrot.slane %v3783, 3
    %v3807 = vrot.slane %v3787, 3
    %v3808 = vsel %vm3796, %v3806, %v3807
    %s3813 = scalar_lea.vmem [#allocation4], 96
    %3814 = vst [vmem:[%s3813] sm:$0xff] %v3799
    %3815 = vst [vmem:[%s3813 + $0x8] sm:$0xff] %v3802
    %3816 = vst [vmem:[%s3813 + $0x10] sm:$0xff] %v3805
    %3817 = vst [vmem:[%s3813 + $0x18] sm:$0xff] %v3808
    %v3818 = vsel %vm3346, %v3333, %v1706
    %v3819 = vsel %vm3349, %v3336, %v3818
    %v3820 = vsel %vm3352, %v3339, %v3819
    %v3821 = vsel %vm3334, %v3345, %v3342
    %v3822 = vsel %vm3337, %v3348, %v3821
    %v3823 = vsel %vm3340, %v3351, %v3822
    %v3826 = vsel %vm3346, %v3364, %v3363
    %v3827 = vsel %vm3349, %v3366, %v3826
    %v3828 = vsel %vm3352, %v3368, %v3827
    %v3829 = vsel %vm3334, %v3372, %v3370
    %v3830 = vsel %vm3337, %v3374, %v3829
    %v3831 = vsel %vm3340, %v3320, %v3830
    %3832 = vrot.lane.b32.xlu0 %v3828, 64
    %v3833 = vpop.permute.xlu0 %3832
    %3834 = vrot.lane.b32.xlu0 %v3831, 64
    %v3835 = vpop.permute.xlu0 %3834
    %3838 = vrot.lane.b32.xlu0 %v3820, 64
    %v3839 = vpop.permute.xlu0 %3838
    %3840 = vrot.lane.b32.xlu0 %v3823, 64
    %v3841 = vpop.permute.xlu0 %3840
    %v3846 = vsel %vm3346, %v3392, %v1708
    %v3847 = vsel %vm3349, %v3394, %v3846
    %v3848 = vsel %vm3352, %v3396, %v3847
    %v3849 = vsel %vm3334, %v3400, %v3398
    %v3850 = vsel %vm3337, %v3402, %v3849
    %v3851 = vsel %vm3340, %v3404, %v3850
    %v3854 = vsel %vm3346, %v3416, %v3415
    %v3855 = vsel %vm3349, %v3418, %v3854
    %v3856 = vsel %vm3352, %v3420, %v3855
    %v3857 = vsel %vm3334, %v3424, %v3422
    %v3858 = vsel %vm3337, %v3426, %v3857
    %v3859 = vsel %vm3340, %v3322, %v3858
    %3860 = vrot.lane.b32.xlu0 %v3856, 64
    %v3861 = vpop.permute.xlu0 %3860
    %3862 = vrot.lane.b32.xlu0 %v3859, 64
    %v3863 = vpop.permute.xlu0 %3862
    %3866 = vrot.lane.b32.xlu0 %v3848, 64
    %v3867 = vpop.permute.xlu0 %3866
    %3868 = vrot.lane.b32.xlu0 %v3851, 64
    %v3869 = vpop.permute.xlu0 %3868
    %v3874 = vsel %vm3436, %v3820, %v3833
    %v3875 = vsel %vm3436, %v3823, %v3835
    %v3876 = vsel %vm3436, %v3839, %v3828
    %v3877 = vsel %vm3436, %v3841, %v3831
    %v3878 = vsel %vm3436, %v3848, %v3861
    %v3879 = vsel %vm3436, %v3851, %v3863
    %v3880 = vsel %vm3436, %v3867, %v3856
    %v3881 = vsel %vm3436, %v3869, %v3859
    %v3882 = vadd.f32 %v3874, %v3445
    %v3883 = vadd.f32 %v3876, %v3449
    %v3884 = vadd.f32 %v3878, %v3453
    %v3885 = vadd.f32 %v3880, %v3457
    %v3886 = vadd.f32 %v3875, %v3445
    %v3887 = vadd.f32 %v3877, %v3449
    %v3888 = vadd.f32 %v3879, %v3453
    %v3889 = vadd.f32 %v3881, %v3457
    %vm3898 = vcmask 1043456
    %v3899 = vrot.slane %v3882, 4
    %v3900 = vrot.slane %v3886, 4
    %v3901 = vsel %vm3898, %v3899, %v3900
    %v3902 = vrot.slane %v3883, 4
    %v3903 = vrot.slane %v3887, 4
    %v3904 = vsel %vm3898, %v3902, %v3903
    %v3905 = vrot.slane %v3884, 4
    %v3906 = vrot.slane %v3888, 4
    %v3907 = vsel %vm3898, %v3905, %v3906
    %v3908 = vrot.slane %v3885, 4
    %v3909 = vrot.slane %v3889, 4
    %v3910 = vsel %vm3898, %v3908, %v3909
    %s3915 = scalar_lea.vmem [#allocation4], 128
    %3916 = vst [vmem:[%s3915] sm:$0xff] %v3901
    %3917 = vst [vmem:[%s3915 + $0x8] sm:$0xff] %v3904
    %3918 = vst [vmem:[%s3915 + $0x10] sm:$0xff] %v3907
    %3919 = vst [vmem:[%s3915 + $0x18] sm:$0xff] %v3910
    %v3920 = vsel %vm3349, %v3333, %v1706
    %v3921 = vsel %vm3352, %v3336, %v3920
    %v3922 = vsel %vm3334, %v3342, %v3339
    %v3923 = vsel %vm3337, %v3345, %v3922
    %v3924 = vsel %vm3340, %v3348, %v3923
    %v3925 = vsel %vm3343, %v3351, %v3924
    %v3928 = vsel %vm3349, %v3479, %v3478
    %v3929 = vsel %vm3352, %v3481, %v3928
    %v3930 = vsel %vm3334, %v3485, %v3483
    %v3931 = vsel %vm3337, %v3300, %v3930
    %v3932 = vsel %vm3340, %v3488, %v3931
    %v3933 = vsel %vm3343, %v3490, %v3932
    %3934 = vrot.lane.b32.xlu0 %v3929, 64
    %v3935 = vpop.permute.xlu0 %3934
    %3936 = vrot.lane.b32.xlu0 %v3933, 64
    %v3937 = vpop.permute.xlu0 %3936
    %3940 = vrot.lane.b32.xlu0 %v3921, 64
    %v3941 = vpop.permute.xlu0 %3940
    %3942 = vrot.lane.b32.xlu0 %v3925, 64
    %v3943 = vpop.permute.xlu0 %3942
    %v3948 = vsel %vm3349, %v3392, %v1708
    %v3949 = vsel %vm3352, %v3394, %v3948
    %v3950 = vsel %vm3334, %v3398, %v3396
    %v3951 = vsel %vm3337, %v3400, %v3950
    %v3952 = vsel %vm3340, %v3402, %v3951
    %v3953 = vsel %vm3343, %v3404, %v3952
    %v3956 = vsel %vm3349, %v3514, %v3513
    %v3957 = vsel %vm3352, %v3516, %v3956
    %v3958 = vsel %vm3334, %v3520, %v3518
    %v3959 = vsel %vm3337, %v3302, %v3958
    %v3960 = vsel %vm3340, %v3523, %v3959
    %v3961 = vsel %vm3343, %v3525, %v3960
    %3962 = vrot.lane.b32.xlu0 %v3957, 64
    %v3963 = vpop.permute.xlu0 %3962
    %3964 = vrot.lane.b32.xlu0 %v3961, 64
    %v3965 = vpop.permute.xlu0 %3964
    %3968 = vrot.lane.b32.xlu0 %v3949, 64
    %v3969 = vpop.permute.xlu0 %3968
    %3970 = vrot.lane.b32.xlu0 %v3953, 64
    %v3971 = vpop.permute.xlu0 %3970
    %v3976 = vsel %vm3436, %v3921, %v3935
    %v3977 = vsel %vm3436, %v3925, %v3937
    %v3978 = vsel %vm3436, %v3941, %v3929
    %v3979 = vsel %vm3436, %v3943, %v3933
    %v3980 = vsel %vm3436, %v3949, %v3963
    %v3981 = vsel %vm3436, %v3953, %v3965
    %v3982 = vsel %vm3436, %v3969, %v3957
    %v3983 = vsel %vm3436, %v3971, %v3961
    %v3984 = vadd.f32 %v3976, %v3445
    %v3985 = vadd.f32 %v3978, %v3449
    %v3986 = vadd.f32 %v3980, %v3453
    %v3987 = vadd.f32 %v3982, %v3457
    %v3988 = vadd.f32 %v3977, %v3445
    %v3989 = vadd.f32 %v3979, %v3449
    %v3990 = vadd.f32 %v3981, %v3453
    %v3991 = vadd.f32 %v3983, %v3457
    %vm4000 = vcmask 1042432
    %v4001 = vrot.slane %v3984, 5
    %v4002 = vrot.slane %v3988, 5
    %v4003 = vsel %vm4000, %v4001, %v4002
    %v4004 = vrot.slane %v3985, 5
    %v4005 = vrot.slane %v3989, 5
    %v4006 = vsel %vm4000, %v4004, %v4005
    %v4007 = vrot.slane %v3986, 5
    %v4008 = vrot.slane %v3990, 5
    %v4009 = vsel %vm4000, %v4007, %v4008
    %v4010 = vrot.slane %v3987, 5
    %v4011 = vrot.slane %v3991, 5
    %v4012 = vsel %vm4000, %v4010, %v4011
    %s4017 = scalar_lea.vmem [#allocation4], 160
    %4018 = vst [vmem:[%s4017] sm:$0xff] %v4003
    %4019 = vst [vmem:[%s4017 + $0x8] sm:$0xff] %v4006
    %4020 = vst [vmem:[%s4017 + $0x10] sm:$0xff] %v4009
    %4021 = vst [vmem:[%s4017 + $0x18] sm:$0xff] %v4012
    %v4022 = vsel %vm3352, %v3333, %v1706
    %v4023 = vsel %vm3334, %v3339, %v3336
    %v4024 = vsel %vm3337, %v3342, %v4023
    %v4025 = vsel %vm3340, %v3345, %v4024
    %v4026 = vsel %vm3343, %v3348, %v4025
    %v4027 = vsel %vm3346, %v3351, %v4026
    %v4030 = vsel %vm3352, %v3595, %v3594
    %v4031 = vsel %vm3334, %v3280, %v3597
    %v4032 = vsel %vm3337, %v3600, %v4031
    %v4033 = vsel %vm3340, %v3602, %v4032
    %v4034 = vsel %vm3343, %v3604, %v4033
    %v4035 = vsel %vm3346, %v3605, %v4034
    %4036 = vrot.lane.b32.xlu0 %v4030, 64
    %v4037 = vpop.permute.xlu0 %4036
    %4038 = vrot.lane.b32.xlu0 %v4035, 64
    %v4039 = vpop.permute.xlu0 %4038
    %4042 = vrot.lane.b32.xlu0 %v4022, 64
    %v4043 = vpop.permute.xlu0 %4042
    %4044 = vrot.lane.b32.xlu0 %v4027, 64
    %v4045 = vpop.permute.xlu0 %4044
    %v4050 = vsel %vm3352, %v3392, %v1708
    %v4051 = vsel %vm3334, %v3396, %v3394
    %v4052 = vsel %vm3337, %v3398, %v4051
    %v4053 = vsel %vm3340, %v3400, %v4052
    %v4054 = vsel %vm3343, %v3402, %v4053
    %v4055 = vsel %vm3346, %v3404, %v4054
    %v4058 = vsel %vm3352, %v3630, %v3629
    %v4059 = vsel %vm3334, %v3282, %v3632
    %v4060 = vsel %vm3337, %v3635, %v4059
    %v4061 = vsel %vm3340, %v3637, %v4060
    %v4062 = vsel %vm3343, %v3639, %v4061
    %v4063 = vsel %vm3346, %v3640, %v4062
    %4064 = vrot.lane.b32.xlu0 %v4058, 64
    %v4065 = vpop.permute.xlu0 %4064
    %4066 = vrot.lane.b32.xlu0 %v4063, 64
    %v4067 = vpop.permute.xlu0 %4066
    %4070 = vrot.lane.b32.xlu0 %v4050, 64
    %v4071 = vpop.permute.xlu0 %4070
    %4072 = vrot.lane.b32.xlu0 %v4055, 64
    %v4073 = vpop.permute.xlu0 %4072
    %v4078 = vsel %vm3436, %v4022, %v4037
    %v4079 = vsel %vm3436, %v4027, %v4039
    %v4080 = vsel %vm3436, %v4043, %v4030
    %v4081 = vsel %vm3436, %v4045, %v4035
    %v4082 = vsel %vm3436, %v4050, %v4065
    %v4083 = vsel %vm3436, %v4055, %v4067
    %v4084 = vsel %vm3436, %v4071, %v4058
    %v4085 = vsel %vm3436, %v4073, %v4063
    %v4086 = vadd.f32 %v4078, %v3445
    %v4087 = vadd.f32 %v4080, %v3449
    %v4088 = vadd.f32 %v4082, %v3453
    %v4089 = vadd.f32 %v4084, %v3457
    %v4090 = vadd.f32 %v4079, %v3445
    %v4091 = vadd.f32 %v4081, %v3449
    %v4092 = vadd.f32 %v4083, %v3453
    %v4093 = vadd.f32 %v4085, %v3457
    %vm4102 = vcmask 1041408
    %v4103 = vrot.slane %v4086, 6
    %v4104 = vrot.slane %v4090, 6
    %v4105 = vsel %vm4102, %v4103, %v4104
    %v4106 = vrot.slane %v4087, 6
    %v4107 = vrot.slane %v4091, 6
    %v4108 = vsel %vm4102, %v4106, %v4107
    %v4109 = vrot.slane %v4088, 6
    %v4110 = vrot.slane %v4092, 6
    %v4111 = vsel %vm4102, %v4109, %v4110
    %v4112 = vrot.slane %v4089, 6
    %v4113 = vrot.slane %v4093, 6
    %v4114 = vsel %vm4102, %v4112, %v4113
    %s4119 = scalar_lea.vmem [#allocation4], 192
    %4120 = vst [vmem:[%s4119] sm:$0xff] %v4105
    %4121 = vst [vmem:[%s4119 + $0x8] sm:$0xff] %v4108
    %4122 = vst [vmem:[%s4119 + $0x10] sm:$0xff] %v4111
    %4123 = vst [vmem:[%s4119 + $0x18] sm:$0xff] %v4114
    %v4124 = vsel %vm3334, %v3336, %v3333
    %v4125 = vsel %vm3337, %v3339, %v4124
    %v4126 = vsel %vm3340, %v3342, %v4125
    %v4127 = vsel %vm3343, %v3345, %v4126
    %v4128 = vsel %vm3346, %v3348, %v4127
    %v4129 = vsel %vm3349, %v3351, %v4128
    %v4132 = vsel %vm3334, %v3712, %v3260
    %v4133 = vsel %vm3337, %v3714, %v4132
    %v4134 = vsel %vm3340, %v3716, %v4133
    %v4135 = vsel %vm3343, %v3718, %v4134
    %v4136 = vsel %vm3346, %v3719, %v4135
    %v4137 = vsel %vm3349, %v3721, %v4136
    %4138 = vrot.lane.b32.xlu0 %v3710, 64
    %v4139 = vpop.permute.xlu0 %4138
    %4140 = vrot.lane.b32.xlu0 %v4137, 64
    %v4141 = vpop.permute.xlu0 %4140
    %4144 = vrot.lane.b32.xlu0 %v1706, 64
    %v4145 = vpop.permute.xlu0 %4144
    %4146 = vrot.lane.b32.xlu0 %v4129, 64
    %v4147 = vpop.permute.xlu0 %4146
    %v4152 = vsel %vm3334, %v3394, %v3392
    %v4153 = vsel %vm3337, %v3396, %v4152
    %v4154 = vsel %vm3340, %v3398, %v4153
    %v4155 = vsel %vm3343, %v3400, %v4154
    %v4156 = vsel %vm3346, %v3402, %v4155
    %v4157 = vsel %vm3349, %v3404, %v4156
    %v4160 = vsel %vm3334, %v3747, %v3262
    %v4161 = vsel %vm3337, %v3749, %v4160
    %v4162 = vsel %vm3340, %v3751, %v4161
    %v4163 = vsel %vm3343, %v3753, %v4162
    %v4164 = vsel %vm3346, %v3754, %v4163
    %v4165 = vsel %vm3349, %v3756, %v4164
    %4166 = vrot.lane.b32.xlu0 %v3745, 64
    %v4167 = vpop.permute.xlu0 %4166
    %4168 = vrot.lane.b32.xlu0 %v4165, 64
    %v4169 = vpop.permute.xlu0 %4168
    %4172 = vrot.lane.b32.xlu0 %v1708, 64
    %v4173 = vpop.permute.xlu0 %4172
    %4174 = vrot.lane.b32.xlu0 %v4157, 64
    %v4175 = vpop.permute.xlu0 %4174
    %v4180 = vsel %vm3436, %v1706, %v4139
    %v4181 = vsel %vm3436, %v4129, %v4141
    %v4182 = vsel %vm3436, %v4145, %v3710
    %v4183 = vsel %vm3436, %v4147, %v4137
    %v4184 = vsel %vm3436, %v1708, %v4167
    %v4185 = vsel %vm3436, %v4157, %v4169
    %v4186 = vsel %vm3436, %v4173, %v3745
    %v4187 = vsel %vm3436, %v4175, %v4165
    %v4188 = vadd.f32 %v4180, %v3445
    %v4189 = vadd.f32 %v4182, %v3449
    %v4190 = vadd.f32 %v4184, %v3453
    %v4191 = vadd.f32 %v4186, %v3457
    %v4192 = vadd.f32 %v4181, %v3445
    %v4193 = vadd.f32 %v4183, %v3449
    %v4194 = vadd.f32 %v4185, %v3453
    %v4195 = vadd.f32 %v4187, %v3457
    %vm4204 = vcmask 1040384
    %v4205 = vrot.slane %v4188, 7
    %v4206 = vrot.slane %v4192, 7
    %v4207 = vsel %vm4204, %v4205, %v4206
    %v4208 = vrot.slane %v4189, 7
    %v4209 = vrot.slane %v4193, 7
    %v4210 = vsel %vm4204, %v4208, %v4209
    %v4211 = vrot.slane %v4190, 7
    %v4212 = vrot.slane %v4194, 7
    %v4213 = vsel %vm4204, %v4211, %v4212
    %v4214 = vrot.slane %v4191, 7
    %v4215 = vrot.slane %v4195, 7
    %v4216 = vsel %vm4204, %v4214, %v4215
    %s4221 = scalar_lea.vmem [#allocation4], 224
    %4222 = vst [vmem:[%s4221] sm:$0xff] %v4207
    %4223 = vst [vmem:[%s4221 + $0x8] sm:$0xff] %v4210
    %4224 = vst [vmem:[%s4221 + $0x10] sm:$0xff] %v4213
    %4225 = vst [vmem:[%s4221 + $0x18] sm:$0xff] %v4216
    %v4234 = vrot.slane %v1720, 7
    %v4235 = vsel %vm3334, %v4234, %v1710
    %v4236 = vrot.slane %v1730, 6
    %v4237 = vsel %vm3337, %v4236, %v4235
    %v4238 = vrot.slane %v1740, 5
    %v4239 = vsel %vm3340, %v4238, %v4237
    %v4240 = vrot.slane %v1750, 4
    %v4241 = vsel %vm3343, %v4240, %v4239
    %v4242 = vrot.slane %v1760, 3
    %v4243 = vsel %vm3346, %v4242, %v4241
    %v4244 = vrot.slane %v1770, 2
    %v4245 = vsel %vm3349, %v4244, %v4243
    %v4246 = vrot.slane %v1780, 1
    %v4247 = vsel %vm3352, %v4246, %v4245
    %v4257 = vrot.slane %v3246, 7
    %v4258 = vrot.slane %v3256, 6
    %v4259 = vsel %vm3334, %v4258, %v4257
    %v4260 = vrot.slane %v3266, 5
    %v4261 = vsel %vm3337, %v4260, %v4259
    %v4262 = vrot.slane %v3276, 4
    %v4263 = vsel %vm3340, %v4262, %v4261
    %v4264 = vrot.slane %v3286, 3
    %v4265 = vsel %vm3343, %v4264, %v4263
    %v4266 = vrot.slane %v3296, 2
    %v4267 = vsel %vm3346, %v4266, %v4265
    %v4268 = vrot.slane %v3306, 1
    %v4269 = vsel %vm3349, %v4268, %v4267
    %v4270 = vsel %vm3352, %v3316, %v4269
    %4271 = vrot.lane.b32.xlu0 %v4270, 64
    %v4272 = vpop.permute.xlu0 %4271
    %4274 = vrot.lane.b32.xlu0 %v4247, 64
    %v4275 = vpop.permute.xlu0 %4274
    %v4286 = vrot.slane %v1722, 7
    %v4287 = vsel %vm3334, %v4286, %v1712
    %v4288 = vrot.slane %v1732, 6
    %v4289 = vsel %vm3337, %v4288, %v4287
    %v4290 = vrot.slane %v1742, 5
    %v4291 = vsel %vm3340, %v4290, %v4289
    %v4292 = vrot.slane %v1752, 4
    %v4293 = vsel %vm3343, %v4292, %v4291
    %v4294 = vrot.slane %v1762, 3
    %v4295 = vsel %vm3346, %v4294, %v4293
    %v4296 = vrot.slane %v1772, 2
    %v4297 = vsel %vm3349, %v4296, %v4295
    %v4298 = vrot.slane %v1782, 1
    %v4299 = vsel %vm3352, %v4298, %v4297
    %v4309 = vrot.slane %v3248, 7
    %v4310 = vrot.slane %v3258, 6
    %v4311 = vsel %vm3334, %v4310, %v4309
    %v4312 = vrot.slane %v3268, 5
    %v4313 = vsel %vm3337, %v4312, %v4311
    %v4314 = vrot.slane %v3278, 4
    %v4315 = vsel %vm3340, %v4314, %v4313
    %v4316 = vrot.slane %v3288, 3
    %v4317 = vsel %vm3343, %v4316, %v4315
    %v4318 = vrot.slane %v3298, 2
    %v4319 = vsel %vm3346, %v4318, %v4317
    %v4320 = vrot.slane %v3308, 1
    %v4321 = vsel %vm3349, %v4320, %v4319
    %v4322 = vsel %vm3352, %v3318, %v4321
    %4323 = vrot.lane.b32.xlu0 %v4322, 64
    %v4324 = vpop.permute.xlu0 %4323
    %4326 = vrot.lane.b32.xlu0 %v4299, 64
    %v4327 = vpop.permute.xlu0 %4326
    %v4330 = vsel %vm3436, %v4247, %v4272
    %v4331 = vsel %vm3436, %v4275, %v4270
    %v4332 = vsel %vm3436, %v4299, %v4324
    %v4333 = vsel %vm3436, %v4327, %v4322
    %v4334 = vadd.f32 %v4330, %v3445
    %v4335 = vadd.f32 %v4331, %v3449
    %v4336 = vadd.f32 %v4332, %v3453
    %v4337 = vadd.f32 %v4333, %v3457
    %s4338 = scalar_lea.vmem [#allocation4], 256
    %4339 = vst [vmem:[%s4338] sm:$0xff] %v4334
    %4340 = vst [vmem:[%s4338 + $0x8] sm:$0xff] %v4335
    %4341 = vst [vmem:[%s4338 + $0x10] sm:$0xff] %v4336
    %4342 = vst [vmem:[%s4338 + $0x18] sm:$0xff] %v4337
    %v4343 = vsel %vm3337, %v4234, %v1710
    %v4344 = vsel %vm3340, %v4236, %v4343
    %v4345 = vsel %vm3343, %v4238, %v4344
    %v4346 = vsel %vm3346, %v4240, %v4345
    %v4347 = vsel %vm3349, %v4242, %v4346
    %v4348 = vsel %vm3352, %v4244, %v4347
    %v4351 = vrot.slane %v3246, 5
    %v4352 = vrot.slane %v3256, 4
    %v4353 = vsel %vm3337, %v4352, %v4351
    %v4354 = vrot.slane %v3266, 3
    %v4355 = vsel %vm3340, %v4354, %v4353
    %v4356 = vrot.slane %v3276, 2
    %v4357 = vsel %vm3343, %v4356, %v4355
    %v4358 = vrot.slane %v3286, 1
    %v4359 = vsel %vm3346, %v4358, %v4357
    %v4360 = vsel %vm3349, %v3296, %v4359
    %v4361 = vrot.slane %v3306, 7
    %v4362 = vsel %vm3352, %v4361, %v4360
    %v4363 = vrot.slane %v3316, 6
    %4364 = vrot.lane.b32.xlu0 %v4362, 64
    %v4365 = vpop.permute.xlu0 %4364
    %4366 = vrot.lane.b32.xlu0 %v4363, 64
    %v4367 = vpop.permute.xlu0 %4366
    %4370 = vrot.lane.b32.xlu0 %v4348, 64
    %v4371 = vpop.permute.xlu0 %4370
    %4372 = vrot.lane.b32.xlu0 %v4246, 64
    %v4373 = vpop.permute.xlu0 %4372
    %v4378 = vsel %vm3337, %v4286, %v1712
    %v4379 = vsel %vm3340, %v4288, %v4378
    %v4380 = vsel %vm3343, %v4290, %v4379
    %v4381 = vsel %vm3346, %v4292, %v4380
    %v4382 = vsel %vm3349, %v4294, %v4381
    %v4383 = vsel %vm3352, %v4296, %v4382
    %v4386 = vrot.slane %v3248, 5
    %v4387 = vrot.slane %v3258, 4
    %v4388 = vsel %vm3337, %v4387, %v4386
    %v4389 = vrot.slane %v3268, 3
    %v4390 = vsel %vm3340, %v4389, %v4388
    %v4391 = vrot.slane %v3278, 2
    %v4392 = vsel %vm3343, %v4391, %v4390
    %v4393 = vrot.slane %v3288, 1
    %v4394 = vsel %vm3346, %v4393, %v4392
    %v4395 = vsel %vm3349, %v3298, %v4394
    %v4396 = vrot.slane %v3308, 7
    %v4397 = vsel %vm3352, %v4396, %v4395
    %v4398 = vrot.slane %v3318, 6
    %4399 = vrot.lane.b32.xlu0 %v4397, 64
    %v4400 = vpop.permute.xlu0 %4399
    %4401 = vrot.lane.b32.xlu0 %v4398, 64
    %v4402 = vpop.permute.xlu0 %4401
    %4405 = vrot.lane.b32.xlu0 %v4383, 64
    %v4406 = vpop.permute.xlu0 %4405
    %4407 = vrot.lane.b32.xlu0 %v4298, 64
    %v4408 = vpop.permute.xlu0 %4407
    %v4413 = vsel %vm3436, %v4348, %v4365
    %v4414 = vsel %vm3436, %v4246, %v4367
    %v4415 = vsel %vm3436, %v4371, %v4362
    %v4416 = vsel %vm3436, %v4373, %v4363
    %v4417 = vsel %vm3436, %v4383, %v4400
    %v4418 = vsel %vm3436, %v4298, %v4402
    %v4419 = vsel %vm3436, %v4406, %v4397
    %v4420 = vsel %vm3436, %v4408, %v4398
    %v4421 = vadd.f32 %v4413, %v3445
    %v4422 = vadd.f32 %v4415, %v3449
    %v4423 = vadd.f32 %v4417, %v3453
    %v4424 = vadd.f32 %v4419, %v3457
    %v4425 = vadd.f32 %v4414, %v3445
    %v4426 = vadd.f32 %v4416, %v3449
    %v4427 = vadd.f32 %v4418, %v3453
    %v4428 = vadd.f32 %v4420, %v3457
    %v4437 = vrot.slane %v4421, 1
    %v4438 = vrot.slane %v4425, 1
    %v4439 = vsel %vm3564, %v4437, %v4438
    %v4440 = vrot.slane %v4422, 1
    %v4441 = vrot.slane %v4426, 1
    %v4442 = vsel %vm3564, %v4440, %v4441
    %v4443 = vrot.slane %v4423, 1
    %v4444 = vrot.slane %v4427, 1
    %v4445 = vsel %vm3564, %v4443, %v4444
    %v4446 = vrot.slane %v4424, 1
    %v4447 = vrot.slane %v4428, 1
    %v4448 = vsel %vm3564, %v4446, %v4447
    %s4453 = scalar_lea.vmem [#allocation4], 288
    %4454 = vst [vmem:[%s4453] sm:$0xff] %v4439
    %4455 = vst [vmem:[%s4453 + $0x8] sm:$0xff] %v4442
    %4456 = vst [vmem:[%s4453 + $0x10] sm:$0xff] %v4445
    %4457 = vst [vmem:[%s4453 + $0x18] sm:$0xff] %v4448
    %v4458 = vsel %vm3340, %v4234, %v1710
    %v4459 = vsel %vm3343, %v4236, %v4458
    %v4460 = vsel %vm3346, %v4238, %v4459
    %v4461 = vsel %vm3349, %v4240, %v4460
    %v4462 = vsel %vm3352, %v4242, %v4461
    %v4463 = vsel %vm3334, %v4246, %v4244
    %v4466 = vrot.slane %v3246, 3
    %v4467 = vrot.slane %v3256, 2
    %v4468 = vsel %vm3340, %v4467, %v4466
    %v4469 = vrot.slane %v3266, 1
    %v4470 = vsel %vm3343, %v4469, %v4468
    %v4471 = vsel %vm3346, %v3276, %v4470
    %v4472 = vrot.slane %v3286, 7
    %v4473 = vsel %vm3349, %v4472, %v4471
    %v4474 = vrot.slane %v3296, 6
    %v4475 = vsel %vm3352, %v4474, %v4473
    %v4476 = vrot.slane %v3306, 5
    %v4477 = vrot.slane %v3316, 4
    %v4478 = vsel %vm3334, %v4477, %v4476
    %4479 = vrot.lane.b32.xlu0 %v4475, 64
    %v4480 = vpop.permute.xlu0 %4479
    %4481 = vrot.lane.b32.xlu0 %v4478, 64
    %v4482 = vpop.permute.xlu0 %4481
    %4485 = vrot.lane.b32.xlu0 %v4462, 64
    %v4486 = vpop.permute.xlu0 %4485
    %4487 = vrot.lane.b32.xlu0 %v4463, 64
    %v4488 = vpop.permute.xlu0 %4487
    %v4493 = vsel %vm3340, %v4286, %v1712
    %v4494 = vsel %vm3343, %v4288, %v4493
    %v4495 = vsel %vm3346, %v4290, %v4494
    %v4496 = vsel %vm3349, %v4292, %v4495
    %v4497 = vsel %vm3352, %v4294, %v4496
    %v4498 = vsel %vm3334, %v4298, %v4296
    %v4501 = vrot.slane %v3248, 3
    %v4502 = vrot.slane %v3258, 2
    %v4503 = vsel %vm3340, %v4502, %v4501
    %v4504 = vrot.slane %v3268, 1
    %v4505 = vsel %vm3343, %v4504, %v4503
    %v4506 = vsel %vm3346, %v3278, %v4505
    %v4507 = vrot.slane %v3288, 7
    %v4508 = vsel %vm3349, %v4507, %v4506
    %v4509 = vrot.slane %v3298, 6
    %v4510 = vsel %vm3352, %v4509, %v4508
    %v4511 = vrot.slane %v3308, 5
    %v4512 = vrot.slane %v3318, 4
    %v4513 = vsel %vm3334, %v4512, %v4511
    %4514 = vrot.lane.b32.xlu0 %v4510, 64
    %v4515 = vpop.permute.xlu0 %4514
    %4516 = vrot.lane.b32.xlu0 %v4513, 64
    %v4517 = vpop.permute.xlu0 %4516
    %4520 = vrot.lane.b32.xlu0 %v4497, 64
    %v4521 = vpop.permute.xlu0 %4520
    %4522 = vrot.lane.b32.xlu0 %v4498, 64
    %v4523 = vpop.permute.xlu0 %4522
    %v4528 = vsel %vm3436, %v4462, %v4480
    %v4529 = vsel %vm3436, %v4463, %v4482
    %v4530 = vsel %vm3436, %v4486, %v4475
    %v4531 = vsel %vm3436, %v4488, %v4478
    %v4532 = vsel %vm3436, %v4497, %v4515
    %v4533 = vsel %vm3436, %v4498, %v4517
    %v4534 = vsel %vm3436, %v4521, %v4510
    %v4535 = vsel %vm3436, %v4523, %v4513
    %v4536 = vadd.f32 %v4528, %v3445
    %v4537 = vadd.f32 %v4530, %v3449
    %v4538 = vadd.f32 %v4532, %v3453
    %v4539 = vadd.f32 %v4534, %v3457
    %v4540 = vadd.f32 %v4529, %v3445
    %v4541 = vadd.f32 %v4531, %v3449
    %v4542 = vadd.f32 %v4533, %v3453
    %v4543 = vadd.f32 %v4535, %v3457
    %v4552 = vrot.slane %v4536, 2
    %v4553 = vrot.slane %v4540, 2
    %v4554 = vsel %vm3680, %v4552, %v4553
    %v4555 = vrot.slane %v4537, 2
    %v4556 = vrot.slane %v4541, 2
    %v4557 = vsel %vm3680, %v4555, %v4556
    %v4558 = vrot.slane %v4538, 2
    %v4559 = vrot.slane %v4542, 2
    %v4560 = vsel %vm3680, %v4558, %v4559
    %v4561 = vrot.slane %v4539, 2
    %v4562 = vrot.slane %v4543, 2
    %v4563 = vsel %vm3680, %v4561, %v4562
    %s4568 = scalar_lea.vmem [#allocation4], 320
    %4569 = vst [vmem:[%s4568] sm:$0xff] %v4554
    %4570 = vst [vmem:[%s4568 + $0x8] sm:$0xff] %v4557
    %4571 = vst [vmem:[%s4568 + $0x10] sm:$0xff] %v4560
    %4572 = vst [vmem:[%s4568 + $0x18] sm:$0xff] %v4563
    %v4573 = vsel %vm3343, %v4234, %v1710
    %v4574 = vsel %vm3346, %v4236, %v4573
    %v4575 = vsel %vm3349, %v4238, %v4574
    %v4576 = vsel %vm3352, %v4240, %v4575
    %v4577 = vsel %vm3334, %v4244, %v4242
    %v4578 = vsel %vm3337, %v4246, %v4577
    %v4581 = vrot.slane %v3246, 1
    %v4582 = vsel %vm3343, %v3256, %v4581
    %v4583 = vrot.slane %v3266, 7
    %v4584 = vsel %vm3346, %v4583, %v4582
    %v4585 = vrot.slane %v3276, 6
    %v4586 = vsel %vm3349, %v4585, %v4584
    %v4587 = vrot.slane %v3286, 5
    %v4588 = vsel %vm3352, %v4587, %v4586
    %v4589 = vrot.slane %v3296, 4
    %v4590 = vrot.slane %v3306, 3
    %v4591 = vsel %vm3334, %v4590, %v4589
    %v4592 = vrot.slane %v3316, 2
    %v4593 = vsel %vm3337, %v4592, %v4591
    %4594 = vrot.lane.b32.xlu0 %v4588, 64
    %v4595 = vpop.permute.xlu0 %4594
    %4596 = vrot.lane.b32.xlu0 %v4593, 64
    %v4597 = vpop.permute.xlu0 %4596
    %4600 = vrot.lane.b32.xlu0 %v4576, 64
    %v4601 = vpop.permute.xlu0 %4600
    %4602 = vrot.lane.b32.xlu0 %v4578, 64
    %v4603 = vpop.permute.xlu0 %4602
    %v4608 = vsel %vm3343, %v4286, %v1712
    %v4609 = vsel %vm3346, %v4288, %v4608
    %v4610 = vsel %vm3349, %v4290, %v4609
    %v4611 = vsel %vm3352, %v4292, %v4610
    %v4612 = vsel %vm3334, %v4296, %v4294
    %v4613 = vsel %vm3337, %v4298, %v4612
    %v4616 = vrot.slane %v3248, 1
    %v4617 = vsel %vm3343, %v3258, %v4616
    %v4618 = vrot.slane %v3268, 7
    %v4619 = vsel %vm3346, %v4618, %v4617
    %v4620 = vrot.slane %v3278, 6
    %v4621 = vsel %vm3349, %v4620, %v4619
    %v4622 = vrot.slane %v3288, 5
    %v4623 = vsel %vm3352, %v4622, %v4621
    %v4624 = vrot.slane %v3298, 4
    %v4625 = vrot.slane %v3308, 3
    %v4626 = vsel %vm3334, %v4625, %v4624
    %v4627 = vrot.slane %v3318, 2
    %v4628 = vsel %vm3337, %v4627, %v4626
    %4629 = vrot.lane.b32.xlu0 %v4623, 64
    %v4630 = vpop.permute.xlu0 %4629
    %4631 = vrot.lane.b32.xlu0 %v4628, 64
    %v4632 = vpop.permute.xlu0 %4631
    %4635 = vrot.lane.b32.xlu0 %v4611, 64
    %v4636 = vpop.permute.xlu0 %4635
    %4637 = vrot.lane.b32.xlu0 %v4613, 64
    %v4638 = vpop.permute.xlu0 %4637
    %v4643 = vsel %vm3436, %v4576, %v4595
    %v4644 = vsel %vm3436, %v4578, %v4597
    %v4645 = vsel %vm3436, %v4601, %v4588
    %v4646 = vsel %vm3436, %v4603, %v4593
    %v4647 = vsel %vm3436, %v4611, %v4630
    %v4648 = vsel %vm3436, %v4613, %v4632
    %v4649 = vsel %vm3436, %v4636, %v4623
    %v4650 = vsel %vm3436, %v4638, %v4628
    %v4651 = vadd.f32 %v4643, %v3445
    %v4652 = vadd.f32 %v4645, %v3449
    %v4653 = vadd.f32 %v4647, %v3453
    %v4654 = vadd.f32 %v4649, %v3457
    %v4655 = vadd.f32 %v4644, %v3445
    %v4656 = vadd.f32 %v4646, %v3449
    %v4657 = vadd.f32 %v4648, %v3453
    %v4658 = vadd.f32 %v4650, %v3457
    %v4667 = vrot.slane %v4651, 3
    %v4668 = vrot.slane %v4655, 3
    %v4669 = vsel %vm3796, %v4667, %v4668
    %v4670 = vrot.slane %v4652, 3
    %v4671 = vrot.slane %v4656, 3
    %v4672 = vsel %vm3796, %v4670, %v4671
    %v4673 = vrot.slane %v4653, 3
    %v4674 = vrot.slane %v4657, 3
    %v4675 = vsel %vm3796, %v4673, %v4674
    %v4676 = vrot.slane %v4654, 3
    %v4677 = vrot.slane %v4658, 3
    %v4678 = vsel %vm3796, %v4676, %v4677
    %s4683 = scalar_lea.vmem [#allocation4], 352
    %4684 = vst [vmem:[%s4683] sm:$0xff] %v4669
    %4685 = vst [vmem:[%s4683 + $0x8] sm:$0xff] %v4672
    %4686 = vst [vmem:[%s4683 + $0x10] sm:$0xff] %v4675
    %4687 = vst [vmem:[%s4683 + $0x18] sm:$0xff] %v4678
    %v4688 = vsel %vm3346, %v4234, %v1710
    %v4689 = vsel %vm3349, %v4236, %v4688
    %v4690 = vsel %vm3352, %v4238, %v4689
    %v4691 = vsel %vm3334, %v4242, %v4240
    %v4692 = vsel %vm3337, %v4244, %v4691
    %v4693 = vsel %vm3340, %v4246, %v4692
    %v4696 = vsel %vm3346, %v4258, %v4257
    %v4697 = vsel %vm3349, %v4260, %v4696
    %v4698 = vsel %vm3352, %v4262, %v4697
    %v4699 = vsel %vm3334, %v4266, %v4264
    %v4700 = vsel %vm3337, %v4268, %v4699
    %v4701 = vsel %vm3340, %v3316, %v4700
    %4702 = vrot.lane.b32.xlu0 %v4698, 64
    %v4703 = vpop.permute.xlu0 %4702
    %4704 = vrot.lane.b32.xlu0 %v4701, 64
    %v4705 = vpop.permute.xlu0 %4704
    %4708 = vrot.lane.b32.xlu0 %v4690, 64
    %v4709 = vpop.permute.xlu0 %4708
    %4710 = vrot.lane.b32.xlu0 %v4693, 64
    %v4711 = vpop.permute.xlu0 %4710
    %v4716 = vsel %vm3346, %v4286, %v1712
    %v4717 = vsel %vm3349, %v4288, %v4716
    %v4718 = vsel %vm3352, %v4290, %v4717
    %v4719 = vsel %vm3334, %v4294, %v4292
    %v4720 = vsel %vm3337, %v4296, %v4719
    %v4721 = vsel %vm3340, %v4298, %v4720
    %v4724 = vsel %vm3346, %v4310, %v4309
    %v4725 = vsel %vm3349, %v4312, %v4724
    %v4726 = vsel %vm3352, %v4314, %v4725
    %v4727 = vsel %vm3334, %v4318, %v4316
    %v4728 = vsel %vm3337, %v4320, %v4727
    %v4729 = vsel %vm3340, %v3318, %v4728
    %4730 = vrot.lane.b32.xlu0 %v4726, 64
    %v4731 = vpop.permute.xlu0 %4730
    %4732 = vrot.lane.b32.xlu0 %v4729, 64
    %v4733 = vpop.permute.xlu0 %4732
    %4736 = vrot.lane.b32.xlu0 %v4718, 64
    %v4737 = vpop.permute.xlu0 %4736
    %4738 = vrot.lane.b32.xlu0 %v4721, 64
    %v4739 = vpop.permute.xlu0 %4738
    %v4744 = vsel %vm3436, %v4690, %v4703
    %v4745 = vsel %vm3436, %v4693, %v4705
    %v4746 = vsel %vm3436, %v4709, %v4698
    %v4747 = vsel %vm3436, %v4711, %v4701
    %v4748 = vsel %vm3436, %v4718, %v4731
    %v4749 = vsel %vm3436, %v4721, %v4733
    %v4750 = vsel %vm3436, %v4737, %v4726
    %v4751 = vsel %vm3436, %v4739, %v4729
    %v4752 = vadd.f32 %v4744, %v3445
    %v4753 = vadd.f32 %v4746, %v3449
    %v4754 = vadd.f32 %v4748, %v3453
    %v4755 = vadd.f32 %v4750, %v3457
    %v4756 = vadd.f32 %v4745, %v3445
    %v4757 = vadd.f32 %v4747, %v3449
    %v4758 = vadd.f32 %v4749, %v3453
    %v4759 = vadd.f32 %v4751, %v3457
    %v4768 = vrot.slane %v4752, 4
    %v4769 = vrot.slane %v4756, 4
    %v4770 = vsel %vm3898, %v4768, %v4769
    %v4771 = vrot.slane %v4753, 4
    %v4772 = vrot.slane %v4757, 4
    %v4773 = vsel %vm3898, %v4771, %v4772
    %v4774 = vrot.slane %v4754, 4
    %v4775 = vrot.slane %v4758, 4
    %v4776 = vsel %vm3898, %v4774, %v4775
    %v4777 = vrot.slane %v4755, 4
    %v4778 = vrot.slane %v4759, 4
    %v4779 = vsel %vm3898, %v4777, %v4778
    %s4784 = scalar_lea.vmem [#allocation4], 384
    %4785 = vst [vmem:[%s4784] sm:$0xff] %v4770
    %4786 = vst [vmem:[%s4784 + $0x8] sm:$0xff] %v4773
    %4787 = vst [vmem:[%s4784 + $0x10] sm:$0xff] %v4776
    %4788 = vst [vmem:[%s4784 + $0x18] sm:$0xff] %v4779
    %v4789 = vsel %vm3349, %v4234, %v1710
    %v4790 = vsel %vm3352, %v4236, %v4789
    %v4791 = vsel %vm3334, %v4240, %v4238
    %v4792 = vsel %vm3337, %v4242, %v4791
    %v4793 = vsel %vm3340, %v4244, %v4792
    %v4794 = vsel %vm3343, %v4246, %v4793
    %v4797 = vsel %vm3349, %v4352, %v4351
    %v4798 = vsel %vm3352, %v4354, %v4797
    %v4799 = vsel %vm3334, %v4358, %v4356
    %v4800 = vsel %vm3337, %v3296, %v4799
    %v4801 = vsel %vm3340, %v4361, %v4800
    %v4802 = vsel %vm3343, %v4363, %v4801
    %4803 = vrot.lane.b32.xlu0 %v4798, 64
    %v4804 = vpop.permute.xlu0 %4803
    %4805 = vrot.lane.b32.xlu0 %v4802, 64
    %v4806 = vpop.permute.xlu0 %4805
    %4809 = vrot.lane.b32.xlu0 %v4790, 64
    %v4810 = vpop.permute.xlu0 %4809
    %4811 = vrot.lane.b32.xlu0 %v4794, 64
    %v4812 = vpop.permute.xlu0 %4811
    %v4817 = vsel %vm3349, %v4286, %v1712
    %v4818 = vsel %vm3352, %v4288, %v4817
    %v4819 = vsel %vm3334, %v4292, %v4290
    %v4820 = vsel %vm3337, %v4294, %v4819
    %v4821 = vsel %vm3340, %v4296, %v4820
    %v4822 = vsel %vm3343, %v4298, %v4821
    %v4825 = vsel %vm3349, %v4387, %v4386
    %v4826 = vsel %vm3352, %v4389, %v4825
    %v4827 = vsel %vm3334, %v4393, %v4391
    %v4828 = vsel %vm3337, %v3298, %v4827
    %v4829 = vsel %vm3340, %v4396, %v4828
    %v4830 = vsel %vm3343, %v4398, %v4829
    %4831 = vrot.lane.b32.xlu0 %v4826, 64
    %v4832 = vpop.permute.xlu0 %4831
    %4833 = vrot.lane.b32.xlu0 %v4830, 64
    %v4834 = vpop.permute.xlu0 %4833
    %4837 = vrot.lane.b32.xlu0 %v4818, 64
    %v4838 = vpop.permute.xlu0 %4837
    %4839 = vrot.lane.b32.xlu0 %v4822, 64
    %v4840 = vpop.permute.xlu0 %4839
    %v4845 = vsel %vm3436, %v4790, %v4804
    %v4846 = vsel %vm3436, %v4794, %v4806
    %v4847 = vsel %vm3436, %v4810, %v4798
    %v4848 = vsel %vm3436, %v4812, %v4802
    %v4849 = vsel %vm3436, %v4818, %v4832
    %v4850 = vsel %vm3436, %v4822, %v4834
    %v4851 = vsel %vm3436, %v4838, %v4826
    %v4852 = vsel %vm3436, %v4840, %v4830
    %v4853 = vadd.f32 %v4845, %v3445
    %v4854 = vadd.f32 %v4847, %v3449
    %v4855 = vadd.f32 %v4849, %v3453
    %v4856 = vadd.f32 %v4851, %v3457
    %v4857 = vadd.f32 %v4846, %v3445
    %v4858 = vadd.f32 %v4848, %v3449
    %v4859 = vadd.f32 %v4850, %v3453
    %v4860 = vadd.f32 %v4852, %v3457
    %v4869 = vrot.slane %v4853, 5
    %v4870 = vrot.slane %v4857, 5
    %v4871 = vsel %vm4000, %v4869, %v4870
    %v4872 = vrot.slane %v4854, 5
    %v4873 = vrot.slane %v4858, 5
    %v4874 = vsel %vm4000, %v4872, %v4873
    %v4875 = vrot.slane %v4855, 5
    %v4876 = vrot.slane %v4859, 5
    %v4877 = vsel %vm4000, %v4875, %v4876
    %v4878 = vrot.slane %v4856, 5
    %v4879 = vrot.slane %v4860, 5
    %v4880 = vsel %vm4000, %v4878, %v4879
    %s4885 = scalar_lea.vmem [#allocation4], 416
    %4886 = vst [vmem:[%s4885] sm:$0xff] %v4871
    %4887 = vst [vmem:[%s4885 + $0x8] sm:$0xff] %v4874
    %4888 = vst [vmem:[%s4885 + $0x10] sm:$0xff] %v4877
    %4889 = vst [vmem:[%s4885 + $0x18] sm:$0xff] %v4880
    %v4890 = vsel %vm3352, %v4234, %v1710
    %v4891 = vsel %vm3334, %v4238, %v4236
    %v4892 = vsel %vm3337, %v4240, %v4891
    %v4893 = vsel %vm3340, %v4242, %v4892
    %v4894 = vsel %vm3343, %v4244, %v4893
    %v4895 = vsel %vm3346, %v4246, %v4894
    %v4898 = vsel %vm3352, %v4467, %v4466
    %v4899 = vsel %vm3334, %v3276, %v4469
    %v4900 = vsel %vm3337, %v4472, %v4899
    %v4901 = vsel %vm3340, %v4474, %v4900
    %v4902 = vsel %vm3343, %v4476, %v4901
    %v4903 = vsel %vm3346, %v4477, %v4902
    %4904 = vrot.lane.b32.xlu0 %v4898, 64
    %v4905 = vpop.permute.xlu0 %4904
    %4906 = vrot.lane.b32.xlu0 %v4903, 64
    %v4907 = vpop.permute.xlu0 %4906
    %4910 = vrot.lane.b32.xlu0 %v4890, 64
    %v4911 = vpop.permute.xlu0 %4910
    %4912 = vrot.lane.b32.xlu0 %v4895, 64
    %v4913 = vpop.permute.xlu0 %4912
    %v4918 = vsel %vm3352, %v4286, %v1712
    %v4919 = vsel %vm3334, %v4290, %v4288
    %v4920 = vsel %vm3337, %v4292, %v4919
    %v4921 = vsel %vm3340, %v4294, %v4920
    %v4922 = vsel %vm3343, %v4296, %v4921
    %v4923 = vsel %vm3346, %v4298, %v4922
    %v4926 = vsel %vm3352, %v4502, %v4501
    %v4927 = vsel %vm3334, %v3278, %v4504
    %v4928 = vsel %vm3337, %v4507, %v4927
    %v4929 = vsel %vm3340, %v4509, %v4928
    %v4930 = vsel %vm3343, %v4511, %v4929
    %v4931 = vsel %vm3346, %v4512, %v4930
    %4932 = vrot.lane.b32.xlu0 %v4926, 64
    %v4933 = vpop.permute.xlu0 %4932
    %4934 = vrot.lane.b32.xlu0 %v4931, 64
    %v4935 = vpop.permute.xlu0 %4934
    %4938 = vrot.lane.b32.xlu0 %v4918, 64
    %v4939 = vpop.permute.xlu0 %4938
    %4940 = vrot.lane.b32.xlu0 %v4923, 64
    %v4941 = vpop.permute.xlu0 %4940
    %v4946 = vsel %vm3436, %v4890, %v4905
    %v4947 = vsel %vm3436, %v4895, %v4907
    %v4948 = vsel %vm3436, %v4911, %v4898
    %v4949 = vsel %vm3436, %v4913, %v4903
    %v4950 = vsel %vm3436, %v4918, %v4933
    %v4951 = vsel %vm3436, %v4923, %v4935
    %v4952 = vsel %vm3436, %v4939, %v4926
    %v4953 = vsel %vm3436, %v4941, %v4931
    %v4954 = vadd.f32 %v4946, %v3445
    %v4955 = vadd.f32 %v4948, %v3449
    %v4956 = vadd.f32 %v4950, %v3453
    %v4957 = vadd.f32 %v4952, %v3457
    %v4958 = vadd.f32 %v4947, %v3445
    %v4959 = vadd.f32 %v4949, %v3449
    %v4960 = vadd.f32 %v4951, %v3453
    %v4961 = vadd.f32 %v4953, %v3457
    %v4970 = vrot.slane %v4954, 6
    %v4971 = vrot.slane %v4958, 6
    %v4972 = vsel %vm4102, %v4970, %v4971
    %v4973 = vrot.slane %v4955, 6
    %v4974 = vrot.slane %v4959, 6
    %v4975 = vsel %vm4102, %v4973, %v4974
    %v4976 = vrot.slane %v4956, 6
    %v4977 = vrot.slane %v4960, 6
    %v4978 = vsel %vm4102, %v4976, %v4977
    %v4979 = vrot.slane %v4957, 6
    %v4980 = vrot.slane %v4961, 6
    %v4981 = vsel %vm4102, %v4979, %v4980
    %s4986 = scalar_lea.vmem [#allocation4], 448
    %4987 = vst [vmem:[%s4986] sm:$0xff] %v4972
    %4988 = vst [vmem:[%s4986 + $0x8] sm:$0xff] %v4975
    %4989 = vst [vmem:[%s4986 + $0x10] sm:$0xff] %v4978
    %4990 = vst [vmem:[%s4986 + $0x18] sm:$0xff] %v4981
    %v4991 = vsel %vm3334, %v4236, %v4234
    %v4992 = vsel %vm3337, %v4238, %v4991
    %v4993 = vsel %vm3340, %v4240, %v4992
    %v4994 = vsel %vm3343, %v4242, %v4993
    %v4995 = vsel %vm3346, %v4244, %v4994
    %v4996 = vsel %vm3349, %v4246, %v4995
    %v4999 = vsel %vm3334, %v4583, %v3256
    %v5000 = vsel %vm3337, %v4585, %v4999
    %v5001 = vsel %vm3340, %v4587, %v5000
    %v5002 = vsel %vm3343, %v4589, %v5001
    %v5003 = vsel %vm3346, %v4590, %v5002
    %v5004 = vsel %vm3349, %v4592, %v5003
    %5005 = vrot.lane.b32.xlu0 %v4581, 64
    %v5006 = vpop.permute.xlu0 %5005
    %5007 = vrot.lane.b32.xlu0 %v5004, 64
    %v5008 = vpop.permute.xlu0 %5007
    %5011 = vrot.lane.b32.xlu0 %v1710, 64
    %v5012 = vpop.permute.xlu0 %5011
    %5013 = vrot.lane.b32.xlu0 %v4996, 64
    %v5014 = vpop.permute.xlu0 %5013
    %v5019 = vsel %vm3334, %v4288, %v4286
    %v5020 = vsel %vm3337, %v4290, %v5019
    %v5021 = vsel %vm3340, %v4292, %v5020
    %v5022 = vsel %vm3343, %v4294, %v5021
    %v5023 = vsel %vm3346, %v4296, %v5022
    %v5024 = vsel %vm3349, %v4298, %v5023
    %v5027 = vsel %vm3334, %v4618, %v3258
    %v5028 = vsel %vm3337, %v4620, %v5027
    %v5029 = vsel %vm3340, %v4622, %v5028
    %v5030 = vsel %vm3343, %v4624, %v5029
    %v5031 = vsel %vm3346, %v4625, %v5030
    %v5032 = vsel %vm3349, %v4627, %v5031
    %5033 = vrot.lane.b32.xlu0 %v4616, 64
    %v5034 = vpop.permute.xlu0 %5033
    %5035 = vrot.lane.b32.xlu0 %v5032, 64
    %v5036 = vpop.permute.xlu0 %5035
    %5039 = vrot.lane.b32.xlu0 %v1712, 64
    %v5040 = vpop.permute.xlu0 %5039
    %5041 = vrot.lane.b32.xlu0 %v5024, 64
    %v5042 = vpop.permute.xlu0 %5041
    %v5047 = vsel %vm3436, %v1710, %v5006
    %v5048 = vsel %vm3436, %v4996, %v5008
    %v5049 = vsel %vm3436, %v5012, %v4581
    %v5050 = vsel %vm3436, %v5014, %v5004
    %v5051 = vsel %vm3436, %v1712, %v5034
    %v5052 = vsel %vm3436, %v5024, %v5036
    %v5053 = vsel %vm3436, %v5040, %v4616
    %v5054 = vsel %vm3436, %v5042, %v5032
    %v5055 = vadd.f32 %v5047, %v3445
    %v5056 = vadd.f32 %v5049, %v3449
    %v5057 = vadd.f32 %v5051, %v3453
    %v5058 = vadd.f32 %v5053, %v3457
    %v5059 = vadd.f32 %v5048, %v3445
    %v5060 = vadd.f32 %v5050, %v3449
    %v5061 = vadd.f32 %v5052, %v3453
    %v5062 = vadd.f32 %v5054, %v3457
    %v5071 = vrot.slane %v5055, 7
    %v5072 = vrot.slane %v5059, 7
    %v5073 = vsel %vm4204, %v5071, %v5072
    %v5074 = vrot.slane %v5056, 7
    %v5075 = vrot.slane %v5060, 7
    %v5076 = vsel %vm4204, %v5074, %v5075
    %v5077 = vrot.slane %v5057, 7
    %v5078 = vrot.slane %v5061, 7
    %v5079 = vsel %vm4204, %v5077, %v5078
    %v5080 = vrot.slane %v5058, 7
    %v5081 = vrot.slane %v5062, 7
    %v5082 = vsel %vm4204, %v5080, %v5081
    %s5087 = scalar_lea.vmem [#allocation4], 480
    %5088 = vst [vmem:[%s5087] sm:$0xff] %v5073
    %5089 = vst [vmem:[%s5087 + $0x8] sm:$0xff] %v5076
    %5090 = vst [vmem:[%s5087 + $0x10] sm:$0xff] %v5079
    %5091 = vst [vmem:[%s5087 + $0x18] sm:$0xff] %v5082
    %v5092 = vld [vmem:[#allocation13] sm:$0xff]
    %v5093 = vld [vmem:[#allocation13 + $0x8] sm:$0xff]
    %v5094 = vld [vmem:[#allocation13 + $0x10] sm:$0xff]
    %v5095 = vld [vmem:[#allocation13 + $0x18] sm:$0xff]
    %v5096 = vld [vmem:[#allocation13 + $0x20] sm:$0xff]
    %v5097 = vld [vmem:[#allocation13 + $0x28] sm:$0xff]
    %v5098 = vld [vmem:[#allocation13 + $0x30] sm:$0xff]
    %v5099 = vld [vmem:[#allocation13 + $0x38] sm:$0xff]
    %v5100 = vld [vmem:[#allocation13 + $0x40] sm:$0xff]
    %v5101 = vld [vmem:[#allocation13 + $0x48] sm:$0xff]
    %v5102 = vld [vmem:[#allocation13 + $0x50] sm:$0xff]
    %v5103 = vld [vmem:[#allocation13 + $0x58] sm:$0xff]
    %v5104 = vld [vmem:[#allocation13 + $0x60] sm:$0xff]
    %v5105 = vld [vmem:[#allocation13 + $0x68] sm:$0xff]
    %v5106 = vld [vmem:[#allocation13 + $0x70] sm:$0xff]
    %v5107 = vld [vmem:[#allocation13 + $0x78] sm:$0xff]
    %v5108 = vld [vmem:[#allocation13 + $0x80] sm:$0xff]
    %v5109 = vld [vmem:[#allocation13 + $0x88] sm:$0xff]
    %v5110 = vld [vmem:[#allocation13 + $0x90] sm:$0xff]
    %v5111 = vld [vmem:[#allocation13 + $0x98] sm:$0xff]
    %v5112 = vld [vmem:[#allocation13 + $0xa0] sm:$0xff]
    %v5113 = vld [vmem:[#allocation13 + $0xa8] sm:$0xff]
    %v5114 = vld [vmem:[#allocation13 + $0xb0] sm:$0xff]
    %v5115 = vld [vmem:[#allocation13 + $0xb8] sm:$0xff]
    %v5116 = vld [vmem:[#allocation13 + $0xc0] sm:$0xff]
    %v5117 = vld [vmem:[#allocation13 + $0xc8] sm:$0xff]
    %v5118 = vld [vmem:[#allocation13 + $0xd0] sm:$0xff]
    %v5119 = vld [vmem:[#allocation13 + $0xd8] sm:$0xff]
    %v5120 = vld [vmem:[#allocation13 + $0xe0] sm:$0xff]
    %v5121 = vld [vmem:[#allocation13 + $0xe8] sm:$0xff]
    %v5122 = vld [vmem:[#allocation13 + $0xf0] sm:$0xff]
    %v5123 = vld [vmem:[#allocation13 + $0xf8] sm:$0xff]
    %v5124 = vld [vmem:[%s0] sm:$0xff]
    %v5125 = vlaneseq
    %v5126 = vand.u32 %v5125, 127
    %v5127 = vld [vmem:[#allocation2] sm:$0xff]
    %v5128 = vld [vmem:[#allocation3] sm:$0xff]
    %s5129 = smul.u32 0, 16
    %s5130 = ssub.s32 15, %s5129
    %v5131 = vld [vmem:[#allocation4] sm:$0xff]
    %v5132 = vld [vmem:[#allocation4 + $0x8] sm:$0xff]
    %v5133 = vld [vmem:[#allocation4 + $0x10] sm:$0xff]
    %v5134 = vld [vmem:[#allocation4 + $0x18] sm:$0xff]
    %v5135 = vpack.c.bf16 %v5127, %v5127
    %v5168 = vunpack.c.l.b16 %v5092
    %v5169 = vunpack.c.h.b16 %v5092
    %v5170 = vunpack.c.l.b16 %v5093
    %v5171 = vunpack.c.h.b16 %v5093
    %v5172 = vunpack.c.l.b16 %v5094
    %v5173 = vunpack.c.h.b16 %v5094
    %v5174 = vunpack.c.l.b16 %v5095
    %v5175 = vunpack.c.h.b16 %v5095
    %v5176 = vunpack.c.l.b16 %v5096
    %v5177 = vunpack.c.h.b16 %v5096
    %v5178 = vunpack.c.l.b16 %v5097
    %v5179 = vunpack.c.h.b16 %v5097
    %v5180 = vunpack.c.l.b16 %v5098
    %v5181 = vunpack.c.h.b16 %v5098
    %v5182 = vunpack.c.l.b16 %v5099
    %v5183 = vunpack.c.h.b16 %v5099
    %v5184 = vunpack.c.l.b16 %v5100
    %v5185 = vunpack.c.h.b16 %v5100
    %v5186 = vunpack.c.l.b16 %v5101
    %v5187 = vunpack.c.h.b16 %v5101
    %v5188 = vunpack.c.l.b16 %v5102
    %v5189 = vunpack.c.h.b16 %v5102
    %v5190 = vunpack.c.l.b16 %v5103
    %v5191 = vunpack.c.h.b16 %v5103
    %v5192 = vunpack.c.l.b16 %v5104
    %v5193 = vunpack.c.h.b16 %v5104
    %v5194 = vunpack.c.l.b16 %v5105
    %v5195 = vunpack.c.h.b16 %v5105
    %v5196 = vunpack.c.l.b16 %v5106
    %v5197 = vunpack.c.h.b16 %v5106
    %v5198 = vunpack.c.l.b16 %v5107
    %v5199 = vunpack.c.h.b16 %v5107
    %v5200 = vunpack.c.l.b16 %v5108
    %v5201 = vunpack.c.h.b16 %v5108
    %v5202 = vunpack.c.l.b16 %v5109
    %v5203 = vunpack.c.h.b16 %v5109
    %v5204 = vunpack.c.l.b16 %v5110
    %v5205 = vunpack.c.h.b16 %v5110
    %v5206 = vunpack.c.l.b16 %v5111
    %v5207 = vunpack.c.h.b16 %v5111
    %v5208 = vunpack.c.l.b16 %v5112
    %v5209 = vunpack.c.h.b16 %v5112
    %v5210 = vunpack.c.l.b16 %v5113
    %v5211 = vunpack.c.h.b16 %v5113
    %v5212 = vunpack.c.l.b16 %v5114
    %v5213 = vunpack.c.h.b16 %v5114
    %v5214 = vunpack.c.l.b16 %v5115
    %v5215 = vunpack.c.h.b16 %v5115
    %v5216 = vunpack.c.l.b16 %v5116
    %v5217 = vunpack.c.h.b16 %v5116
    %v5218 = vunpack.c.l.b16 %v5117
    %v5219 = vunpack.c.h.b16 %v5117
    %v5220 = vunpack.c.l.b16 %v5118
    %v5221 = vunpack.c.h.b16 %v5118
    %v5222 = vunpack.c.l.b16 %v5119
    %v5223 = vunpack.c.h.b16 %v5119
    %v5224 = vunpack.c.l.b16 %v5120
    %v5225 = vunpack.c.h.b16 %v5120
    %v5226 = vunpack.c.l.b16 %v5121
    %v5227 = vunpack.c.h.b16 %v5121
    %v5228 = vunpack.c.l.b16 %v5122
    %v5229 = vunpack.c.h.b16 %v5122
    %v5230 = vunpack.c.l.b16 %v5123
    %v5231 = vunpack.c.h.b16 %v5123
    %v5232 = vpack.c.b16 %v5172, %v5168
    %v5233 = vpack.c.b16 %v5173, %v5169
    %v5234 = vpack.c.b16 %v5174, %v5170
    %v5235 = vpack.c.b16 %v5175, %v5171
    %v5236 = vpack.c.b16 %v5180, %v5176
    %v5237 = vpack.c.b16 %v5181, %v5177
    %v5238 = vpack.c.b16 %v5182, %v5178
    %v5239 = vpack.c.b16 %v5183, %v5179
    %v5240 = vpack.c.b16 %v5188, %v5184
    %v5241 = vpack.c.b16 %v5189, %v5185
    %v5242 = vpack.c.b16 %v5190, %v5186
    %v5243 = vpack.c.b16 %v5191, %v5187
    %v5244 = vpack.c.b16 %v5196, %v5192
    %v5245 = vpack.c.b16 %v5197, %v5193
    %v5246 = vpack.c.b16 %v5198, %v5194
    %v5247 = vpack.c.b16 %v5199, %v5195
    %v5248 = vpack.c.b16 %v5204, %v5200
    %v5249 = vpack.c.b16 %v5205, %v5201
    %v5250 = vpack.c.b16 %v5206, %v5202
    %v5251 = vpack.c.b16 %v5207, %v5203
    %v5252 = vpack.c.b16 %v5212, %v5208
    %v5253 = vpack.c.b16 %v5213, %v5209
    %v5254 = vpack.c.b16 %v5214, %v5210
    %v5255 = vpack.c.b16 %v5215, %v5211
    %v5256 = vpack.c.b16 %v5220, %v5216
    %v5257 = vpack.c.b16 %v5221, %v5217
    %v5258 = vpack.c.b16 %v5222, %v5218
    %v5259 = vpack.c.b16 %v5223, %v5219
    %v5260 = vpack.c.b16 %v5228, %v5224
    %v5261 = vpack.c.b16 %v5229, %v5225
    %v5262 = vpack.c.b16 %v5230, %v5226
    %v5263 = vpack.c.b16 %v5231, %v5227
    %5296 = vmatprep.subr.bf16.mxu0 %v5233
    %5297 = vmatpush1.bf16.msra.mxu0 %v5232
    %5298 = vmatprep.subr.bf16.mxu0 %v5237
    %5299 = vmatpush1.bf16.msra.mxu0 %v5236
    %5300 = vmatprep.subr.bf16.mxu0 %v5241
    %5301 = vmatpush1.bf16.msra.mxu0 %v5240
    %5302 = vmatprep.subr.bf16.mxu0 %v5245
    %5303 = vmatpush1.bf16.msra.mxu0 %v5244
    %5304 = vmatprep.subr.bf16.mxu0 %v5249
    %5305 = vmatpush1.bf16.msra.mxu0 %v5248
    %5306 = vmatprep.subr.bf16.mxu0 %v5253
    %5307 = vmatpush1.bf16.msra.mxu0 %v5252
    %5308 = vmatprep.subr.bf16.mxu0 %v5257
    %5309 = vmatpush1.bf16.msra.mxu0 %v5256
    %5310 = vmatprep.subr.bf16.mxu0 %v5261
    %5311 = vmatpush1.bf16.msra.mxu0 %v5260
    %5312 = vmatprep.subr.bf16.mxu0 0
    %5313 = vmatpush1.bf16.msra.mxu0 0
    %5314 = vmatprep.subr.bf16.mxu0 0
    %5315 = vmatpush1.bf16.msra.mxu0 0
    %5316 = vmatprep.subr.bf16.mxu0 0
    %5317 = vmatpush1.bf16.msra.mxu0 0
    %5318 = vmatprep.subr.bf16.mxu0 0
    %5319 = vmatpush1.bf16.msra.mxu0 0
    %5320 = vmatprep.subr.bf16.mxu0 0
    %5321 = vmatpush1.bf16.msra.mxu0 0
    %5322 = vmatprep.subr.bf16.mxu0 0
    %5323 = vmatpush1.bf16.msra.mxu0 0
    %5324 = vmatprep.subr.bf16.mxu0 0
    %5325 = vmatpush1.bf16.msra.mxu0 0
    %5326 = vmatprep.subr.bf16.mxu0 0
    %5327 = vmatpush1.bf16.msra.mxu0 0
    %5328 = vmatprep.mubr.bf16.mxu0 0
    %5329 = vmatmul.mubr.bf16.gmra.mrb[0].mxu0 %v5135
    %v5330 = vpop.f32.mrb[0].mxu0
    %v5331 = vadd.f32 0.0, %v5330
    %v5332 = vpop.f32.mrb[0].mxu0
    %v5333 = vadd.f32 0.0, %v5332
    %v5334 = vpop.f32.mrb[0].mxu0
    %v5335 = vpop.f32.mrb[0].mxu0
    %5336 = vdwg.mxu0
    %5337 = vmatprep.subr.bf16.mxu0 %v5235
    %5338 = vmatpush1.bf16.msra.mxu0 %v5234
    %5339 = vmatprep.subr.bf16.mxu0 %v5239
    %5340 = vmatpush1.bf16.msra.mxu0 %v5238
    %5341 = vmatprep.subr.bf16.mxu0 %v5243
    %5342 = vmatpush1.bf16.msra.mxu0 %v5242
    %5343 = vmatprep.subr.bf16.mxu0 %v5247
    %5344 = vmatpush1.bf16.msra.mxu0 %v5246
    %5345 = vmatprep.subr.bf16.mxu0 %v5251
    %5346 = vmatpush1.bf16.msra.mxu0 %v5250
    %5347 = vmatprep.subr.bf16.mxu0 %v5255
    %5348 = vmatpush1.bf16.msra.mxu0 %v5254
    %5349 = vmatprep.subr.bf16.mxu0 %v5259
    %5350 = vmatpush1.bf16.msra.mxu0 %v5258
    %5351 = vmatprep.subr.bf16.mxu0 %v5263
    %5352 = vmatpush1.bf16.msra.mxu0 %v5262
    %5353 = vmatprep.subr.bf16.mxu0 0
    %5354 = vmatpush1.bf16.msra.mxu0 0
    %5355 = vmatprep.subr.bf16.mxu0 0
    %5356 = vmatpush1.bf16.msra.mxu0 0
    %5357 = vmatprep.subr.bf16.mxu0 0
    %5358 = vmatpush1.bf16.msra.mxu0 0
    %5359 = vmatprep.subr.bf16.mxu0 0
    %5360 = vmatpush1.bf16.msra.mxu0 0
    %5361 = vmatprep.subr.bf16.mxu0 0
    %5362 = vmatpush1.bf16.msra.mxu0 0
    %5363 = vmatprep.subr.bf16.mxu0 0
    %5364 = vmatpush1.bf16.msra.mxu0 0
    %5365 = vmatprep.subr.bf16.mxu0 0
    %5366 = vmatpush1.bf16.msra.mxu0 0
    %5367 = vmatprep.subr.bf16.mxu0 0
    %5368 = vmatpush1.bf16.msra.mxu0 0
    %5369 = vmatprep.mubr.bf16.mxu0 0
    %5370 = vmatmul.mubr.bf16.gmra.mrb[0].mxu0 %v5135
    %v5371 = vpop.f32.mrb[0].mxu0
    %v5372 = vadd.f32 0.0, %v5371
    %v5373 = vpop.f32.mrb[0].mxu0
    %v5374 = vadd.f32 0.0, %v5373
    %v5375 = vpop.f32.mrb[0].mxu0
    %v5376 = vpop.f32.mrb[0].mxu0
    %5377 = vdwg.mxu0
    %v5378 = vadd.f32 %v5131, %v5331
    %v5379 = vadd.f32 %v5132, %v5333
    %v5380 = vadd.f32 %v5133, %v5372
    %v5381 = vadd.f32 %v5134, %v5374
    %v5382 = vxor.u32 %v5378, 2147483648
    %v5383 = vmul.f32 %v5382, 1.442695
    %v5384 = vpow.pop %v5383
    %v5385 = vadd.f32 %v5384, 1.0
    %v5386 = vrcp.pop %v5385
    %v5387 = vmul.f32 1.0, %v5386
    %v5388 = vxor.u32 %v5379, 2147483648
    %v5389 = vmul.f32 %v5388, 1.442695
    %v5390 = vpow.pop %v5389
    %v5391 = vadd.f32 %v5390, 1.0
    %v5392 = vrcp.pop %v5391
    %v5393 = vmul.f32 1.0, %v5392
    %v5394 = vxor.u32 %v5380, 2147483648
    %v5395 = vmul.f32 %v5394, 1.442695
    %v5396 = vpow.pop %v5395
    %v5397 = vadd.f32 %v5396, 1.0
    %v5398 = vrcp.pop %v5397
    %v5399 = vmul.f32 1.0, %v5398
    %v5400 = vtanh.pop %v5381
    %v5401 = vmul.f32 %v5393, %v5128
    %v5402 = vmul.f32 %v5387, %v5400
    %v5403 = vadd.f32 %v5401, %v5402
    %v5404 = vtanh.pop %v5403
    %v5405 = vmul.f32 %v5399, %v5404
    %vm5406 = vcmp.lt.s32.totalorder %v5126, 64
    %v5407 = vstv %s5129
    %v5408 = vstv %s5130
    %v5409 = vsel %vm5406, %v5407, %v5408
    %5410 = vset.pattern.permute.xlu0 0
    %5411 = vperm.xlu0 %5410, %v5124
    %v5412 = vpop.permute.xlu0 %5411
    %vm5413 = vcmp.lt.s32.totalorder %v5409, %v5412
    %v5414 = vsel %vm5413, %v5405, %v5127
    %v5415 = vsel %vm5413, %v5403, %v5128
    %s5416 = sadd.s32 %s5129, 1
    %s5417 = ssub.s32 14, %s5129
    %v5418 = vld [vmem:[%s3581] sm:$0xff]
    %v5419 = vld [vmem:[%s3581 + $0x8] sm:$0xff]
    %v5420 = vld [vmem:[%s3581 + $0x10] sm:$0xff]
    %v5421 = vld [vmem:[%s3581 + $0x18] sm:$0xff]
    %v5422 = vpack.c.bf16 %v5414, %v5414
    %5423 = vmatprep.subr.bf16.mxu0 %v5233
    %5424 = vmatpush1.bf16.msra.mxu0 %v5232
    %5425 = vmatprep.subr.bf16.mxu0 %v5237
    %5426 = vmatpush1.bf16.msra.mxu0 %v5236
    %5427 = vmatprep.subr.bf16.mxu0 %v5241
    %5428 = vmatpush1.bf16.msra.mxu0 %v5240
    %5429 = vmatprep.subr.bf16.mxu0 %v5245
    %5430 = vmatpush1.bf16.msra.mxu0 %v5244
    %5431 = vmatprep.subr.bf16.mxu0 %v5249
    %5432 = vmatpush1.bf16.msra.mxu0 %v5248
    %5433 = vmatprep.subr.bf16.mxu0 %v5253
    %5434 = vmatpush1.bf16.msra.mxu0 %v5252
    %5435 = vmatprep.subr.bf16.mxu0 %v5257
    %5436 = vmatpush1.bf16.msra.mxu0 %v5256
    %5437 = vmatprep.subr.bf16.mxu0 %v5261
    %5438 = vmatpush1.bf16.msra.mxu0 %v5260
    %5439 = vmatprep.subr.bf16.mxu0 0
    %5440 = vmatpush1.bf16.msra.mxu0 0
    %5441 = vmatprep.subr.bf16.mxu0 0
    %5442 = vmatpush1.bf16.msra.mxu0 0
    %5443 = vmatprep.subr.bf16.mxu0 0
    %5444 = vmatpush1.bf16.msra.mxu0 0
    %5445 = vmatprep.subr.bf16.mxu0 0
    %5446 = vmatpush1.bf16.msra.mxu0 0
    %5447 = vmatprep.subr.bf16.mxu0 0
    %5448 = vmatpush1.bf16.msra.mxu0 0
    %5449 = vmatprep.subr.bf16.mxu0 0
    %5450 = vmatpush1.bf16.msra.mxu0 0
    %5451 = vmatprep.subr.bf16.mxu0 0
    %5452 = vmatpush1.bf16.msra.mxu0 0
    %5453 = vmatprep.subr.bf16.mxu0 0
    %5454 = vmatpush1.bf16.msra.mxu0 0
    %5455 = vmatprep.mubr.bf16.mxu0 0
    %5456 = vmatmul.mubr.bf16.gmra.mrb[0].mxu0 %v5422
    %v5457 = vpop.f32.mrb[0].mxu0
    %v5458 = vadd.f32 0.0, %v5457
    %v5459 = vpop.f32.mrb[0].mxu0
    %v5460 = vadd.f32 0.0, %v5459
    %v5461 = vpop.f32.mrb[0].mxu0
    %v5462 = vpop.f32.mrb[0].mxu0
    %5463 = vdwg.mxu0
    %5464 = vmatprep.subr.bf16.mxu0 %v5235
    %5465 = vmatpush1.bf16.msra.mxu0 %v5234
    %5466 = vmatprep.subr.bf16.mxu0 %v5239
    %5467 = vmatpush1.bf16.msra.mxu0 %v5238
    %5468 = vmatprep.subr.bf16.mxu0 %v5243
    %5469 = vmatpush1.bf16.msra.mxu0 %v5242
    %5470 = vmatprep.subr.bf16.mxu0 %v5247
    %5471 = vmatpush1.bf16.msra.mxu0 %v5246
    %5472 = vmatprep.subr.bf16.mxu0 %v5251
    %5473 = vmatpush1.bf16.msra.mxu0 %v5250
    %5474 = vmatprep.subr.bf16.mxu0 %v5255
    %5475 = vmatpush1.bf16.msra.mxu0 %v5254
    %5476 = vmatprep.subr.bf16.mxu0 %v5259
    %5477 = vmatpush1.bf16.msra.mxu0 %v5258
    %5478 = vmatprep.subr.bf16.mxu0 %v5263
    %5479 = vmatpush1.bf16.msra.mxu0 %v5262
    %5480 = vmatprep.subr.bf16.mxu0 0
    %5481 = vmatpush1.bf16.msra.mxu0 0
    %5482 = vmatprep.subr.bf16.mxu0 0
    %5483 = vmatpush1.bf16.msra.mxu0 0
    %5484 = vmatprep.subr.bf16.mxu0 0
    %5485 = vmatpush1.bf16.msra.mxu0 0
    %5486 = vmatprep.subr.bf16.mxu0 0
    %5487 = vmatpush1.bf16.msra.mxu0 0
    %5488 = vmatprep.subr.bf16.mxu0 0
    %5489 = vmatpush1.bf16.msra.mxu0 0
    %5490 = vmatprep.subr.bf16.mxu0 0
    %5491 = vmatpush1.bf16.msra.mxu0 0
    %5492 = vmatprep.subr.bf16.mxu0 0
    %5493 = vmatpush1.bf16.msra.mxu0 0
    %5494 = vmatprep.subr.bf16.mxu0 0
    %5495 = vmatpush1.bf16.msra.mxu0 0
    %5496 = vmatprep.mubr.bf16.mxu0 0
    %5497 = vmatmul.mubr.bf16.gmra.mrb[0].mxu0 %v5422
    %v5498 = vpop.f32.mrb[0].mxu0
    %v5499 = vadd.f32 0.0, %v5498
    %v5500 = vpop.f32.mrb[0].mxu0
    %v5501 = vadd.f32 0.0, %v5500
    %v5502 = vpop.f32.mrb[0].mxu0
    %v5503 = vpop.f32.mrb[0].mxu0
    %5504 = vdwg.mxu0
    %v5505 = vadd.f32 %v5418, %v5458
    %v5506 = vadd.f32 %v5419, %v5460
    %v5507 = vadd.f32 %v5420, %v5499
    %v5508 = vadd.f32 %v5421, %v5501
    %v5509 = vxor.u32 %v5505, 2147483648
    %v5510 = vmul.f32 %v5509, 1.442695
    %v5511 = vpow.pop %v5510
    %v5512 = vadd.f32 %v5511, 1.0
    %v5513 = vrcp.pop %v5512
    %v5514 = vmul.f32 1.0, %v5513
    %v5515 = vxor.u32 %v5506, 2147483648
    %v5516 = vmul.f32 %v5515, 1.442695
    %v5517 = vpow.pop %v5516
    %v5518 = vadd.f32 %v5517, 1.0
    %v5519 = vrcp.pop %v5518
    %v5520 = vmul.f32 1.0, %v5519
    %v5521 = vxor.u32 %v5507, 2147483648
    %v5522 = vmul.f32 %v5521, 1.442695
    %v5523 = vpow.pop %v5522
    %v5524 = vadd.f32 %v5523, 1.0
    %v5525 = vrcp.pop %v5524
    %v5526 = vmul.f32 1.0, %v5525
    %v5527 = vtanh.pop %v5508
    %v5528 = vmul.f32 %v5520, %v5415
    %v5529 = vmul.f32 %v5514, %v5527
    %v5530 = vadd.f32 %v5528, %v5529
    %v5531 = vtanh.pop %v5530
    %v5532 = vmul.f32 %v5526, %v5531
    %v5533 = vstv %s5416
    %v5534 = vstv %s5417
    %v5535 = vsel %vm5406, %v5533, %v5534
    %vm5536 = vcmp.lt.s32.totalorder %v5535, %v5412
    %v5537 = vsel %vm5536, %v5532, %v5414
    %v5538 = vsel %vm5536, %v5530, %v5415
    %s5539 = sadd.s32 %s5129, 2
    %s5540 = ssub.s32 13, %s5129
    %v5541 = vld [vmem:[%s3697] sm:$0xff]
    %v5542 = vld [vmem:[%s3697 + $0x8] sm:$0xff]
    %v5543 = vld [vmem:[%s3697 + $0x10] sm:$0xff]
    %v5544 = vld [vmem:[%s3697 + $0x18] sm:$0xff]
    %v5545 = vpack.c.bf16 %v5537, %v5537
    %5546 = vmatprep.subr.bf16.mxu0 %v5233
    %5547 = vmatpush1.bf16.msra.mxu0 %v5232
    %5548 = vmatprep.subr.bf16.mxu0 %v5237
    %5549 = vmatpush1.bf16.msra.mxu0 %v5236
    %5550 = vmatprep.subr.bf16.mxu0 %v5241
    %5551 = vmatpush1.bf16.msra.mxu0 %v5240
    %5552 = vmatprep.subr.bf16.mxu0 %v5245
    %5553 = vmatpush1.bf16.msra.mxu0 %v5244
    %5554 = vmatprep.subr.bf16.mxu0 %v5249
    %5555 = vmatpush1.bf16.msra.mxu0 %v5248
    %5556 = vmatprep.subr.bf16.mxu0 %v5253
    %5557 = vmatpush1.bf16.msra.mxu0 %v5252
    %5558 = vmatprep.subr.bf16.mxu0 %v5257
    %5559 = vmatpush1.bf16.msra.mxu0 %v5256
    %5560 = vmatprep.subr.bf16.mxu0 %v5261
    %5561 = vmatpush1.bf16.msra.mxu0 %v5260
    %5562 = vmatprep.subr.bf16.mxu0 0
    %5563 = vmatpush1.bf16.msra.mxu0 0
    %5564 = vmatprep.subr.bf16.mxu0 0
    %5565 = vmatpush1.bf16.msra.mxu0 0
    %5566 = vmatprep.subr.bf16.mxu0 0
    %5567 = vmatpush1.bf16.msra.mxu0 0
    %5568 = vmatprep.subr.bf16.mxu0 0
    %5569 = vmatpush1.bf16.msra.mxu0 0
    %5570 = vmatprep.subr.bf16.mxu0 0
    %5571 = vmatpush1.bf16.msra.mxu0 0
    %5572 = vmatprep.subr.bf16.mxu0 0
    %5573 = vmatpush1.bf16.msra.mxu0 0
    %5574 = vmatprep.subr.bf16.mxu0 0
    %5575 = vmatpush1.bf16.msra.mxu0 0
    %5576 = vmatprep.subr.bf16.mxu0 0
    %5577 = vmatpush1.bf16.msra.mxu0 0
    %5578 = vmatprep.mubr.bf16.mxu0 0
    %5579 = vmatmul.mubr.bf16.gmra.mrb[0].mxu0 %v5545
    %v5580 = vpop.f32.mrb[0].mxu0
    %v5581 = vadd.f32 0.0, %v5580
    %v5582 = vpop.f32.mrb[0].mxu0
    %v5583 = vadd.f32 0.0, %v5582
    %v5584 = vpop.f32.mrb[0].mxu0
    %v5585 = vpop.f32.mrb[0].mxu0
    %5586 = vdwg.mxu0
    %5587 = vmatprep.subr.bf16.mxu0 %v5235
    %5588 = vmatpush1.bf16.msra.mxu0 %v5234
    %5589 = vmatprep.subr.bf16.mxu0 %v5239
    %5590 = vmatpush1.bf16.msra.mxu0 %v5238
    %5591 = vmatprep.subr.bf16.mxu0 %v5243
    %5592 = vmatpush1.bf16.msra.mxu0 %v5242
    %5593 = vmatprep.subr.bf16.mxu0 %v5247
    %5594 = vmatpush1.bf16.msra.mxu0 %v5246
    %5595 = vmatprep.subr.bf16.mxu0 %v5251
    %5596 = vmatpush1.bf16.msra.mxu0 %v5250
    %5597 = vmatprep.subr.bf16.mxu0 %v5255
    %5598 = vmatpush1.bf16.msra.mxu0 %v5254
    %5599 = vmatprep.subr.bf16.mxu0 %v5259
    %5600 = vmatpush1.bf16.msra.mxu0 %v5258
    %5601 = vmatprep.subr.bf16.mxu0 %v5263
    %5602 = vmatpush1.bf16.msra.mxu0 %v5262
    %5603 = vmatprep.subr.bf16.mxu0 0
    %5604 = vmatpush1.bf16.msra.mxu0 0
    %5605 = vmatprep.subr.bf16.mxu0 0
    %5606 = vmatpush1.bf16.msra.mxu0 0
    %5607 = vmatprep.subr.bf16.mxu0 0
    %5608 = vmatpush1.bf16.msra.mxu0 0
    %5609 = vmatprep.subr.bf16.mxu0 0
    %5610 = vmatpush1.bf16.msra.mxu0 0
    %5611 = vmatprep.subr.bf16.mxu0 0
    %5612 = vmatpush1.bf16.msra.mxu0 0
    %5613 = vmatprep.subr.bf16.mxu0 0
    %5614 = vmatpush1.bf16.msra.mxu0 0
    %5615 = vmatprep.subr.bf16.mxu0 0
    %5616 = vmatpush1.bf16.msra.mxu0 0
    %5617 = vmatprep.subr.bf16.mxu0 0
    %5618 = vmatpush1.bf16.msra.mxu0 0
    %5619 = vmatprep.mubr.bf16.mxu0 0
    %5620 = vmatmul.mubr.bf16.gmra.mrb[0].mxu0 %v5545
    %v5621 = vpop.f32.mrb[0].mxu0
    %v5622 = vadd.f32 0.0, %v5621
    %v5623 = vpop.f32.mrb[0].mxu0
    %v5624 = vadd.f32 0.0, %v5623
    %v5625 = vpop.f32.mrb[0].mxu0
    %v5626 = vpop.f32.mrb[0].mxu0
    %5627 = vdwg.mxu0
    %v5628 = vadd.f32 %v5541, %v5581
    %v5629 = vadd.f32 %v5542, %v5583
    %v5630 = vadd.f32 %v5543, %v5622
    %v5631 = vadd.f32 %v5544, %v5624
    %v5632 = vxor.u32 %v5628, 2147483648
    %v5633 = vmul.f32 %v5632, 1.442695
    %v5634 = vpow.pop %v5633
    %v5635 = vadd.f32 %v5634, 1.0
    %v5636 = vrcp.pop %v5635
    %v5637 = vmul.f32 1.0, %v5636
    %v5638 = vxor.u32 %v5629, 2147483648
    %v5639 = vmul.f32 %v5638, 1.442695
    %v5640 = vpow.pop %v5639
    %v5641 = vadd.f32 %v5640, 1.0
    %v5642 = vrcp.pop %v5641
    %v5643 = vmul.f32 1.0, %v5642
    %v5644 = vxor.u32 %v5630, 2147483648
    %v5645 = vmul.f32 %v5644, 1.442695
    %v5646 = vpow.pop %v5645
    %v5647 = vadd.f32 %v5646, 1.0
    %v5648 = vrcp.pop %v5647
    %v5649 = vmul.f32 1.0, %v5648
    %v5650 = vtanh.pop %v5631
    %v5651 = vmul.f32 %v5643, %v5538
    %v5652 = vmul.f32 %v5637, %v5650
    %v5653 = vadd.f32 %v5651, %v5652
    %v5654 = vtanh.pop %v5653
    %v5655 = vmul.f32 %v5649, %v5654
    %v5656 = vstv %s5539
    %v5657 = vstv %s5540
    %v5658 = vsel %vm5406, %v5656, %v5657
    %vm5659 = vcmp.lt.s32.totalorder %v5658, %v5412
    %v5660 = vsel %vm5659, %v5655, %v5537
    %v5661 = vsel %vm5659, %v5653, %v5538
    %s5662 = sadd.s32 %s5129, 3
    %s5663 = ssub.s32 12, %s5129
    %v5664 = vld [vmem:[%s3813] sm:$0xff]
    %v5665 = vld [vmem:[%s3813 + $0x8] sm:$0xff]
    %v5666 = vld [vmem:[%s3813 + $0x10] sm:$0xff]
    %v5667 = vld [vmem:[%s3813 + $0x18] sm:$0xff]
    %v5668 = vpack.c.bf16 %v5660, %v5660
    %5669 = vmatprep.subr.bf16.mxu0 %v5233
    %5670 = vmatpush1.bf16.msra.mxu0 %v5232
    %5671 = vmatprep.subr.bf16.mxu0 %v5237
    %5672 = vmatpush1.bf16.msra.mxu0 %v5236
    %5673 = vmatprep.subr.bf16.mxu0 %v5241
    %5674 = vmatpush1.bf16.msra.mxu0 %v5240
    %5675 = vmatprep.subr.bf16.mxu0 %v5245
    %5676 = vmatpush1.bf16.msra.mxu0 %v5244
    %5677 = vmatprep.subr.bf16.mxu0 %v5249
    %5678 = vmatpush1.bf16.msra.mxu0 %v5248
    %5679 = vmatprep.subr.bf16.mxu0 %v5253
    %5680 = vmatpush1.bf16.msra.mxu0 %v5252
    %5681 = vmatprep.subr.bf16.mxu0 %v5257
    %5682 = vmatpush1.bf16.msra.mxu0 %v5256
    %5683 = vmatprep.subr.bf16.mxu0 %v5261
    %5684 = vmatpush1.bf16.msra.mxu0 %v5260
    %5685 = vmatprep.subr.bf16.mxu0 0
    %5686 = vmatpush1.bf16.msra.mxu0 0
    %5687 = vmatprep.subr.bf16.mxu0 0
    %5688 = vmatpush1.bf16.msra.mxu0 0
    %5689 = vmatprep.subr.bf16.mxu0 0
    %5690 = vmatpush1.bf16.msra.mxu0 0
    %5691 = vmatprep.subr.bf16.mxu0 0
    %5692 = vmatpush1.bf16.msra.mxu0 0
    %5693 = vmatprep.subr.bf16.mxu0 0
    %5694 = vmatpush1.bf16.msra.mxu0 0
    %5695 = vmatprep.subr.bf16.mxu0 0
    %5696 = vmatpush1.bf16.msra.mxu0 0
    %5697 = vmatprep.subr.bf16.mxu0 0
    %5698 = vmatpush1.bf16.msra.mxu0 0
    %5699 = vmatprep.subr.bf16.mxu0 0
    %5700 = vmatpush1.bf16.msra.mxu0 0
    %5701 = vmatprep.mubr.bf16.mxu0 0
    %5702 = vmatmul.mubr.bf16.gmra.mrb[0].mxu0 %v5668
    %v5703 = vpop.f32.mrb[0].mxu0
    %v5704 = vadd.f32 0.0, %v5703
    %v5705 = vpop.f32.mrb[0].mxu0
    %v5706 = vadd.f32 0.0, %v5705
    %v5707 = vpop.f32.mrb[0].mxu0
    %v5708 = vpop.f32.mrb[0].mxu0
    %5709 = vdwg.mxu0
    %5710 = vmatprep.subr.bf16.mxu0 %v5235
    %5711 = vmatpush1.bf16.msra.mxu0 %v5234
    %5712 = vmatprep.subr.bf16.mxu0 %v5239
    %5713 = vmatpush1.bf16.msra.mxu0 %v5238
    %5714 = vmatprep.subr.bf16.mxu0 %v5243
    %5715 = vmatpush1.bf16.msra.mxu0 %v5242
    %5716 = vmatprep.subr.bf16.mxu0 %v5247
    %5717 = vmatpush1.bf16.msra.mxu0 %v5246
    %5718 = vmatprep.subr.bf16.mxu0 %v5251
    %5719 = vmatpush1.bf16.msra.mxu0 %v5250
    %5720 = vmatprep.subr.bf16.mxu0 %v5255
    %5721 = vmatpush1.bf16.msra.mxu0 %v5254
    %5722 = vmatprep.subr.bf16.mxu0 %v5259
    %5723 = vmatpush1.bf16.msra.mxu0 %v5258
    %5724 = vmatprep.subr.bf16.mxu0 %v5263
    %5725 = vmatpush1.bf16.msra.mxu0 %v5262
    %5726 = vmatprep.subr.bf16.mxu0 0
    %5727 = vmatpush1.bf16.msra.mxu0 0
    %5728 = vmatprep.subr.bf16.mxu0 0
    %5729 = vmatpush1.bf16.msra.mxu0 0
    %5730 = vmatprep.subr.bf16.mxu0 0
    %5731 = vmatpush1.bf16.msra.mxu0 0
    %5732 = vmatprep.subr.bf16.mxu0 0
    %5733 = vmatpush1.bf16.msra.mxu0 0
    %5734 = vmatprep.subr.bf16.mxu0 0
    %5735 = vmatpush1.bf16.msra.mxu0 0
    %5736 = vmatprep.subr.bf16.mxu0 0
    %5737 = vmatpush1.bf16.msra.mxu0 0
    %5738 = vmatprep.subr.bf16.mxu0 0
    %5739 = vmatpush1.bf16.msra.mxu0 0
    %5740 = vmatprep.subr.bf16.mxu0 0
    %5741 = vmatpush1.bf16.msra.mxu0 0
    %5742 = vmatprep.mubr.bf16.mxu0 0
    %5743 = vmatmul.mubr.bf16.gmra.mrb[0].mxu0 %v5668
    %v5744 = vpop.f32.mrb[0].mxu0
    %v5745 = vadd.f32 0.0, %v5744
    %v5746 = vpop.f32.mrb[0].mxu0
    %v5747 = vadd.f32 0.0, %v5746
    %v5748 = vpop.f32.mrb[0].mxu0
    %v5749 = vpop.f32.mrb[0].mxu0
    %5750 = vdwg.mxu0
    %v5751 = vadd.f32 %v5664, %v5704
    %v5752 = vadd.f32 %v5665, %v5706
    %v5753 = vadd.f32 %v5666, %v5745
    %v5754 = vadd.f32 %v5667, %v5747
    %v5755 = vxor.u32 %v5751, 2147483648
    %v5756 = vmul.f32 %v5755, 1.442695
    %v5757 = vpow.pop %v5756
    %v5758 = vadd.f32 %v5757, 1.0
    %v5759 = vrcp.pop %v5758
    %v5760 = vmul.f32 1.0, %v5759
    %v5761 = vxor.u32 %v5752, 2147483648
    %v5762 = vmul.f32 %v5761, 1.442695
    %v5763 = vpow.pop %v5762
    %v5764 = vadd.f32 %v5763, 1.0
    %v5765 = vrcp.pop %v5764
    %v5766 = vmul.f32 1.0, %v5765
    %v5767 = vxor.u32 %v5753, 2147483648
    %v5768 = vmul.f32 %v5767, 1.442695
    %v5769 = vpow.pop %v5768
    %v5770 = vadd.f32 %v5769, 1.0
    %v5771 = vrcp.pop %v5770
    %v5772 = vmul.f32 1.0, %v5771
    %v5773 = vtanh.pop %v5754
    %v5774 = vmul.f32 %v5766, %v5661
    %v5775 = vmul.f32 %v5760, %v5773
    %v5776 = vadd.f32 %v5774, %v5775
    %v5777 = vtanh.pop %v5776
    %v5778 = vmul.f32 %v5772, %v5777
    %v5779 = vstv %s5662
    %v5780 = vstv %s5663
    %v5781 = vsel %vm5406, %v5779, %v5780
    %vm5782 = vcmp.lt.s32.totalorder %v5781, %v5412
    %v5783 = vsel %vm5782, %v5778, %v5660
    %v5784 = vsel %vm5782, %v5776, %v5661
    %s5785 = sadd.s32 %s5129, 4
    %s5786 = ssub.s32 11, %s5129
    %v5787 = vld [vmem:[%s3915] sm:$0xff]
    %v5788 = vld [vmem:[%s3915 + $0x8] sm:$0xff]
    %v5789 = vld [vmem:[%s3915 + $0x10] sm:$0xff]
    %v5790 = vld [vmem:[%s3915 + $0x18] sm:$0xff]
    %v5791 = vpack.c.bf16 %v5783, %v5783
    %5792 = vmatprep.subr.bf16.mxu0 %v5233
    %5793 = vmatpush1.bf16.msra.mxu0 %v5232
    %5794 = vmatprep.subr.bf16.mxu0 %v5237
    %5795 = vmatpush1.bf16.msra.mxu0 %v5236
    %5796 = vmatprep.subr.bf16.mxu0 %v5241
    %5797 = vmatpush1.bf16.msra.mxu0 %v5240
    %5798 = vmatprep.subr.bf16.mxu0 %v5245
    %5799 = vmatpush1.bf16.msra.mxu0 %v5244
    %5800 = vmatprep.subr.bf16.mxu0 %v5249
    %5801 = vmatpush1.bf16.msra.mxu0 %v5248
    %5802 = vmatprep.subr.bf16.mxu0 %v5253
    %5803 = vmatpush1.bf16.msra.mxu0 %v5252
    %5804 = vmatprep.subr.bf16.mxu0 %v5257
    %5805 = vmatpush1.bf16.msra.mxu0 %v5256
    %5806 = vmatprep.subr.bf16.mxu0 %v5261
    %5807 = vmatpush1.bf16.msra.mxu0 %v5260
    %5808 = vmatprep.subr.bf16.mxu0 0
    %5809 = vmatpush1.bf16.msra.mxu0 0
    %5810 = vmatprep.subr.bf16.mxu0 0
    %5811 = vmatpush1.bf16.msra.mxu0 0
    %5812 = vmatprep.subr.bf16.mxu0 0
    %5813 = vmatpush1.bf16.msra.mxu0 0
    %5814 = vmatprep.subr.bf16.mxu0 0
    %5815 = vmatpush1.bf16.msra.mxu0 0
    %5816 = vmatprep.subr.bf16.mxu0 0
    %5817 = vmatpush1.bf16.msra.mxu0 0
    %5818 = vmatprep.subr.bf16.mxu0 0
    %5819 = vmatpush1.bf16.msra.mxu0 0
    %5820 = vmatprep.subr.bf16.mxu0 0
    %5821 = vmatpush1.bf16.msra.mxu0 0
    %5822 = vmatprep.subr.bf16.mxu0 0
    %5823 = vmatpush1.bf16.msra.mxu0 0
    %5824 = vmatprep.mubr.bf16.mxu0 0
    %5825 = vmatmul.mubr.bf16.gmra.mrb[0].mxu0 %v5791
    %v5826 = vpop.f32.mrb[0].mxu0
    %v5827 = vadd.f32 0.0, %v5826
    %v5828 = vpop.f32.mrb[0].mxu0
    %v5829 = vadd.f32 0.0, %v5828
    %v5830 = vpop.f32.mrb[0].mxu0
    %v5831 = vpop.f32.mrb[0].mxu0
    %5832 = vdwg.mxu0
    %5833 = vmatprep.subr.bf16.mxu0 %v5235
    %5834 = vmatpush1.bf16.msra.mxu0 %v5234
    %5835 = vmatprep.subr.bf16.mxu0 %v5239
    %5836 = vmatpush1.bf16.msra.mxu0 %v5238
    %5837 = vmatprep.subr.bf16.mxu0 %v5243
    %5838 = vmatpush1.bf16.msra.mxu0 %v5242
    %5839 = vmatprep.subr.bf16.mxu0 %v5247
    %5840 = vmatpush1.bf16.msra.mxu0 %v5246
    %5841 = vmatprep.subr.bf16.mxu0 %v5251
    %5842 = vmatpush1.bf16.msra.mxu0 %v5250
    %5843 = vmatprep.subr.bf16.mxu0 %v5255
    %5844 = vmatpush1.bf16.msra.mxu0 %v5254
    %5845 = vmatprep.subr.bf16.mxu0 %v5259
    %5846 = vmatpush1.bf16.msra.mxu0 %v5258
    %5847 = vmatprep.subr.bf16.mxu0 %v5263
    %5848 = vmatpush1.bf16.msra.mxu0 %v5262
    %5849 = vmatprep.subr.bf16.mxu0 0
    %5850 = vmatpush1.bf16.msra.mxu0 0
    %5851 = vmatprep.subr.bf16.mxu0 0
    %5852 = vmatpush1.bf16.msra.mxu0 0
    %5853 = vmatprep.subr.bf16.mxu0 0
    %5854 = vmatpush1.bf16.msra.mxu0 0
    %5855 = vmatprep.subr.bf16.mxu0 0
    %5856 = vmatpush1.bf16.msra.mxu0 0
    %5857 = vmatprep.subr.bf16.mxu0 0
    %5858 = vmatpush1.bf16.msra.mxu0 0
    %5859 = vmatprep.subr.bf16.mxu0 0
    %5860 = vmatpush1.bf16.msra.mxu0 0
    %5861 = vmatprep.subr.bf16.mxu0 0
    %5862 = vmatpush1.bf16.msra.mxu0 0
    %5863 = vmatprep.subr.bf16.mxu0 0
    %5864 = vmatpush1.bf16.msra.mxu0 0
    %5865 = vmatprep.mubr.bf16.mxu0 0
    %5866 = vmatmul.mubr.bf16.gmra.mrb[0].mxu0 %v5791
    %v5867 = vpop.f32.mrb[0].mxu0
    %v5868 = vadd.f32 0.0, %v5867
    %v5869 = vpop.f32.mrb[0].mxu0
    %v5870 = vadd.f32 0.0, %v5869
    %v5871 = vpop.f32.mrb[0].mxu0
    %v5872 = vpop.f32.mrb[0].mxu0
    %5873 = vdwg.mxu0
    %v5874 = vadd.f32 %v5787, %v5827
    %v5875 = vadd.f32 %v5788, %v5829
    %v5876 = vadd.f32 %v5789, %v5868
    %v5877 = vadd.f32 %v5790, %v5870
    %v5878 = vxor.u32 %v5874, 2147483648
    %v5879 = vmul.f32 %v5878, 1.442695
    %v5880 = vpow.pop %v5879
    %v5881 = vadd.f32 %v5880, 1.0
    %v5882 = vrcp.pop %v5881
    %v5883 = vmul.f32 1.0, %v5882
    %v5884 = vxor.u32 %v5875, 2147483648
    %v5885 = vmul.f32 %v5884, 1.442695
    %v5886 = vpow.pop %v5885
    %v5887 = vadd.f32 %v5886, 1.0
    %v5888 = vrcp.pop %v5887
    %v5889 = vmul.f32 1.0, %v5888
    %v5890 = vxor.u32 %v5876, 2147483648
    %v5891 = vmul.f32 %v5890, 1.442695
    %v5892 = vpow.pop %v5891
    %v5893 = vadd.f32 %v5892, 1.0
    %v5894 = vrcp.pop %v5893
    %v5895 = vmul.f32 1.0, %v5894
    %v5896 = vtanh.pop %v5877
    %v5897 = vmul.f32 %v5889, %v5784
    %v5898 = vmul.f32 %v5883, %v5896
    %v5899 = vadd.f32 %v5897, %v5898
    %v5900 = vtanh.pop %v5899
    %v5901 = vmul.f32 %v5895, %v5900
    %v5902 = vstv %s5785
    %v5903 = vstv %s5786
    %v5904 = vsel %vm5406, %v5902, %v5903
    %vm5905 = vcmp.lt.s32.totalorder %v5904, %v5412
    %v5906 = vsel %vm5905, %v5901, %v5783
    %v5907 = vsel %vm5905, %v5899, %v5784
    %s5908 = sadd.s32 %s5129, 5
    %s5909 = ssub.s32 10, %s5129
    %v5910 = vld [vmem:[%s4017] sm:$0xff]
    %v5911 = vld [vmem:[%s4017 + $0x8] sm:$0xff]
    %v5912 = vld [vmem:[%s4017 + $0x10] sm:$0xff]
    %v5913 = vld [vmem:[%s4017 + $0x18] sm:$0xff]
    %v5914 = vpack.c.bf16 %v5906, %v5906
    %5915 = vmatprep.subr.bf16.mxu0 %v5233
    %5916 = vmatpush1.bf16.msra.mxu0 %v5232
    %5917 = vmatprep.subr.bf16.mxu0 %v5237
    %5918 = vmatpush1.bf16.msra.mxu0 %v5236
    %5919 = vmatprep.subr.bf16.mxu0 %v5241
    %5920 = vmatpush1.bf16.msra.mxu0 %v5240
    %5921 = vmatprep.subr.bf16.mxu0 %v5245
    %5922 = vmatpush1.bf16.msra.mxu0 %v5244
    %5923 = vmatprep.subr.bf16.mxu0 %v5249
    %5924 = vmatpush1.bf16.msra.mxu0 %v5248
    %5925 = vmatprep.subr.bf16.mxu0 %v5253
    %5926 = vmatpush1.bf16.msra.mxu0 %v5252
    %5927 = vmatprep.subr.bf16.mxu0 %v5257
    %5928 = vmatpush1.bf16.msra.mxu0 %v5256
    %5929 = vmatprep.subr.bf16.mxu0 %v5261
    %5930 = vmatpush1.bf16.msra.mxu0 %v5260
    %5931 = vmatprep.subr.bf16.mxu0 0
    %5932 = vmatpush1.bf16.msra.mxu0 0
    %5933 = vmatprep.subr.bf16.mxu0 0
    %5934 = vmatpush1.bf16.msra.mxu0 0
    %5935 = vmatprep.subr.bf16.mxu0 0
    %5936 = vmatpush1.bf16.msra.mxu0 0
    %5937 = vmatprep.subr.bf16.mxu0 0
    %5938 = vmatpush1.bf16.msra.mxu0 0
    %5939 = vmatprep.subr.bf16.mxu0 0
    %5940 = vmatpush1.bf16.msra.mxu0 0
    %5941 = vmatprep.subr.bf16.mxu0 0
    %5942 = vmatpush1.bf16.msra.mxu0 0
    %5943 = vmatprep.subr.bf16.mxu0 0
    %5944 = vmatpush1.bf16.msra.mxu0 0
    %5945 = vmatprep.subr.bf16.mxu0 0
    %5946 = vmatpush1.bf16.msra.mxu0 0
    %5947 = vmatprep.mubr.bf16.mxu0 0
    %5948 = vmatmul.mubr.bf16.gmra.mrb[0].mxu0 %v5914
    %v5949 = vpop.f32.mrb[0].mxu0
    %v5950 = vadd.f32 0.0, %v5949
    %v5951 = vpop.f32.mrb[0].mxu0
    %v5952 = vadd.f32 0.0, %v5951
    %v5953 = vpop.f32.mrb[0].mxu0
    %v5954 = vpop.f32.mrb[0].mxu0
    %5955 = vdwg.mxu0
    %5956 = vmatprep.subr.bf16.mxu0 %v5235
    %5957 = vmatpush1.bf16.msra.mxu0 %v5234
    %5958 = vmatprep.subr.bf16.mxu0 %v5239
    %5959 = vmatpush1.bf16.msra.mxu0 %v5238
    %5960 = vmatprep.subr.bf16.mxu0 %v5243
    %5961 = vmatpush1.bf16.msra.mxu0 %v5242
    %5962 = vmatprep.subr.bf16.mxu0 %v5247
    %5963 = vmatpush1.bf16.msra.mxu0 %v5246
    %5964 = vmatprep.subr.bf16.mxu0 %v5251
    %5965 = vmatpush1.bf16.msra.mxu0 %v5250
    %5966 = vmatprep.subr.bf16.mxu0 %v5255
    %5967 = vmatpush1.bf16.msra.mxu0 %v5254
    %5968 = vmatprep.subr.bf16.mxu0 %v5259
    %5969 = vmatpush1.bf16.msra.mxu0 %v5258
    %5970 = vmatprep.subr.bf16.mxu0 %v5263
    %5971 = vmatpush1.bf16.msra.mxu0 %v5262
    %5972 = vmatprep.subr.bf16.mxu0 0
    %5973 = vmatpush1.bf16.msra.mxu0 0
    %5974 = vmatprep.subr.bf16.mxu0 0
    %5975 = vmatpush1.bf16.msra.mxu0 0
    %5976 = vmatprep.subr.bf16.mxu0 0
    %5977 = vmatpush1.bf16.msra.mxu0 0
    %5978 = vmatprep.subr.bf16.mxu0 0
    %5979 = vmatpush1.bf16.msra.mxu0 0
    %5980 = vmatprep.subr.bf16.mxu0 0
    %5981 = vmatpush1.bf16.msra.mxu0 0
    %5982 = vmatprep.subr.bf16.mxu0 0
    %5983 = vmatpush1.bf16.msra.mxu0 0
    %5984 = vmatprep.subr.bf16.mxu0 0
    %5985 = vmatpush1.bf16.msra.mxu0 0
    %5986 = vmatprep.subr.bf16.mxu0 0
    %5987 = vmatpush1.bf16.msra.mxu0 0
    %5988 = vmatprep.mubr.bf16.mxu0 0
    %5989 = vmatmul.mubr.bf16.gmra.mrb[0].mxu0 %v5914
    %v5990 = vpop.f32.mrb[0].mxu0
    %v5991 = vadd.f32 0.0, %v5990
    %v5992 = vpop.f32.mrb[0].mxu0
    %v5993 = vadd.f32 0.0, %v5992
    %v5994 = vpop.f32.mrb[0].mxu0
    %v5995 = vpop.f32.mrb[0].mxu0
    %5996 = vdwg.mxu0
    %v5997 = vadd.f32 %v5910, %v5950
    %v5998 = vadd.f32 %v5911, %v5952
    %v5999 = vadd.f32 %v5912, %v5991
    %v6000 = vadd.f32 %v5913, %v5993
    %v6001 = vxor.u32 %v5997, 2147483648
    %v6002 = vmul.f32 %v6001, 1.442695
    %v6003 = vpow.pop %v6002
    %v6004 = vadd.f32 %v6003, 1.0
    %v6005 = vrcp.pop %v6004
    %v6006 = vmul.f32 1.0, %v6005
    %v6007 = vxor.u32 %v5998, 2147483648
    %v6008 = vmul.f32 %v6007, 1.442695
    %v6009 = vpow.pop %v6008
    %v6010 = vadd.f32 %v6009, 1.0
    %v6011 = vrcp.pop %v6010
    %v6012 = vmul.f32 1.0, %v6011
    %v6013 = vxor.u32 %v5999, 2147483648
    %v6014 = vmul.f32 %v6013, 1.442695
    %v6015 = vpow.pop %v6014
    %v6016 = vadd.f32 %v6015, 1.0
    %v6017 = vrcp.pop %v6016
    %v6018 = vmul.f32 1.0, %v6017
    %v6019 = vtanh.pop %v6000
    %v6020 = vmul.f32 %v6012, %v5907
    %v6021 = vmul.f32 %v6006, %v6019
    %v6022 = vadd.f32 %v6020, %v6021
    %v6023 = vtanh.pop %v6022
    %v6024 = vmul.f32 %v6018, %v6023
    %v6025 = vstv %s5908
    %v6026 = vstv %s5909
    %v6027 = vsel %vm5406, %v6025, %v6026
    %vm6028 = vcmp.lt.s32.totalorder %v6027, %v5412
    %v6029 = vsel %vm6028, %v6024, %v5906
    %v6030 = vsel %vm6028, %v6022, %v5907
    %s6031 = sadd.s32 %s5129, 6
    %s6032 = ssub.s32 9, %s5129
    %v6033 = vld [vmem:[%s4119] sm:$0xff]
    %v6034 = vld [vmem:[%s4119 + $0x8] sm:$0xff]
    %v6035 = vld [vmem:[%s4119 + $0x10] sm:$0xff]
    %v6036 = vld [vmem:[%s4119 + $0x18] sm:$0xff]
    %v6037 = vpack.c.bf16 %v6029, %v6029
    %6038 = vmatprep.subr.bf16.mxu0 %v5233
    %6039 = vmatpush1.bf16.msra.mxu0 %v5232
    %6040 = vmatprep.subr.bf16.mxu0 %v5237
    %6041 = vmatpush1.bf16.msra.mxu0 %v5236
    %6042 = vmatprep.subr.bf16.mxu0 %v5241
    %6043 = vmatpush1.bf16.msra.mxu0 %v5240
    %6044 = vmatprep.subr.bf16.mxu0 %v5245
    %6045 = vmatpush1.bf16.msra.mxu0 %v5244
    %6046 = vmatprep.subr.bf16.mxu0 %v5249
    %6047 = vmatpush1.bf16.msra.mxu0 %v5248
    %6048 = vmatprep.subr.bf16.mxu0 %v5253
    %6049 = vmatpush1.bf16.msra.mxu0 %v5252
    %6050 = vmatprep.subr.bf16.mxu0 %v5257
    %6051 = vmatpush1.bf16.msra.mxu0 %v5256
    %6052 = vmatprep.subr.bf16.mxu0 %v5261
    %6053 = vmatpush1.bf16.msra.mxu0 %v5260
    %6054 = vmatprep.subr.bf16.mxu0 0
    %6055 = vmatpush1.bf16.msra.mxu0 0
    %6056 = vmatprep.subr.bf16.mxu0 0
    %6057 = vmatpush1.bf16.msra.mxu0 0
    %6058 = vmatprep.subr.bf16.mxu0 0
    %6059 = vmatpush1.bf16.msra.mxu0 0
    %6060 = vmatprep.subr.bf16.mxu0 0
    %6061 = vmatpush1.bf16.msra.mxu0 0
    %6062 = vmatprep.subr.bf16.mxu0 0
    %6063 = vmatpush1.bf16.msra.mxu0 0
    %6064 = vmatprep.subr.bf16.mxu0 0
    %6065 = vmatpush1.bf16.msra.mxu0 0
    %6066 = vmatprep.subr.bf16.mxu0 0
    %6067 = vmatpush1.bf16.msra.mxu0 0
    %6068 = vmatprep.subr.bf16.mxu0 0
    %6069 = vmatpush1.bf16.msra.mxu0 0
    %6070 = vmatprep.mubr.bf16.mxu0 0
    %6071 = vmatmul.mubr.bf16.gmra.mrb[0].mxu0 %v6037
    %v6072 = vpop.f32.mrb[0].mxu0
    %v6073 = vadd.f32 0.0, %v6072
    %v6074 = vpop.f32.mrb[0].mxu0
    %v6075 = vadd.f32 0.0, %v6074
    %v6076 = vpop.f32.mrb[0].mxu0
    %v6077 = vpop.f32.mrb[0].mxu0
    %6078 = vdwg.mxu0
    %6079 = vmatprep.subr.bf16.mxu0 %v5235
    %6080 = vmatpush1.bf16.msra.mxu0 %v5234
    %6081 = vmatprep.subr.bf16.mxu0 %v5239
    %6082 = vmatpush1.bf16.msra.mxu0 %v5238
    %6083 = vmatprep.subr.bf16.mxu0 %v5243
    %6084 = vmatpush1.bf16.msra.mxu0 %v5242
    %6085 = vmatprep.subr.bf16.mxu0 %v5247
    %6086 = vmatpush1.bf16.msra.mxu0 %v5246
    %6087 = vmatprep.subr.bf16.mxu0 %v5251
    %6088 = vmatpush1.bf16.msra.mxu0 %v5250
    %6089 = vmatprep.subr.bf16.mxu0 %v5255
    %6090 = vmatpush1.bf16.msra.mxu0 %v5254
    %6091 = vmatprep.subr.bf16.mxu0 %v5259
    %6092 = vmatpush1.bf16.msra.mxu0 %v5258
    %6093 = vmatprep.subr.bf16.mxu0 %v5263
    %6094 = vmatpush1.bf16.msra.mxu0 %v5262
    %6095 = vmatprep.subr.bf16.mxu0 0
    %6096 = vmatpush1.bf16.msra.mxu0 0
    %6097 = vmatprep.subr.bf16.mxu0 0
    %6098 = vmatpush1.bf16.msra.mxu0 0
    %6099 = vmatprep.subr.bf16.mxu0 0
    %6100 = vmatpush1.bf16.msra.mxu0 0
    %6101 = vmatprep.subr.bf16.mxu0 0
    %6102 = vmatpush1.bf16.msra.mxu0 0
    %6103 = vmatprep.subr.bf16.mxu0 0
    %6104 = vmatpush1.bf16.msra.mxu0 0
    %6105 = vmatprep.subr.bf16.mxu0 0
    %6106 = vmatpush1.bf16.msra.mxu0 0
    %6107 = vmatprep.subr.bf16.mxu0 0
    %6108 = vmatpush1.bf16.msra.mxu0 0
    %6109 = vmatprep.subr.bf16.mxu0 0
    %6110 = vmatpush1.bf16.msra.mxu0 0
    %6111 = vmatprep.mubr.bf16.mxu0 0
    %6112 = vmatmul.mubr.bf16.gmra.mrb[0].mxu0 %v6037
    %v6113 = vpop.f32.mrb[0].mxu0
    %v6114 = vadd.f32 0.0, %v6113
    %v6115 = vpop.f32.mrb[0].mxu0
    %v6116 = vadd.f32 0.0, %v6115
    %v6117 = vpop.f32.mrb[0].mxu0
    %v6118 = vpop.f32.mrb[0].mxu0
    %6119 = vdwg.mxu0
    %v6120 = vadd.f32 %v6033, %v6073
    %v6121 = vadd.f32 %v6034, %v6075
    %v6122 = vadd.f32 %v6035, %v6114
    %v6123 = vadd.f32 %v6036, %v6116
    %v6124 = vxor.u32 %v6120, 2147483648
    %v6125 = vmul.f32 %v6124, 1.442695
    %v6126 = vpow.pop %v6125
    %v6127 = vadd.f32 %v6126, 1.0
    %v6128 = vrcp.pop %v6127
    %v6129 = vmul.f32 1.0, %v6128
    %v6130 = vxor.u32 %v6121, 2147483648
    %v6131 = vmul.f32 %v6130, 1.442695
    %v6132 = vpow.pop %v6131
    %v6133 = vadd.f32 %v6132, 1.0
    %v6134 = vrcp.pop %v6133
    %v6135 = vmul.f32 1.0, %v6134
    %v6136 = vxor.u32 %v6122, 2147483648
    %v6137 = vmul.f32 %v6136, 1.442695
    %v6138 = vpow.pop %v6137
    %v6139 = vadd.f32 %v6138, 1.0
    %v6140 = vrcp.pop %v6139
    %v6141 = vmul.f32 1.0, %v6140
    %v6142 = vtanh.pop %v6123
    %v6143 = vmul.f32 %v6135, %v6030
    %v6144 = vmul.f32 %v6129, %v6142
    %v6145 = vadd.f32 %v6143, %v6144
    %v6146 = vtanh.pop %v6145
    %v6147 = vmul.f32 %v6141, %v6146
    %v6148 = vstv %s6031
    %v6149 = vstv %s6032
    %v6150 = vsel %vm5406, %v6148, %v6149
    %vm6151 = vcmp.lt.s32.totalorder %v6150, %v5412
    %v6152 = vsel %vm6151, %v6147, %v6029
    %v6153 = vsel %vm6151, %v6145, %v6030
    %s6154 = sadd.s32 %s5129, 7
    %s6155 = ssub.s32 8, %s5129
    %v6156 = vld [vmem:[%s4221] sm:$0xff]
    %v6157 = vld [vmem:[%s4221 + $0x8] sm:$0xff]
    %v6158 = vld [vmem:[%s4221 + $0x10] sm:$0xff]
    %v6159 = vld [vmem:[%s4221 + $0x18] sm:$0xff]
    %v6160 = vpack.c.bf16 %v6152, %v6152
    %6161 = vmatprep.subr.bf16.mxu0 %v5233
    %6162 = vmatpush1.bf16.msra.mxu0 %v5232
    %6163 = vmatprep.subr.bf16.mxu0 %v5237
    %6164 = vmatpush1.bf16.msra.mxu0 %v5236
    %6165 = vmatprep.subr.bf16.mxu0 %v5241
    %6166 = vmatpush1.bf16.msra.mxu0 %v5240
    %6167 = vmatprep.subr.bf16.mxu0 %v5245
    %6168 = vmatpush1.bf16.msra.mxu0 %v5244
    %6169 = vmatprep.subr.bf16.mxu0 %v5249
    %6170 = vmatpush1.bf16.msra.mxu0 %v5248
    %6171 = vmatprep.subr.bf16.mxu0 %v5253
    %6172 = vmatpush1.bf16.msra.mxu0 %v5252
    %6173 = vmatprep.subr.bf16.mxu0 %v5257
    %6174 = vmatpush1.bf16.msra.mxu0 %v5256
    %6175 = vmatprep.subr.bf16.mxu0 %v5261
    %6176 = vmatpush1.bf16.msra.mxu0 %v5260
    %6177 = vmatprep.subr.bf16.mxu0 0
    %6178 = vmatpush1.bf16.msra.mxu0 0
    %6179 = vmatprep.subr.bf16.mxu0 0
    %6180 = vmatpush1.bf16.msra.mxu0 0
    %6181 = vmatprep.subr.bf16.mxu0 0
    %6182 = vmatpush1.bf16.msra.mxu0 0
    %6183 = vmatprep.subr.bf16.mxu0 0
    %6184 = vmatpush1.bf16.msra.mxu0 0
    %6185 = vmatprep.subr.bf16.mxu0 0
    %6186 = vmatpush1.bf16.msra.mxu0 0
    %6187 = vmatprep.subr.bf16.mxu0 0
    %6188 = vmatpush1.bf16.msra.mxu0 0
    %6189 = vmatprep.subr.bf16.mxu0 0
    %6190 = vmatpush1.bf16.msra.mxu0 0
    %6191 = vmatprep.subr.bf16.mxu0 0
    %6192 = vmatpush1.bf16.msra.mxu0 0
    %6193 = vmatprep.mubr.bf16.mxu0 0
    %6194 = vmatmul.mubr.bf16.gmra.mrb[0].mxu0 %v6160
    %v6195 = vpop.f32.mrb[0].mxu0
    %v6196 = vadd.f32 0.0, %v6195
    %v6197 = vpop.f32.mrb[0].mxu0
    %v6198 = vadd.f32 0.0, %v6197
    %v6199 = vpop.f32.mrb[0].mxu0
    %v6200 = vpop.f32.mrb[0].mxu0
    %6201 = vdwg.mxu0
    %6202 = vmatprep.subr.bf16.mxu0 %v5235
    %6203 = vmatpush1.bf16.msra.mxu0 %v5234
    %6204 = vmatprep.subr.bf16.mxu0 %v5239
    %6205 = vmatpush1.bf16.msra.mxu0 %v5238
    %6206 = vmatprep.subr.bf16.mxu0 %v5243
    %6207 = vmatpush1.bf16.msra.mxu0 %v5242
    %6208 = vmatprep.subr.bf16.mxu0 %v5247
    %6209 = vmatpush1.bf16.msra.mxu0 %v5246
    %6210 = vmatprep.subr.bf16.mxu0 %v5251
    %6211 = vmatpush1.bf16.msra.mxu0 %v5250
    %6212 = vmatprep.subr.bf16.mxu0 %v5255
    %6213 = vmatpush1.bf16.msra.mxu0 %v5254
    %6214 = vmatprep.subr.bf16.mxu0 %v5259
    %6215 = vmatpush1.bf16.msra.mxu0 %v5258
    %6216 = vmatprep.subr.bf16.mxu0 %v5263
    %6217 = vmatpush1.bf16.msra.mxu0 %v5262
    %6218 = vmatprep.subr.bf16.mxu0 0
    %6219 = vmatpush1.bf16.msra.mxu0 0
    %6220 = vmatprep.subr.bf16.mxu0 0
    %6221 = vmatpush1.bf16.msra.mxu0 0
    %6222 = vmatprep.subr.bf16.mxu0 0
    %6223 = vmatpush1.bf16.msra.mxu0 0
    %6224 = vmatprep.subr.bf16.mxu0 0
    %6225 = vmatpush1.bf16.msra.mxu0 0
    %6226 = vmatprep.subr.bf16.mxu0 0
    %6227 = vmatpush1.bf16.msra.mxu0 0
    %6228 = vmatprep.subr.bf16.mxu0 0
    %6229 = vmatpush1.bf16.msra.mxu0 0
    %6230 = vmatprep.subr.bf16.mxu0 0
    %6231 = vmatpush1.bf16.msra.mxu0 0
    %6232 = vmatprep.subr.bf16.mxu0 0
    %6233 = vmatpush1.bf16.msra.mxu0 0
    %6234 = vmatprep.mubr.bf16.mxu0 0
    %6235 = vmatmul.mubr.bf16.gmra.mrb[0].mxu0 %v6160
    %v6236 = vpop.f32.mrb[0].mxu0
    %v6237 = vadd.f32 0.0, %v6236
    %v6238 = vpop.f32.mrb[0].mxu0
    %v6239 = vadd.f32 0.0, %v6238
    %v6240 = vpop.f32.mrb[0].mxu0
    %v6241 = vpop.f32.mrb[0].mxu0
    %6242 = vdwg.mxu0
    %v6243 = vadd.f32 %v6156, %v6196
    %v6244 = vadd.f32 %v6157, %v6198
    %v6245 = vadd.f32 %v6158, %v6237
    %v6246 = vadd.f32 %v6159, %v6239
    %v6247 = vxor.u32 %v6243, 2147483648
    %v6248 = vmul.f32 %v6247, 1.442695
    %v6249 = vpow.pop %v6248
    %v6250 = vadd.f32 %v6249, 1.0
    %v6251 = vrcp.pop %v6250
    %v6252 = vmul.f32 1.0, %v6251
    %v6253 = vxor.u32 %v6244, 2147483648
    %v6254 = vmul.f32 %v6253, 1.442695
    %v6255 = vpow.pop %v6254
    %v6256 = vadd.f32 %v6255, 1.0
    %v6257 = vrcp.pop %v6256
    %v6258 = vmul.f32 1.0, %v6257
    %v6259 = vxor.u32 %v6245, 2147483648
    %v6260 = vmul.f32 %v6259, 1.442695
    %v6261 = vpow.pop %v6260
    %v6262 = vadd.f32 %v6261, 1.0
    %v6263 = vrcp.pop %v6262
    %v6264 = vmul.f32 1.0, %v6263
    %v6265 = vtanh.pop %v6246
    %v6266 = vmul.f32 %v6258, %v6153
    %v6267 = vmul.f32 %v6252, %v6265
    %v6268 = vadd.f32 %v6266, %v6267
    %v6269 = vtanh.pop %v6268
    %v6270 = vmul.f32 %v6264, %v6269
    %v6271 = vstv %s6154
    %v6272 = vstv %s6155
    %v6273 = vsel %vm5406, %v6271, %v6272
    %vm6274 = vcmp.lt.s32.totalorder %v6273, %v5412
    %v6275 = vsel %vm6274, %v6270, %v6152
    %v6276 = vsel %vm6274, %v6268, %v6153
    %s6277 = sadd.s32 %s5129, 8
    %s6278 = ssub.s32 7, %s5129
    %v6279 = vld [vmem:[%s4338] sm:$0xff]
    %v6280 = vld [vmem:[%s4338 + $0x8] sm:$0xff]
    %v6281 = vld [vmem:[%s4338 + $0x10] sm:$0xff]
    %v6282 = vld [vmem:[%s4338 + $0x18] sm:$0xff]
    %v6283 = vpack.c.bf16 %v6275, %v6275
    %6284 = vmatprep.subr.bf16.mxu0 %v5233
    %6285 = vmatpush1.bf16.msra.mxu0 %v5232
    %6286 = vmatprep.subr.bf16.mxu0 %v5237
    %6287 = vmatpush1.bf16.msra.mxu0 %v5236
    %6288 = vmatprep.subr.bf16.mxu0 %v5241
    %6289 = vmatpush1.bf16.msra.mxu0 %v5240
    %6290 = vmatprep.subr.bf16.mxu0 %v5245
    %6291 = vmatpush1.bf16.msra.mxu0 %v5244
    %6292 = vmatprep.subr.bf16.mxu0 %v5249
    %6293 = vmatpush1.bf16.msra.mxu0 %v5248
    %6294 = vmatprep.subr.bf16.mxu0 %v5253
    %6295 = vmatpush1.bf16.msra.mxu0 %v5252
    %6296 = vmatprep.subr.bf16.mxu0 %v5257
    %6297 = vmatpush1.bf16.msra.mxu0 %v5256
    %6298 = vmatprep.subr.bf16.mxu0 %v5261
    %6299 = vmatpush1.bf16.msra.mxu0 %v5260
    %6300 = vmatprep.subr.bf16.mxu0 0
    %6301 = vmatpush1.bf16.msra.mxu0 0
    %6302 = vmatprep.subr.bf16.mxu0 0
    %6303 = vmatpush1.bf16.msra.mxu0 0
    %6304 = vmatprep.subr.bf16.mxu0 0
    %6305 = vmatpush1.bf16.msra.mxu0 0
    %6306 = vmatprep.subr.bf16.mxu0 0
    %6307 = vmatpush1.bf16.msra.mxu0 0
    %6308 = vmatprep.subr.bf16.mxu0 0
    %6309 = vmatpush1.bf16.msra.mxu0 0
    %6310 = vmatprep.subr.bf16.mxu0 0
    %6311 = vmatpush1.bf16.msra.mxu0 0
    %6312 = vmatprep.subr.bf16.mxu0 0
    %6313 = vmatpush1.bf16.msra.mxu0 0
    %6314 = vmatprep.subr.bf16.mxu0 0
    %6315 = vmatpush1.bf16.msra.mxu0 0
    %6316 = vmatprep.mubr.bf16.mxu0 0
    %6317 = vmatmul.mubr.bf16.gmra.mrb[0].mxu0 %v6283
    %v6318 = vpop.f32.mrb[0].mxu0
    %v6319 = vadd.f32 0.0, %v6318
    %v6320 = vpop.f32.mrb[0].mxu0
    %v6321 = vadd.f32 0.0, %v6320
    %v6322 = vpop.f32.mrb[0].mxu0
    %v6323 = vpop.f32.mrb[0].mxu0
    %6324 = vdwg.mxu0
    %6325 = vmatprep.subr.bf16.mxu0 %v5235
    %6326 = vmatpush1.bf16.msra.mxu0 %v5234
    %6327 = vmatprep.subr.bf16.mxu0 %v5239
    %6328 = vmatpush1.bf16.msra.mxu0 %v5238
    %6329 = vmatprep.subr.bf16.mxu0 %v5243
    %6330 = vmatpush1.bf16.msra.mxu0 %v5242
    %6331 = vmatprep.subr.bf16.mxu0 %v5247
    %6332 = vmatpush1.bf16.msra.mxu0 %v5246
    %6333 = vmatprep.subr.bf16.mxu0 %v5251
    %6334 = vmatpush1.bf16.msra.mxu0 %v5250
    %6335 = vmatprep.subr.bf16.mxu0 %v5255
    %6336 = vmatpush1.bf16.msra.mxu0 %v5254
    %6337 = vmatprep.subr.bf16.mxu0 %v5259
    %6338 = vmatpush1.bf16.msra.mxu0 %v5258
    %6339 = vmatprep.subr.bf16.mxu0 %v5263
    %6340 = vmatpush1.bf16.msra.mxu0 %v5262
    %6341 = vmatprep.subr.bf16.mxu0 0
    %6342 = vmatpush1.bf16.msra.mxu0 0
    %6343 = vmatprep.subr.bf16.mxu0 0
    %6344 = vmatpush1.bf16.msra.mxu0 0
    %6345 = vmatprep.subr.bf16.mxu0 0
    %6346 = vmatpush1.bf16.msra.mxu0 0
    %6347 = vmatprep.subr.bf16.mxu0 0
    %6348 = vmatpush1.bf16.msra.mxu0 0
    %6349 = vmatprep.subr.bf16.mxu0 0
    %6350 = vmatpush1.bf16.msra.mxu0 0
    %6351 = vmatprep.subr.bf16.mxu0 0
    %6352 = vmatpush1.bf16.msra.mxu0 0
    %6353 = vmatprep.subr.bf16.mxu0 0
    %6354 = vmatpush1.bf16.msra.mxu0 0
    %6355 = vmatprep.subr.bf16.mxu0 0
    %6356 = vmatpush1.bf16.msra.mxu0 0
    %6357 = vmatprep.mubr.bf16.mxu0 0
    %6358 = vmatmul.mubr.bf16.gmra.mrb[0].mxu0 %v6283
    %v6359 = vpop.f32.mrb[0].mxu0
    %v6360 = vadd.f32 0.0, %v6359
    %v6361 = vpop.f32.mrb[0].mxu0
    %v6362 = vadd.f32 0.0, %v6361
    %v6363 = vpop.f32.mrb[0].mxu0
    %v6364 = vpop.f32.mrb[0].mxu0
    %6365 = vdwg.mxu0
    %v6366 = vadd.f32 %v6279, %v6319
    %v6367 = vadd.f32 %v6280, %v6321
    %v6368 = vadd.f32 %v6281, %v6360
    %v6369 = vadd.f32 %v6282, %v6362
    %v6370 = vxor.u32 %v6366, 2147483648
    %v6371 = vmul.f32 %v6370, 1.442695
    %v6372 = vpow.pop %v6371
    %v6373 = vadd.f32 %v6372, 1.0
    %v6374 = vrcp.pop %v6373
    %v6375 = vmul.f32 1.0, %v6374
    %v6376 = vxor.u32 %v6367, 2147483648
    %v6377 = vmul.f32 %v6376, 1.442695
    %v6378 = vpow.pop %v6377
    %v6379 = vadd.f32 %v6378, 1.0
    %v6380 = vrcp.pop %v6379
    %v6381 = vmul.f32 1.0, %v6380
    %v6382 = vxor.u32 %v6368, 2147483648
    %v6383 = vmul.f32 %v6382, 1.442695
    %v6384 = vpow.pop %v6383
    %v6385 = vadd.f32 %v6384, 1.0
    %v6386 = vrcp.pop %v6385
    %v6387 = vmul.f32 1.0, %v6386
    %v6388 = vtanh.pop %v6369
    %v6389 = vmul.f32 %v6381, %v6276
    %v6390 = vmul.f32 %v6375, %v6388
    %v6391 = vadd.f32 %v6389, %v6390
    %v6392 = vtanh.pop %v6391
    %v6393 = vmul.f32 %v6387, %v6392
    %v6394 = vstv %s6277
    %v6395 = vstv %s6278
    %v6396 = vsel %vm5406, %v6394, %v6395
    %vm6397 = vcmp.lt.s32.totalorder %v6396, %v5412
    %v6398 = vsel %vm6397, %v6393, %v6275
    %v6399 = vsel %vm6397, %v6391, %v6276
    %s6400 = sadd.s32 %s5129, 9
    %s6401 = ssub.s32 6, %s5129
    %v6402 = vld [vmem:[%s4453] sm:$0xff]
    %v6403 = vld [vmem:[%s4453 + $0x8] sm:$0xff]
    %v6404 = vld [vmem:[%s4453 + $0x10] sm:$0xff]
    %v6405 = vld [vmem:[%s4453 + $0x18] sm:$0xff]
    %v6406 = vpack.c.bf16 %v6398, %v6398
    %6407 = vmatprep.subr.bf16.mxu0 %v5233
    %6408 = vmatpush1.bf16.msra.mxu0 %v5232
    %6409 = vmatprep.subr.bf16.mxu0 %v5237
    %6410 = vmatpush1.bf16.msra.mxu0 %v5236
    %6411 = vmatprep.subr.bf16.mxu0 %v5241
    %6412 = vmatpush1.bf16.msra.mxu0 %v5240
    %6413 = vmatprep.subr.bf16.mxu0 %v5245
    %6414 = vmatpush1.bf16.msra.mxu0 %v5244
    %6415 = vmatprep.subr.bf16.mxu0 %v5249
    %6416 = vmatpush1.bf16.msra.mxu0 %v5248
    %6417 = vmatprep.subr.bf16.mxu0 %v5253
    %6418 = vmatpush1.bf16.msra.mxu0 %v5252
    %6419 = vmatprep.subr.bf16.mxu0 %v5257
    %6420 = vmatpush1.bf16.msra.mxu0 %v5256
    %6421 = vmatprep.subr.bf16.mxu0 %v5261
    %6422 = vmatpush1.bf16.msra.mxu0 %v5260
    %6423 = vmatprep.subr.bf16.mxu0 0
    %6424 = vmatpush1.bf16.msra.mxu0 0
    %6425 = vmatprep.subr.bf16.mxu0 0
    %6426 = vmatpush1.bf16.msra.mxu0 0
    %6427 = vmatprep.subr.bf16.mxu0 0
    %6428 = vmatpush1.bf16.msra.mxu0 0
    %6429 = vmatprep.subr.bf16.mxu0 0
    %6430 = vmatpush1.bf16.msra.mxu0 0
    %6431 = vmatprep.subr.bf16.mxu0 0
    %6432 = vmatpush1.bf16.msra.mxu0 0
    %6433 = vmatprep.subr.bf16.mxu0 0
    %6434 = vmatpush1.bf16.msra.mxu0 0
    %6435 = vmatprep.subr.bf16.mxu0 0
    %6436 = vmatpush1.bf16.msra.mxu0 0
    %6437 = vmatprep.subr.bf16.mxu0 0
    %6438 = vmatpush1.bf16.msra.mxu0 0
    %6439 = vmatprep.mubr.bf16.mxu0 0
    %6440 = vmatmul.mubr.bf16.gmra.mrb[0].mxu0 %v6406
    %v6441 = vpop.f32.mrb[0].mxu0
    %v6442 = vadd.f32 0.0, %v6441
    %v6443 = vpop.f32.mrb[0].mxu0
    %v6444 = vadd.f32 0.0, %v6443
    %v6445 = vpop.f32.mrb[0].mxu0
    %v6446 = vpop.f32.mrb[0].mxu0
    %6447 = vdwg.mxu0
    %6448 = vmatprep.subr.bf16.mxu0 %v5235
    %6449 = vmatpush1.bf16.msra.mxu0 %v5234
    %6450 = vmatprep.subr.bf16.mxu0 %v5239
    %6451 = vmatpush1.bf16.msra.mxu0 %v5238
    %6452 = vmatprep.subr.bf16.mxu0 %v5243
    %6453 = vmatpush1.bf16.msra.mxu0 %v5242
    %6454 = vmatprep.subr.bf16.mxu0 %v5247
    %6455 = vmatpush1.bf16.msra.mxu0 %v5246
    %6456 = vmatprep.subr.bf16.mxu0 %v5251
    %6457 = vmatpush1.bf16.msra.mxu0 %v5250
    %6458 = vmatprep.subr.bf16.mxu0 %v5255
    %6459 = vmatpush1.bf16.msra.mxu0 %v5254
    %6460 = vmatprep.subr.bf16.mxu0 %v5259
    %6461 = vmatpush1.bf16.msra.mxu0 %v5258
    %6462 = vmatprep.subr.bf16.mxu0 %v5263
    %6463 = vmatpush1.bf16.msra.mxu0 %v5262
    %6464 = vmatprep.subr.bf16.mxu0 0
    %6465 = vmatpush1.bf16.msra.mxu0 0
    %6466 = vmatprep.subr.bf16.mxu0 0
    %6467 = vmatpush1.bf16.msra.mxu0 0
    %6468 = vmatprep.subr.bf16.mxu0 0
    %6469 = vmatpush1.bf16.msra.mxu0 0
    %6470 = vmatprep.subr.bf16.mxu0 0
    %6471 = vmatpush1.bf16.msra.mxu0 0
    %6472 = vmatprep.subr.bf16.mxu0 0
    %6473 = vmatpush1.bf16.msra.mxu0 0
    %6474 = vmatprep.subr.bf16.mxu0 0
    %6475 = vmatpush1.bf16.msra.mxu0 0
    %6476 = vmatprep.subr.bf16.mxu0 0
    %6477 = vmatpush1.bf16.msra.mxu0 0
    %6478 = vmatprep.subr.bf16.mxu0 0
    %6479 = vmatpush1.bf16.msra.mxu0 0
    %6480 = vmatprep.mubr.bf16.mxu0 0
    %6481 = vmatmul.mubr.bf16.gmra.mrb[0].mxu0 %v6406
    %v6482 = vpop.f32.mrb[0].mxu0
    %v6483 = vadd.f32 0.0, %v6482
    %v6484 = vpop.f32.mrb[0].mxu0
    %v6485 = vadd.f32 0.0, %v6484
    %v6486 = vpop.f32.mrb[0].mxu0
    %v6487 = vpop.f32.mrb[0].mxu0
    %6488 = vdwg.mxu0
    %v6489 = vadd.f32 %v6402, %v6442
    %v6490 = vadd.f32 %v6403, %v6444
    %v6491 = vadd.f32 %v6404, %v6483
    %v6492 = vadd.f32 %v6405, %v6485
    %v6493 = vxor.u32 %v6489, 2147483648
    %v6494 = vmul.f32 %v6493, 1.442695
    %v6495 = vpow.pop %v6494
    %v6496 = vadd.f32 %v6495, 1.0
    %v6497 = vrcp.pop %v6496
    %v6498 = vmul.f32 1.0, %v6497
    %v6499 = vxor.u32 %v6490, 2147483648
    %v6500 = vmul.f32 %v6499, 1.442695
    %v6501 = vpow.pop %v6500
    %v6502 = vadd.f32 %v6501, 1.0
    %v6503 = vrcp.pop %v6502
    %v6504 = vmul.f32 1.0, %v6503
    %v6505 = vxor.u32 %v6491, 2147483648
    %v6506 = vmul.f32 %v6505, 1.442695
    %v6507 = vpow.pop %v6506
    %v6508 = vadd.f32 %v6507, 1.0
    %v6509 = vrcp.pop %v6508
    %v6510 = vmul.f32 1.0, %v6509
    %v6511 = vtanh.pop %v6492
    %v6512 = vmul.f32 %v6504, %v6399
    %v6513 = vmul.f32 %v6498, %v6511
    %v6514 = vadd.f32 %v6512, %v6513
    %v6515 = vtanh.pop %v6514
    %v6516 = vmul.f32 %v6510, %v6515
    %v6517 = vstv %s6400
    %v6518 = vstv %s6401
    %v6519 = vsel %vm5406, %v6517, %v6518
    %vm6520 = vcmp.lt.s32.totalorder %v6519, %v5412
    %v6521 = vsel %vm6520, %v6516, %v6398
    %v6522 = vsel %vm6520, %v6514, %v6399
    %s6523 = sadd.s32 %s5129, 10
    %s6524 = ssub.s32 5, %s5129
    %v6525 = vld [vmem:[%s4568] sm:$0xff]
    %v6526 = vld [vmem:[%s4568 + $0x8] sm:$0xff]
    %v6527 = vld [vmem:[%s4568 + $0x10] sm:$0xff]
    %v6528 = vld [vmem:[%s4568 + $0x18] sm:$0xff]
    %v6529 = vpack.c.bf16 %v6521, %v6521
    %6530 = vmatprep.subr.bf16.mxu0 %v5233
    %6531 = vmatpush1.bf16.msra.mxu0 %v5232
    %6532 = vmatprep.subr.bf16.mxu0 %v5237
    %6533 = vmatpush1.bf16.msra.mxu0 %v5236
    %6534 = vmatprep.subr.bf16.mxu0 %v5241
    %6535 = vmatpush1.bf16.msra.mxu0 %v5240
    %6536 = vmatprep.subr.bf16.mxu0 %v5245
    %6537 = vmatpush1.bf16.msra.mxu0 %v5244
    %6538 = vmatprep.subr.bf16.mxu0 %v5249
    %6539 = vmatpush1.bf16.msra.mxu0 %v5248
    %6540 = vmatprep.subr.bf16.mxu0 %v5253
    %6541 = vmatpush1.bf16.msra.mxu0 %v5252
    %6542 = vmatprep.subr.bf16.mxu0 %v5257
    %6543 = vmatpush1.bf16.msra.mxu0 %v5256
    %6544 = vmatprep.subr.bf16.mxu0 %v5261
    %6545 = vmatpush1.bf16.msra.mxu0 %v5260
    %6546 = vmatprep.subr.bf16.mxu0 0
    %6547 = vmatpush1.bf16.msra.mxu0 0
    %6548 = vmatprep.subr.bf16.mxu0 0
    %6549 = vmatpush1.bf16.msra.mxu0 0
    %6550 = vmatprep.subr.bf16.mxu0 0
    %6551 = vmatpush1.bf16.msra.mxu0 0
    %6552 = vmatprep.subr.bf16.mxu0 0
    %6553 = vmatpush1.bf16.msra.mxu0 0
    %6554 = vmatprep.subr.bf16.mxu0 0
    %6555 = vmatpush1.bf16.msra.mxu0 0
    %6556 = vmatprep.subr.bf16.mxu0 0
    %6557 = vmatpush1.bf16.msra.mxu0 0
    %6558 = vmatprep.subr.bf16.mxu0 0
    %6559 = vmatpush1.bf16.msra.mxu0 0
    %6560 = vmatprep.subr.bf16.mxu0 0
    %6561 = vmatpush1.bf16.msra.mxu0 0
    %6562 = vmatprep.mubr.bf16.mxu0 0
    %6563 = vmatmul.mubr.bf16.gmra.mrb[0].mxu0 %v6529
    %v6564 = vpop.f32.mrb[0].mxu0
    %v6565 = vadd.f32 0.0, %v6564
    %v6566 = vpop.f32.mrb[0].mxu0
    %v6567 = vadd.f32 0.0, %v6566
    %v6568 = vpop.f32.mrb[0].mxu0
    %v6569 = vpop.f32.mrb[0].mxu0
    %6570 = vdwg.mxu0
    %6571 = vmatprep.subr.bf16.mxu0 %v5235
    %6572 = vmatpush1.bf16.msra.mxu0 %v5234
    %6573 = vmatprep.subr.bf16.mxu0 %v5239
    %6574 = vmatpush1.bf16.msra.mxu0 %v5238
    %6575 = vmatprep.subr.bf16.mxu0 %v5243
    %6576 = vmatpush1.bf16.msra.mxu0 %v5242
    %6577 = vmatprep.subr.bf16.mxu0 %v5247
    %6578 = vmatpush1.bf16.msra.mxu0 %v5246
    %6579 = vmatprep.subr.bf16.mxu0 %v5251
    %6580 = vmatpush1.bf16.msra.mxu0 %v5250
    %6581 = vmatprep.subr.bf16.mxu0 %v5255
    %6582 = vmatpush1.bf16.msra.mxu0 %v5254
    %6583 = vmatprep.subr.bf16.mxu0 %v5259
    %6584 = vmatpush1.bf16.msra.mxu0 %v5258
    %6585 = vmatprep.subr.bf16.mxu0 %v5263
    %6586 = vmatpush1.bf16.msra.mxu0 %v5262
    %6587 = vmatprep.subr.bf16.mxu0 0
    %6588 = vmatpush1.bf16.msra.mxu0 0
    %6589 = vmatprep.subr.bf16.mxu0 0
    %6590 = vmatpush1.bf16.msra.mxu0 0
    %6591 = vmatprep.subr.bf16.mxu0 0
    %6592 = vmatpush1.bf16.msra.mxu0 0
    %6593 = vmatprep.subr.bf16.mxu0 0
    %6594 = vmatpush1.bf16.msra.mxu0 0
    %6595 = vmatprep.subr.bf16.mxu0 0
    %6596 = vmatpush1.bf16.msra.mxu0 0
    %6597 = vmatprep.subr.bf16.mxu0 0
    %6598 = vmatpush1.bf16.msra.mxu0 0
    %6599 = vmatprep.subr.bf16.mxu0 0
    %6600 = vmatpush1.bf16.msra.mxu0 0
    %6601 = vmatprep.subr.bf16.mxu0 0
    %6602 = vmatpush1.bf16.msra.mxu0 0
    %6603 = vmatprep.mubr.bf16.mxu0 0
    %6604 = vmatmul.mubr.bf16.gmra.mrb[0].mxu0 %v6529
    %v6605 = vpop.f32.mrb[0].mxu0
    %v6606 = vadd.f32 0.0, %v6605
    %v6607 = vpop.f32.mrb[0].mxu0
    %v6608 = vadd.f32 0.0, %v6607
    %v6609 = vpop.f32.mrb[0].mxu0
    %v6610 = vpop.f32.mrb[0].mxu0
    %6611 = vdwg.mxu0
    %v6612 = vadd.f32 %v6525, %v6565
    %v6613 = vadd.f32 %v6526, %v6567
    %v6614 = vadd.f32 %v6527, %v6606
    %v6615 = vadd.f32 %v6528, %v6608
    %v6616 = vxor.u32 %v6612, 2147483648
    %v6617 = vmul.f32 %v6616, 1.442695
    %v6618 = vpow.pop %v6617
    %v6619 = vadd.f32 %v6618, 1.0
    %v6620 = vrcp.pop %v6619
    %v6621 = vmul.f32 1.0, %v6620
    %v6622 = vxor.u32 %v6613, 2147483648
    %v6623 = vmul.f32 %v6622, 1.442695
    %v6624 = vpow.pop %v6623
    %v6625 = vadd.f32 %v6624, 1.0
    %v6626 = vrcp.pop %v6625
    %v6627 = vmul.f32 1.0, %v6626
    %v6628 = vxor.u32 %v6614, 2147483648
    %v6629 = vmul.f32 %v6628, 1.442695
    %v6630 = vpow.pop %v6629
    %v6631 = vadd.f32 %v6630, 1.0
    %v6632 = vrcp.pop %v6631
    %v6633 = vmul.f32 1.0, %v6632
    %v6634 = vtanh.pop %v6615
    %v6635 = vmul.f32 %v6627, %v6522
    %v6636 = vmul.f32 %v6621, %v6634
    %v6637 = vadd.f32 %v6635, %v6636
    %v6638 = vtanh.pop %v6637
    %v6639 = vmul.f32 %v6633, %v6638
    %v6640 = vstv %s6523
    %v6641 = vstv %s6524
    %v6642 = vsel %vm5406, %v6640, %v6641
    %vm6643 = vcmp.lt.s32.totalorder %v6642, %v5412
    %v6644 = vsel %vm6643, %v6639, %v6521
    %v6645 = vsel %vm6643, %v6637, %v6522
    %s6646 = sadd.s32 %s5129, 11
    %s6647 = ssub.s32 4, %s5129
    %v6648 = vld [vmem:[%s4683] sm:$0xff]
    %v6649 = vld [vmem:[%s4683 + $0x8] sm:$0xff]
    %v6650 = vld [vmem:[%s4683 + $0x10] sm:$0xff]
    %v6651 = vld [vmem:[%s4683 + $0x18] sm:$0xff]
    %v6652 = vpack.c.bf16 %v6644, %v6644
    %6653 = vmatprep.subr.bf16.mxu0 %v5233
    %6654 = vmatpush1.bf16.msra.mxu0 %v5232
    %6655 = vmatprep.subr.bf16.mxu0 %v5237
    %6656 = vmatpush1.bf16.msra.mxu0 %v5236
    %6657 = vmatprep.subr.bf16.mxu0 %v5241
    %6658 = vmatpush1.bf16.msra.mxu0 %v5240
    %6659 = vmatprep.subr.bf16.mxu0 %v5245
    %6660 = vmatpush1.bf16.msra.mxu0 %v5244
    %6661 = vmatprep.subr.bf16.mxu0 %v5249
    %6662 = vmatpush1.bf16.msra.mxu0 %v5248
    %6663 = vmatprep.subr.bf16.mxu0 %v5253
    %6664 = vmatpush1.bf16.msra.mxu0 %v5252
    %6665 = vmatprep.subr.bf16.mxu0 %v5257
    %6666 = vmatpush1.bf16.msra.mxu0 %v5256
    %6667 = vmatprep.subr.bf16.mxu0 %v5261
    %6668 = vmatpush1.bf16.msra.mxu0 %v5260
    %6669 = vmatprep.subr.bf16.mxu0 0
    %6670 = vmatpush1.bf16.msra.mxu0 0
    %6671 = vmatprep.subr.bf16.mxu0 0
    %6672 = vmatpush1.bf16.msra.mxu0 0
    %6673 = vmatprep.subr.bf16.mxu0 0
    %6674 = vmatpush1.bf16.msra.mxu0 0
    %6675 = vmatprep.subr.bf16.mxu0 0
    %6676 = vmatpush1.bf16.msra.mxu0 0
    %6677 = vmatprep.subr.bf16.mxu0 0
    %6678 = vmatpush1.bf16.msra.mxu0 0
    %6679 = vmatprep.subr.bf16.mxu0 0
    %6680 = vmatpush1.bf16.msra.mxu0 0
    %6681 = vmatprep.subr.bf16.mxu0 0
    %6682 = vmatpush1.bf16.msra.mxu0 0
    %6683 = vmatprep.subr.bf16.mxu0 0
    %6684 = vmatpush1.bf16.msra.mxu0 0
    %6685 = vmatprep.mubr.bf16.mxu0 0
    %6686 = vmatmul.mubr.bf16.gmra.mrb[0].mxu0 %v6652
    %v6687 = vpop.f32.mrb[0].mxu0
    %v6688 = vadd.f32 0.0, %v6687
    %v6689 = vpop.f32.mrb[0].mxu0
    %v6690 = vadd.f32 0.0, %v6689
    %v6691 = vpop.f32.mrb[0].mxu0
    %v6692 = vpop.f32.mrb[0].mxu0
    %6693 = vdwg.mxu0
    %6694 = vmatprep.subr.bf16.mxu0 %v5235
    %6695 = vmatpush1.bf16.msra.mxu0 %v5234
    %6696 = vmatprep.subr.bf16.mxu0 %v5239
    %6697 = vmatpush1.bf16.msra.mxu0 %v5238
    %6698 = vmatprep.subr.bf16.mxu0 %v5243
    %6699 = vmatpush1.bf16.msra.mxu0 %v5242
    %6700 = vmatprep.subr.bf16.mxu0 %v5247
    %6701 = vmatpush1.bf16.msra.mxu0 %v5246
    %6702 = vmatprep.subr.bf16.mxu0 %v5251
    %6703 = vmatpush1.bf16.msra.mxu0 %v5250
    %6704 = vmatprep.subr.bf16.mxu0 %v5255
    %6705 = vmatpush1.bf16.msra.mxu0 %v5254
    %6706 = vmatprep.subr.bf16.mxu0 %v5259
    %6707 = vmatpush1.bf16.msra.mxu0 %v5258
    %6708 = vmatprep.subr.bf16.mxu0 %v5263
    %6709 = vmatpush1.bf16.msra.mxu0 %v5262
    %6710 = vmatprep.subr.bf16.mxu0 0
    %6711 = vmatpush1.bf16.msra.mxu0 0
    %6712 = vmatprep.subr.bf16.mxu0 0
    %6713 = vmatpush1.bf16.msra.mxu0 0
    %6714 = vmatprep.subr.bf16.mxu0 0
    %6715 = vmatpush1.bf16.msra.mxu0 0
    %6716 = vmatprep.subr.bf16.mxu0 0
    %6717 = vmatpush1.bf16.msra.mxu0 0
    %6718 = vmatprep.subr.bf16.mxu0 0
    %6719 = vmatpush1.bf16.msra.mxu0 0
    %6720 = vmatprep.subr.bf16.mxu0 0
    %6721 = vmatpush1.bf16.msra.mxu0 0
    %6722 = vmatprep.subr.bf16.mxu0 0
    %6723 = vmatpush1.bf16.msra.mxu0 0
    %6724 = vmatprep.subr.bf16.mxu0 0
    %6725 = vmatpush1.bf16.msra.mxu0 0
    %6726 = vmatprep.mubr.bf16.mxu0 0
    %6727 = vmatmul.mubr.bf16.gmra.mrb[0].mxu0 %v6652
    %v6728 = vpop.f32.mrb[0].mxu0
    %v6729 = vadd.f32 0.0, %v6728
    %v6730 = vpop.f32.mrb[0].mxu0
    %v6731 = vadd.f32 0.0, %v6730
    %v6732 = vpop.f32.mrb[0].mxu0
    %v6733 = vpop.f32.mrb[0].mxu0
    %6734 = vdwg.mxu0
    %v6735 = vadd.f32 %v6648, %v6688
    %v6736 = vadd.f32 %v6649, %v6690
    %v6737 = vadd.f32 %v6650, %v6729
    %v6738 = vadd.f32 %v6651, %v6731
    %v6739 = vxor.u32 %v6735, 2147483648
    %v6740 = vmul.f32 %v6739, 1.442695
    %v6741 = vpow.pop %v6740
    %v6742 = vadd.f32 %v6741, 1.0
    %v6743 = vrcp.pop %v6742
    %v6744 = vmul.f32 1.0, %v6743
    %v6745 = vxor.u32 %v6736, 2147483648
    %v6746 = vmul.f32 %v6745, 1.442695
    %v6747 = vpow.pop %v6746
    %v6748 = vadd.f32 %v6747, 1.0
    %v6749 = vrcp.pop %v6748
    %v6750 = vmul.f32 1.0, %v6749
    %v6751 = vxor.u32 %v6737, 2147483648
    %v6752 = vmul.f32 %v6751, 1.442695
    %v6753 = vpow.pop %v6752
    %v6754 = vadd.f32 %v6753, 1.0
    %v6755 = vrcp.pop %v6754
    %v6756 = vmul.f32 1.0, %v6755
    %v6757 = vtanh.pop %v6738
    %v6758 = vmul.f32 %v6750, %v6645
    %v6759 = vmul.f32 %v6744, %v6757
    %v6760 = vadd.f32 %v6758, %v6759
    %v6761 = vtanh.pop %v6760
    %v6762 = vmul.f32 %v6756, %v6761
    %v6763 = vstv %s6646
    %v6764 = vstv %s6647
    %v6765 = vsel %vm5406, %v6763, %v6764
    %vm6766 = vcmp.lt.s32.totalorder %v6765, %v5412
    %v6767 = vsel %vm6766, %v6762, %v6644
    %v6768 = vsel %vm6766, %v6760, %v6645
    %s6769 = sadd.s32 %s5129, 12
    %s6770 = ssub.s32 3, %s5129
    %v6771 = vld [vmem:[%s4784] sm:$0xff]
    %v6772 = vld [vmem:[%s4784 + $0x8] sm:$0xff]
    %v6773 = vld [vmem:[%s4784 + $0x10] sm:$0xff]
    %v6774 = vld [vmem:[%s4784 + $0x18] sm:$0xff]
    %v6775 = vpack.c.bf16 %v6767, %v6767
    %6776 = vmatprep.subr.bf16.mxu0 %v5233
    %6777 = vmatpush1.bf16.msra.mxu0 %v5232
    %6778 = vmatprep.subr.bf16.mxu0 %v5237
    %6779 = vmatpush1.bf16.msra.mxu0 %v5236
    %6780 = vmatprep.subr.bf16.mxu0 %v5241
    %6781 = vmatpush1.bf16.msra.mxu0 %v5240
    %6782 = vmatprep.subr.bf16.mxu0 %v5245
    %6783 = vmatpush1.bf16.msra.mxu0 %v5244
    %6784 = vmatprep.subr.bf16.mxu0 %v5249
    %6785 = vmatpush1.bf16.msra.mxu0 %v5248
    %6786 = vmatprep.subr.bf16.mxu0 %v5253
    %6787 = vmatpush1.bf16.msra.mxu0 %v5252
    %6788 = vmatprep.subr.bf16.mxu0 %v5257
    %6789 = vmatpush1.bf16.msra.mxu0 %v5256
    %6790 = vmatprep.subr.bf16.mxu0 %v5261
    %6791 = vmatpush1.bf16.msra.mxu0 %v5260
    %6792 = vmatprep.subr.bf16.mxu0 0
    %6793 = vmatpush1.bf16.msra.mxu0 0
    %6794 = vmatprep.subr.bf16.mxu0 0
    %6795 = vmatpush1.bf16.msra.mxu0 0
    %6796 = vmatprep.subr.bf16.mxu0 0
    %6797 = vmatpush1.bf16.msra.mxu0 0
    %6798 = vmatprep.subr.bf16.mxu0 0
    %6799 = vmatpush1.bf16.msra.mxu0 0
    %6800 = vmatprep.subr.bf16.mxu0 0
    %6801 = vmatpush1.bf16.msra.mxu0 0
    %6802 = vmatprep.subr.bf16.mxu0 0
    %6803 = vmatpush1.bf16.msra.mxu0 0
    %6804 = vmatprep.subr.bf16.mxu0 0
    %6805 = vmatpush1.bf16.msra.mxu0 0
    %6806 = vmatprep.subr.bf16.mxu0 0
    %6807 = vmatpush1.bf16.msra.mxu0 0
    %6808 = vmatprep.mubr.bf16.mxu0 0
    %6809 = vmatmul.mubr.bf16.gmra.mrb[0].mxu0 %v6775
    %v6810 = vpop.f32.mrb[0].mxu0
    %v6811 = vadd.f32 0.0, %v6810
    %v6812 = vpop.f32.mrb[0].mxu0
    %v6813 = vadd.f32 0.0, %v6812
    %v6814 = vpop.f32.mrb[0].mxu0
    %v6815 = vpop.f32.mrb[0].mxu0
    %6816 = vdwg.mxu0
    %6817 = vmatprep.subr.bf16.mxu0 %v5235
    %6818 = vmatpush1.bf16.msra.mxu0 %v5234
    %6819 = vmatprep.subr.bf16.mxu0 %v5239
    %6820 = vmatpush1.bf16.msra.mxu0 %v5238
    %6821 = vmatprep.subr.bf16.mxu0 %v5243
    %6822 = vmatpush1.bf16.msra.mxu0 %v5242
    %6823 = vmatprep.subr.bf16.mxu0 %v5247
    %6824 = vmatpush1.bf16.msra.mxu0 %v5246
    %6825 = vmatprep.subr.bf16.mxu0 %v5251
    %6826 = vmatpush1.bf16.msra.mxu0 %v5250
    %6827 = vmatprep.subr.bf16.mxu0 %v5255
    %6828 = vmatpush1.bf16.msra.mxu0 %v5254
    %6829 = vmatprep.subr.bf16.mxu0 %v5259
    %6830 = vmatpush1.bf16.msra.mxu0 %v5258
    %6831 = vmatprep.subr.bf16.mxu0 %v5263
    %6832 = vmatpush1.bf16.msra.mxu0 %v5262
    %6833 = vmatprep.subr.bf16.mxu0 0
    %6834 = vmatpush1.bf16.msra.mxu0 0
    %6835 = vmatprep.subr.bf16.mxu0 0
    %6836 = vmatpush1.bf16.msra.mxu0 0
    %6837 = vmatprep.subr.bf16.mxu0 0
    %6838 = vmatpush1.bf16.msra.mxu0 0
    %6839 = vmatprep.subr.bf16.mxu0 0
    %6840 = vmatpush1.bf16.msra.mxu0 0
    %6841 = vmatprep.subr.bf16.mxu0 0
    %6842 = vmatpush1.bf16.msra.mxu0 0
    %6843 = vmatprep.subr.bf16.mxu0 0
    %6844 = vmatpush1.bf16.msra.mxu0 0
    %6845 = vmatprep.subr.bf16.mxu0 0
    %6846 = vmatpush1.bf16.msra.mxu0 0
    %6847 = vmatprep.subr.bf16.mxu0 0
    %6848 = vmatpush1.bf16.msra.mxu0 0
    %6849 = vmatprep.mubr.bf16.mxu0 0
    %6850 = vmatmul.mubr.bf16.gmra.mrb[0].mxu0 %v6775
    %v6851 = vpop.f32.mrb[0].mxu0
    %v6852 = vadd.f32 0.0, %v6851
    %v6853 = vpop.f32.mrb[0].mxu0
    %v6854 = vadd.f32 0.0, %v6853
    %v6855 = vpop.f32.mrb[0].mxu0
    %v6856 = vpop.f32.mrb[0].mxu0
    %6857 = vdwg.mxu0
    %v6858 = vadd.f32 %v6771, %v6811
    %v6859 = vadd.f32 %v6772, %v6813
    %v6860 = vadd.f32 %v6773, %v6852
    %v6861 = vadd.f32 %v6774, %v6854
    %v6862 = vxor.u32 %v6858, 2147483648
    %v6863 = vmul.f32 %v6862, 1.442695
    %v6864 = vpow.pop %v6863
    %v6865 = vadd.f32 %v6864, 1.0
    %v6866 = vrcp.pop %v6865
    %v6867 = vmul.f32 1.0, %v6866
    %v6868 = vxor.u32 %v6859, 2147483648
    %v6869 = vmul.f32 %v6868, 1.442695
    %v6870 = vpow.pop %v6869
    %v6871 = vadd.f32 %v6870, 1.0
    %v6872 = vrcp.pop %v6871
    %v6873 = vmul.f32 1.0, %v6872
    %v6874 = vxor.u32 %v6860, 2147483648
    %v6875 = vmul.f32 %v6874, 1.442695
    %v6876 = vpow.pop %v6875
    %v6877 = vadd.f32 %v6876, 1.0
    %v6878 = vrcp.pop %v6877
    %v6879 = vmul.f32 1.0, %v6878
    %v6880 = vtanh.pop %v6861
    %v6881 = vmul.f32 %v6873, %v6768
    %v6882 = vmul.f32 %v6867, %v6880
    %v6883 = vadd.f32 %v6881, %v6882
    %v6884 = vtanh.pop %v6883
    %v6885 = vmul.f32 %v6879, %v6884
    %v6886 = vstv %s6769
    %v6887 = vstv %s6770
    %v6888 = vsel %vm5406, %v6886, %v6887
    %vm6889 = vcmp.lt.s32.totalorder %v6888, %v5412
    %v6890 = vsel %vm6889, %v6885, %v6767
    %v6891 = vsel %vm6889, %v6883, %v6768
    %s6892 = sadd.s32 %s5129, 13
    %s6893 = ssub.s32 2, %s5129
    %v6894 = vld [vmem:[%s4885] sm:$0xff]
    %v6895 = vld [vmem:[%s4885 + $0x8] sm:$0xff]
    %v6896 = vld [vmem:[%s4885 + $0x10] sm:$0xff]
    %v6897 = vld [vmem:[%s4885 + $0x18] sm:$0xff]
    %v6898 = vpack.c.bf16 %v6890, %v6890
    %6899 = vmatprep.subr.bf16.mxu0 %v5233
    %6900 = vmatpush1.bf16.msra.mxu0 %v5232
    %6901 = vmatprep.subr.bf16.mxu0 %v5237
    %6902 = vmatpush1.bf16.msra.mxu0 %v5236
    %6903 = vmatprep.subr.bf16.mxu0 %v5241
    %6904 = vmatpush1.bf16.msra.mxu0 %v5240
    %6905 = vmatprep.subr.bf16.mxu0 %v5245
    %6906 = vmatpush1.bf16.msra.mxu0 %v5244
    %6907 = vmatprep.subr.bf16.mxu0 %v5249
    %6908 = vmatpush1.bf16.msra.mxu0 %v5248
    %6909 = vmatprep.subr.bf16.mxu0 %v5253
    %6910 = vmatpush1.bf16.msra.mxu0 %v5252
    %6911 = vmatprep.subr.bf16.mxu0 %v5257
    %6912 = vmatpush1.bf16.msra.mxu0 %v5256
    %6913 = vmatprep.subr.bf16.mxu0 %v5261
    %6914 = vmatpush1.bf16.msra.mxu0 %v5260
    %6915 = vmatprep.subr.bf16.mxu0 0
    %6916 = vmatpush1.bf16.msra.mxu0 0
    %6917 = vmatprep.subr.bf16.mxu0 0
    %6918 = vmatpush1.bf16.msra.mxu0 0
    %6919 = vmatprep.subr.bf16.mxu0 0
    %6920 = vmatpush1.bf16.msra.mxu0 0
    %6921 = vmatprep.subr.bf16.mxu0 0
    %6922 = vmatpush1.bf16.msra.mxu0 0
    %6923 = vmatprep.subr.bf16.mxu0 0
    %6924 = vmatpush1.bf16.msra.mxu0 0
    %6925 = vmatprep.subr.bf16.mxu0 0
    %6926 = vmatpush1.bf16.msra.mxu0 0
    %6927 = vmatprep.subr.bf16.mxu0 0
    %6928 = vmatpush1.bf16.msra.mxu0 0
    %6929 = vmatprep.subr.bf16.mxu0 0
    %6930 = vmatpush1.bf16.msra.mxu0 0
    %6931 = vmatprep.mubr.bf16.mxu0 0
    %6932 = vmatmul.mubr.bf16.gmra.mrb[0].mxu0 %v6898
    %v6933 = vpop.f32.mrb[0].mxu0
    %v6934 = vadd.f32 0.0, %v6933
    %v6935 = vpop.f32.mrb[0].mxu0
    %v6936 = vadd.f32 0.0, %v6935
    %v6937 = vpop.f32.mrb[0].mxu0
    %v6938 = vpop.f32.mrb[0].mxu0
    %6939 = vdwg.mxu0
    %6940 = vmatprep.subr.bf16.mxu0 %v5235
    %6941 = vmatpush1.bf16.msra.mxu0 %v5234
    %6942 = vmatprep.subr.bf16.mxu0 %v5239
    %6943 = vmatpush1.bf16.msra.mxu0 %v5238
    %6944 = vmatprep.subr.bf16.mxu0 %v5243
    %6945 = vmatpush1.bf16.msra.mxu0 %v5242
    %6946 = vmatprep.subr.bf16.mxu0 %v5247
    %6947 = vmatpush1.bf16.msra.mxu0 %v5246
    %6948 = vmatprep.subr.bf16.mxu0 %v5251
    %6949 = vmatpush1.bf16.msra.mxu0 %v5250
    %6950 = vmatprep.subr.bf16.mxu0 %v5255
    %6951 = vmatpush1.bf16.msra.mxu0 %v5254
    %6952 = vmatprep.subr.bf16.mxu0 %v5259
    %6953 = vmatpush1.bf16.msra.mxu0 %v5258
    %6954 = vmatprep.subr.bf16.mxu0 %v5263
    %6955 = vmatpush1.bf16.msra.mxu0 %v5262
    %6956 = vmatprep.subr.bf16.mxu0 0
    %6957 = vmatpush1.bf16.msra.mxu0 0
    %6958 = vmatprep.subr.bf16.mxu0 0
    %6959 = vmatpush1.bf16.msra.mxu0 0
    %6960 = vmatprep.subr.bf16.mxu0 0
    %6961 = vmatpush1.bf16.msra.mxu0 0
    %6962 = vmatprep.subr.bf16.mxu0 0
    %6963 = vmatpush1.bf16.msra.mxu0 0
    %6964 = vmatprep.subr.bf16.mxu0 0
    %6965 = vmatpush1.bf16.msra.mxu0 0
    %6966 = vmatprep.subr.bf16.mxu0 0
    %6967 = vmatpush1.bf16.msra.mxu0 0
    %6968 = vmatprep.subr.bf16.mxu0 0
    %6969 = vmatpush1.bf16.msra.mxu0 0
    %6970 = vmatprep.subr.bf16.mxu0 0
    %6971 = vmatpush1.bf16.msra.mxu0 0
    %6972 = vmatprep.mubr.bf16.mxu0 0
    %6973 = vmatmul.mubr.bf16.gmra.mrb[0].mxu0 %v6898
    %v6974 = vpop.f32.mrb[0].mxu0
    %v6975 = vadd.f32 0.0, %v6974
    %v6976 = vpop.f32.mrb[0].mxu0
    %v6977 = vadd.f32 0.0, %v6976
    %v6978 = vpop.f32.mrb[0].mxu0
    %v6979 = vpop.f32.mrb[0].mxu0
    %6980 = vdwg.mxu0
    %v6981 = vadd.f32 %v6894, %v6934
    %v6982 = vadd.f32 %v6895, %v6936
    %v6983 = vadd.f32 %v6896, %v6975
    %v6984 = vadd.f32 %v6897, %v6977
    %v6985 = vxor.u32 %v6981, 2147483648
    %v6986 = vmul.f32 %v6985, 1.442695
    %v6987 = vpow.pop %v6986
    %v6988 = vadd.f32 %v6987, 1.0
    %v6989 = vrcp.pop %v6988
    %v6990 = vmul.f32 1.0, %v6989
    %v6991 = vxor.u32 %v6982, 2147483648
    %v6992 = vmul.f32 %v6991, 1.442695
    %v6993 = vpow.pop %v6992
    %v6994 = vadd.f32 %v6993, 1.0
    %v6995 = vrcp.pop %v6994
    %v6996 = vmul.f32 1.0, %v6995
    %v6997 = vxor.u32 %v6983, 2147483648
    %v6998 = vmul.f32 %v6997, 1.442695
    %v6999 = vpow.pop %v6998
    %v7000 = vadd.f32 %v6999, 1.0
    %v7001 = vrcp.pop %v7000
    %v7002 = vmul.f32 1.0, %v7001
    %v7003 = vtanh.pop %v6984
    %v7004 = vmul.f32 %v6996, %v6891
    %v7005 = vmul.f32 %v6990, %v7003
    %v7006 = vadd.f32 %v7004, %v7005
    %v7007 = vtanh.pop %v7006
    %v7008 = vmul.f32 %v7002, %v7007
    %v7009 = vstv %s6892
    %v7010 = vstv %s6893
    %v7011 = vsel %vm5406, %v7009, %v7010
    %vm7012 = vcmp.lt.s32.totalorder %v7011, %v5412
    %v7013 = vsel %vm7012, %v7008, %v6890
    %v7014 = vsel %vm7012, %v7006, %v6891
    %s7015 = sadd.s32 %s5129, 14
    %s7016 = ssub.s32 1, %s5129
    %v7017 = vld [vmem:[%s4986] sm:$0xff]
    %v7018 = vld [vmem:[%s4986 + $0x8] sm:$0xff]
    %v7019 = vld [vmem:[%s4986 + $0x10] sm:$0xff]
    %v7020 = vld [vmem:[%s4986 + $0x18] sm:$0xff]
    %v7021 = vpack.c.bf16 %v7013, %v7013
    %7022 = vmatprep.subr.bf16.mxu0 %v5233
    %7023 = vmatpush1.bf16.msra.mxu0 %v5232
    %7024 = vmatprep.subr.bf16.mxu0 %v5237
    %7025 = vmatpush1.bf16.msra.mxu0 %v5236
    %7026 = vmatprep.subr.bf16.mxu0 %v5241
    %7027 = vmatpush1.bf16.msra.mxu0 %v5240
    %7028 = vmatprep.subr.bf16.mxu0 %v5245
    %7029 = vmatpush1.bf16.msra.mxu0 %v5244
    %7030 = vmatprep.subr.bf16.mxu0 %v5249
    %7031 = vmatpush1.bf16.msra.mxu0 %v5248
    %7032 = vmatprep.subr.bf16.mxu0 %v5253
    %7033 = vmatpush1.bf16.msra.mxu0 %v5252
    %7034 = vmatprep.subr.bf16.mxu0 %v5257
    %7035 = vmatpush1.bf16.msra.mxu0 %v5256
    %7036 = vmatprep.subr.bf16.mxu0 %v5261
    %7037 = vmatpush1.bf16.msra.mxu0 %v5260
    %7038 = vmatprep.subr.bf16.mxu0 0
    %7039 = vmatpush1.bf16.msra.mxu0 0
    %7040 = vmatprep.subr.bf16.mxu0 0
    %7041 = vmatpush1.bf16.msra.mxu0 0
    %7042 = vmatprep.subr.bf16.mxu0 0
    %7043 = vmatpush1.bf16.msra.mxu0 0
    %7044 = vmatprep.subr.bf16.mxu0 0
    %7045 = vmatpush1.bf16.msra.mxu0 0
    %7046 = vmatprep.subr.bf16.mxu0 0
    %7047 = vmatpush1.bf16.msra.mxu0 0
    %7048 = vmatprep.subr.bf16.mxu0 0
    %7049 = vmatpush1.bf16.msra.mxu0 0
    %7050 = vmatprep.subr.bf16.mxu0 0
    %7051 = vmatpush1.bf16.msra.mxu0 0
    %7052 = vmatprep.subr.bf16.mxu0 0
    %7053 = vmatpush1.bf16.msra.mxu0 0
    %7054 = vmatprep.mubr.bf16.mxu0 0
    %7055 = vmatmul.mubr.bf16.gmra.mrb[0].mxu0 %v7021
    %v7056 = vpop.f32.mrb[0].mxu0
    %v7057 = vadd.f32 0.0, %v7056
    %v7058 = vpop.f32.mrb[0].mxu0
    %v7059 = vadd.f32 0.0, %v7058
    %v7060 = vpop.f32.mrb[0].mxu0
    %v7061 = vpop.f32.mrb[0].mxu0
    %7062 = vdwg.mxu0
    %7063 = vmatprep.subr.bf16.mxu0 %v5235
    %7064 = vmatpush1.bf16.msra.mxu0 %v5234
    %7065 = vmatprep.subr.bf16.mxu0 %v5239
    %7066 = vmatpush1.bf16.msra.mxu0 %v5238
    %7067 = vmatprep.subr.bf16.mxu0 %v5243
    %7068 = vmatpush1.bf16.msra.mxu0 %v5242
    %7069 = vmatprep.subr.bf16.mxu0 %v5247
    %7070 = vmatpush1.bf16.msra.mxu0 %v5246
    %7071 = vmatprep.subr.bf16.mxu0 %v5251
    %7072 = vmatpush1.bf16.msra.mxu0 %v5250
    %7073 = vmatprep.subr.bf16.mxu0 %v5255
    %7074 = vmatpush1.bf16.msra.mxu0 %v5254
    %7075 = vmatprep.subr.bf16.mxu0 %v5259
    %7076 = vmatpush1.bf16.msra.mxu0 %v5258
    %7077 = vmatprep.subr.bf16.mxu0 %v5263
    %7078 = vmatpush1.bf16.msra.mxu0 %v5262
    %7079 = vmatprep.subr.bf16.mxu0 0
    %7080 = vmatpush1.bf16.msra.mxu0 0
    %7081 = vmatprep.subr.bf16.mxu0 0
    %7082 = vmatpush1.bf16.msra.mxu0 0
    %7083 = vmatprep.subr.bf16.mxu0 0
    %7084 = vmatpush1.bf16.msra.mxu0 0
    %7085 = vmatprep.subr.bf16.mxu0 0
    %7086 = vmatpush1.bf16.msra.mxu0 0
    %7087 = vmatprep.subr.bf16.mxu0 0
    %7088 = vmatpush1.bf16.msra.mxu0 0
    %7089 = vmatprep.subr.bf16.mxu0 0
    %7090 = vmatpush1.bf16.msra.mxu0 0
    %7091 = vmatprep.subr.bf16.mxu0 0
    %7092 = vmatpush1.bf16.msra.mxu0 0
    %7093 = vmatprep.subr.bf16.mxu0 0
    %7094 = vmatpush1.bf16.msra.mxu0 0
    %7095 = vmatprep.mubr.bf16.mxu0 0
    %7096 = vmatmul.mubr.bf16.gmra.mrb[0].mxu0 %v7021
    %v7097 = vpop.f32.mrb[0].mxu0
    %v7098 = vadd.f32 0.0, %v7097
    %v7099 = vpop.f32.mrb[0].mxu0
    %v7100 = vadd.f32 0.0, %v7099
    %v7101 = vpop.f32.mrb[0].mxu0
    %v7102 = vpop.f32.mrb[0].mxu0
    %7103 = vdwg.mxu0
    %v7104 = vadd.f32 %v7017, %v7057
    %v7105 = vadd.f32 %v7018, %v7059
    %v7106 = vadd.f32 %v7019, %v7098
    %v7107 = vadd.f32 %v7020, %v7100
    %v7108 = vxor.u32 %v7104, 2147483648
    %v7109 = vmul.f32 %v7108, 1.442695
    %v7110 = vpow.pop %v7109
    %v7111 = vadd.f32 %v7110, 1.0
    %v7112 = vrcp.pop %v7111
    %v7113 = vmul.f32 1.0, %v7112
    %v7114 = vxor.u32 %v7105, 2147483648
    %v7115 = vmul.f32 %v7114, 1.442695
    %v7116 = vpow.pop %v7115
    %v7117 = vadd.f32 %v7116, 1.0
    %v7118 = vrcp.pop %v7117
    %v7119 = vmul.f32 1.0, %v7118
    %v7120 = vxor.u32 %v7106, 2147483648
    %v7121 = vmul.f32 %v7120, 1.442695
    %v7122 = vpow.pop %v7121
    %v7123 = vadd.f32 %v7122, 1.0
    %v7124 = vrcp.pop %v7123
    %v7125 = vmul.f32 1.0, %v7124
    %v7126 = vtanh.pop %v7107
    %v7127 = vmul.f32 %v7119, %v7014
    %v7128 = vmul.f32 %v7113, %v7126
    %v7129 = vadd.f32 %v7127, %v7128
    %v7130 = vtanh.pop %v7129
    %v7131 = vmul.f32 %v7125, %v7130
    %v7132 = vstv %s7015
    %v7133 = vstv %s7016
    %v7134 = vsel %vm5406, %v7132, %v7133
    %vm7135 = vcmp.lt.s32.totalorder %v7134, %v5412
    %v7136 = vsel %vm7135, %v7131, %v7013
    %v7137 = vsel %vm7135, %v7129, %v7014
    %s7138 = sadd.s32 %s5129, 15
    %s7139 = ssub.s32 0, %s5129
    %v7140 = vld [vmem:[%s5087] sm:$0xff]
    %v7141 = vld [vmem:[%s5087 + $0x8] sm:$0xff]
    %v7142 = vld [vmem:[%s5087 + $0x10] sm:$0xff]
    %v7143 = vld [vmem:[%s5087 + $0x18] sm:$0xff]
    %v7144 = vpack.c.bf16 %v7136, %v7136
    %7145 = vmatprep.subr.bf16.mxu0 %v5233
    %7146 = vmatpush1.bf16.msra.mxu0 %v5232
    %7147 = vmatprep.subr.bf16.mxu0 %v5237
    %7148 = vmatpush1.bf16.msra.mxu0 %v5236
    %7149 = vmatprep.subr.bf16.mxu0 %v5241
    %7150 = vmatpush1.bf16.msra.mxu0 %v5240
    %7151 = vmatprep.subr.bf16.mxu0 %v5245
    %7152 = vmatpush1.bf16.msra.mxu0 %v5244
    %7153 = vmatprep.subr.bf16.mxu0 %v5249
    %7154 = vmatpush1.bf16.msra.mxu0 %v5248
    %7155 = vmatprep.subr.bf16.mxu0 %v5253
    %7156 = vmatpush1.bf16.msra.mxu0 %v5252
    %7157 = vmatprep.subr.bf16.mxu0 %v5257
    %7158 = vmatpush1.bf16.msra.mxu0 %v5256
    %7159 = vmatprep.subr.bf16.mxu0 %v5261
    %7160 = vmatpush1.bf16.msra.mxu0 %v5260
    %7161 = vmatprep.subr.bf16.mxu0 0
    %7162 = vmatpush1.bf16.msra.mxu0 0
    %7163 = vmatprep.subr.bf16.mxu0 0
    %7164 = vmatpush1.bf16.msra.mxu0 0
    %7165 = vmatprep.subr.bf16.mxu0 0
    %7166 = vmatpush1.bf16.msra.mxu0 0
    %7167 = vmatprep.subr.bf16.mxu0 0
    %7168 = vmatpush1.bf16.msra.mxu0 0
    %7169 = vmatprep.subr.bf16.mxu0 0
    %7170 = vmatpush1.bf16.msra.mxu0 0
    %7171 = vmatprep.subr.bf16.mxu0 0
    %7172 = vmatpush1.bf16.msra.mxu0 0
    %7173 = vmatprep.subr.bf16.mxu0 0
    %7174 = vmatpush1.bf16.msra.mxu0 0
    %7175 = vmatprep.subr.bf16.mxu0 0
    %7176 = vmatpush1.bf16.msra.mxu0 0
    %7177 = vmatprep.mubr.bf16.mxu0 0
    %7178 = vmatmul.mubr.bf16.gmra.mrb[0].mxu0 %v7144
    %v7179 = vpop.f32.mrb[0].mxu0
    %v7180 = vadd.f32 0.0, %v7179
    %v7181 = vpop.f32.mrb[0].mxu0
    %v7182 = vadd.f32 0.0, %v7181
    %v7183 = vpop.f32.mrb[0].mxu0
    %v7184 = vpop.f32.mrb[0].mxu0
    %7185 = vdwg.mxu0
    %7186 = vmatprep.subr.bf16.mxu0 %v5235
    %7187 = vmatpush1.bf16.msra.mxu0 %v5234
    %7188 = vmatprep.subr.bf16.mxu0 %v5239
    %7189 = vmatpush1.bf16.msra.mxu0 %v5238
    %7190 = vmatprep.subr.bf16.mxu0 %v5243
    %7191 = vmatpush1.bf16.msra.mxu0 %v5242
    %7192 = vmatprep.subr.bf16.mxu0 %v5247
    %7193 = vmatpush1.bf16.msra.mxu0 %v5246
    %7194 = vmatprep.subr.bf16.mxu0 %v5251
    %7195 = vmatpush1.bf16.msra.mxu0 %v5250
    %7196 = vmatprep.subr.bf16.mxu0 %v5255
    %7197 = vmatpush1.bf16.msra.mxu0 %v5254
    %7198 = vmatprep.subr.bf16.mxu0 %v5259
    %7199 = vmatpush1.bf16.msra.mxu0 %v5258
    %7200 = vmatprep.subr.bf16.mxu0 %v5263
    %7201 = vmatpush1.bf16.msra.mxu0 %v5262
    %7202 = vmatprep.subr.bf16.mxu0 0
    %7203 = vmatpush1.bf16.msra.mxu0 0
    %7204 = vmatprep.subr.bf16.mxu0 0
    %7205 = vmatpush1.bf16.msra.mxu0 0
    %7206 = vmatprep.subr.bf16.mxu0 0
    %7207 = vmatpush1.bf16.msra.mxu0 0
    %7208 = vmatprep.subr.bf16.mxu0 0
    %7209 = vmatpush1.bf16.msra.mxu0 0
    %7210 = vmatprep.subr.bf16.mxu0 0
    %7211 = vmatpush1.bf16.msra.mxu0 0
    %7212 = vmatprep.subr.bf16.mxu0 0
    %7213 = vmatpush1.bf16.msra.mxu0 0
    %7214 = vmatprep.subr.bf16.mxu0 0
    %7215 = vmatpush1.bf16.msra.mxu0 0
    %7216 = vmatprep.subr.bf16.mxu0 0
    %7217 = vmatpush1.bf16.msra.mxu0 0
    %7218 = vmatprep.mubr.bf16.mxu0 0
    %7219 = vmatmul.mubr.bf16.gmra.mrb[0].mxu0 %v7144
    %v7220 = vpop.f32.mrb[0].mxu0
    %v7221 = vadd.f32 0.0, %v7220
    %v7222 = vpop.f32.mrb[0].mxu0
    %v7223 = vadd.f32 0.0, %v7222
    %v7224 = vpop.f32.mrb[0].mxu0
    %v7225 = vpop.f32.mrb[0].mxu0
    %7226 = vdwg.mxu0
    %v7227 = vadd.f32 %v7140, %v7180
    %v7228 = vadd.f32 %v7141, %v7182
    %v7229 = vadd.f32 %v7142, %v7221
    %v7230 = vadd.f32 %v7143, %v7223
    %v7231 = vxor.u32 %v7227, 2147483648
    %v7232 = vmul.f32 %v7231, 1.442695
    %v7233 = vpow.pop %v7232
    %v7234 = vadd.f32 %v7233, 1.0
    %v7235 = vrcp.pop %v7234
    %v7236 = vmul.f32 1.0, %v7235
    %v7237 = vxor.u32 %v7228, 2147483648
    %v7238 = vmul.f32 %v7237, 1.442695
    %v7239 = vpow.pop %v7238
    %v7240 = vadd.f32 %v7239, 1.0
    %v7241 = vrcp.pop %v7240
    %v7242 = vmul.f32 1.0, %v7241
    %v7243 = vxor.u32 %v7229, 2147483648
    %v7244 = vmul.f32 %v7243, 1.442695
    %v7245 = vpow.pop %v7244
    %v7246 = vadd.f32 %v7245, 1.0
    %v7247 = vrcp.pop %v7246
    %v7248 = vmul.f32 1.0, %v7247
    %v7249 = vtanh.pop %v7230
    %v7250 = vmul.f32 %v7242, %v7137
    %v7251 = vmul.f32 %v7236, %v7249
    %v7252 = vadd.f32 %v7250, %v7251
    %v7253 = vtanh.pop %v7252
    %v7254 = vmul.f32 %v7248, %v7253
    %v7255 = vstv %s7138
    %v7256 = vstv %s7139
    %v7257 = vsel %vm5406, %v7255, %v7256
    %vm7258 = vcmp.lt.s32.totalorder %v7257, %v5412
    %v7259 = vsel %vm7258, %v7254, %v7136
    %v7260 = vsel %vm7258, %v7252, %v7137
    %7261 = vst [vmem:[#allocation2] sm:$0xff] %v7259
    %7262 = vst [vmem:[#allocation3] sm:$0xff] %v7260
    // Predicated region
    $region62: #{tpu_custom_call.1} parent=1 // pred_check
      %p7263 = pneg %p110
    $region63: #{tpu_custom_call.1} parent=1 // pred_check_branch
      %7265 = sbr.rel (%p7263) target = $region65
    $region64: #{tpu_custom_call.1} parent=1 // pred_region
      %v7266 = vld [vmem:[%s7] sm:$0x1]
      %v7268 = vlaneseq
      %v7269 = vshrl.u32 %v7268, 7
      %v7270 = vsub.s32 0, %v7269
      %v7271 = vrot.slane %v7266, %v7270
      %v7273 = vmul.f32 %v7259, %v7271
      %7274 = vadd.xlane.f32.xlu0 %v7273
      %v7275 = vpop.xlane.xlu0 %7274
      %v7276 = vld [vmem:[#allocation5] sm:$0x1]
      %v7278 = vlaneseq
      %v7279 = vshrl.u32 %v7278, 7
      %v7280 = vsub.s32 0, %v7279
      %v7281 = vrot.slane %v7276, %v7280
      %v7283 = vadd.f32 %v7275, %v7281
      %vm7284 = vcmask 7168
      %7285 = vst.msk [vmem:[%s9] sm:$0xff] %vm7284, %v7283
    $region65: #{tpu_custom_call.1} parent=1 // pred_fallthru
      _
    // Predicated region
    $region66: #{tpu_custom_call.1} parent=1 // pred_check
      _
    $region67: #{tpu_custom_call.1} parent=1 // pred_check_branch
      %7287 = sbr.rel (0) target = $region69
    $region68: #{tpu_custom_call.1} parent=1 // pred_region
      _
    $region69: #{tpu_custom_call.1} parent=1 // pred_fallthru
      _
    // Predicated region
    $region70: #{tpu_custom_call.1} parent=1 // pred_check
      _
    $region71: #{tpu_custom_call.1} parent=1 // pred_check_branch
      %7289 = sbr.rel (0) target = $region73
    $region72: #{tpu_custom_call.1} parent=1 // pred_region
      _
    $region73: #{tpu_custom_call.1} parent=1 // pred_fallthru
      _
    %7290 = vsyncpa [#allocation7], 1
    %7291 = vsyncpa [#allocation9], 1
    %7292 = vsyncpa [#allocation12], 1

</llo_original>
